<compile_context>
chip_gen: v6e
topology: v6e:2x2x1
jax: 0.10.0
libtpu: 0.0.40
codegen_flags: <defaults>
</compile_context>

<pallas_src>
import jax
import jax.numpy as jnp
import numpy as np
from jax import lax
from jax.experimental import pallas as pl
from jax.experimental.pallas import tpu as pltpu

# ---- model dimensions implied by the PyTorch module ----
B = 2              # batch
HROWS = 2          # input height (I/Q rows)
W = 128            # input width
C = 50             # conv channels == GRU sequence length
KW = 6             # conv kernel width
PADL, PADR = 2, 3  # torch 'same' padding for even kernel width 6
T_SEQ = C          # GRU timesteps (50)
HID = 50           # GRU hidden size
HP = 128           # GRU hidden padded to one lane tile
G = 3 * HP         # padded gate width (r, z, n)
FEAT = HROWS * 2 * W   # 512 = GRU input size
FC1 = 256
CLASSES = 11
UNROLL = 5         # GRU recurrence unroll factor (50 % 5 == 0)

VMEM = pltpu.MemorySpace.VMEM
F32 = jnp.float32
BF16 = jnp.bfloat16


# --------------------------------------------------------------------------
# in-kernel helpers (traced inline)
# --------------------------------------------------------------------------
def _pool_same_2x2(a):
    """max_pool2d kernel (2,2) stride 1 with torch-style zero 'same' padding
    (bottom / right).  a: (B, 2, W, C) post-ReLU (non-negative) -> same shape.
    Implemented as separable shifted max; border column/row passes through,
    which equals the zero-pad semantics because inputs are >= 0."""
    ww = a.shape[2]
    # width direction
    mw = jnp.maximum(a[:, :, :ww - 1, :], a[:, :, 1:, :])
    a = jnp.concatenate([mw, a[:, :, ww - 1:, :]], axis=2)
    # height direction (H == 2): row0 = max(row0, row1); row1 unchanged
    m0 = jnp.maximum(a[:, :1, :, :], a[:, 1:, :, :])
    return jnp.concatenate([m0, a[:, 1:, :, :]], axis=1)


def _conv1x6_same_im2col(a, w_ref, b_ref):
    """Conv2d(Cin, Cout, kernel=(1,6), padding='same') as ONE im2col matmul.
    a: (B, 2, W, Cin) f32; w_ref: (KW*Cin, Cout) bf16 with row = j*Cin + c;
    b_ref: (1, Cout) f32."""
    bsz, hh, ww, cin = a.shape
    cout = w_ref.shape[-1]
    ap = jnp.concatenate(
        [jnp.zeros((bsz, hh, PADL, cin), F32), a,
         jnp.zeros((bsz, hh, PADR, cin), F32)], axis=2)          # (B, 2, W+5, Cin)
    # tap matrix: column index j*Cin + c  <->  ap[b, h, w+j, c]
    taps = jnp.concatenate([ap[:, :, j:j + ww, :] for j in range(KW)], axis=3)
    lhs = taps.reshape(bsz * hh * ww, KW * cin).astype(BF16)     # (512, 300)
    out = jnp.dot(lhs, w_ref[...], preferred_element_type=F32) + b_ref[...]
    return out.reshape(bsz, hh, ww, cout)


# --------------------------------------------------------------------------
# the single fused kernel
# --------------------------------------------------------------------------
def cgdnn_kernel(x_ref, w1_ref, b1_ref, w2_ref, b2_ref, w3_ref, b3_ref,
                 wih_ref, whh_ref, bih_ref, bhh_ref,
                 wfc1_ref, bfc1_ref, wfc2_ref, bfc2_ref,
                 out_ref, xg_ref):
    bsz = out_ref.shape[0]
    rows = bsz * HROWS

    # ---------------- conv1 (1 -> 50), kernel (1,6), 'same' ----------------
    # Build one (rows*W, 6) shifted-tap matrix and do a SINGLE matmul.
    x2d = x_ref[...]                                             # (rows, W)
    xp = jnp.concatenate(
        [jnp.zeros((rows, PADL), F32), x2d, jnp.zeros((rows, PADR), F32)], axis=1)
    xpT = xp.T                                                   # (W+5, rows)
    taps1 = []
    for r in range(rows):                                        # static, rows = 4
        col = xpT[:, r:r + 1]                                    # (W+5, 1)
        taps1.append(
            jnp.concatenate([col[j:j + W, :] for j in range(KW)], axis=1))  # (W, KW)
    lhs1 = jnp.concatenate(taps1, axis=0).astype(BF16)           # (rows*W, KW)
    a1 = jnp.dot(lhs1, w1_ref[...], preferred_element_type=F32) + b1_ref[...]
    x1 = _pool_same_2x2(jnp.maximum(a1, 0.0).reshape(bsz, HROWS, W, C))

    # ---------------- conv2 / conv3 (im2col, one matmul each) --------------
    x2 = _pool_same_2x2(jnp.maximum(_conv1x6_same_im2col(x1, w2_ref, b2_ref), 0.0))
    x3 = _pool_same_2x2(jnp.maximum(_conv1x6_same_im2col(x2, w3_ref, b3_ref), 0.0))

    # ---------- GRU input: torch cat((x1, x3), dim=3).view(B, 50, 512) ------
    xcat = jnp.concatenate([x1, x3], axis=2)                     # (B, 2, 2W, C)
    xflat = xcat.reshape(bsz, FEAT, C)                           # (B, 512, C)

    # input-side gates for ALL timesteps with ONE matmul, hoisted out of the
    # recurrence.  scratch row = b*T_SEQ + t.
    lhs_g = jnp.concatenate([xflat[b].T for b in range(bsz)], axis=0)   # (B*T, 512)
    xg_ref[...] = (jnp.dot(lhs_g.astype(BF16), wih_ref[...],
                           preferred_element_type=F32) + bih_ref[...])

    # ---------------- GRU recurrence (torch gate order r, z, n) -------------
    whh = whh_ref[...]                                           # (128, 384) bf16, hoisted
    bhh = bhh_ref[...]                                           # (1, 384) f32

    def gru_step(t, h):
        xg = jnp.concatenate(
            [xg_ref[pl.ds(b * T_SEQ + t, 1), :] for b in range(bsz)], axis=0)  # (B, 384)
        hg = jnp.dot(h.astype(BF16), whh, preferred_element_type=F32) + bhh     # (B, 384)
        # fused r/z sigmoid over one contiguous 256-lane slice
        rz = jax.nn.sigmoid(xg[:, :2 * HP] + hg[:, :2 * HP])
        r, z = rz[:, :HP], rz[:, HP:]
        n = jnp.tanh(xg[:, 2 * HP:] + r * hg[:, 2 * HP:])
        return (1.0 - z) * n + z * h

    def gru_block(i, h):                                         # 5x manual unroll
        t0 = i * UNROLL
        for s in range(UNROLL):
            h = gru_step(t0 + s, h)
        return h

    h_last = lax.fori_loop(0, T_SEQ // UNROLL, gru_block,
                           jnp.zeros((bsz, HP), F32))
    # padded hidden lanes [HID:HP] stay exactly zero: whh/bih/bhh padded
    # rows/cols are zero and the initial h is zero.

    # ---------------- fc1 -> relu -> fc2 ------------------------------------
    f1 = jnp.maximum(
        jnp.dot(h_last, wfc1_ref[...], preferred_element_type=F32) + bfc1_ref[...], 0.0)
    out_ref[...] = (
        jnp.dot(f1, wfc2_ref[...], preferred_element_type=F32) + bfc2_ref[...])


# --------------------------------------------------------------------------
# wrapper
# --------------------------------------------------------------------------
def cgdnn_forward(prep, x):
    """x: (B, 1, 2, W) NCHW, exactly as the PyTorch module expects."""
    bsz = x.shape[0]
    x2d = x.reshape(bsz * HROWS, W)          # free row-major reshape; row = b*2 + h
    kernel_in = [
        x2d, prep['w1'], prep['b1'], prep['w2'], prep['b2'], prep['w3'], prep['b3'],
        prep['wih'], prep['whh'], prep['bih'], prep['bhh'],
        prep['wfc1'], prep['bfc1'], prep['wfc2'], prep['bfc2'],
    ]
    cost = pl.CostEstimate(flops=81_000_000, transcendentals=40_000,
                           bytes_accessed=700_000)
    return pl.pallas_call(
        cgdnn_kernel,
        out_shape=jax.ShapeDtypeStruct((bsz, CLASSES), jnp.float32),
        in_specs=[pl.BlockSpec(memory_space=VMEM)] * len(kernel_in),
        out_specs=pl.BlockSpec(memory_space=VMEM),
        scratch_shapes=[pltpu.VMEM((bsz * T_SEQ, G), jnp.float32)],
        cost_estimate=cost,
    )(*kernel_in)


# --------------------------------------------------------------------------
# one-time parameter preparation (hoisted transposes / reshapes / padding /
# bf16 packing) -- outside the per-call path
# --------------------------------------------------------------------------
def prepare_params(raw):
    p = {}
    # conv1 weight: (Cout,1,1,KW) -> (KW, Cout), bf16
    p['w1'] = jnp.transpose(raw['c1_w'][:, 0, 0, :]).astype(BF16)              # (6, 50)
    p['b1'] = raw['c1_b'].reshape(1, C).astype(F32)
    # conv2/3 weights: (Cout,Cin,1,KW) -> (KW, Cin, Cout) -> (KW*Cin, Cout), bf16
    p['w2'] = jnp.transpose(raw['c2_w'][:, :, 0, :], (2, 1, 0)).reshape(
        KW * C, C).astype(BF16)                                                # (300, 50)
    p['b2'] = raw['c2_b'].reshape(1, C).astype(F32)
    p['w3'] = jnp.transpose(raw['c3_w'][:, :, 0, :], (2, 1, 0)).reshape(
        KW * C, C).astype(BF16)
    p['b3'] = raw['c3_b'].reshape(1, C).astype(F32)

    # GRU: pad hidden 50 -> 128 per gate so gate slices are lane aligned; bf16 pack.
    wih, whh = raw['gru_wih'], raw['gru_whh']        # (150,512), (150,50)
    bih, bhh = raw['gru_bih'], raw['gru_bhh']        # (150,), (150,)
    p['wih'] = jnp.concatenate(
        [jnp.pad(wih[g * HID:(g + 1) * HID, :].T, ((0, 0), (0, HP - HID)))
         for g in range(3)], axis=1).astype(BF16)                              # (512,384)
    p['whh'] = jnp.concatenate(
        [jnp.pad(whh[g * HID:(g + 1) * HID, :].T, ((0, HP - HID), (0, HP - HID)))
         for g in range(3)], axis=1).astype(BF16)                              # (128,384)
    p['bih'] = jnp.concatenate(
        [jnp.pad(bih[g * HID:(g + 1) * HID], (0, HP - HID)) for g in range(3)]
    ).reshape(1, G).astype(F32)
    p['bhh'] = jnp.concatenate(
        [jnp.pad(bhh[g * HID:(g + 1) * HID], (0, HP - HID)) for g in range(3)]
    ).reshape(1, G).astype(F32)

    p['wfc1'] = jnp.pad(raw['fc1_w'].T, ((0, HP - HID), (0, 0))).astype(F32)   # (128,256)
    p['bfc1'] = raw['fc1_b'].reshape(1, FC1).astype(F32)
    p['wfc2'] = raw['fc2_w'].T.astype(F32)                                     # (256,11)
    p['bfc2'] = raw['fc2_b'].reshape(1, CLASSES).astype(F32)
    return p


def init_raw_params(key):
    ks = jax.random.split(key, 14)

    def u(k, shape, fan_in):
        b = 1.0 / np.sqrt(fan_in)
        return jax.random.uniform(k, shape, jnp.float32, -b, b)

    raw = {}
    raw['c1_w'] = u(ks[0], (C, 1, 1, KW), 1 * KW)
    raw['c1_b'] = u(ks[1], (C,), 1 * KW)
    raw['c2_w'] = u(ks[2], (C, C, 1, KW), C * KW)
    raw['c2_b'] = u(ks[3], (C,), C * KW)
    raw['c3_w'] = u(ks[4], (C, C, 1, KW), C * KW)
    raw['c3_b'] = u(ks[5], (C,), C * KW)
    raw['gru_wih'] = u(ks[6], (3 * HID, FEAT), HID)
    raw['gru_whh'] = u(ks[7], (3 * HID, HID), HID)
    raw['gru_bih'] = u(ks[8], (3 * HID,), HID)
    raw['gru_bhh'] = u(ks[9], (3 * HID,), HID)
    raw['fc1_w'] = u(ks[10], (FC1, HID), HID)
    raw['fc1_b'] = u(ks[11], (FC1,), HID)
    raw['fc2_w'] = u(ks[12], (CLASSES, FC1), FC1)
    raw['fc2_b'] = u(ks[13], (CLASSES,), FC1)
    return raw


# --------------------------------------------------------------------------
# pure-JAX reference (torch layout & math) for correctness checking
# --------------------------------------------------------------------------
def cgdnn_reference(raw, x):
    def conv1x6_same(a, w, b):       # a (B,Cin,2,W) NCHW, w (Cout,Cin,1,6)
        wd = a.shape[-1]
        a_pad = jnp.pad(a, ((0, 0), (0, 0), (0, 0), (PADL, PADR)))
        out = jnp.broadcast_to(b[None, :, None, None],
                               (a.shape[0], w.shape[0], a.shape[2], wd)).astype(jnp.float32)
        for j in range(KW):
            out = out + jnp.einsum('bchw,oc->bohw', a_pad[:, :, :, j:j + wd], w[:, :, 0, j])
        return out

    def pool_same(a):                # zero-padded (bottom/right) 2x2, stride 1
        a_pad = jnp.pad(a, ((0, 0), (0, 0), (0, 1), (0, 1)))
        return jnp.maximum(
            jnp.maximum(a_pad[:, :, :-1, :-1], a_pad[:, :, :-1, 1:]),
            jnp.maximum(a_pad[:, :, 1:, :-1], a_pad[:, :, 1:, 1:]))

    x1 = pool_same(jax.nn.relu(conv1x6_same(x, raw['c1_w'], raw['c1_b'])))
    x2 = pool_same(jax.nn.relu(conv1x6_same(x1, raw['c2_w'], raw['c2_b'])))
    x3 = pool_same(jax.nn.relu(conv1x6_same(x2, raw['c3_w'], raw['c3_b'])))
    x11 = jnp.concatenate([x1, x3], axis=3)                  # (B, 50, 2, 256)
    seq = x11.reshape(x.shape[0], C, -1)                     # (B, 50, 512)

    wih, whh = raw['gru_wih'], raw['gru_whh']
    bih, bhh = raw['gru_bih'], raw['gru_bhh']

    def step(h, xt):
        xg = xt @ wih.T + bih
        hg = h @ whh.T + bhh
        xr, xz, xn = jnp.split(xg, 3, axis=-1)
        hr, hz, hn = jnp.split(hg, 3, axis=-1)
        r = jax.nn.sigmoid(xr + hr)
        z = jax.nn.sigmoid(xz + hz)
        n = jnp.tanh(xn + r * hn)
        return (1.0 - z) * n + z * h, None

    h, _ = lax.scan(step, jnp.zeros((x.shape[0], HID), jnp.float32),
                    jnp.transpose(seq, (1, 0, 2)))
    f1 = jax.nn.relu(h @ raw['fc1_w'].T + raw['fc1_b'])
    return f1 @ raw['fc2_w'].T + raw['fc2_b']


if __name__ == "__main__":
    key = jax.random.PRNGKey(0)
    kp, kx = jax.random.split(key)
    raw = init_raw_params(kp)
    prep = prepare_params(raw)                      # one-time weight prep (bf16 pack)
    x = jax.random.normal(kx, (B, 1, HROWS, W), jnp.float32)

    fwd = jax.jit(cgdnn_forward)
    out = jax.block_until_ready(fwd(prep, x))
    assert out.shape == (B, CLASSES)

    ref = jax.block_until_ready(jax.jit(cgdnn_reference)(raw, x))
    # Tolerance covers the explicit bf16 MXU passes in the kernel vs. the XLA
    # reference's default matmul precision, plus accumulation-order differences
    # through the 50-step recurrence.
    np.testing.assert_allclose(np.asarray(out), np.asarray(ref), rtol=2e-2, atol=2e-2)
    print("KERNEL_OK")
</pallas_src>

<mosaic_0001>
module attributes {stable_mosaic.version = 11 : i64} {
  func.func @cgdnn_kernel(%arg0: memref<4x128xf32, #tpu.memory_space<vmem>>, %arg1: memref<6x50xbf16, #tpu.memory_space<vmem>>, %arg2: memref<1x50xf32, #tpu.memory_space<vmem>>, %arg3: memref<300x50xbf16, #tpu.memory_space<vmem>>, %arg4: memref<1x50xf32, #tpu.memory_space<vmem>>, %arg5: memref<300x50xbf16, #tpu.memory_space<vmem>>, %arg6: memref<1x50xf32, #tpu.memory_space<vmem>>, %arg7: memref<512x384xbf16, #tpu.memory_space<vmem>>, %arg8: memref<128x384xbf16, #tpu.memory_space<vmem>>, %arg9: memref<1x384xf32, #tpu.memory_space<vmem>>, %arg10: memref<1x384xf32, #tpu.memory_space<vmem>>, %arg11: memref<128x256xf32, #tpu.memory_space<vmem>>, %arg12: memref<1x256xf32, #tpu.memory_space<vmem>>, %arg13: memref<256x11xf32, #tpu.memory_space<vmem>>, %arg14: memref<1x11xf32, #tpu.memory_space<vmem>>, %arg15: memref<2x11xf32, #tpu.memory_space<vmem>>, %arg16: memref<100x384xf32, #tpu.memory_space<vmem>>) attributes {dimension_semantics = [], scalar_prefetch = 0 : i64, scratch_operands = 1 : i64, tpu.core_type = #tpu.core_type<tc>} {
    %c0 = arith.constant 0 : index
    %c0_0 = arith.constant 0 : index
    %0 = vector.load %arg0[%c0, %c0_0] : memref<4x128xf32, #tpu.memory_space<vmem>>, vector<4x128xf32>
    %cst = arith.constant 0.000000e+00 : f32
    %1 = vector.broadcast %cst : f32 to vector<4x2xf32>
    %cst_1 = arith.constant 0.000000e+00 : f32
    %2 = vector.broadcast %cst_1 : f32 to vector<4x3xf32>
    %3 = tpu.concatenate %1, %0, %2 in 1 : vector<4x2xf32>, vector<4x128xf32>, vector<4x3xf32> -> vector<4x133xf32>
    %4 = tpu.transpose %3, [1, 0] : vector<4x133xf32> -> vector<133x4xf32>
    %5 = vector.extract_strided_slice %4 {offsets = [0, 0], sizes = [133, 1], strides = [1, 1]} : vector<133x4xf32> to vector<133x1xf32>
    %6 = vector.extract_strided_slice %5 {offsets = [0, 0], sizes = [128, 1], strides = [1, 1]} : vector<133x1xf32> to vector<128x1xf32>
    %7 = vector.extract_strided_slice %5 {offsets = [1, 0], sizes = [128, 1], strides = [1, 1]} : vector<133x1xf32> to vector<128x1xf32>
    %8 = vector.extract_strided_slice %5 {offsets = [2, 0], sizes = [128, 1], strides = [1, 1]} : vector<133x1xf32> to vector<128x1xf32>
    %9 = vector.extract_strided_slice %5 {offsets = [3, 0], sizes = [128, 1], strides = [1, 1]} : vector<133x1xf32> to vector<128x1xf32>
    %10 = vector.extract_strided_slice %5 {offsets = [4, 0], sizes = [128, 1], strides = [1, 1]} : vector<133x1xf32> to vector<128x1xf32>
    %11 = vector.extract_strided_slice %5 {offsets = [5, 0], sizes = [128, 1], strides = [1, 1]} : vector<133x1xf32> to vector<128x1xf32>
    %12 = tpu.concatenate %6, %7, %8, %9, %10, %11 in 1 : vector<128x1xf32>, vector<128x1xf32>, vector<128x1xf32>, vector<128x1xf32>, vector<128x1xf32>, vector<128x1xf32> -> vector<128x6xf32>
    %13 = vector.extract_strided_slice %4 {offsets = [0, 1], sizes = [133, 1], strides = [1, 1]} : vector<133x4xf32> to vector<133x1xf32>
    %14 = vector.extract_strided_slice %13 {offsets = [0, 0], sizes = [128, 1], strides = [1, 1]} : vector<133x1xf32> to vector<128x1xf32>
    %15 = vector.extract_strided_slice %13 {offsets = [1, 0], sizes = [128, 1], strides = [1, 1]} : vector<133x1xf32> to vector<128x1xf32>
    %16 = vector.extract_strided_slice %13 {offsets = [2, 0], sizes = [128, 1], strides = [1, 1]} : vector<133x1xf32> to vector<128x1xf32>
    %17 = vector.extract_strided_slice %13 {offsets = [3, 0], sizes = [128, 1], strides = [1, 1]} : vector<133x1xf32> to vector<128x1xf32>
    %18 = vector.extract_strided_slice %13 {offsets = [4, 0], sizes = [128, 1], strides = [1, 1]} : vector<133x1xf32> to vector<128x1xf32>
    %19 = vector.extract_strided_slice %13 {offsets = [5, 0], sizes = [128, 1], strides = [1, 1]} : vector<133x1xf32> to vector<128x1xf32>
    %20 = tpu.concatenate %14, %15, %16, %17, %18, %19 in 1 : vector<128x1xf32>, vector<128x1xf32>, vector<128x1xf32>, vector<128x1xf32>, vector<128x1xf32>, vector<128x1xf32> -> vector<128x6xf32>
    %21 = vector.extract_strided_slice %4 {offsets = [0, 2], sizes = [133, 1], strides = [1, 1]} : vector<133x4xf32> to vector<133x1xf32>
    %22 = vector.extract_strided_slice %21 {offsets = [0, 0], sizes = [128, 1], strides = [1, 1]} : vector<133x1xf32> to vector<128x1xf32>
    %23 = vector.extract_strided_slice %21 {offsets = [1, 0], sizes = [128, 1], strides = [1, 1]} : vector<133x1xf32> to vector<128x1xf32>
    %24 = vector.extract_strided_slice %21 {offsets = [2, 0], sizes = [128, 1], strides = [1, 1]} : vector<133x1xf32> to vector<128x1xf32>
    %25 = vector.extract_strided_slice %21 {offsets = [3, 0], sizes = [128, 1], strides = [1, 1]} : vector<133x1xf32> to vector<128x1xf32>
    %26 = vector.extract_strided_slice %21 {offsets = [4, 0], sizes = [128, 1], strides = [1, 1]} : vector<133x1xf32> to vector<128x1xf32>
    %27 = vector.extract_strided_slice %21 {offsets = [5, 0], sizes = [128, 1], strides = [1, 1]} : vector<133x1xf32> to vector<128x1xf32>
    %28 = tpu.concatenate %22, %23, %24, %25, %26, %27 in 1 : vector<128x1xf32>, vector<128x1xf32>, vector<128x1xf32>, vector<128x1xf32>, vector<128x1xf32>, vector<128x1xf32> -> vector<128x6xf32>
    %29 = vector.extract_strided_slice %4 {offsets = [0, 3], sizes = [133, 1], strides = [1, 1]} : vector<133x4xf32> to vector<133x1xf32>
    %30 = vector.extract_strided_slice %29 {offsets = [0, 0], sizes = [128, 1], strides = [1, 1]} : vector<133x1xf32> to vector<128x1xf32>
    %31 = vector.extract_strided_slice %29 {offsets = [1, 0], sizes = [128, 1], strides = [1, 1]} : vector<133x1xf32> to vector<128x1xf32>
    %32 = vector.extract_strided_slice %29 {offsets = [2, 0], sizes = [128, 1], strides = [1, 1]} : vector<133x1xf32> to vector<128x1xf32>
    %33 = vector.extract_strided_slice %29 {offsets = [3, 0], sizes = [128, 1], strides = [1, 1]} : vector<133x1xf32> to vector<128x1xf32>
    %34 = vector.extract_strided_slice %29 {offsets = [4, 0], sizes = [128, 1], strides = [1, 1]} : vector<133x1xf32> to vector<128x1xf32>
    %35 = vector.extract_strided_slice %29 {offsets = [5, 0], sizes = [128, 1], strides = [1, 1]} : vector<133x1xf32> to vector<128x1xf32>
    %36 = tpu.concatenate %30, %31, %32, %33, %34, %35 in 1 : vector<128x1xf32>, vector<128x1xf32>, vector<128x1xf32>, vector<128x1xf32>, vector<128x1xf32>, vector<128x1xf32> -> vector<128x6xf32>
    %37 = tpu.concatenate %12, %20, %28, %36 in 0 : vector<128x6xf32>, vector<128x6xf32>, vector<128x6xf32>, vector<128x6xf32> -> vector<512x6xf32>
    %38 = arith.truncf %37 : vector<512x6xf32> to vector<512x6xbf16>
    %c0_2 = arith.constant 0 : index
    %c0_3 = arith.constant 0 : index
    %39 = vector.load %arg1[%c0_2, %c0_3] : memref<6x50xbf16, #tpu.memory_space<vmem>>, vector<6x50xbf16>
    %cst_4 = arith.constant dense<0.000000e+00> : vector<512x50xf32>
    %40 = tpu.matmul %38, %39, %cst_4 {dimension_numbers = #tpu.dot_dimension_numbers<[1], [0], [0], [1], [0, 0, 1, 1], [], []>} : vector<512x6xbf16>, vector<6x50xbf16>, vector<512x50xf32> -> vector<512x50xf32>
    %c0_5 = arith.constant 0 : index
    %c0_6 = arith.constant 0 : index
    %41 = vector.load %arg2[%c0_5, %c0_6] : memref<1x50xf32, #tpu.memory_space<vmem>>, vector<1x50xf32>
    %42 = vector.broadcast %41 : vector<1x50xf32> to vector<512x50xf32>
    %43 = arith.addf %40, %42 : vector<512x50xf32>
    %cst_7 = arith.constant 0.000000e+00 : f32
    %44 = vector.broadcast %cst_7 : f32 to vector<512x50xf32>
    %45 = arith.maximumf %43, %44 : vector<512x50xf32>
    %46 = vector.shape_cast %45 : vector<512x50xf32> to vector<2x2x128x50xf32>
    %47 = vector.extract_strided_slice %46 {offsets = [0, 0, 0, 0], sizes = [2, 2, 127, 50], strides = [1, 1, 1, 1]} : vector<2x2x128x50xf32> to vector<2x2x127x50xf32>
    %48 = vector.extract_strided_slice %46 {offsets = [0, 0, 1, 0], sizes = [2, 2, 127, 50], strides = [1, 1, 1, 1]} : vector<2x2x128x50xf32> to vector<2x2x127x50xf32>
    %49 = arith.maximumf %47, %48 : vector<2x2x127x50xf32>
    %50 = vector.extract_strided_slice %46 {offsets = [0, 0, 127, 0], sizes = [2, 2, 1, 50], strides = [1, 1, 1, 1]} : vector<2x2x128x50xf32> to vector<2x2x1x50xf32>
    %51 = tpu.concatenate %49, %50 in 2 : vector<2x2x127x50xf32>, vector<2x2x1x50xf32> -> vector<2x2x128x50xf32>
    %52 = vector.extract_strided_slice %51 {offsets = [0, 0, 0, 0], sizes = [2, 1, 128, 50], strides = [1, 1, 1, 1]} : vector<2x2x128x50xf32> to vector<2x1x128x50xf32>
    %53 = vector.extract_strided_slice %51 {offsets = [0, 1, 0, 0], sizes = [2, 1, 128, 50], strides = [1, 1, 1, 1]} : vector<2x2x128x50xf32> to vector<2x1x128x50xf32>
    %54 = arith.maximumf %52, %53 : vector<2x1x128x50xf32>
    %55 = vector.extract_strided_slice %51 {offsets = [0, 1, 0, 0], sizes = [2, 1, 128, 50], strides = [1, 1, 1, 1]} : vector<2x2x128x50xf32> to vector<2x1x128x50xf32>
    %56 = tpu.concatenate %54, %55 in 1 : vector<2x1x128x50xf32>, vector<2x1x128x50xf32> -> vector<2x2x128x50xf32>
    %cst_8 = arith.constant 0.000000e+00 : f32
    %57 = vector.broadcast %cst_8 : f32 to vector<2x2x2x50xf32>
    %cst_9 = arith.constant 0.000000e+00 : f32
    %58 = vector.broadcast %cst_9 : f32 to vector<2x2x3x50xf32>
    %59 = tpu.concatenate %57, %56, %58 in 2 : vector<2x2x2x50xf32>, vector<2x2x128x50xf32>, vector<2x2x3x50xf32> -> vector<2x2x133x50xf32>
    %60 = vector.extract_strided_slice %59 {offsets = [0, 0, 0, 0], sizes = [2, 2, 128, 50], strides = [1, 1, 1, 1]} : vector<2x2x133x50xf32> to vector<2x2x128x50xf32>
    %61 = vector.extract_strided_slice %59 {offsets = [0, 0, 1, 0], sizes = [2, 2, 128, 50], strides = [1, 1, 1, 1]} : vector<2x2x133x50xf32> to vector<2x2x128x50xf32>
    %62 = vector.extract_strided_slice %59 {offsets = [0, 0, 2, 0], sizes = [2, 2, 128, 50], strides = [1, 1, 1, 1]} : vector<2x2x133x50xf32> to vector<2x2x128x50xf32>
    %63 = vector.extract_strided_slice %59 {offsets = [0, 0, 3, 0], sizes = [2, 2, 128, 50], strides = [1, 1, 1, 1]} : vector<2x2x133x50xf32> to vector<2x2x128x50xf32>
    %64 = vector.extract_strided_slice %59 {offsets = [0, 0, 4, 0], sizes = [2, 2, 128, 50], strides = [1, 1, 1, 1]} : vector<2x2x133x50xf32> to vector<2x2x128x50xf32>
    %65 = vector.extract_strided_slice %59 {offsets = [0, 0, 5, 0], sizes = [2, 2, 128, 50], strides = [1, 1, 1, 1]} : vector<2x2x133x50xf32> to vector<2x2x128x50xf32>
    %66 = tpu.concatenate %60, %61, %62, %63, %64, %65 in 3 : vector<2x2x128x50xf32>, vector<2x2x128x50xf32>, vector<2x2x128x50xf32>, vector<2x2x128x50xf32>, vector<2x2x128x50xf32>, vector<2x2x128x50xf32> -> vector<2x2x128x300xf32>
    %67 = vector.shape_cast %66 : vector<2x2x128x300xf32> to vector<512x300xf32>
    %68 = arith.truncf %67 : vector<512x300xf32> to vector<512x300xbf16>
    %c0_10 = arith.constant 0 : index
    %c0_11 = arith.constant 0 : index
    %69 = vector.load %arg3[%c0_10, %c0_11] : memref<300x50xbf16, #tpu.memory_space<vmem>>, vector<300x50xbf16>
    %cst_12 = arith.constant dense<0.000000e+00> : vector<512x50xf32>
    %70 = tpu.matmul %68, %69, %cst_12 {dimension_numbers = #tpu.dot_dimension_numbers<[1], [0], [0], [1], [0, 0, 1, 1], [], []>} : vector<512x300xbf16>, vector<300x50xbf16>, vector<512x50xf32> -> vector<512x50xf32>
    %c0_13 = arith.constant 0 : index
    %c0_14 = arith.constant 0 : index
    %71 = vector.load %arg4[%c0_13, %c0_14] : memref<1x50xf32, #tpu.memory_space<vmem>>, vector<1x50xf32>
    %72 = vector.broadcast %71 : vector<1x50xf32> to vector<512x50xf32>
    %73 = arith.addf %70, %72 : vector<512x50xf32>
    %74 = vector.shape_cast %73 : vector<512x50xf32> to vector<2x2x128x50xf32>
    %cst_15 = arith.constant 0.000000e+00 : f32
    %75 = vector.broadcast %cst_15 : f32 to vector<2x2x128x50xf32>
    %76 = arith.maximumf %74, %75 : vector<2x2x128x50xf32>
    %77 = vector.extract_strided_slice %76 {offsets = [0, 0, 0, 0], sizes = [2, 2, 127, 50], strides = [1, 1, 1, 1]} : vector<2x2x128x50xf32> to vector<2x2x127x50xf32>
    %78 = vector.extract_strided_slice %76 {offsets = [0, 0, 1, 0], sizes = [2, 2, 127, 50], strides = [1, 1, 1, 1]} : vector<2x2x128x50xf32> to vector<2x2x127x50xf32>
    %79 = arith.maximumf %77, %78 : vector<2x2x127x50xf32>
    %80 = vector.extract_strided_slice %76 {offsets = [0, 0, 127, 0], sizes = [2, 2, 1, 50], strides = [1, 1, 1, 1]} : vector<2x2x128x50xf32> to vector<2x2x1x50xf32>
    %81 = tpu.concatenate %79, %80 in 2 : vector<2x2x127x50xf32>, vector<2x2x1x50xf32> -> vector<2x2x128x50xf32>
    %82 = vector.extract_strided_slice %81 {offsets = [0, 0, 0, 0], sizes = [2, 1, 128, 50], strides = [1, 1, 1, 1]} : vector<2x2x128x50xf32> to vector<2x1x128x50xf32>
    %83 = vector.extract_strided_slice %81 {offsets = [0, 1, 0, 0], sizes = [2, 1, 128, 50], strides = [1, 1, 1, 1]} : vector<2x2x128x50xf32> to vector<2x1x128x50xf32>
    %84 = arith.maximumf %82, %83 : vector<2x1x128x50xf32>
    %85 = vector.extract_strided_slice %81 {offsets = [0, 1, 0, 0], sizes = [2, 1, 128, 50], strides = [1, 1, 1, 1]} : vector<2x2x128x50xf32> to vector<2x1x128x50xf32>
    %86 = tpu.concatenate %84, %85 in 1 : vector<2x1x128x50xf32>, vector<2x1x128x50xf32> -> vector<2x2x128x50xf32>
    %cst_16 = arith.constant 0.000000e+00 : f32
    %87 = vector.broadcast %cst_16 : f32 to vector<2x2x2x50xf32>
    %cst_17 = arith.constant 0.000000e+00 : f32
    %88 = vector.broadcast %cst_17 : f32 to vector<2x2x3x50xf32>
    %89 = tpu.concatenate %87, %86, %88 in 2 : vector<2x2x2x50xf32>, vector<2x2x128x50xf32>, vector<2x2x3x50xf32> -> vector<2x2x133x50xf32>
    %90 = vector.extract_strided_slice %89 {offsets = [0, 0, 0, 0], sizes = [2, 2, 128, 50], strides = [1, 1, 1, 1]} : vector<2x2x133x50xf32> to vector<2x2x128x50xf32>
    %91 = vector.extract_strided_slice %89 {offsets = [0, 0, 1, 0], sizes = [2, 2, 128, 50], strides = [1, 1, 1, 1]} : vector<2x2x133x50xf32> to vector<2x2x128x50xf32>
    %92 = vector.extract_strided_slice %89 {offsets = [0, 0, 2, 0], sizes = [2, 2, 128, 50], strides = [1, 1, 1, 1]} : vector<2x2x133x50xf32> to vector<2x2x128x50xf32>
    %93 = vector.extract_strided_slice %89 {offsets = [0, 0, 3, 0], sizes = [2, 2, 128, 50], strides = [1, 1, 1, 1]} : vector<2x2x133x50xf32> to vector<2x2x128x50xf32>
    %94 = vector.extract_strided_slice %89 {offsets = [0, 0, 4, 0], sizes = [2, 2, 128, 50], strides = [1, 1, 1, 1]} : vector<2x2x133x50xf32> to vector<2x2x128x50xf32>
    %95 = vector.extract_strided_slice %89 {offsets = [0, 0, 5, 0], sizes = [2, 2, 128, 50], strides = [1, 1, 1, 1]} : vector<2x2x133x50xf32> to vector<2x2x128x50xf32>
    %96 = tpu.concatenate %90, %91, %92, %93, %94, %95 in 3 : vector<2x2x128x50xf32>, vector<2x2x128x50xf32>, vector<2x2x128x50xf32>, vector<2x2x128x50xf32>, vector<2x2x128x50xf32>, vector<2x2x128x50xf32> -> vector<2x2x128x300xf32>
    %97 = vector.shape_cast %96 : vector<2x2x128x300xf32> to vector<512x300xf32>
    %98 = arith.truncf %97 : vector<512x300xf32> to vector<512x300xbf16>
    %c0_18 = arith.constant 0 : index
    %c0_19 = arith.constant 0 : index
    %99 = vector.load %arg5[%c0_18, %c0_19] : memref<300x50xbf16, #tpu.memory_space<vmem>>, vector<300x50xbf16>
    %cst_20 = arith.constant dense<0.000000e+00> : vector<512x50xf32>
    %100 = tpu.matmul %98, %99, %cst_20 {dimension_numbers = #tpu.dot_dimension_numbers<[1], [0], [0], [1], [0, 0, 1, 1], [], []>} : vector<512x300xbf16>, vector<300x50xbf16>, vector<512x50xf32> -> vector<512x50xf32>
    %c0_21 = arith.constant 0 : index
    %c0_22 = arith.constant 0 : index
    %101 = vector.load %arg6[%c0_21, %c0_22] : memref<1x50xf32, #tpu.memory_space<vmem>>, vector<1x50xf32>
    %102 = vector.broadcast %101 : vector<1x50xf32> to vector<512x50xf32>
    %103 = arith.addf %100, %102 : vector<512x50xf32>
    %104 = vector.shape_cast %103 : vector<512x50xf32> to vector<2x2x128x50xf32>
    %cst_23 = arith.constant 0.000000e+00 : f32
    %105 = vector.broadcast %cst_23 : f32 to vector<2x2x128x50xf32>
    %106 = arith.maximumf %104, %105 : vector<2x2x128x50xf32>
    %107 = vector.extract_strided_slice %106 {offsets = [0, 0, 0, 0], sizes = [2, 2, 127, 50], strides = [1, 1, 1, 1]} : vector<2x2x128x50xf32> to vector<2x2x127x50xf32>
    %108 = vector.extract_strided_slice %106 {offsets = [0, 0, 1, 0], sizes = [2, 2, 127, 50], strides = [1, 1, 1, 1]} : vector<2x2x128x50xf32> to vector<2x2x127x50xf32>
    %109 = arith.maximumf %107, %108 : vector<2x2x127x50xf32>
    %110 = vector.extract_strided_slice %106 {offsets = [0, 0, 127, 0], sizes = [2, 2, 1, 50], strides = [1, 1, 1, 1]} : vector<2x2x128x50xf32> to vector<2x2x1x50xf32>
    %111 = tpu.concatenate %109, %110 in 2 : vector<2x2x127x50xf32>, vector<2x2x1x50xf32> -> vector<2x2x128x50xf32>
    %112 = vector.extract_strided_slice %111 {offsets = [0, 0, 0, 0], sizes = [2, 1, 128, 50], strides = [1, 1, 1, 1]} : vector<2x2x128x50xf32> to vector<2x1x128x50xf32>
    %113 = vector.extract_strided_slice %111 {offsets = [0, 1, 0, 0], sizes = [2, 1, 128, 50], strides = [1, 1, 1, 1]} : vector<2x2x128x50xf32> to vector<2x1x128x50xf32>
    %114 = arith.maximumf %112, %113 : vector<2x1x128x50xf32>
    %115 = vector.extract_strided_slice %111 {offsets = [0, 1, 0, 0], sizes = [2, 1, 128, 50], strides = [1, 1, 1, 1]} : vector<2x2x128x50xf32> to vector<2x1x128x50xf32>
    %116 = tpu.concatenate %114, %115 in 1 : vector<2x1x128x50xf32>, vector<2x1x128x50xf32> -> vector<2x2x128x50xf32>
    %117 = tpu.concatenate %56, %116 in 2 : vector<2x2x128x50xf32>, vector<2x2x128x50xf32> -> vector<2x2x256x50xf32>
    %118 = vector.shape_cast %117 : vector<2x2x256x50xf32> to vector<2x512x50xf32>
    %119 = vector.extract_strided_slice %118 {offsets = [0, 0, 0], sizes = [1, 512, 50], strides = [1, 1, 1]} : vector<2x512x50xf32> to vector<1x512x50xf32>
    %120 = vector.shape_cast %119 : vector<1x512x50xf32> to vector<512x50xf32>
    %121 = tpu.transpose %120, [1, 0] : vector<512x50xf32> -> vector<50x512xf32>
    %122 = vector.extract_strided_slice %118 {offsets = [1, 0, 0], sizes = [1, 512, 50], strides = [1, 1, 1]} : vector<2x512x50xf32> to vector<1x512x50xf32>
    %123 = vector.shape_cast %122 : vector<1x512x50xf32> to vector<512x50xf32>
    %124 = tpu.transpose %123, [1, 0] : vector<512x50xf32> -> vector<50x512xf32>
    %125 = tpu.concatenate %121, %124 in 0 : vector<50x512xf32>, vector<50x512xf32> -> vector<100x512xf32>
    %126 = arith.truncf %125 : vector<100x512xf32> to vector<100x512xbf16>
    %c0_24 = arith.constant 0 : index
    %c0_25 = arith.constant 0 : index
    %127 = vector.load %arg7[%c0_24, %c0_25] : memref<512x384xbf16, #tpu.memory_space<vmem>>, vector<512x384xbf16>
    %cst_26 = arith.constant dense<0.000000e+00> : vector<100x384xf32>
    %128 = tpu.matmul %126, %127, %cst_26 {dimension_numbers = #tpu.dot_dimension_numbers<[1], [0], [0], [1], [0, 0, 1, 1], [], []>} : vector<100x512xbf16>, vector<512x384xbf16>, vector<100x384xf32> -> vector<100x384xf32>
    %c0_27 = arith.constant 0 : index
    %c0_28 = arith.constant 0 : index
    %129 = vector.load %arg9[%c0_27, %c0_28] : memref<1x384xf32, #tpu.memory_space<vmem>>, vector<1x384xf32>
    %130 = vector.broadcast %129 : vector<1x384xf32> to vector<100x384xf32>
    %131 = arith.addf %128, %130 : vector<100x384xf32>
    %c0_29 = arith.constant 0 : index
    %c0_30 = arith.constant 0 : index
    %132 = vector.load %arg16[%c0_29, %c0_30] : memref<100x384xf32, #tpu.memory_space<vmem>>, vector<100x384xf32>
    tpu.vector_store %arg16[%c0_29, %c0_30], %131 {strides = array<i32>} : memref<100x384xf32, #tpu.memory_space<vmem>>, vector<100x384xf32>,
    %c0_31 = arith.constant 0 : index
    %c0_32 = arith.constant 0 : index
    %133 = vector.load %arg8[%c0_31, %c0_32] : memref<128x384xbf16, #tpu.memory_space<vmem>>, vector<128x384xbf16>
    %c0_33 = arith.constant 0 : index
    %c0_34 = arith.constant 0 : index
    %134 = vector.load %arg10[%c0_33, %c0_34] : memref<1x384xf32, #tpu.memory_space<vmem>>, vector<1x384xf32>
    %cst_35 = arith.constant 0.000000e+00 : f32
    %135 = vector.broadcast %cst_35 : f32 to vector<2x128xf32>
    %c0_i32 = arith.constant 0 : i32
    %c10_i32 = arith.constant 10 : i32
    %136 = arith.addi %c0_i32, %c10_i32 : i32
    %c1_i32 = arith.constant 1 : i32
    %137 = scf.for %arg17 = %c0_i32 to %136 step %c1_i32 iter_args(%arg18 = %135) -> (vector<2x128xf32>)  : i32 {
      %c5_i32 = arith.constant 5 : i32
      %151 = arith.muli %arg17, %c5_i32 : i32
      %c0_i32_50 = arith.constant 0 : i32
      %152 = arith.addi %151, %c0_i32_50 : i32
      %c0_i32_51 = arith.constant 0 : i32
      %153 = arith.addi %c0_i32_51, %152 : i32
      %154 = arith.index_cast %153 : i32 to index
      %c0_52 = arith.constant 0 : index
      %155 = vector.load %arg16[%154, %c0_52] : memref<100x384xf32, #tpu.memory_space<vmem>>, vector<1x384xf32>
      %c50_i32 = arith.constant 50 : i32
      %156 = arith.addi %c50_i32, %152 : i32
      %157 = arith.index_cast %156 : i32 to index
      %c0_53 = arith.constant 0 : index
      %158 = vector.load %arg16[%157, %c0_53] : memref<100x384xf32, #tpu.memory_space<vmem>>, vector<1x384xf32>
      %159 = tpu.concatenate %155, %158 in 0 : vector<1x384xf32>, vector<1x384xf32> -> vector<2x384xf32>
      %160 = arith.truncf %arg18 : vector<2x128xf32> to vector<2x128xbf16>
      %cst_54 = arith.constant dense<0.000000e+00> : vector<2x384xf32>
      %161 = tpu.matmul %160, %133, %cst_54 {dimension_numbers = #tpu.dot_dimension_numbers<[1], [0], [0], [1], [0, 0, 1, 1], [], []>} : vector<2x128xbf16>, vector<128x384xbf16>, vector<2x384xf32> -> vector<2x384xf32>
      %162 = vector.broadcast %134 : vector<1x384xf32> to vector<2x384xf32>
      %163 = arith.addf %161, %162 : vector<2x384xf32>
      %164 = vector.extract_strided_slice %159 {offsets = [0, 0], sizes = [2, 256], strides = [1, 1]} : vector<2x384xf32> to vector<2x256xf32>
      %165 = vector.extract_strided_slice %163 {offsets = [0, 0], sizes = [2, 256], strides = [1, 1]} : vector<2x384xf32> to vector<2x256xf32>
      %166 = arith.addf %164, %165 : vector<2x256xf32>
      %167 = arith.negf %166 : vector<2x256xf32>
      %168 = math.exp %167 : vector<2x256xf32>
      %cst_55 = arith.constant 1.000000e+00 : f32
      %169 = vector.broadcast %cst_55 : f32 to vector<2x256xf32>
      %170 = arith.addf %169, %168 : vector<2x256xf32>
      %171 = arith.divf %169, %170 : vector<2x256xf32>
      %172 = vector.extract_strided_slice %171 {offsets = [0, 0], sizes = [2, 128], strides = [1, 1]} : vector<2x256xf32> to vector<2x128xf32>
      %173 = vector.extract_strided_slice %171 {offsets = [0, 128], sizes = [2, 128], strides = [1, 1]} : vector<2x256xf32> to vector<2x128xf32>
      %174 = vector.extract_strided_slice %159 {offsets = [0, 256], sizes = [2, 128], strides = [1, 1]} : vector<2x384xf32> to vector<2x128xf32>
      %175 = vector.extract_strided_slice %163 {offsets = [0, 256], sizes = [2, 128], strides = [1, 1]} : vector<2x384xf32> to vector<2x128xf32>
      %176 = arith.mulf %172, %175 : vector<2x128xf32>
      %177 = arith.addf %174, %176 : vector<2x128xf32>
      %178 = math.tanh %177 : vector<2x128xf32>
      %cst_56 = arith.constant 1.000000e+00 : f32
      %179 = vector.broadcast %cst_56 : f32 to vector<2x128xf32>
      %180 = arith.subf %179, %173 : vector<2x128xf32>
      %181 = arith.mulf %180, %178 : vector<2x128xf32>
      %182 = arith.mulf %173, %arg18 : vector<2x128xf32>
      %183 = arith.addf %181, %182 : vector<2x128xf32>
      %c1_i32_57 = arith.constant 1 : i32
      %184 = arith.addi %151, %c1_i32_57 : i32
      %c0_i32_58 = arith.constant 0 : i32
      %185 = arith.addi %c0_i32_58, %184 : i32
      %186 = arith.index_cast %185 : i32 to index
      %c0_59 = arith.constant 0 : index
      %187 = vector.load %arg16[%186, %c0_59] : memref<100x384xf32, #tpu.memory_space<vmem>>, vector<1x384xf32>
      %c50_i32_60 = arith.constant 50 : i32
      %188 = arith.addi %c50_i32_60, %184 : i32
      %189 = arith.index_cast %188 : i32 to index
      %c0_61 = arith.constant 0 : index
      %190 = vector.load %arg16[%189, %c0_61] : memref<100x384xf32, #tpu.memory_space<vmem>>, vector<1x384xf32>
      %191 = tpu.concatenate %187, %190 in 0 : vector<1x384xf32>, vector<1x384xf32> -> vector<2x384xf32>
      %192 = arith.truncf %183 : vector<2x128xf32> to vector<2x128xbf16>
      %cst_62 = arith.constant dense<0.000000e+00> : vector<2x384xf32>
      %193 = tpu.matmul %192, %133, %cst_62 {dimension_numbers = #tpu.dot_dimension_numbers<[1], [0], [0], [1], [0, 0, 1, 1], [], []>} : vector<2x128xbf16>, vector<128x384xbf16>, vector<2x384xf32> -> vector<2x384xf32>
      %194 = vector.broadcast %134 : vector<1x384xf32> to vector<2x384xf32>
      %195 = arith.addf %193, %194 : vector<2x384xf32>
      %196 = vector.extract_strided_slice %191 {offsets = [0, 0], sizes = [2, 256], strides = [1, 1]} : vector<2x384xf32> to vector<2x256xf32>
      %197 = vector.extract_strided_slice %195 {offsets = [0, 0], sizes = [2, 256], strides = [1, 1]} : vector<2x384xf32> to vector<2x256xf32>
      %198 = arith.addf %196, %197 : vector<2x256xf32>
      %199 = arith.negf %198 : vector<2x256xf32>
      %200 = math.exp %199 : vector<2x256xf32>
      %cst_63 = arith.constant 1.000000e+00 : f32
      %201 = vector.broadcast %cst_63 : f32 to vector<2x256xf32>
      %202 = arith.addf %201, %200 : vector<2x256xf32>
      %203 = arith.divf %201, %202 : vector<2x256xf32>
      %204 = vector.extract_strided_slice %203 {offsets = [0, 0], sizes = [2, 128], strides = [1, 1]} : vector<2x256xf32> to vector<2x128xf32>
      %205 = vector.extract_strided_slice %203 {offsets = [0, 128], sizes = [2, 128], strides = [1, 1]} : vector<2x256xf32> to vector<2x128xf32>
      %206 = vector.extract_strided_slice %191 {offsets = [0, 256], sizes = [2, 128], strides = [1, 1]} : vector<2x384xf32> to vector<2x128xf32>
      %207 = vector.extract_strided_slice %195 {offsets = [0, 256], sizes = [2, 128], strides = [1, 1]} : vector<2x384xf32> to vector<2x128xf32>
      %208 = arith.mulf %204, %207 : vector<2x128xf32>
      %209 = arith.addf %206, %208 : vector<2x128xf32>
      %210 = math.tanh %209 : vector<2x128xf32>
      %cst_64 = arith.constant 1.000000e+00 : f32
      %211 = vector.broadcast %cst_64 : f32 to vector<2x128xf32>
      %212 = arith.subf %211, %205 : vector<2x128xf32>
      %213 = arith.mulf %212, %210 : vector<2x128xf32>
      %214 = arith.mulf %205, %183 : vector<2x128xf32>
      %215 = arith.addf %213, %214 : vector<2x128xf32>
      %c2_i32 = arith.constant 2 : i32
      %216 = arith.addi %151, %c2_i32 : i32
      %c0_i32_65 = arith.constant 0 : i32
      %217 = arith.addi %c0_i32_65, %216 : i32
      %218 = arith.index_cast %217 : i32 to index
      %c0_66 = arith.constant 0 : index
      %219 = vector.load %arg16[%218, %c0_66] : memref<100x384xf32, #tpu.memory_space<vmem>>, vector<1x384xf32>
      %c50_i32_67 = arith.constant 50 : i32
      %220 = arith.addi %c50_i32_67, %216 : i32
      %221 = arith.index_cast %220 : i32 to index
      %c0_68 = arith.constant 0 : index
      %222 = vector.load %arg16[%221, %c0_68] : memref<100x384xf32, #tpu.memory_space<vmem>>, vector<1x384xf32>
      %223 = tpu.concatenate %219, %222 in 0 : vector<1x384xf32>, vector<1x384xf32> -> vector<2x384xf32>
      %224 = arith.truncf %215 : vector<2x128xf32> to vector<2x128xbf16>
      %cst_69 = arith.constant dense<0.000000e+00> : vector<2x384xf32>
      %225 = tpu.matmul %224, %133, %cst_69 {dimension_numbers = #tpu.dot_dimension_numbers<[1], [0], [0], [1], [0, 0, 1, 1], [], []>} : vector<2x128xbf16>, vector<128x384xbf16>, vector<2x384xf32> -> vector<2x384xf32>
      %226 = vector.broadcast %134 : vector<1x384xf32> to vector<2x384xf32>
      %227 = arith.addf %225, %226 : vector<2x384xf32>
      %228 = vector.extract_strided_slice %223 {offsets = [0, 0], sizes = [2, 256], strides = [1, 1]} : vector<2x384xf32> to vector<2x256xf32>
      %229 = vector.extract_strided_slice %227 {offsets = [0, 0], sizes = [2, 256], strides = [1, 1]} : vector<2x384xf32> to vector<2x256xf32>
      %230 = arith.addf %228, %229 : vector<2x256xf32>
      %231 = arith.negf %230 : vector<2x256xf32>
      %232 = math.exp %231 : vector<2x256xf32>
      %cst_70 = arith.constant 1.000000e+00 : f32
      %233 = vector.broadcast %cst_70 : f32 to vector<2x256xf32>
      %234 = arith.addf %233, %232 : vector<2x256xf32>
      %235 = arith.divf %233, %234 : vector<2x256xf32>
      %236 = vector.extract_strided_slice %235 {offsets = [0, 0], sizes = [2, 128], strides = [1, 1]} : vector<2x256xf32> to vector<2x128xf32>
      %237 = vector.extract_strided_slice %235 {offsets = [0, 128], sizes = [2, 128], strides = [1, 1]} : vector<2x256xf32> to vector<2x128xf32>
      %238 = vector.extract_strided_slice %223 {offsets = [0, 256], sizes = [2, 128], strides = [1, 1]} : vector<2x384xf32> to vector<2x128xf32>
      %239 = vector.extract_strided_slice %227 {offsets = [0, 256], sizes = [2, 128], strides = [1, 1]} : vector<2x384xf32> to vector<2x128xf32>
      %240 = arith.mulf %236, %239 : vector<2x128xf32>
      %241 = arith.addf %238, %240 : vector<2x128xf32>
      %242 = math.tanh %241 : vector<2x128xf32>
      %cst_71 = arith.constant 1.000000e+00 : f32
      %243 = vector.broadcast %cst_71 : f32 to vector<2x128xf32>
      %244 = arith.subf %243, %237 : vector<2x128xf32>
      %245 = arith.mulf %244, %242 : vector<2x128xf32>
      %246 = arith.mulf %237, %215 : vector<2x128xf32>
      %247 = arith.addf %245, %246 : vector<2x128xf32>
      %c3_i32 = arith.constant 3 : i32
      %248 = arith.addi %151, %c3_i32 : i32
      %c0_i32_72 = arith.constant 0 : i32
      %249 = arith.addi %c0_i32_72, %248 : i32
      %250 = arith.index_cast %249 : i32 to index
      %c0_73 = arith.constant 0 : index
      %251 = vector.load %arg16[%250, %c0_73] : memref<100x384xf32, #tpu.memory_space<vmem>>, vector<1x384xf32>
      %c50_i32_74 = arith.constant 50 : i32
      %252 = arith.addi %c50_i32_74, %248 : i32
      %253 = arith.index_cast %252 : i32 to index
      %c0_75 = arith.constant 0 : index
      %254 = vector.load %arg16[%253, %c0_75] : memref<100x384xf32, #tpu.memory_space<vmem>>, vector<1x384xf32>
      %255 = tpu.concatenate %251, %254 in 0 : vector<1x384xf32>, vector<1x384xf32> -> vector<2x384xf32>
      %256 = arith.truncf %247 : vector<2x128xf32> to vector<2x128xbf16>
      %cst_76 = arith.constant dense<0.000000e+00> : vector<2x384xf32>
      %257 = tpu.matmul %256, %133, %cst_76 {dimension_numbers = #tpu.dot_dimension_numbers<[1], [0], [0], [1], [0, 0, 1, 1], [], []>} : vector<2x128xbf16>, vector<128x384xbf16>, vector<2x384xf32> -> vector<2x384xf32>
      %258 = vector.broadcast %134 : vector<1x384xf32> to vector<2x384xf32>
      %259 = arith.addf %257, %258 : vector<2x384xf32>
      %260 = vector.extract_strided_slice %255 {offsets = [0, 0], sizes = [2, 256], strides = [1, 1]} : vector<2x384xf32> to vector<2x256xf32>
      %261 = vector.extract_strided_slice %259 {offsets = [0, 0], sizes = [2, 256], strides = [1, 1]} : vector<2x384xf32> to vector<2x256xf32>
      %262 = arith.addf %260, %261 : vector<2x256xf32>
      %263 = arith.negf %262 : vector<2x256xf32>
      %264 = math.exp %263 : vector<2x256xf32>
      %cst_77 = arith.constant 1.000000e+00 : f32
      %265 = vector.broadcast %cst_77 : f32 to vector<2x256xf32>
      %266 = arith.addf %265, %264 : vector<2x256xf32>
      %267 = arith.divf %265, %266 : vector<2x256xf32>
      %268 = vector.extract_strided_slice %267 {offsets = [0, 0], sizes = [2, 128], strides = [1, 1]} : vector<2x256xf32> to vector<2x128xf32>
      %269 = vector.extract_strided_slice %267 {offsets = [0, 128], sizes = [2, 128], strides = [1, 1]} : vector<2x256xf32> to vector<2x128xf32>
      %270 = vector.extract_strided_slice %255 {offsets = [0, 256], sizes = [2, 128], strides = [1, 1]} : vector<2x384xf32> to vector<2x128xf32>
      %271 = vector.extract_strided_slice %259 {offsets = [0, 256], sizes = [2, 128], strides = [1, 1]} : vector<2x384xf32> to vector<2x128xf32>
      %272 = arith.mulf %268, %271 : vector<2x128xf32>
      %273 = arith.addf %270, %272 : vector<2x128xf32>
      %274 = math.tanh %273 : vector<2x128xf32>
      %cst_78 = arith.constant 1.000000e+00 : f32
      %275 = vector.broadcast %cst_78 : f32 to vector<2x128xf32>
      %276 = arith.subf %275, %269 : vector<2x128xf32>
      %277 = arith.mulf %276, %274 : vector<2x128xf32>
      %278 = arith.mulf %269, %247 : vector<2x128xf32>
      %279 = arith.addf %277, %278 : vector<2x128xf32>
      %c4_i32 = arith.constant 4 : i32
      %280 = arith.addi %151, %c4_i32 : i32
      %c0_i32_79 = arith.constant 0 : i32
      %281 = arith.addi %c0_i32_79, %280 : i32
      %282 = arith.index_cast %281 : i32 to index
      %c0_80 = arith.constant 0 : index
      %283 = vector.load %arg16[%282, %c0_80] : memref<100x384xf32, #tpu.memory_space<vmem>>, vector<1x384xf32>
      %c50_i32_81 = arith.constant 50 : i32
      %284 = arith.addi %c50_i32_81, %280 : i32
      %285 = arith.index_cast %284 : i32 to index
      %c0_82 = arith.constant 0 : index
      %286 = vector.load %arg16[%285, %c0_82] : memref<100x384xf32, #tpu.memory_space<vmem>>, vector<1x384xf32>
      %287 = tpu.concatenate %283, %286 in 0 : vector<1x384xf32>, vector<1x384xf32> -> vector<2x384xf32>
      %288 = arith.truncf %279 : vector<2x128xf32> to vector<2x128xbf16>
      %cst_83 = arith.constant dense<0.000000e+00> : vector<2x384xf32>
      %289 = tpu.matmul %288, %133, %cst_83 {dimension_numbers = #tpu.dot_dimension_numbers<[1], [0], [0], [1], [0, 0, 1, 1], [], []>} : vector<2x128xbf16>, vector<128x384xbf16>, vector<2x384xf32> -> vector<2x384xf32>
      %290 = vector.broadcast %134 : vector<1x384xf32> to vector<2x384xf32>
      %291 = arith.addf %289, %290 : vector<2x384xf32>
      %292 = vector.extract_strided_slice %287 {offsets = [0, 0], sizes = [2, 256], strides = [1, 1]} : vector<2x384xf32> to vector<2x256xf32>
      %293 = vector.extract_strided_slice %291 {offsets = [0, 0], sizes = [2, 256], strides = [1, 1]} : vector<2x384xf32> to vector<2x256xf32>
      %294 = arith.addf %292, %293 : vector<2x256xf32>
      %295 = arith.negf %294 : vector<2x256xf32>
      %296 = math.exp %295 : vector<2x256xf32>
      %cst_84 = arith.constant 1.000000e+00 : f32
      %297 = vector.broadcast %cst_84 : f32 to vector<2x256xf32>
      %298 = arith.addf %297, %296 : vector<2x256xf32>
      %299 = arith.divf %297, %298 : vector<2x256xf32>
      %300 = vector.extract_strided_slice %299 {offsets = [0, 0], sizes = [2, 128], strides = [1, 1]} : vector<2x256xf32> to vector<2x128xf32>
      %301 = vector.extract_strided_slice %299 {offsets = [0, 128], sizes = [2, 128], strides = [1, 1]} : vector<2x256xf32> to vector<2x128xf32>
      %302 = vector.extract_strided_slice %287 {offsets = [0, 256], sizes = [2, 128], strides = [1, 1]} : vector<2x384xf32> to vector<2x128xf32>
      %303 = vector.extract_strided_slice %291 {offsets = [0, 256], sizes = [2, 128], strides = [1, 1]} : vector<2x384xf32> to vector<2x128xf32>
      %304 = arith.mulf %300, %303 : vector<2x128xf32>
      %305 = arith.addf %302, %304 : vector<2x128xf32>
      %306 = math.tanh %305 : vector<2x128xf32>
      %cst_85 = arith.constant 1.000000e+00 : f32
      %307 = vector.broadcast %cst_85 : f32 to vector<2x128xf32>
      %308 = arith.subf %307, %301 : vector<2x128xf32>
      %309 = arith.mulf %308, %306 : vector<2x128xf32>
      %310 = arith.mulf %301, %279 : vector<2x128xf32>
      %311 = arith.addf %309, %310 : vector<2x128xf32>
      scf.yield %311 : vector<2x128xf32>
    }
    %c10_i32_36 = arith.constant 10 : i32
    %c0_37 = arith.constant 0 : index
    %c0_38 = arith.constant 0 : index
    %138 = vector.load %arg11[%c0_37, %c0_38] : memref<128x256xf32, #tpu.memory_space<vmem>>, vector<128x256xf32>
    %cst_39 = arith.constant dense<0.000000e+00> : vector<2x256xf32>
    %139 = tpu.matmul %137, %138, %cst_39 {dimension_numbers = #tpu.dot_dimension_numbers<[1], [0], [0], [1], [0, 0, 1, 1], [], []>} : vector<2x128xf32>, vector<128x256xf32>, vector<2x256xf32> -> vector<2x256xf32>
    %c0_40 = arith.constant 0 : index
    %c0_41 = arith.constant 0 : index
    %140 = vector.load %arg12[%c0_40, %c0_41] : memref<1x256xf32, #tpu.memory_space<vmem>>, vector<1x256xf32>
    %141 = vector.broadcast %140 : vector<1x256xf32> to vector<2x256xf32>
    %142 = arith.addf %139, %141 : vector<2x256xf32>
    %cst_42 = arith.constant 0.000000e+00 : f32
    %143 = vector.broadcast %cst_42 : f32 to vector<2x256xf32>
    %144 = arith.maximumf %142, %143 : vector<2x256xf32>
    %c0_43 = arith.constant 0 : index
    %c0_44 = arith.constant 0 : index
    %145 = vector.load %arg13[%c0_43, %c0_44] : memref<256x11xf32, #tpu.memory_space<vmem>>, vector<256x11xf32>
    %cst_45 = arith.constant dense<0.000000e+00> : vector<2x11xf32>
    %146 = tpu.matmul %144, %145, %cst_45 {dimension_numbers = #tpu.dot_dimension_numbers<[1], [0], [0], [1], [0, 0, 1, 1], [], []>} : vector<2x256xf32>, vector<256x11xf32>, vector<2x11xf32> -> vector<2x11xf32>
    %c0_46 = arith.constant 0 : index
    %c0_47 = arith.constant 0 : index
    %147 = vector.load %arg14[%c0_46, %c0_47] : memref<1x11xf32, #tpu.memory_space<vmem>>, vector<1x11xf32>
    %148 = vector.broadcast %147 : vector<1x11xf32> to vector<2x11xf32>
    %149 = arith.addf %146, %148 : vector<2x11xf32>
    %c0_48 = arith.constant 0 : index
    %c0_49 = arith.constant 0 : index
    %150 = vector.load %arg15[%c0_48, %c0_49] : memref<2x11xf32, #tpu.memory_space<vmem>>, vector<2x11xf32>
    tpu.vector_store %arg15[%c0_48, %c0_49], %149 {strides = array<i32>} : memref<2x11xf32, #tpu.memory_space<vmem>>, vector<2x11xf32>,
    return
  }
}

</mosaic_0001>

<llo_original>
// kernel: cgdnn_forward.1
$region0: #{cgdnn_forward.1}
  #allocation0 [shape = 'u32[]', space=smem, size = 0x4, offset = 0x4, fixed_abs, tag = 'smem constant byte address 0x4 - core index']
  #allocation1 [shape = 'u32[144,128]{1,0:T(1,128)}', space=vmem, size = 0x12000, scoped, tag = 'internal scratch']
  #allocation2 [shape = 'f32[100,384]{1,0:T(8,128)}', space=vmem, size = 0x27000, scoped, tag = 'scratch operand']
  %s0 = inlined_call_operand.vmem [shape: f32[4,128], index: 0, kind: input, shape index: {}]
  %s1 = inlined_call_operand.vmem [shape: bf16[6,50], index: 1, kind: input, shape index: {}]
  %s2 = inlined_call_operand.vmem [shape: f32[1,50], index: 2, kind: input, shape index: {}]
  %s3 = inlined_call_operand.vmem [shape: bf16[300,50], index: 3, kind: input, shape index: {}]
  %s4 = inlined_call_operand.hbm [shape: f32[1,50], index: 4, kind: input, shape index: {}]
  %s5 = inlined_call_operand.vmem [shape: bf16[300,50], index: 5, kind: input, shape index: {}]
  %s6 = inlined_call_operand.hbm [shape: f32[1,50], index: 6, kind: input, shape index: {}]
  %s7 = inlined_call_operand.vmem [shape: bf16[512,384], index: 7, kind: input, shape index: {}]
  %s8 = inlined_call_operand.hbm [shape: bf16[128,384], index: 8, kind: input, shape index: {}]
  %s9 = inlined_call_operand.vmem [shape: f32[1,384], index: 9, kind: input, shape index: {}]
  %s10 = inlined_call_operand.vmem [shape: f32[1,384], index: 10, kind: input, shape index: {}]
  %s11 = inlined_call_operand.hbm [shape: f32[128,256], index: 11, kind: input, shape index: {}]
  %s12 = inlined_call_operand.vmem [shape: f32[1,256], index: 12, kind: input, shape index: {}]
  %s13 = inlined_call_operand.vmem [shape: f32[256,11], index: 13, kind: input, shape index: {}]
  %s14 = inlined_call_operand.hbm [shape: f32[1,11], index: 14, kind: input, shape index: {}]
  %s15 = inlined_call_operand.hbm [shape: f32[2,11], index: 15, kind: output, shape index: {}]
  %s16 = sld [smem:[#allocation0]]
  $region97: #{cgdnn_forward.1} parent=0
    _
  %s18 = ssub.s32 1, %s16
  %s19 = scalar_select 0, %s18, %s16
  $region1: #{cgdnn_forward.1} parent=0
    #allocation3 [shape = 'u8[512]{0}', space=vmem, size = 0x400, scoped, tag = 'input window, operand 4, single buffered']
    #allocation4 [shape = 's32[1]{0}', space=sflag, size = 0x4, scoped, tag = 'scoped memory for cgdnn_forward.1']
    #allocation5 [shape = 's32[1]{0}', space=sflag, size = 0x4, scoped, tag = 'scoped memory for cgdnn_forward.1']
    #allocation6 [shape = 'u8[512]{0}', space=vmem, size = 0x400, scoped, tag = 'input window, operand 6, single buffered']
    #allocation7 [shape = 's32[1]{0}', space=sflag, size = 0x4, scoped, tag = 'scoped memory for cgdnn_forward.1']
    #allocation8 [shape = 'u8[98304]{0}', space=vmem, size = 0x18000, scoped, tag = 'input window, operand 8, single buffered']
    #allocation9 [shape = 'u8[131072]{0}', space=vmem, size = 0x20000, scoped, tag = 'input window, operand 11, single buffered']
    #allocation10 [shape = 's32[1]{0}', space=sflag, size = 0x4, scoped, tag = 'scoped memory for cgdnn_forward.1']
    #allocation11 [shape = 'u8[512]{0}', space=vmem, size = 0x400, scoped, tag = 'input window, operand 14, single buffered']
    #allocation12 [shape = 'u8[1024]{0}', space=vmem, size = 0x400, scoped, tag = 'output window, operand 0, single buffered']
    %20 = vsyncpa [#allocation4], 0
    %21 = vsyncpa [#allocation7], 0
    %22 = vsyncpa [#allocation10], 0
    %23 = vsyncpa [#allocation5], 0
    // Predicated region
    $region2: #{cgdnn_forward.1} parent=1 // pred_check
      _
    $region3: #{cgdnn_forward.1} parent=1 // pred_check_branch
      %25 = sbr.rel (0) target = $region5
    $region4: #{cgdnn_forward.1} parent=1 // pred_region
      _
    $region5: #{cgdnn_forward.1} parent=1 // pred_fallthru
      _
    // Predicated region
    $region6: #{cgdnn_forward.1} parent=1 // pred_check
      _
    $region7: #{cgdnn_forward.1} parent=1 // pred_check_branch
      %27 = sbr.rel (0) target = $region9
    $region8: #{cgdnn_forward.1} parent=1 // pred_region
      _
    $region9: #{cgdnn_forward.1} parent=1 // pred_fallthru
      _
    // Predicated region
    $region10: #{cgdnn_forward.1} parent=1 // pred_check
      _
    $region11: #{cgdnn_forward.1} parent=1 // pred_check_branch
      %29 = sbr.rel (0) target = $region13
    $region12: #{cgdnn_forward.1} parent=1 // pred_region
      _
    $region13: #{cgdnn_forward.1} parent=1 // pred_fallthru
      _
    // Predicated region
    $region14: #{cgdnn_forward.1} parent=1 // pred_check
      _
    $region15: #{cgdnn_forward.1} parent=1 // pred_check_branch
      %31 = sbr.rel (0) target = $region17
    $region16: #{cgdnn_forward.1} parent=1 // pred_region
      _
    $region17: #{cgdnn_forward.1} parent=1 // pred_fallthru
      _
    // Predicated region
    $region18: #{cgdnn_forward.1} parent=1 // pred_check
      _
    $region19: #{cgdnn_forward.1} parent=1 // pred_check_branch
      %33 = sbr.rel (0) target = $region21
    $region20: #{cgdnn_forward.1} parent=1 // pred_region
      %s35 = ssub.s32 16, 16
      %36 = vsyncadd [#allocation4], %s35
      %s38 = sshll.u32 [#allocation3], 4
      %s39 = int_to_ptr.vmem [resolvable:$true] %s38
      %41 = dma.hbm_to_vmem [thread:$0]  %s4, 16, %s39, [#allocation4]
    $region21: #{cgdnn_forward.1} parent=1 // pred_fallthru
      _
    // Predicated region
    $region22: #{cgdnn_forward.1} parent=1 // pred_check
      _
    $region23: #{cgdnn_forward.1} parent=1 // pred_check_branch
      %43 = sbr.rel (0) target = $region25
    $region24: #{cgdnn_forward.1} parent=1 // pred_region
      _
    $region25: #{cgdnn_forward.1} parent=1 // pred_fallthru
      _
    // Predicated region
    $region26: #{cgdnn_forward.1} parent=1 // pred_check
      _
    $region27: #{cgdnn_forward.1} parent=1 // pred_check_branch
      %45 = sbr.rel (0) target = $region29
    $region28: #{cgdnn_forward.1} parent=1 // pred_region
      %s47 = ssub.s32 16, 16
      %48 = vsyncadd [#allocation7], %s47
      %s50 = sshll.u32 [#allocation6], 4
      %s51 = int_to_ptr.vmem [resolvable:$true] %s50
      %53 = dma.hbm_to_vmem [thread:$0]  %s6, 16, %s51, [#allocation7]
    $region29: #{cgdnn_forward.1} parent=1 // pred_fallthru
      _
    // Predicated region
    $region30: #{cgdnn_forward.1} parent=1 // pred_check
      _
    $region31: #{cgdnn_forward.1} parent=1 // pred_check_branch
      %55 = sbr.rel (0) target = $region33
    $region32: #{cgdnn_forward.1} parent=1 // pred_region
      _
    $region33: #{cgdnn_forward.1} parent=1 // pred_fallthru
      _
    // Predicated region
    $region34: #{cgdnn_forward.1} parent=1 // pred_check
      _
    $region35: #{cgdnn_forward.1} parent=1 // pred_check_branch
      %57 = sbr.rel (0) target = $region37
    $region36: #{cgdnn_forward.1} parent=1 // pred_region
      %s59 = ssub.s32 3072, 3072
      %60 = vsyncadd [#allocation7], %s59
      %s61 = sshll.u32 [#allocation8], 4
      %s62 = int_to_ptr.vmem [resolvable:$true] %s61
      %67 = dma.hbm_to_vmem [thread:$0]  %s8, 3072, %s62, [#allocation7], 192, 192, 12
    $region37: #{cgdnn_forward.1} parent=1 // pred_fallthru
      _
    // Predicated region
    $region38: #{cgdnn_forward.1} parent=1 // pred_check
      _
    $region39: #{cgdnn_forward.1} parent=1 // pred_check_branch
      %69 = sbr.rel (0) target = $region41
    $region40: #{cgdnn_forward.1} parent=1 // pred_region
      _
    $region41: #{cgdnn_forward.1} parent=1 // pred_fallthru
      _
    // Predicated region
    $region42: #{cgdnn_forward.1} parent=1 // pred_check
      _
    $region43: #{cgdnn_forward.1} parent=1 // pred_check_branch
      %71 = sbr.rel (0) target = $region45
    $region44: #{cgdnn_forward.1} parent=1 // pred_region
      _
    $region45: #{cgdnn_forward.1} parent=1 // pred_fallthru
      _
    // Predicated region
    $region46: #{cgdnn_forward.1} parent=1 // pred_check
      _
    $region47: #{cgdnn_forward.1} parent=1 // pred_check_branch
      %73 = sbr.rel (0) target = $region49
    $region48: #{cgdnn_forward.1} parent=1 // pred_region
      %s75 = ssub.s32 4096, 4096
      %76 = vsyncadd [#allocation10], %s75
      %s77 = sshll.u32 [#allocation9], 4
      %s78 = int_to_ptr.vmem [resolvable:$true] %s77
      %83 = dma.hbm_to_vmem [thread:$0]  %s11, 4096, %s78, [#allocation10], 256, 256, 16
    $region49: #{cgdnn_forward.1} parent=1 // pred_fallthru
      _
    // Predicated region
    $region50: #{cgdnn_forward.1} parent=1 // pred_check
      _
    $region51: #{cgdnn_forward.1} parent=1 // pred_check_branch
      %85 = sbr.rel (0) target = $region53
    $region52: #{cgdnn_forward.1} parent=1 // pred_region
      _
    $region53: #{cgdnn_forward.1} parent=1 // pred_fallthru
      _
    // Predicated region
    $region54: #{cgdnn_forward.1} parent=1 // pred_check
      _
    $region55: #{cgdnn_forward.1} parent=1 // pred_check_branch
      %87 = sbr.rel (0) target = $region57
    $region56: #{cgdnn_forward.1} parent=1 // pred_region
      _
    $region57: #{cgdnn_forward.1} parent=1 // pred_fallthru
      _
    // Predicated region
    $region58: #{cgdnn_forward.1} parent=1 // pred_check
      _
    $region59: #{cgdnn_forward.1} parent=1 // pred_check_branch
      %89 = sbr.rel (0) target = $region61
    $region60: #{cgdnn_forward.1} parent=1 // pred_region
      %s91 = ssub.s32 16, 16
      %92 = vsyncadd [#allocation10], %s91
      %s94 = sshll.u32 [#allocation11], 4
      %s95 = int_to_ptr.vmem [resolvable:$true] %s94
      %97 = dma.hbm_to_vmem [thread:$0]  %s14, 16, %s95, [#allocation10]
    $region61: #{cgdnn_forward.1} parent=1 // pred_fallthru
      _
    // Predicated region
    $region62: #{cgdnn_forward.1} parent=1 // pred_check
      _
    $region63: #{cgdnn_forward.1} parent=1 // pred_check_branch
      %99 = sbr.rel (0) target = $region65
    $region64: #{cgdnn_forward.1} parent=1 // pred_region
      %100 = dma.done [#allocation4], 16
    $region65: #{cgdnn_forward.1} parent=1 // pred_fallthru
      _
    // Predicated region
    $region66: #{cgdnn_forward.1} parent=1 // pred_check
      _
    $region67: #{cgdnn_forward.1} parent=1 // pred_check_branch
      %102 = sbr.rel (0) target = $region69
    $region68: #{cgdnn_forward.1} parent=1 // pred_region
      %103 = dma.done [#allocation7], 16
    $region69: #{cgdnn_forward.1} parent=1 // pred_fallthru
      _
    // Predicated region
    $region70: #{cgdnn_forward.1} parent=1 // pred_check
      _
    $region71: #{cgdnn_forward.1} parent=1 // pred_check_branch
      %105 = sbr.rel (0) target = $region73
    $region72: #{cgdnn_forward.1} parent=1 // pred_region
      %106 = dma.done [#allocation7], 3072
    $region73: #{cgdnn_forward.1} parent=1 // pred_fallthru
      _
    // Predicated region
    $region74: #{cgdnn_forward.1} parent=1 // pred_check
      _
    $region75: #{cgdnn_forward.1} parent=1 // pred_check_branch
      %108 = sbr.rel (0) target = $region77
    $region76: #{cgdnn_forward.1} parent=1 // pred_region
      %109 = dma.done [#allocation10], 4096
    $region77: #{cgdnn_forward.1} parent=1 // pred_fallthru
      _
    // Predicated region
    $region78: #{cgdnn_forward.1} parent=1 // pred_check
      _
    $region79: #{cgdnn_forward.1} parent=1 // pred_check_branch
      %111 = sbr.rel (0) target = $region81
    $region80: #{cgdnn_forward.1} parent=1 // pred_region
      %112 = dma.done [#allocation10], 16
    $region81: #{cgdnn_forward.1} parent=1 // pred_fallthru
      _
    %v114 = vld [vmem:[%s0] sm:$0xf]
    %116 = vrot.lane.b32.xlu0 %v114, 2
    %v117 = vpop.permute.xlu0 %116
    %vm119 = vcmask 15360
    %v120 = vsel %vm119, 0.0, %v117
    %v121 = vsel %vm119, %v117, 0.0
    %122 = vxpose.xlu0.b32.start [1/16] %v120, 128
    %123 = vxpose.xlu0.b32.cont [2/16] 0.0, 128
    %124 = vxpose.xlu0.b32.cont [3/16] 0.0, 128
    %125 = vxpose.xlu0.b32.cont [4/16] 0.0, 128
    %126 = vxpose.xlu0.b32.cont [5/16] 0.0, 128
    %127 = vxpose.xlu0.b32.cont [6/16] 0.0, 128
    %128 = vxpose.xlu0.b32.cont [7/16] 0.0, 128
    %129 = vxpose.xlu0.b32.cont [8/16] 0.0, 128
    %130 = vxpose.xlu0.b32.cont [9/16] 0.0, 128
    %131 = vxpose.xlu0.b32.cont [10/16] 0.0, 128
    %132 = vxpose.xlu0.b32.cont [11/16] 0.0, 128
    %133 = vxpose.xlu0.b32.cont [12/16] 0.0, 128
    %134 = vxpose.xlu0.b32.cont [13/16] 0.0, 128
    %135 = vxpose.xlu0.b32.cont [14/16] 0.0, 128
    %136 = vxpose.xlu0.b32.cont [15/16] 0.0, 128
    %137 = vxpose.xlu0.b32.end [16/16] 0.0, 128
    %v138 = vpop.trf.xlu0
    %v139 = vpop.trf.xlu0
    %v140 = vpop.trf.xlu0
    %v141 = vpop.trf.xlu0
    %v142 = vpop.trf.xlu0
    %v143 = vpop.trf.xlu0
    %v144 = vpop.trf.xlu0
    %v145 = vpop.trf.xlu0
    %v146 = vpop.trf.xlu0
    %v147 = vpop.trf.xlu0
    %v148 = vpop.trf.xlu0
    %v149 = vpop.trf.xlu0
    %v150 = vpop.trf.xlu0
    %v151 = vpop.trf.xlu0
    %v152 = vpop.trf.xlu0
    %v153 = vpop.trf.xlu0
    %154 = vxpose.xlu0.b32.start [1/16] %v121, 128
    %155 = vxpose.xlu0.b32.cont [2/16] 0.0, 128
    %156 = vxpose.xlu0.b32.cont [3/16] 0.0, 128
    %157 = vxpose.xlu0.b32.cont [4/16] 0.0, 128
    %158 = vxpose.xlu0.b32.cont [5/16] 0.0, 128
    %159 = vxpose.xlu0.b32.cont [6/16] 0.0, 128
    %160 = vxpose.xlu0.b32.cont [7/16] 0.0, 128
    %161 = vxpose.xlu0.b32.cont [8/16] 0.0, 128
    %162 = vxpose.xlu0.b32.cont [9/16] 0.0, 128
    %163 = vxpose.xlu0.b32.cont [10/16] 0.0, 128
    %164 = vxpose.xlu0.b32.cont [11/16] 0.0, 128
    %165 = vxpose.xlu0.b32.cont [12/16] 0.0, 128
    %166 = vxpose.xlu0.b32.cont [13/16] 0.0, 128
    %167 = vxpose.xlu0.b32.cont [14/16] 0.0, 128
    %168 = vxpose.xlu0.b32.cont [15/16] 0.0, 128
    %169 = vxpose.xlu0.b32.end [16/16] 0.0, 128
    %v170 = vpop.trf.xlu0
    %v171 = vpop.trf.xlu0
    %v172 = vpop.trf.xlu0
    %v173 = vpop.trf.xlu0
    %v174 = vpop.trf.xlu0
    %v175 = vpop.trf.xlu0
    %v176 = vpop.trf.xlu0
    %v177 = vpop.trf.xlu0
    %v178 = vpop.trf.xlu0
    %v179 = vpop.trf.xlu0
    %v180 = vpop.trf.xlu0
    %v181 = vpop.trf.xlu0
    %v182 = vpop.trf.xlu0
    %v183 = vpop.trf.xlu0
    %v184 = vpop.trf.xlu0
    %v185 = vpop.trf.xlu0
    %vm203 = vcmask 1046528
    %v204 = vrot.slane %v138, 1
    %v205 = vrot.slane %v139, 1
    %v206 = vsel %vm203, %v204, %v205
    %v207 = vrot.slane %v140, 1
    %v208 = vsel %vm203, %v205, %v207
    %v209 = vrot.slane %v141, 1
    %v210 = vsel %vm203, %v207, %v209
    %v211 = vrot.slane %v142, 1
    %v212 = vsel %vm203, %v209, %v211
    %v213 = vrot.slane %v143, 1
    %v214 = vsel %vm203, %v211, %v213
    %v215 = vrot.slane %v144, 1
    %v216 = vsel %vm203, %v213, %v215
    %v217 = vrot.slane %v145, 1
    %v218 = vsel %vm203, %v215, %v217
    %v219 = vrot.slane %v146, 1
    %v220 = vsel %vm203, %v217, %v219
    %v221 = vrot.slane %v147, 1
    %v222 = vsel %vm203, %v219, %v221
    %v223 = vrot.slane %v148, 1
    %v224 = vsel %vm203, %v221, %v223
    %v225 = vrot.slane %v149, 1
    %v226 = vsel %vm203, %v223, %v225
    %v227 = vrot.slane %v150, 1
    %v228 = vsel %vm203, %v225, %v227
    %v229 = vrot.slane %v151, 1
    %v230 = vsel %vm203, %v227, %v229
    %v231 = vrot.slane %v152, 1
    %v232 = vsel %vm203, %v229, %v231
    %v233 = vrot.slane %v153, 1
    %v234 = vsel %vm203, %v231, %v233
    %v235 = vrot.slane %v170, 1
    %v236 = vsel %vm203, %v233, %v235
    %237 = vrot.lane.b32.xlu0 %v206, 1
    %v238 = vpop.permute.xlu0 %237
    %239 = vrot.lane.b32.xlu0 %v208, 1
    %v240 = vpop.permute.xlu0 %239
    %241 = vrot.lane.b32.xlu0 %v210, 1
    %v242 = vpop.permute.xlu0 %241
    %243 = vrot.lane.b32.xlu0 %v212, 1
    %v244 = vpop.permute.xlu0 %243
    %245 = vrot.lane.b32.xlu0 %v214, 1
    %v246 = vpop.permute.xlu0 %245
    %247 = vrot.lane.b32.xlu0 %v216, 1
    %v248 = vpop.permute.xlu0 %247
    %249 = vrot.lane.b32.xlu0 %v218, 1
    %v250 = vpop.permute.xlu0 %249
    %251 = vrot.lane.b32.xlu0 %v220, 1
    %v252 = vpop.permute.xlu0 %251
    %253 = vrot.lane.b32.xlu0 %v222, 1
    %v254 = vpop.permute.xlu0 %253
    %255 = vrot.lane.b32.xlu0 %v224, 1
    %v256 = vpop.permute.xlu0 %255
    %257 = vrot.lane.b32.xlu0 %v226, 1
    %v258 = vpop.permute.xlu0 %257
    %259 = vrot.lane.b32.xlu0 %v228, 1
    %v260 = vpop.permute.xlu0 %259
    %261 = vrot.lane.b32.xlu0 %v230, 1
    %v262 = vpop.permute.xlu0 %261
    %263 = vrot.lane.b32.xlu0 %v232, 1
    %v264 = vpop.permute.xlu0 %263
    %265 = vrot.lane.b32.xlu0 %v234, 1
    %v266 = vpop.permute.xlu0 %265
    %267 = vrot.lane.b32.xlu0 %v236, 1
    %v268 = vpop.permute.xlu0 %267
    %vm285 = vcmask 1045504
    %v286 = vrot.slane %v138, 2
    %v287 = vrot.slane %v139, 2
    %v288 = vsel %vm285, %v286, %v287
    %v289 = vrot.slane %v140, 2
    %v290 = vsel %vm285, %v287, %v289
    %v291 = vrot.slane %v141, 2
    %v292 = vsel %vm285, %v289, %v291
    %v293 = vrot.slane %v142, 2
    %v294 = vsel %vm285, %v291, %v293
    %v295 = vrot.slane %v143, 2
    %v296 = vsel %vm285, %v293, %v295
    %v297 = vrot.slane %v144, 2
    %v298 = vsel %vm285, %v295, %v297
    %v299 = vrot.slane %v145, 2
    %v300 = vsel %vm285, %v297, %v299
    %v301 = vrot.slane %v146, 2
    %v302 = vsel %vm285, %v299, %v301
    %v303 = vrot.slane %v147, 2
    %v304 = vsel %vm285, %v301, %v303
    %v305 = vrot.slane %v148, 2
    %v306 = vsel %vm285, %v303, %v305
    %v307 = vrot.slane %v149, 2
    %v308 = vsel %vm285, %v305, %v307
    %v309 = vrot.slane %v150, 2
    %v310 = vsel %vm285, %v307, %v309
    %v311 = vrot.slane %v151, 2
    %v312 = vsel %vm285, %v309, %v311
    %v313 = vrot.slane %v152, 2
    %v314 = vsel %vm285, %v311, %v313
    %v315 = vrot.slane %v153, 2
    %v316 = vsel %vm285, %v313, %v315
    %v317 = vrot.slane %v170, 2
    %v318 = vsel %vm285, %v315, %v317
    %319 = vrot.lane.b32.xlu0 %v288, 2
    %v320 = vpop.permute.xlu0 %319
    %321 = vrot.lane.b32.xlu0 %v290, 2
    %v322 = vpop.permute.xlu0 %321
    %323 = vrot.lane.b32.xlu0 %v292, 2
    %v324 = vpop.permute.xlu0 %323
    %325 = vrot.lane.b32.xlu0 %v294, 2
    %v326 = vpop.permute.xlu0 %325
    %327 = vrot.lane.b32.xlu0 %v296, 2
    %v328 = vpop.permute.xlu0 %327
    %329 = vrot.lane.b32.xlu0 %v298, 2
    %v330 = vpop.permute.xlu0 %329
    %331 = vrot.lane.b32.xlu0 %v300, 2
    %v332 = vpop.permute.xlu0 %331
    %333 = vrot.lane.b32.xlu0 %v302, 2
    %v334 = vpop.permute.xlu0 %333
    %335 = vrot.lane.b32.xlu0 %v304, 2
    %v336 = vpop.permute.xlu0 %335
    %337 = vrot.lane.b32.xlu0 %v306, 2
    %v338 = vpop.permute.xlu0 %337
    %339 = vrot.lane.b32.xlu0 %v308, 2
    %v340 = vpop.permute.xlu0 %339
    %341 = vrot.lane.b32.xlu0 %v310, 2
    %v342 = vpop.permute.xlu0 %341
    %343 = vrot.lane.b32.xlu0 %v312, 2
    %v344 = vpop.permute.xlu0 %343
    %345 = vrot.lane.b32.xlu0 %v314, 2
    %v346 = vpop.permute.xlu0 %345
    %347 = vrot.lane.b32.xlu0 %v316, 2
    %v348 = vpop.permute.xlu0 %347
    %349 = vrot.lane.b32.xlu0 %v318, 2
    %v350 = vpop.permute.xlu0 %349
    %vm367 = vcmask 1044480
    %v368 = vrot.slane %v138, 3
    %v369 = vrot.slane %v139, 3
    %v370 = vsel %vm367, %v368, %v369
    %v371 = vrot.slane %v140, 3
    %v372 = vsel %vm367, %v369, %v371
    %v373 = vrot.slane %v141, 3
    %v374 = vsel %vm367, %v371, %v373
    %v375 = vrot.slane %v142, 3
    %v376 = vsel %vm367, %v373, %v375
    %v377 = vrot.slane %v143, 3
    %v378 = vsel %vm367, %v375, %v377
    %v379 = vrot.slane %v144, 3
    %v380 = vsel %vm367, %v377, %v379
    %v381 = vrot.slane %v145, 3
    %v382 = vsel %vm367, %v379, %v381
    %v383 = vrot.slane %v146, 3
    %v384 = vsel %vm367, %v381, %v383
    %v385 = vrot.slane %v147, 3
    %v386 = vsel %vm367, %v383, %v385
    %v387 = vrot.slane %v148, 3
    %v388 = vsel %vm367, %v385, %v387
    %v389 = vrot.slane %v149, 3
    %v390 = vsel %vm367, %v387, %v389
    %v391 = vrot.slane %v150, 3
    %v392 = vsel %vm367, %v389, %v391
    %v393 = vrot.slane %v151, 3
    %v394 = vsel %vm367, %v391, %v393
    %v395 = vrot.slane %v152, 3
    %v396 = vsel %vm367, %v393, %v395
    %v397 = vrot.slane %v153, 3
    %v398 = vsel %vm367, %v395, %v397
    %v399 = vrot.slane %v170, 3
    %v400 = vsel %vm367, %v397, %v399
    %401 = vrot.lane.b32.xlu0 %v370, 3
    %v402 = vpop.permute.xlu0 %401
    %403 = vrot.lane.b32.xlu0 %v372, 3
    %v404 = vpop.permute.xlu0 %403
    %405 = vrot.lane.b32.xlu0 %v374, 3
    %v406 = vpop.permute.xlu0 %405
    %407 = vrot.lane.b32.xlu0 %v376, 3
    %v408 = vpop.permute.xlu0 %407
    %409 = vrot.lane.b32.xlu0 %v378, 3
    %v410 = vpop.permute.xlu0 %409
    %411 = vrot.lane.b32.xlu0 %v380, 3
    %v412 = vpop.permute.xlu0 %411
    %413 = vrot.lane.b32.xlu0 %v382, 3
    %v414 = vpop.permute.xlu0 %413
    %415 = vrot.lane.b32.xlu0 %v384, 3
    %v416 = vpop.permute.xlu0 %415
    %417 = vrot.lane.b32.xlu0 %v386, 3
    %v418 = vpop.permute.xlu0 %417
    %419 = vrot.lane.b32.xlu0 %v388, 3
    %v420 = vpop.permute.xlu0 %419
    %421 = vrot.lane.b32.xlu0 %v390, 3
    %v422 = vpop.permute.xlu0 %421
    %423 = vrot.lane.b32.xlu0 %v392, 3
    %v424 = vpop.permute.xlu0 %423
    %425 = vrot.lane.b32.xlu0 %v394, 3
    %v426 = vpop.permute.xlu0 %425
    %427 = vrot.lane.b32.xlu0 %v396, 3
    %v428 = vpop.permute.xlu0 %427
    %429 = vrot.lane.b32.xlu0 %v398, 3
    %v430 = vpop.permute.xlu0 %429
    %431 = vrot.lane.b32.xlu0 %v400, 3
    %v432 = vpop.permute.xlu0 %431
    %vm449 = vcmask 1043456
    %v450 = vrot.slane %v138, 4
    %v451 = vrot.slane %v139, 4
    %v452 = vsel %vm449, %v450, %v451
    %v453 = vrot.slane %v140, 4
    %v454 = vsel %vm449, %v451, %v453
    %v455 = vrot.slane %v141, 4
    %v456 = vsel %vm449, %v453, %v455
    %v457 = vrot.slane %v142, 4
    %v458 = vsel %vm449, %v455, %v457
    %v459 = vrot.slane %v143, 4
    %v460 = vsel %vm449, %v457, %v459
    %v461 = vrot.slane %v144, 4
    %v462 = vsel %vm449, %v459, %v461
    %v463 = vrot.slane %v145, 4
    %v464 = vsel %vm449, %v461, %v463
    %v465 = vrot.slane %v146, 4
    %v466 = vsel %vm449, %v463, %v465
    %v467 = vrot.slane %v147, 4
    %v468 = vsel %vm449, %v465, %v467
    %v469 = vrot.slane %v148, 4
    %v470 = vsel %vm449, %v467, %v469
    %v471 = vrot.slane %v149, 4
    %v472 = vsel %vm449, %v469, %v471
    %v473 = vrot.slane %v150, 4
    %v474 = vsel %vm449, %v471, %v473
    %v475 = vrot.slane %v151, 4
    %v476 = vsel %vm449, %v473, %v475
    %v477 = vrot.slane %v152, 4
    %v478 = vsel %vm449, %v475, %v477
    %v479 = vrot.slane %v153, 4
    %v480 = vsel %vm449, %v477, %v479
    %v481 = vrot.slane %v170, 4
    %v482 = vsel %vm449, %v479, %v481
    %483 = vrot.lane.b32.xlu0 %v452, 4
    %v484 = vpop.permute.xlu0 %483
    %485 = vrot.lane.b32.xlu0 %v454, 4
    %v486 = vpop.permute.xlu0 %485
    %487 = vrot.lane.b32.xlu0 %v456, 4
    %v488 = vpop.permute.xlu0 %487
    %489 = vrot.lane.b32.xlu0 %v458, 4
    %v490 = vpop.permute.xlu0 %489
    %491 = vrot.lane.b32.xlu0 %v460, 4
    %v492 = vpop.permute.xlu0 %491
    %493 = vrot.lane.b32.xlu0 %v462, 4
    %v494 = vpop.permute.xlu0 %493
    %495 = vrot.lane.b32.xlu0 %v464, 4
    %v496 = vpop.permute.xlu0 %495
    %497 = vrot.lane.b32.xlu0 %v466, 4
    %v498 = vpop.permute.xlu0 %497
    %499 = vrot.lane.b32.xlu0 %v468, 4
    %v500 = vpop.permute.xlu0 %499
    %501 = vrot.lane.b32.xlu0 %v470, 4
    %v502 = vpop.permute.xlu0 %501
    %503 = vrot.lane.b32.xlu0 %v472, 4
    %v504 = vpop.permute.xlu0 %503
    %505 = vrot.lane.b32.xlu0 %v474, 4
    %v506 = vpop.permute.xlu0 %505
    %507 = vrot.lane.b32.xlu0 %v476, 4
    %v508 = vpop.permute.xlu0 %507
    %509 = vrot.lane.b32.xlu0 %v478, 4
    %v510 = vpop.permute.xlu0 %509
    %511 = vrot.lane.b32.xlu0 %v480, 4
    %v512 = vpop.permute.xlu0 %511
    %513 = vrot.lane.b32.xlu0 %v482, 4
    %v514 = vpop.permute.xlu0 %513
    %vm531 = vcmask 1042432
    %v532 = vrot.slane %v138, 5
    %v533 = vrot.slane %v139, 5
    %v534 = vsel %vm531, %v532, %v533
    %v535 = vrot.slane %v140, 5
    %v536 = vsel %vm531, %v533, %v535
    %v537 = vrot.slane %v141, 5
    %v538 = vsel %vm531, %v535, %v537
    %v539 = vrot.slane %v142, 5
    %v540 = vsel %vm531, %v537, %v539
    %v541 = vrot.slane %v143, 5
    %v542 = vsel %vm531, %v539, %v541
    %v543 = vrot.slane %v144, 5
    %v544 = vsel %vm531, %v541, %v543
    %v545 = vrot.slane %v145, 5
    %v546 = vsel %vm531, %v543, %v545
    %v547 = vrot.slane %v146, 5
    %v548 = vsel %vm531, %v545, %v547
    %v549 = vrot.slane %v147, 5
    %v550 = vsel %vm531, %v547, %v549
    %v551 = vrot.slane %v148, 5
    %v552 = vsel %vm531, %v549, %v551
    %v553 = vrot.slane %v149, 5
    %v554 = vsel %vm531, %v551, %v553
    %v555 = vrot.slane %v150, 5
    %v556 = vsel %vm531, %v553, %v555
    %v557 = vrot.slane %v151, 5
    %v558 = vsel %vm531, %v555, %v557
    %v559 = vrot.slane %v152, 5
    %v560 = vsel %vm531, %v557, %v559
    %v561 = vrot.slane %v153, 5
    %v562 = vsel %vm531, %v559, %v561
    %v563 = vrot.slane %v170, 5
    %v564 = vsel %vm531, %v561, %v563
    %565 = vrot.lane.b32.xlu0 %v534, 5
    %v566 = vpop.permute.xlu0 %565
    %567 = vrot.lane.b32.xlu0 %v536, 5
    %v568 = vpop.permute.xlu0 %567
    %569 = vrot.lane.b32.xlu0 %v538, 5
    %v570 = vpop.permute.xlu0 %569
    %571 = vrot.lane.b32.xlu0 %v540, 5
    %v572 = vpop.permute.xlu0 %571
    %573 = vrot.lane.b32.xlu0 %v542, 5
    %v574 = vpop.permute.xlu0 %573
    %575 = vrot.lane.b32.xlu0 %v544, 5
    %v576 = vpop.permute.xlu0 %575
    %577 = vrot.lane.b32.xlu0 %v546, 5
    %v578 = vpop.permute.xlu0 %577
    %579 = vrot.lane.b32.xlu0 %v548, 5
    %v580 = vpop.permute.xlu0 %579
    %581 = vrot.lane.b32.xlu0 %v550, 5
    %v582 = vpop.permute.xlu0 %581
    %583 = vrot.lane.b32.xlu0 %v552, 5
    %v584 = vpop.permute.xlu0 %583
    %585 = vrot.lane.b32.xlu0 %v554, 5
    %v586 = vpop.permute.xlu0 %585
    %587 = vrot.lane.b32.xlu0 %v556, 5
    %v588 = vpop.permute.xlu0 %587
    %589 = vrot.lane.b32.xlu0 %v558, 5
    %v590 = vpop.permute.xlu0 %589
    %591 = vrot.lane.b32.xlu0 %v560, 5
    %v592 = vpop.permute.xlu0 %591
    %593 = vrot.lane.b32.xlu0 %v562, 5
    %v594 = vpop.permute.xlu0 %593
    %595 = vrot.lane.b32.xlu0 %v564, 5
    %v596 = vpop.permute.xlu0 %595
    %vm613 = vcmask 7168
    %v614 = vsel %vm613, %v138, %v238
    %v615 = vsel %vm613, %v139, %v240
    %v616 = vsel %vm613, %v140, %v242
    %v617 = vsel %vm613, %v141, %v244
    %v618 = vsel %vm613, %v142, %v246
    %v619 = vsel %vm613, %v143, %v248
    %v620 = vsel %vm613, %v144, %v250
    %v621 = vsel %vm613, %v145, %v252
    %v622 = vsel %vm613, %v146, %v254
    %v623 = vsel %vm613, %v147, %v256
    %v624 = vsel %vm613, %v148, %v258
    %v625 = vsel %vm613, %v149, %v260
    %v626 = vsel %vm613, %v150, %v262
    %v627 = vsel %vm613, %v151, %v264
    %v628 = vsel %vm613, %v152, %v266
    %v629 = vsel %vm613, %v153, %v268
    %v630 = vsel %vm119, %v614, %v320
    %v631 = vsel %vm119, %v615, %v322
    %v632 = vsel %vm119, %v616, %v324
    %v633 = vsel %vm119, %v617, %v326
    %v634 = vsel %vm119, %v618, %v328
    %v635 = vsel %vm119, %v619, %v330
    %v636 = vsel %vm119, %v620, %v332
    %v637 = vsel %vm119, %v621, %v334
    %v638 = vsel %vm119, %v622, %v336
    %v639 = vsel %vm119, %v623, %v338
    %v640 = vsel %vm119, %v624, %v340
    %v641 = vsel %vm119, %v625, %v342
    %v642 = vsel %vm119, %v626, %v344
    %v643 = vsel %vm119, %v627, %v346
    %v644 = vsel %vm119, %v628, %v348
    %v645 = vsel %vm119, %v629, %v350
    %vm646 = vcmask 23552
    %v647 = vsel %vm646, %v630, %v402
    %v648 = vsel %vm646, %v631, %v404
    %v649 = vsel %vm646, %v632, %v406
    %v650 = vsel %vm646, %v633, %v408
    %v651 = vsel %vm646, %v634, %v410
    %v652 = vsel %vm646, %v635, %v412
    %v653 = vsel %vm646, %v636, %v414
    %v654 = vsel %vm646, %v637, %v416
    %v655 = vsel %vm646, %v638, %v418
    %v656 = vsel %vm646, %v639, %v420
    %v657 = vsel %vm646, %v640, %v422
    %v658 = vsel %vm646, %v641, %v424
    %v659 = vsel %vm646, %v642, %v426
    %v660 = vsel %vm646, %v643, %v428
    %v661 = vsel %vm646, %v644, %v430
    %v662 = vsel %vm646, %v645, %v432
    %vm663 = vcmask 31744
    %v664 = vsel %vm663, %v647, %v484
    %v665 = vsel %vm663, %v648, %v486
    %v666 = vsel %vm663, %v649, %v488
    %v667 = vsel %vm663, %v650, %v490
    %v668 = vsel %vm663, %v651, %v492
    %v669 = vsel %vm663, %v652, %v494
    %v670 = vsel %vm663, %v653, %v496
    %v671 = vsel %vm663, %v654, %v498
    %v672 = vsel %vm663, %v655, %v500
    %v673 = vsel %vm663, %v656, %v502
    %v674 = vsel %vm663, %v657, %v504
    %v675 = vsel %vm663, %v658, %v506
    %v676 = vsel %vm663, %v659, %v508
    %v677 = vsel %vm663, %v660, %v510
    %v678 = vsel %vm663, %v661, %v512
    %v679 = vsel %vm663, %v662, %v514
    %vm680 = vcmask 39936
    %v681 = vsel %vm680, %v664, %v566
    %v682 = vsel %vm680, %v665, %v568
    %v683 = vsel %vm680, %v666, %v570
    %v684 = vsel %vm680, %v667, %v572
    %v685 = vsel %vm680, %v668, %v574
    %v686 = vsel %vm680, %v669, %v576
    %v687 = vsel %vm680, %v670, %v578
    %v688 = vsel %vm680, %v671, %v580
    %v689 = vsel %vm680, %v672, %v582
    %v690 = vsel %vm680, %v673, %v584
    %v691 = vsel %vm680, %v674, %v586
    %v692 = vsel %vm680, %v675, %v588
    %v693 = vsel %vm680, %v676, %v590
    %v694 = vsel %vm680, %v677, %v592
    %v695 = vsel %vm680, %v678, %v594
    %v696 = vsel %vm680, %v679, %v596
    %697 = vrot.lane.b32.xlu0 %v138, 127
    %v698 = vpop.permute.xlu0 %697
    %699 = vrot.lane.b32.xlu0 %v139, 127
    %v700 = vpop.permute.xlu0 %699
    %701 = vrot.lane.b32.xlu0 %v140, 127
    %v702 = vpop.permute.xlu0 %701
    %703 = vrot.lane.b32.xlu0 %v141, 127
    %v704 = vpop.permute.xlu0 %703
    %705 = vrot.lane.b32.xlu0 %v142, 127
    %v706 = vpop.permute.xlu0 %705
    %707 = vrot.lane.b32.xlu0 %v143, 127
    %v708 = vpop.permute.xlu0 %707
    %709 = vrot.lane.b32.xlu0 %v144, 127
    %v710 = vpop.permute.xlu0 %709
    %711 = vrot.lane.b32.xlu0 %v145, 127
    %v712 = vpop.permute.xlu0 %711
    %713 = vrot.lane.b32.xlu0 %v146, 127
    %v714 = vpop.permute.xlu0 %713
    %715 = vrot.lane.b32.xlu0 %v147, 127
    %v716 = vpop.permute.xlu0 %715
    %717 = vrot.lane.b32.xlu0 %v148, 127
    %v718 = vpop.permute.xlu0 %717
    %719 = vrot.lane.b32.xlu0 %v149, 127
    %v720 = vpop.permute.xlu0 %719
    %721 = vrot.lane.b32.xlu0 %v150, 127
    %v722 = vpop.permute.xlu0 %721
    %723 = vrot.lane.b32.xlu0 %v151, 127
    %v724 = vpop.permute.xlu0 %723
    %725 = vrot.lane.b32.xlu0 %v152, 127
    %v726 = vpop.permute.xlu0 %725
    %727 = vrot.lane.b32.xlu0 %v153, 127
    %v728 = vpop.permute.xlu0 %727
    %761 = vrot.lane.b32.xlu0 %v288, 1
    %v762 = vpop.permute.xlu0 %761
    %763 = vrot.lane.b32.xlu0 %v290, 1
    %v764 = vpop.permute.xlu0 %763
    %765 = vrot.lane.b32.xlu0 %v292, 1
    %v766 = vpop.permute.xlu0 %765
    %767 = vrot.lane.b32.xlu0 %v294, 1
    %v768 = vpop.permute.xlu0 %767
    %769 = vrot.lane.b32.xlu0 %v296, 1
    %v770 = vpop.permute.xlu0 %769
    %771 = vrot.lane.b32.xlu0 %v298, 1
    %v772 = vpop.permute.xlu0 %771
    %773 = vrot.lane.b32.xlu0 %v300, 1
    %v774 = vpop.permute.xlu0 %773
    %775 = vrot.lane.b32.xlu0 %v302, 1
    %v776 = vpop.permute.xlu0 %775
    %777 = vrot.lane.b32.xlu0 %v304, 1
    %v778 = vpop.permute.xlu0 %777
    %779 = vrot.lane.b32.xlu0 %v306, 1
    %v780 = vpop.permute.xlu0 %779
    %781 = vrot.lane.b32.xlu0 %v308, 1
    %v782 = vpop.permute.xlu0 %781
    %783 = vrot.lane.b32.xlu0 %v310, 1
    %v784 = vpop.permute.xlu0 %783
    %785 = vrot.lane.b32.xlu0 %v312, 1
    %v786 = vpop.permute.xlu0 %785
    %787 = vrot.lane.b32.xlu0 %v314, 1
    %v788 = vpop.permute.xlu0 %787
    %789 = vrot.lane.b32.xlu0 %v316, 1
    %v790 = vpop.permute.xlu0 %789
    %791 = vrot.lane.b32.xlu0 %v318, 1
    %v792 = vpop.permute.xlu0 %791
    %809 = vrot.lane.b32.xlu0 %v370, 2
    %v810 = vpop.permute.xlu0 %809
    %811 = vrot.lane.b32.xlu0 %v372, 2
    %v812 = vpop.permute.xlu0 %811
    %813 = vrot.lane.b32.xlu0 %v374, 2
    %v814 = vpop.permute.xlu0 %813
    %815 = vrot.lane.b32.xlu0 %v376, 2
    %v816 = vpop.permute.xlu0 %815
    %817 = vrot.lane.b32.xlu0 %v378, 2
    %v818 = vpop.permute.xlu0 %817
    %819 = vrot.lane.b32.xlu0 %v380, 2
    %v820 = vpop.permute.xlu0 %819
    %821 = vrot.lane.b32.xlu0 %v382, 2
    %v822 = vpop.permute.xlu0 %821
    %823 = vrot.lane.b32.xlu0 %v384, 2
    %v824 = vpop.permute.xlu0 %823
    %825 = vrot.lane.b32.xlu0 %v386, 2
    %v826 = vpop.permute.xlu0 %825
    %827 = vrot.lane.b32.xlu0 %v388, 2
    %v828 = vpop.permute.xlu0 %827
    %829 = vrot.lane.b32.xlu0 %v390, 2
    %v830 = vpop.permute.xlu0 %829
    %831 = vrot.lane.b32.xlu0 %v392, 2
    %v832 = vpop.permute.xlu0 %831
    %833 = vrot.lane.b32.xlu0 %v394, 2
    %v834 = vpop.permute.xlu0 %833
    %835 = vrot.lane.b32.xlu0 %v396, 2
    %v836 = vpop.permute.xlu0 %835
    %837 = vrot.lane.b32.xlu0 %v398, 2
    %v838 = vpop.permute.xlu0 %837
    %839 = vrot.lane.b32.xlu0 %v400, 2
    %v840 = vpop.permute.xlu0 %839
    %857 = vrot.lane.b32.xlu0 %v452, 3
    %v858 = vpop.permute.xlu0 %857
    %859 = vrot.lane.b32.xlu0 %v454, 3
    %v860 = vpop.permute.xlu0 %859
    %861 = vrot.lane.b32.xlu0 %v456, 3
    %v862 = vpop.permute.xlu0 %861
    %863 = vrot.lane.b32.xlu0 %v458, 3
    %v864 = vpop.permute.xlu0 %863
    %865 = vrot.lane.b32.xlu0 %v460, 3
    %v866 = vpop.permute.xlu0 %865
    %867 = vrot.lane.b32.xlu0 %v462, 3
    %v868 = vpop.permute.xlu0 %867
    %869 = vrot.lane.b32.xlu0 %v464, 3
    %v870 = vpop.permute.xlu0 %869
    %871 = vrot.lane.b32.xlu0 %v466, 3
    %v872 = vpop.permute.xlu0 %871
    %873 = vrot.lane.b32.xlu0 %v468, 3
    %v874 = vpop.permute.xlu0 %873
    %875 = vrot.lane.b32.xlu0 %v470, 3
    %v876 = vpop.permute.xlu0 %875
    %877 = vrot.lane.b32.xlu0 %v472, 3
    %v878 = vpop.permute.xlu0 %877
    %879 = vrot.lane.b32.xlu0 %v474, 3
    %v880 = vpop.permute.xlu0 %879
    %881 = vrot.lane.b32.xlu0 %v476, 3
    %v882 = vpop.permute.xlu0 %881
    %883 = vrot.lane.b32.xlu0 %v478, 3
    %v884 = vpop.permute.xlu0 %883
    %885 = vrot.lane.b32.xlu0 %v480, 3
    %v886 = vpop.permute.xlu0 %885
    %887 = vrot.lane.b32.xlu0 %v482, 3
    %v888 = vpop.permute.xlu0 %887
    %905 = vrot.lane.b32.xlu0 %v534, 4
    %v906 = vpop.permute.xlu0 %905
    %907 = vrot.lane.b32.xlu0 %v536, 4
    %v908 = vpop.permute.xlu0 %907
    %909 = vrot.lane.b32.xlu0 %v538, 4
    %v910 = vpop.permute.xlu0 %909
    %911 = vrot.lane.b32.xlu0 %v540, 4
    %v912 = vpop.permute.xlu0 %911
    %913 = vrot.lane.b32.xlu0 %v542, 4
    %v914 = vpop.permute.xlu0 %913
    %915 = vrot.lane.b32.xlu0 %v544, 4
    %v916 = vpop.permute.xlu0 %915
    %917 = vrot.lane.b32.xlu0 %v546, 4
    %v918 = vpop.permute.xlu0 %917
    %919 = vrot.lane.b32.xlu0 %v548, 4
    %v920 = vpop.permute.xlu0 %919
    %921 = vrot.lane.b32.xlu0 %v550, 4
    %v922 = vpop.permute.xlu0 %921
    %923 = vrot.lane.b32.xlu0 %v552, 4
    %v924 = vpop.permute.xlu0 %923
    %925 = vrot.lane.b32.xlu0 %v554, 4
    %v926 = vpop.permute.xlu0 %925
    %927 = vrot.lane.b32.xlu0 %v556, 4
    %v928 = vpop.permute.xlu0 %927
    %929 = vrot.lane.b32.xlu0 %v558, 4
    %v930 = vpop.permute.xlu0 %929
    %931 = vrot.lane.b32.xlu0 %v560, 4
    %v932 = vpop.permute.xlu0 %931
    %933 = vrot.lane.b32.xlu0 %v562, 4
    %v934 = vpop.permute.xlu0 %933
    %935 = vrot.lane.b32.xlu0 %v564, 4
    %v936 = vpop.permute.xlu0 %935
    %v953 = vsel %vm613, %v698, %v206
    %v954 = vsel %vm613, %v700, %v208
    %v955 = vsel %vm613, %v702, %v210
    %v956 = vsel %vm613, %v704, %v212
    %v957 = vsel %vm613, %v706, %v214
    %v958 = vsel %vm613, %v708, %v216
    %v959 = vsel %vm613, %v710, %v218
    %v960 = vsel %vm613, %v712, %v220
    %v961 = vsel %vm613, %v714, %v222
    %v962 = vsel %vm613, %v716, %v224
    %v963 = vsel %vm613, %v718, %v226
    %v964 = vsel %vm613, %v720, %v228
    %v965 = vsel %vm613, %v722, %v230
    %v966 = vsel %vm613, %v724, %v232
    %v967 = vsel %vm613, %v726, %v234
    %v968 = vsel %vm613, %v728, %v236
    %v969 = vsel %vm119, %v953, %v762
    %v970 = vsel %vm119, %v954, %v764
    %v971 = vsel %vm119, %v955, %v766
    %v972 = vsel %vm119, %v956, %v768
    %v973 = vsel %vm119, %v957, %v770
    %v974 = vsel %vm119, %v958, %v772
    %v975 = vsel %vm119, %v959, %v774
    %v976 = vsel %vm119, %v960, %v776
    %v977 = vsel %vm119, %v961, %v778
    %v978 = vsel %vm119, %v962, %v780
    %v979 = vsel %vm119, %v963, %v782
    %v980 = vsel %vm119, %v964, %v784
    %v981 = vsel %vm119, %v965, %v786
    %v982 = vsel %vm119, %v966, %v788
    %v983 = vsel %vm119, %v967, %v790
    %v984 = vsel %vm119, %v968, %v792
    %v985 = vsel %vm646, %v969, %v810
    %v986 = vsel %vm646, %v970, %v812
    %v987 = vsel %vm646, %v971, %v814
    %v988 = vsel %vm646, %v972, %v816
    %v989 = vsel %vm646, %v973, %v818
    %v990 = vsel %vm646, %v974, %v820
    %v991 = vsel %vm646, %v975, %v822
    %v992 = vsel %vm646, %v976, %v824
    %v993 = vsel %vm646, %v977, %v826
    %v994 = vsel %vm646, %v978, %v828
    %v995 = vsel %vm646, %v979, %v830
    %v996 = vsel %vm646, %v980, %v832
    %v997 = vsel %vm646, %v981, %v834
    %v998 = vsel %vm646, %v982, %v836
    %v999 = vsel %vm646, %v983, %v838
    %v1000 = vsel %vm646, %v984, %v840
    %v1001 = vsel %vm663, %v985, %v858
    %v1002 = vsel %vm663, %v986, %v860
    %v1003 = vsel %vm663, %v987, %v862
    %v1004 = vsel %vm663, %v988, %v864
    %v1005 = vsel %vm663, %v989, %v866
    %v1006 = vsel %vm663, %v990, %v868
    %v1007 = vsel %vm663, %v991, %v870
    %v1008 = vsel %vm663, %v992, %v872
    %v1009 = vsel %vm663, %v993, %v874
    %v1010 = vsel %vm663, %v994, %v876
    %v1011 = vsel %vm663, %v995, %v878
    %v1012 = vsel %vm663, %v996, %v880
    %v1013 = vsel %vm663, %v997, %v882
    %v1014 = vsel %vm663, %v998, %v884
    %v1015 = vsel %vm663, %v999, %v886
    %v1016 = vsel %vm663, %v1000, %v888
    %v1017 = vsel %vm680, %v1001, %v906
    %v1018 = vsel %vm680, %v1002, %v908
    %v1019 = vsel %vm680, %v1003, %v910
    %v1020 = vsel %vm680, %v1004, %v912
    %v1021 = vsel %vm680, %v1005, %v914
    %v1022 = vsel %vm680, %v1006, %v916
    %v1023 = vsel %vm680, %v1007, %v918
    %v1024 = vsel %vm680, %v1008, %v920
    %v1025 = vsel %vm680, %v1009, %v922
    %v1026 = vsel %vm680, %v1010, %v924
    %v1027 = vsel %vm680, %v1011, %v926
    %v1028 = vsel %vm680, %v1012, %v928
    %v1029 = vsel %vm680, %v1013, %v930
    %v1030 = vsel %vm680, %v1014, %v932
    %v1031 = vsel %vm680, %v1015, %v934
    %v1032 = vsel %vm680, %v1016, %v936
    %1033 = vrot.lane.b32.xlu0 %v138, 126
    %v1034 = vpop.permute.xlu0 %1033
    %1035 = vrot.lane.b32.xlu0 %v139, 126
    %v1036 = vpop.permute.xlu0 %1035
    %1037 = vrot.lane.b32.xlu0 %v140, 126
    %v1038 = vpop.permute.xlu0 %1037
    %1039 = vrot.lane.b32.xlu0 %v141, 126
    %v1040 = vpop.permute.xlu0 %1039
    %1041 = vrot.lane.b32.xlu0 %v142, 126
    %v1042 = vpop.permute.xlu0 %1041
    %1043 = vrot.lane.b32.xlu0 %v143, 126
    %v1044 = vpop.permute.xlu0 %1043
    %1045 = vrot.lane.b32.xlu0 %v144, 126
    %v1046 = vpop.permute.xlu0 %1045
    %1047 = vrot.lane.b32.xlu0 %v145, 126
    %v1048 = vpop.permute.xlu0 %1047
    %1049 = vrot.lane.b32.xlu0 %v146, 126
    %v1050 = vpop.permute.xlu0 %1049
    %1051 = vrot.lane.b32.xlu0 %v147, 126
    %v1052 = vpop.permute.xlu0 %1051
    %1053 = vrot.lane.b32.xlu0 %v148, 126
    %v1054 = vpop.permute.xlu0 %1053
    %1055 = vrot.lane.b32.xlu0 %v149, 126
    %v1056 = vpop.permute.xlu0 %1055
    %1057 = vrot.lane.b32.xlu0 %v150, 126
    %v1058 = vpop.permute.xlu0 %1057
    %1059 = vrot.lane.b32.xlu0 %v151, 126
    %v1060 = vpop.permute.xlu0 %1059
    %1061 = vrot.lane.b32.xlu0 %v152, 126
    %v1062 = vpop.permute.xlu0 %1061
    %1063 = vrot.lane.b32.xlu0 %v153, 126
    %v1064 = vpop.permute.xlu0 %1063
    %1081 = vrot.lane.b32.xlu0 %v206, 127
    %v1082 = vpop.permute.xlu0 %1081
    %1083 = vrot.lane.b32.xlu0 %v208, 127
    %v1084 = vpop.permute.xlu0 %1083
    %1085 = vrot.lane.b32.xlu0 %v210, 127
    %v1086 = vpop.permute.xlu0 %1085
    %1087 = vrot.lane.b32.xlu0 %v212, 127
    %v1088 = vpop.permute.xlu0 %1087
    %1089 = vrot.lane.b32.xlu0 %v214, 127
    %v1090 = vpop.permute.xlu0 %1089
    %1091 = vrot.lane.b32.xlu0 %v216, 127
    %v1092 = vpop.permute.xlu0 %1091
    %1093 = vrot.lane.b32.xlu0 %v218, 127
    %v1094 = vpop.permute.xlu0 %1093
    %1095 = vrot.lane.b32.xlu0 %v220, 127
    %v1096 = vpop.permute.xlu0 %1095
    %1097 = vrot.lane.b32.xlu0 %v222, 127
    %v1098 = vpop.permute.xlu0 %1097
    %1099 = vrot.lane.b32.xlu0 %v224, 127
    %v1100 = vpop.permute.xlu0 %1099
    %1101 = vrot.lane.b32.xlu0 %v226, 127
    %v1102 = vpop.permute.xlu0 %1101
    %1103 = vrot.lane.b32.xlu0 %v228, 127
    %v1104 = vpop.permute.xlu0 %1103
    %1105 = vrot.lane.b32.xlu0 %v230, 127
    %v1106 = vpop.permute.xlu0 %1105
    %1107 = vrot.lane.b32.xlu0 %v232, 127
    %v1108 = vpop.permute.xlu0 %1107
    %1109 = vrot.lane.b32.xlu0 %v234, 127
    %v1110 = vpop.permute.xlu0 %1109
    %1111 = vrot.lane.b32.xlu0 %v236, 127
    %v1112 = vpop.permute.xlu0 %1111
    %1145 = vrot.lane.b32.xlu0 %v370, 1
    %v1146 = vpop.permute.xlu0 %1145
    %1147 = vrot.lane.b32.xlu0 %v372, 1
    %v1148 = vpop.permute.xlu0 %1147
    %1149 = vrot.lane.b32.xlu0 %v374, 1
    %v1150 = vpop.permute.xlu0 %1149
    %1151 = vrot.lane.b32.xlu0 %v376, 1
    %v1152 = vpop.permute.xlu0 %1151
    %1153 = vrot.lane.b32.xlu0 %v378, 1
    %v1154 = vpop.permute.xlu0 %1153
    %1155 = vrot.lane.b32.xlu0 %v380, 1
    %v1156 = vpop.permute.xlu0 %1155
    %1157 = vrot.lane.b32.xlu0 %v382, 1
    %v1158 = vpop.permute.xlu0 %1157
    %1159 = vrot.lane.b32.xlu0 %v384, 1
    %v1160 = vpop.permute.xlu0 %1159
    %1161 = vrot.lane.b32.xlu0 %v386, 1
    %v1162 = vpop.permute.xlu0 %1161
    %1163 = vrot.lane.b32.xlu0 %v388, 1
    %v1164 = vpop.permute.xlu0 %1163
    %1165 = vrot.lane.b32.xlu0 %v390, 1
    %v1166 = vpop.permute.xlu0 %1165
    %1167 = vrot.lane.b32.xlu0 %v392, 1
    %v1168 = vpop.permute.xlu0 %1167
    %1169 = vrot.lane.b32.xlu0 %v394, 1
    %v1170 = vpop.permute.xlu0 %1169
    %1171 = vrot.lane.b32.xlu0 %v396, 1
    %v1172 = vpop.permute.xlu0 %1171
    %1173 = vrot.lane.b32.xlu0 %v398, 1
    %v1174 = vpop.permute.xlu0 %1173
    %1175 = vrot.lane.b32.xlu0 %v400, 1
    %v1176 = vpop.permute.xlu0 %1175
    %1193 = vrot.lane.b32.xlu0 %v452, 2
    %v1194 = vpop.permute.xlu0 %1193
    %1195 = vrot.lane.b32.xlu0 %v454, 2
    %v1196 = vpop.permute.xlu0 %1195
    %1197 = vrot.lane.b32.xlu0 %v456, 2
    %v1198 = vpop.permute.xlu0 %1197
    %1199 = vrot.lane.b32.xlu0 %v458, 2
    %v1200 = vpop.permute.xlu0 %1199
    %1201 = vrot.lane.b32.xlu0 %v460, 2
    %v1202 = vpop.permute.xlu0 %1201
    %1203 = vrot.lane.b32.xlu0 %v462, 2
    %v1204 = vpop.permute.xlu0 %1203
    %1205 = vrot.lane.b32.xlu0 %v464, 2
    %v1206 = vpop.permute.xlu0 %1205
    %1207 = vrot.lane.b32.xlu0 %v466, 2
    %v1208 = vpop.permute.xlu0 %1207
    %1209 = vrot.lane.b32.xlu0 %v468, 2
    %v1210 = vpop.permute.xlu0 %1209
    %1211 = vrot.lane.b32.xlu0 %v470, 2
    %v1212 = vpop.permute.xlu0 %1211
    %1213 = vrot.lane.b32.xlu0 %v472, 2
    %v1214 = vpop.permute.xlu0 %1213
    %1215 = vrot.lane.b32.xlu0 %v474, 2
    %v1216 = vpop.permute.xlu0 %1215
    %1217 = vrot.lane.b32.xlu0 %v476, 2
    %v1218 = vpop.permute.xlu0 %1217
    %1219 = vrot.lane.b32.xlu0 %v478, 2
    %v1220 = vpop.permute.xlu0 %1219
    %1221 = vrot.lane.b32.xlu0 %v480, 2
    %v1222 = vpop.permute.xlu0 %1221
    %1223 = vrot.lane.b32.xlu0 %v482, 2
    %v1224 = vpop.permute.xlu0 %1223
    %1241 = vrot.lane.b32.xlu0 %v534, 3
    %v1242 = vpop.permute.xlu0 %1241
    %1243 = vrot.lane.b32.xlu0 %v536, 3
    %v1244 = vpop.permute.xlu0 %1243
    %1245 = vrot.lane.b32.xlu0 %v538, 3
    %v1246 = vpop.permute.xlu0 %1245
    %1247 = vrot.lane.b32.xlu0 %v540, 3
    %v1248 = vpop.permute.xlu0 %1247
    %1249 = vrot.lane.b32.xlu0 %v542, 3
    %v1250 = vpop.permute.xlu0 %1249
    %1251 = vrot.lane.b32.xlu0 %v544, 3
    %v1252 = vpop.permute.xlu0 %1251
    %1253 = vrot.lane.b32.xlu0 %v546, 3
    %v1254 = vpop.permute.xlu0 %1253
    %1255 = vrot.lane.b32.xlu0 %v548, 3
    %v1256 = vpop.permute.xlu0 %1255
    %1257 = vrot.lane.b32.xlu0 %v550, 3
    %v1258 = vpop.permute.xlu0 %1257
    %1259 = vrot.lane.b32.xlu0 %v552, 3
    %v1260 = vpop.permute.xlu0 %1259
    %1261 = vrot.lane.b32.xlu0 %v554, 3
    %v1262 = vpop.permute.xlu0 %1261
    %1263 = vrot.lane.b32.xlu0 %v556, 3
    %v1264 = vpop.permute.xlu0 %1263
    %1265 = vrot.lane.b32.xlu0 %v558, 3
    %v1266 = vpop.permute.xlu0 %1265
    %1267 = vrot.lane.b32.xlu0 %v560, 3
    %v1268 = vpop.permute.xlu0 %1267
    %1269 = vrot.lane.b32.xlu0 %v562, 3
    %v1270 = vpop.permute.xlu0 %1269
    %1271 = vrot.lane.b32.xlu0 %v564, 3
    %v1272 = vpop.permute.xlu0 %1271
    %v1289 = vsel %vm613, %v1034, %v1082
    %v1290 = vsel %vm613, %v1036, %v1084
    %v1291 = vsel %vm613, %v1038, %v1086
    %v1292 = vsel %vm613, %v1040, %v1088
    %v1293 = vsel %vm613, %v1042, %v1090
    %v1294 = vsel %vm613, %v1044, %v1092
    %v1295 = vsel %vm613, %v1046, %v1094
    %v1296 = vsel %vm613, %v1048, %v1096
    %v1297 = vsel %vm613, %v1050, %v1098
    %v1298 = vsel %vm613, %v1052, %v1100
    %v1299 = vsel %vm613, %v1054, %v1102
    %v1300 = vsel %vm613, %v1056, %v1104
    %v1301 = vsel %vm613, %v1058, %v1106
    %v1302 = vsel %vm613, %v1060, %v1108
    %v1303 = vsel %vm613, %v1062, %v1110
    %v1304 = vsel %vm613, %v1064, %v1112
    %v1305 = vsel %vm119, %v1289, %v288
    %v1306 = vsel %vm119, %v1290, %v290
    %v1307 = vsel %vm119, %v1291, %v292
    %v1308 = vsel %vm119, %v1292, %v294
    %v1309 = vsel %vm119, %v1293, %v296
    %v1310 = vsel %vm119, %v1294, %v298
    %v1311 = vsel %vm119, %v1295, %v300
    %v1312 = vsel %vm119, %v1296, %v302
    %v1313 = vsel %vm119, %v1297, %v304
    %v1314 = vsel %vm119, %v1298, %v306
    %v1315 = vsel %vm119, %v1299, %v308
    %v1316 = vsel %vm119, %v1300, %v310
    %v1317 = vsel %vm119, %v1301, %v312
    %v1318 = vsel %vm119, %v1302, %v314
    %v1319 = vsel %vm119, %v1303, %v316
    %v1320 = vsel %vm119, %v1304, %v318
    %v1321 = vsel %vm646, %v1305, %v1146
    %v1322 = vsel %vm646, %v1306, %v1148
    %v1323 = vsel %vm646, %v1307, %v1150
    %v1324 = vsel %vm646, %v1308, %v1152
    %v1325 = vsel %vm646, %v1309, %v1154
    %v1326 = vsel %vm646, %v1310, %v1156
    %v1327 = vsel %vm646, %v1311, %v1158
    %v1328 = vsel %vm646, %v1312, %v1160
    %v1329 = vsel %vm646, %v1313, %v1162
    %v1330 = vsel %vm646, %v1314, %v1164
    %v1331 = vsel %vm646, %v1315, %v1166
    %v1332 = vsel %vm646, %v1316, %v1168
    %v1333 = vsel %vm646, %v1317, %v1170
    %v1334 = vsel %vm646, %v1318, %v1172
    %v1335 = vsel %vm646, %v1319, %v1174
    %v1336 = vsel %vm646, %v1320, %v1176
    %v1337 = vsel %vm663, %v1321, %v1194
    %v1338 = vsel %vm663, %v1322, %v1196
    %v1339 = vsel %vm663, %v1323, %v1198
    %v1340 = vsel %vm663, %v1324, %v1200
    %v1341 = vsel %vm663, %v1325, %v1202
    %v1342 = vsel %vm663, %v1326, %v1204
    %v1343 = vsel %vm663, %v1327, %v1206
    %v1344 = vsel %vm663, %v1328, %v1208
    %v1345 = vsel %vm663, %v1329, %v1210
    %v1346 = vsel %vm663, %v1330, %v1212
    %v1347 = vsel %vm663, %v1331, %v1214
    %v1348 = vsel %vm663, %v1332, %v1216
    %v1349 = vsel %vm663, %v1333, %v1218
    %v1350 = vsel %vm663, %v1334, %v1220
    %v1351 = vsel %vm663, %v1335, %v1222
    %v1352 = vsel %vm663, %v1336, %v1224
    %v1353 = vsel %vm680, %v1337, %v1242
    %v1354 = vsel %vm680, %v1338, %v1244
    %v1355 = vsel %vm680, %v1339, %v1246
    %v1356 = vsel %vm680, %v1340, %v1248
    %v1357 = vsel %vm680, %v1341, %v1250
    %v1358 = vsel %vm680, %v1342, %v1252
    %v1359 = vsel %vm680, %v1343, %v1254
    %v1360 = vsel %vm680, %v1344, %v1256
    %v1361 = vsel %vm680, %v1345, %v1258
    %v1362 = vsel %vm680, %v1346, %v1260
    %v1363 = vsel %vm680, %v1347, %v1262
    %v1364 = vsel %vm680, %v1348, %v1264
    %v1365 = vsel %vm680, %v1349, %v1266
    %v1366 = vsel %vm680, %v1350, %v1268
    %v1367 = vsel %vm680, %v1351, %v1270
    %v1368 = vsel %vm680, %v1352, %v1272
    %1369 = vrot.lane.b32.xlu0 %v138, 125
    %v1370 = vpop.permute.xlu0 %1369
    %1371 = vrot.lane.b32.xlu0 %v139, 125
    %v1372 = vpop.permute.xlu0 %1371
    %1373 = vrot.lane.b32.xlu0 %v140, 125
    %v1374 = vpop.permute.xlu0 %1373
    %1375 = vrot.lane.b32.xlu0 %v141, 125
    %v1376 = vpop.permute.xlu0 %1375
    %1377 = vrot.lane.b32.xlu0 %v142, 125
    %v1378 = vpop.permute.xlu0 %1377
    %1379 = vrot.lane.b32.xlu0 %v143, 125
    %v1380 = vpop.permute.xlu0 %1379
    %1381 = vrot.lane.b32.xlu0 %v144, 125
    %v1382 = vpop.permute.xlu0 %1381
    %1383 = vrot.lane.b32.xlu0 %v145, 125
    %v1384 = vpop.permute.xlu0 %1383
    %1385 = vrot.lane.b32.xlu0 %v146, 125
    %v1386 = vpop.permute.xlu0 %1385
    %1387 = vrot.lane.b32.xlu0 %v147, 125
    %v1388 = vpop.permute.xlu0 %1387
    %1389 = vrot.lane.b32.xlu0 %v148, 125
    %v1390 = vpop.permute.xlu0 %1389
    %1391 = vrot.lane.b32.xlu0 %v149, 125
    %v1392 = vpop.permute.xlu0 %1391
    %1393 = vrot.lane.b32.xlu0 %v150, 125
    %v1394 = vpop.permute.xlu0 %1393
    %1395 = vrot.lane.b32.xlu0 %v151, 125
    %v1396 = vpop.permute.xlu0 %1395
    %1397 = vrot.lane.b32.xlu0 %v152, 125
    %v1398 = vpop.permute.xlu0 %1397
    %1399 = vrot.lane.b32.xlu0 %v153, 125
    %v1400 = vpop.permute.xlu0 %1399
    %1417 = vrot.lane.b32.xlu0 %v206, 126
    %v1418 = vpop.permute.xlu0 %1417
    %1419 = vrot.lane.b32.xlu0 %v208, 126
    %v1420 = vpop.permute.xlu0 %1419
    %1421 = vrot.lane.b32.xlu0 %v210, 126
    %v1422 = vpop.permute.xlu0 %1421
    %1423 = vrot.lane.b32.xlu0 %v212, 126
    %v1424 = vpop.permute.xlu0 %1423
    %1425 = vrot.lane.b32.xlu0 %v214, 126
    %v1426 = vpop.permute.xlu0 %1425
    %1427 = vrot.lane.b32.xlu0 %v216, 126
    %v1428 = vpop.permute.xlu0 %1427
    %1429 = vrot.lane.b32.xlu0 %v218, 126
    %v1430 = vpop.permute.xlu0 %1429
    %1431 = vrot.lane.b32.xlu0 %v220, 126
    %v1432 = vpop.permute.xlu0 %1431
    %1433 = vrot.lane.b32.xlu0 %v222, 126
    %v1434 = vpop.permute.xlu0 %1433
    %1435 = vrot.lane.b32.xlu0 %v224, 126
    %v1436 = vpop.permute.xlu0 %1435
    %1437 = vrot.lane.b32.xlu0 %v226, 126
    %v1438 = vpop.permute.xlu0 %1437
    %1439 = vrot.lane.b32.xlu0 %v228, 126
    %v1440 = vpop.permute.xlu0 %1439
    %1441 = vrot.lane.b32.xlu0 %v230, 126
    %v1442 = vpop.permute.xlu0 %1441
    %1443 = vrot.lane.b32.xlu0 %v232, 126
    %v1444 = vpop.permute.xlu0 %1443
    %1445 = vrot.lane.b32.xlu0 %v234, 126
    %v1446 = vpop.permute.xlu0 %1445
    %1447 = vrot.lane.b32.xlu0 %v236, 126
    %v1448 = vpop.permute.xlu0 %1447
    %1465 = vrot.lane.b32.xlu0 %v288, 127
    %v1466 = vpop.permute.xlu0 %1465
    %1467 = vrot.lane.b32.xlu0 %v290, 127
    %v1468 = vpop.permute.xlu0 %1467
    %1469 = vrot.lane.b32.xlu0 %v292, 127
    %v1470 = vpop.permute.xlu0 %1469
    %1471 = vrot.lane.b32.xlu0 %v294, 127
    %v1472 = vpop.permute.xlu0 %1471
    %1473 = vrot.lane.b32.xlu0 %v296, 127
    %v1474 = vpop.permute.xlu0 %1473
    %1475 = vrot.lane.b32.xlu0 %v298, 127
    %v1476 = vpop.permute.xlu0 %1475
    %1477 = vrot.lane.b32.xlu0 %v300, 127
    %v1478 = vpop.permute.xlu0 %1477
    %1479 = vrot.lane.b32.xlu0 %v302, 127
    %v1480 = vpop.permute.xlu0 %1479
    %1481 = vrot.lane.b32.xlu0 %v304, 127
    %v1482 = vpop.permute.xlu0 %1481
    %1483 = vrot.lane.b32.xlu0 %v306, 127
    %v1484 = vpop.permute.xlu0 %1483
    %1485 = vrot.lane.b32.xlu0 %v308, 127
    %v1486 = vpop.permute.xlu0 %1485
    %1487 = vrot.lane.b32.xlu0 %v310, 127
    %v1488 = vpop.permute.xlu0 %1487
    %1489 = vrot.lane.b32.xlu0 %v312, 127
    %v1490 = vpop.permute.xlu0 %1489
    %1491 = vrot.lane.b32.xlu0 %v314, 127
    %v1492 = vpop.permute.xlu0 %1491
    %1493 = vrot.lane.b32.xlu0 %v316, 127
    %v1494 = vpop.permute.xlu0 %1493
    %1495 = vrot.lane.b32.xlu0 %v318, 127
    %v1496 = vpop.permute.xlu0 %1495
    %1529 = vrot.lane.b32.xlu0 %v452, 1
    %v1530 = vpop.permute.xlu0 %1529
    %1531 = vrot.lane.b32.xlu0 %v454, 1
    %v1532 = vpop.permute.xlu0 %1531
    %1533 = vrot.lane.b32.xlu0 %v456, 1
    %v1534 = vpop.permute.xlu0 %1533
    %1535 = vrot.lane.b32.xlu0 %v458, 1
    %v1536 = vpop.permute.xlu0 %1535
    %1537 = vrot.lane.b32.xlu0 %v460, 1
    %v1538 = vpop.permute.xlu0 %1537
    %1539 = vrot.lane.b32.xlu0 %v462, 1
    %v1540 = vpop.permute.xlu0 %1539
    %1541 = vrot.lane.b32.xlu0 %v464, 1
    %v1542 = vpop.permute.xlu0 %1541
    %1543 = vrot.lane.b32.xlu0 %v466, 1
    %v1544 = vpop.permute.xlu0 %1543
    %1545 = vrot.lane.b32.xlu0 %v468, 1
    %v1546 = vpop.permute.xlu0 %1545
    %1547 = vrot.lane.b32.xlu0 %v470, 1
    %v1548 = vpop.permute.xlu0 %1547
    %1549 = vrot.lane.b32.xlu0 %v472, 1
    %v1550 = vpop.permute.xlu0 %1549
    %1551 = vrot.lane.b32.xlu0 %v474, 1
    %v1552 = vpop.permute.xlu0 %1551
    %1553 = vrot.lane.b32.xlu0 %v476, 1
    %v1554 = vpop.permute.xlu0 %1553
    %1555 = vrot.lane.b32.xlu0 %v478, 1
    %v1556 = vpop.permute.xlu0 %1555
    %1557 = vrot.lane.b32.xlu0 %v480, 1
    %v1558 = vpop.permute.xlu0 %1557
    %1559 = vrot.lane.b32.xlu0 %v482, 1
    %v1560 = vpop.permute.xlu0 %1559
    %1577 = vrot.lane.b32.xlu0 %v534, 2
    %v1578 = vpop.permute.xlu0 %1577
    %1579 = vrot.lane.b32.xlu0 %v536, 2
    %v1580 = vpop.permute.xlu0 %1579
    %1581 = vrot.lane.b32.xlu0 %v538, 2
    %v1582 = vpop.permute.xlu0 %1581
    %1583 = vrot.lane.b32.xlu0 %v540, 2
    %v1584 = vpop.permute.xlu0 %1583
    %1585 = vrot.lane.b32.xlu0 %v542, 2
    %v1586 = vpop.permute.xlu0 %1585
    %1587 = vrot.lane.b32.xlu0 %v544, 2
    %v1588 = vpop.permute.xlu0 %1587
    %1589 = vrot.lane.b32.xlu0 %v546, 2
    %v1590 = vpop.permute.xlu0 %1589
    %1591 = vrot.lane.b32.xlu0 %v548, 2
    %v1592 = vpop.permute.xlu0 %1591
    %1593 = vrot.lane.b32.xlu0 %v550, 2
    %v1594 = vpop.permute.xlu0 %1593
    %1595 = vrot.lane.b32.xlu0 %v552, 2
    %v1596 = vpop.permute.xlu0 %1595
    %1597 = vrot.lane.b32.xlu0 %v554, 2
    %v1598 = vpop.permute.xlu0 %1597
    %1599 = vrot.lane.b32.xlu0 %v556, 2
    %v1600 = vpop.permute.xlu0 %1599
    %1601 = vrot.lane.b32.xlu0 %v558, 2
    %v1602 = vpop.permute.xlu0 %1601
    %1603 = vrot.lane.b32.xlu0 %v560, 2
    %v1604 = vpop.permute.xlu0 %1603
    %1605 = vrot.lane.b32.xlu0 %v562, 2
    %v1606 = vpop.permute.xlu0 %1605
    %1607 = vrot.lane.b32.xlu0 %v564, 2
    %v1608 = vpop.permute.xlu0 %1607
    %v1625 = vsel %vm613, %v1370, %v1418
    %v1626 = vsel %vm613, %v1372, %v1420
    %v1627 = vsel %vm613, %v1374, %v1422
    %v1628 = vsel %vm613, %v1376, %v1424
    %v1629 = vsel %vm613, %v1378, %v1426
    %v1630 = vsel %vm613, %v1380, %v1428
    %v1631 = vsel %vm613, %v1382, %v1430
    %v1632 = vsel %vm613, %v1384, %v1432
    %v1633 = vsel %vm613, %v1386, %v1434
    %v1634 = vsel %vm613, %v1388, %v1436
    %v1635 = vsel %vm613, %v1390, %v1438
    %v1636 = vsel %vm613, %v1392, %v1440
    %v1637 = vsel %vm613, %v1394, %v1442
    %v1638 = vsel %vm613, %v1396, %v1444
    %v1639 = vsel %vm613, %v1398, %v1446
    %v1640 = vsel %vm613, %v1400, %v1448
    %v1641 = vsel %vm119, %v1625, %v1466
    %v1642 = vsel %vm119, %v1626, %v1468
    %v1643 = vsel %vm119, %v1627, %v1470
    %v1644 = vsel %vm119, %v1628, %v1472
    %v1645 = vsel %vm119, %v1629, %v1474
    %v1646 = vsel %vm119, %v1630, %v1476
    %v1647 = vsel %vm119, %v1631, %v1478
    %v1648 = vsel %vm119, %v1632, %v1480
    %v1649 = vsel %vm119, %v1633, %v1482
    %v1650 = vsel %vm119, %v1634, %v1484
    %v1651 = vsel %vm119, %v1635, %v1486
    %v1652 = vsel %vm119, %v1636, %v1488
    %v1653 = vsel %vm119, %v1637, %v1490
    %v1654 = vsel %vm119, %v1638, %v1492
    %v1655 = vsel %vm119, %v1639, %v1494
    %v1656 = vsel %vm119, %v1640, %v1496
    %v1657 = vsel %vm646, %v1641, %v370
    %v1658 = vsel %vm646, %v1642, %v372
    %v1659 = vsel %vm646, %v1643, %v374
    %v1660 = vsel %vm646, %v1644, %v376
    %v1661 = vsel %vm646, %v1645, %v378
    %v1662 = vsel %vm646, %v1646, %v380
    %v1663 = vsel %vm646, %v1647, %v382
    %v1664 = vsel %vm646, %v1648, %v384
    %v1665 = vsel %vm646, %v1649, %v386
    %v1666 = vsel %vm646, %v1650, %v388
    %v1667 = vsel %vm646, %v1651, %v390
    %v1668 = vsel %vm646, %v1652, %v392
    %v1669 = vsel %vm646, %v1653, %v394
    %v1670 = vsel %vm646, %v1654, %v396
    %v1671 = vsel %vm646, %v1655, %v398
    %v1672 = vsel %vm646, %v1656, %v400
    %v1673 = vsel %vm663, %v1657, %v1530
    %v1674 = vsel %vm663, %v1658, %v1532
    %v1675 = vsel %vm663, %v1659, %v1534
    %v1676 = vsel %vm663, %v1660, %v1536
    %v1677 = vsel %vm663, %v1661, %v1538
    %v1678 = vsel %vm663, %v1662, %v1540
    %v1679 = vsel %vm663, %v1663, %v1542
    %v1680 = vsel %vm663, %v1664, %v1544
    %v1681 = vsel %vm663, %v1665, %v1546
    %v1682 = vsel %vm663, %v1666, %v1548
    %v1683 = vsel %vm663, %v1667, %v1550
    %v1684 = vsel %vm663, %v1668, %v1552
    %v1685 = vsel %vm663, %v1669, %v1554
    %v1686 = vsel %vm663, %v1670, %v1556
    %v1687 = vsel %vm663, %v1671, %v1558
    %v1688 = vsel %vm663, %v1672, %v1560
    %v1689 = vsel %vm680, %v1673, %v1578
    %v1690 = vsel %vm680, %v1674, %v1580
    %v1691 = vsel %vm680, %v1675, %v1582
    %v1692 = vsel %vm680, %v1676, %v1584
    %v1693 = vsel %vm680, %v1677, %v1586
    %v1694 = vsel %vm680, %v1678, %v1588
    %v1695 = vsel %vm680, %v1679, %v1590
    %v1696 = vsel %vm680, %v1680, %v1592
    %v1697 = vsel %vm680, %v1681, %v1594
    %v1698 = vsel %vm680, %v1682, %v1596
    %v1699 = vsel %vm680, %v1683, %v1598
    %v1700 = vsel %vm680, %v1684, %v1600
    %v1701 = vsel %vm680, %v1685, %v1602
    %v1702 = vsel %vm680, %v1686, %v1604
    %v1703 = vsel %vm680, %v1687, %v1606
    %v1704 = vsel %vm680, %v1688, %v1608
    %v1705 = vpack.c.bf16 %v682, %v681
    %v1706 = vpack.c.bf16 %v684, %v683
    %v1707 = vpack.c.bf16 %v686, %v685
    %v1708 = vpack.c.bf16 %v688, %v687
    %v1709 = vpack.c.bf16 %v690, %v689
    %v1710 = vpack.c.bf16 %v692, %v691
    %v1711 = vpack.c.bf16 %v694, %v693
    %v1712 = vpack.c.bf16 %v696, %v695
    %v1713 = vpack.c.bf16 %v1018, %v1017
    %v1714 = vpack.c.bf16 %v1020, %v1019
    %v1715 = vpack.c.bf16 %v1022, %v1021
    %v1716 = vpack.c.bf16 %v1024, %v1023
    %v1717 = vpack.c.bf16 %v1026, %v1025
    %v1718 = vpack.c.bf16 %v1028, %v1027
    %v1719 = vpack.c.bf16 %v1030, %v1029
    %v1720 = vpack.c.bf16 %v1032, %v1031
    %v1721 = vpack.c.bf16 %v1354, %v1353
    %v1722 = vpack.c.bf16 %v1356, %v1355
    %v1723 = vpack.c.bf16 %v1358, %v1357
    %v1724 = vpack.c.bf16 %v1360, %v1359
    %v1725 = vpack.c.bf16 %v1362, %v1361
    %v1726 = vpack.c.bf16 %v1364, %v1363
    %v1727 = vpack.c.bf16 %v1366, %v1365
    %v1728 = vpack.c.bf16 %v1368, %v1367
    %v1729 = vpack.c.bf16 %v1690, %v1689
    %v1730 = vpack.c.bf16 %v1692, %v1691
    %v1731 = vpack.c.bf16 %v1694, %v1693
    %v1732 = vpack.c.bf16 %v1696, %v1695
    %v1733 = vpack.c.bf16 %v1698, %v1697
    %v1734 = vpack.c.bf16 %v1700, %v1699
    %v1735 = vpack.c.bf16 %v1702, %v1701
    %v1736 = vpack.c.bf16 %v1704, %v1703
    %v1737 = vld [vmem:[%s1] sm:$0x7]
    %v1738 = vld [vmem:[%s2] sm:$0x1]
    %v1740 = vlaneseq
    %v1741 = vshrl.u32 %v1740, 7
    %v1742 = vsub.s32 0, %v1741
    %v1743 = vrot.slane %v1738, %v1742
    %vm1745 = vcmask 48128
    %v1747 = vsel %vm1745, %v1705, 0
    %v1750 = vsel %vm1745, %v1706, 0
    %v1753 = vsel %vm1745, %v1707, 0
    %v1756 = vsel %vm1745, %v1708, 0
    %v1759 = vsel %vm1745, %v1709, 0
    %v1762 = vsel %vm1745, %v1710, 0
    %v1765 = vsel %vm1745, %v1711, 0
    %v1768 = vsel %vm1745, %v1712, 0
    %v1771 = vsel %vm1745, %v1713, 0
    %v1774 = vsel %vm1745, %v1714, 0
    %v1777 = vsel %vm1745, %v1715, 0
    %v1780 = vsel %vm1745, %v1716, 0
    %v1783 = vsel %vm1745, %v1717, 0
    %v1786 = vsel %vm1745, %v1718, 0
    %v1789 = vsel %vm1745, %v1719, 0
    %v1792 = vsel %vm1745, %v1720, 0
    %v1795 = vsel %vm1745, %v1721, 0
    %v1798 = vsel %vm1745, %v1722, 0
    %v1801 = vsel %vm1745, %v1723, 0
    %v1804 = vsel %vm1745, %v1724, 0
    %v1807 = vsel %vm1745, %v1725, 0
    %v1810 = vsel %vm1745, %v1726, 0
    %v1813 = vsel %vm1745, %v1727, 0
    %v1816 = vsel %vm1745, %v1728, 0
    %v1819 = vsel %vm1745, %v1729, 0
    %v1822 = vsel %vm1745, %v1730, 0
    %v1825 = vsel %vm1745, %v1731, 0
    %v1828 = vsel %vm1745, %v1732, 0
    %v1831 = vsel %vm1745, %v1733, 0
    %v1834 = vsel %vm1745, %v1734, 0
    %v1837 = vsel %vm1745, %v1735, 0
    %v1840 = vsel %vm1745, %v1736, 0
    %v1843 = vsel %vm531, %v1737, 0
    %1845 = vmatprep.subr.bf16.mxu0 0
    %1846 = vmatpush1.bf16.msra.mxu0 0
    %1847 = vmatprep.subr.bf16.mxu0 0
    %1848 = vmatpush1.bf16.msra.mxu0 0
    %1849 = vmatprep.subr.bf16.mxu0 0
    %1850 = vmatpush1.bf16.msra.mxu0 0
    %1851 = vmatprep.subr.bf16.mxu0 0
    %1852 = vmatpush1.bf16.msra.mxu0 0
    %1853 = vmatprep.subr.bf16.mxu0 0
    %1854 = vmatpush1.bf16.msra.mxu0 0
    %1855 = vmatprep.subr.bf16.mxu0 0
    %1856 = vmatpush1.bf16.msra.mxu0 0
    %1857 = vmatprep.subr.bf16.mxu0 0
    %1858 = vmatpush1.bf16.msra.mxu0 0
    %1859 = vmatprep.subr.bf16.mxu0 0
    %1860 = vmatpush1.bf16.msra.mxu0 %v1843
    %1861 = vmatprep.subr.bf16.mxu0 0
    %1862 = vmatpush2.bf16.msra.mxu0 0
    %1863 = vmatprep.subr.bf16.mxu0 0
    %1864 = vmatpush2.bf16.msra.mxu0 0
    %1865 = vmatprep.subr.bf16.mxu0 0
    %1866 = vmatpush2.bf16.msra.mxu0 0
    %1867 = vmatprep.subr.bf16.mxu0 0
    %1868 = vmatpush2.bf16.msra.mxu0 0
    %1869 = vmatprep.subr.bf16.mxu0 0
    %1870 = vmatpush2.bf16.msra.mxu0 0
    %1871 = vmatprep.subr.bf16.mxu0 0
    %1872 = vmatpush2.bf16.msra.mxu0 0
    %1873 = vmatprep.subr.bf16.mxu0 0
    %1874 = vmatpush2.bf16.msra.mxu0 0
    %1875 = vmatprep.subr.bf16.mxu0 0
    %1876 = vmatpush2.bf16.msra.mxu0 0
    %1877 = vmatprep.mubr.bf16.mxu0 0
    %1878 = vmatmul.mubr.bf16.gmra.mxu0 %v1747
    %v1879 = vpop.f32.mrf.mxu0
    %v1880 = vadd.f32 %v1743, %v1879
    %v1881 = vpop.f32.mrf.mxu0
    %v1882 = vpop.f32.mrf.mxu0
    %v1883 = vadd.f32 %v1743, %v1882
    %v1884 = vpop.f32.mrf.mxu0
    %1885 = vmatprep.mubr.bf16.mxu0 0
    %1886 = vmatmul.mubr.bf16.gmra.mxu0 %v1750
    %v1887 = vpop.f32.mrf.mxu0
    %v1888 = vadd.f32 %v1743, %v1887
    %v1889 = vpop.f32.mrf.mxu0
    %v1890 = vpop.f32.mrf.mxu0
    %v1891 = vadd.f32 %v1743, %v1890
    %v1892 = vpop.f32.mrf.mxu0
    %1893 = vmatprep.mubr.bf16.mxu0 0
    %1894 = vmatmul.mubr.bf16.gmra.mxu0 %v1753
    %v1895 = vpop.f32.mrf.mxu0
    %v1896 = vadd.f32 %v1743, %v1895
    %v1897 = vpop.f32.mrf.mxu0
    %v1898 = vpop.f32.mrf.mxu0
    %v1899 = vadd.f32 %v1743, %v1898
    %v1900 = vpop.f32.mrf.mxu0
    %1901 = vmatprep.mubr.bf16.mxu0 0
    %1902 = vmatmul.mubr.bf16.gmra.mxu0 %v1756
    %v1903 = vpop.f32.mrf.mxu0
    %v1904 = vadd.f32 %v1743, %v1903
    %v1905 = vpop.f32.mrf.mxu0
    %v1906 = vpop.f32.mrf.mxu0
    %v1907 = vadd.f32 %v1743, %v1906
    %v1908 = vpop.f32.mrf.mxu0
    %1909 = vmatprep.mubr.bf16.mxu0 0
    %1910 = vmatmul.mubr.bf16.gmra.mxu0 %v1759
    %v1911 = vpop.f32.mrf.mxu0
    %v1912 = vadd.f32 %v1743, %v1911
    %v1913 = vpop.f32.mrf.mxu0
    %v1914 = vpop.f32.mrf.mxu0
    %v1915 = vadd.f32 %v1743, %v1914
    %v1916 = vpop.f32.mrf.mxu0
    %1917 = vmatprep.mubr.bf16.mxu0 0
    %1918 = vmatmul.mubr.bf16.gmra.mxu0 %v1762
    %v1919 = vpop.f32.mrf.mxu0
    %v1920 = vadd.f32 %v1743, %v1919
    %v1921 = vpop.f32.mrf.mxu0
    %v1922 = vpop.f32.mrf.mxu0
    %v1923 = vadd.f32 %v1743, %v1922
    %v1924 = vpop.f32.mrf.mxu0
    %1925 = vmatprep.mubr.bf16.mxu0 0
    %1926 = vmatmul.mubr.bf16.gmra.mxu0 %v1765
    %v1927 = vpop.f32.mrf.mxu0
    %v1928 = vadd.f32 %v1743, %v1927
    %v1929 = vpop.f32.mrf.mxu0
    %v1930 = vpop.f32.mrf.mxu0
    %v1931 = vadd.f32 %v1743, %v1930
    %v1932 = vpop.f32.mrf.mxu0
    %1933 = vmatprep.mubr.bf16.mxu0 0
    %1934 = vmatmul.mubr.bf16.gmra.mxu0 %v1768
    %v1935 = vpop.f32.mrf.mxu0
    %v1936 = vadd.f32 %v1743, %v1935
    %v1937 = vpop.f32.mrf.mxu0
    %v1938 = vpop.f32.mrf.mxu0
    %v1939 = vadd.f32 %v1743, %v1938
    %v1940 = vpop.f32.mrf.mxu0
    %1941 = vmatprep.mubr.bf16.mxu0 0
    %1942 = vmatmul.mubr.bf16.gmra.mxu0 %v1771
    %v1943 = vpop.f32.mrf.mxu0
    %v1944 = vadd.f32 %v1743, %v1943
    %v1945 = vpop.f32.mrf.mxu0
    %v1946 = vpop.f32.mrf.mxu0
    %v1947 = vadd.f32 %v1743, %v1946
    %v1948 = vpop.f32.mrf.mxu0
    %1949 = vmatprep.mubr.bf16.mxu0 0
    %1950 = vmatmul.mubr.bf16.gmra.mxu0 %v1774
    %v1951 = vpop.f32.mrf.mxu0
    %v1952 = vadd.f32 %v1743, %v1951
    %v1953 = vpop.f32.mrf.mxu0
    %v1954 = vpop.f32.mrf.mxu0
    %v1955 = vadd.f32 %v1743, %v1954
    %v1956 = vpop.f32.mrf.mxu0
    %1957 = vmatprep.mubr.bf16.mxu0 0
    %1958 = vmatmul.mubr.bf16.gmra.mxu0 %v1777
    %v1959 = vpop.f32.mrf.mxu0
    %v1960 = vadd.f32 %v1743, %v1959
    %v1961 = vpop.f32.mrf.mxu0
    %v1962 = vpop.f32.mrf.mxu0
    %v1963 = vadd.f32 %v1743, %v1962
    %v1964 = vpop.f32.mrf.mxu0
    %1965 = vmatprep.mubr.bf16.mxu0 0
    %1966 = vmatmul.mubr.bf16.gmra.mxu0 %v1780
    %v1967 = vpop.f32.mrf.mxu0
    %v1968 = vadd.f32 %v1743, %v1967
    %v1969 = vpop.f32.mrf.mxu0
    %v1970 = vpop.f32.mrf.mxu0
    %v1971 = vadd.f32 %v1743, %v1970
    %v1972 = vpop.f32.mrf.mxu0
    %1973 = vmatprep.mubr.bf16.mxu0 0
    %1974 = vmatmul.mubr.bf16.gmra.mxu0 %v1783
    %v1975 = vpop.f32.mrf.mxu0
    %v1976 = vadd.f32 %v1743, %v1975
    %v1977 = vpop.f32.mrf.mxu0
    %v1978 = vpop.f32.mrf.mxu0
    %v1979 = vadd.f32 %v1743, %v1978
    %v1980 = vpop.f32.mrf.mxu0
    %1981 = vmatprep.mubr.bf16.mxu0 0
    %1982 = vmatmul.mubr.bf16.gmra.mxu0 %v1786
    %v1983 = vpop.f32.mrf.mxu0
    %v1984 = vadd.f32 %v1743, %v1983
    %v1985 = vpop.f32.mrf.mxu0
    %v1986 = vpop.f32.mrf.mxu0
    %v1987 = vadd.f32 %v1743, %v1986
    %v1988 = vpop.f32.mrf.mxu0
    %1989 = vmatprep.mubr.bf16.mxu0 0
    %1990 = vmatmul.mubr.bf16.gmra.mxu0 %v1789
    %v1991 = vpop.f32.mrf.mxu0
    %v1992 = vadd.f32 %v1743, %v1991
    %v1993 = vpop.f32.mrf.mxu0
    %v1994 = vpop.f32.mrf.mxu0
    %v1995 = vadd.f32 %v1743, %v1994
    %v1996 = vpop.f32.mrf.mxu0
    %1997 = vmatprep.mubr.bf16.mxu0 0
    %1998 = vmatmul.mubr.bf16.gmra.mxu0 %v1792
    %v1999 = vpop.f32.mrf.mxu0
    %v2000 = vadd.f32 %v1743, %v1999
    %v2001 = vpop.f32.mrf.mxu0
    %v2002 = vpop.f32.mrf.mxu0
    %v2003 = vadd.f32 %v1743, %v2002
    %v2004 = vpop.f32.mrf.mxu0
    %2005 = vmatprep.mubr.bf16.mxu0 0
    %2006 = vmatmul.mubr.bf16.gmra.mxu0 %v1795
    %v2007 = vpop.f32.mrf.mxu0
    %v2008 = vadd.f32 %v1743, %v2007
    %v2009 = vpop.f32.mrf.mxu0
    %v2010 = vpop.f32.mrf.mxu0
    %v2011 = vadd.f32 %v1743, %v2010
    %v2012 = vpop.f32.mrf.mxu0
    %2013 = vmatprep.mubr.bf16.mxu0 0
    %2014 = vmatmul.mubr.bf16.gmra.mxu0 %v1798
    %v2015 = vpop.f32.mrf.mxu0
    %v2016 = vadd.f32 %v1743, %v2015
    %v2017 = vpop.f32.mrf.mxu0
    %v2018 = vpop.f32.mrf.mxu0
    %v2019 = vadd.f32 %v1743, %v2018
    %v2020 = vpop.f32.mrf.mxu0
    %2021 = vmatprep.mubr.bf16.mxu0 0
    %2022 = vmatmul.mubr.bf16.gmra.mxu0 %v1801
    %v2023 = vpop.f32.mrf.mxu0
    %v2024 = vadd.f32 %v1743, %v2023
    %v2025 = vpop.f32.mrf.mxu0
    %v2026 = vpop.f32.mrf.mxu0
    %v2027 = vadd.f32 %v1743, %v2026
    %v2028 = vpop.f32.mrf.mxu0
    %2029 = vmatprep.mubr.bf16.mxu0 0
    %2030 = vmatmul.mubr.bf16.gmra.mxu0 %v1804
    %v2031 = vpop.f32.mrf.mxu0
    %v2032 = vadd.f32 %v1743, %v2031
    %v2033 = vpop.f32.mrf.mxu0
    %v2034 = vpop.f32.mrf.mxu0
    %v2035 = vadd.f32 %v1743, %v2034
    %v2036 = vpop.f32.mrf.mxu0
    %2037 = vmatprep.mubr.bf16.mxu0 0
    %2038 = vmatmul.mubr.bf16.gmra.mxu0 %v1807
    %v2039 = vpop.f32.mrf.mxu0
    %v2040 = vadd.f32 %v1743, %v2039
    %v2041 = vpop.f32.mrf.mxu0
    %v2042 = vpop.f32.mrf.mxu0
    %v2043 = vadd.f32 %v1743, %v2042
    %v2044 = vpop.f32.mrf.mxu0
    %2045 = vmatprep.mubr.bf16.mxu0 0
    %2046 = vmatmul.mubr.bf16.gmra.mxu0 %v1810
    %v2047 = vpop.f32.mrf.mxu0
    %v2048 = vadd.f32 %v1743, %v2047
    %v2049 = vpop.f32.mrf.mxu0
    %v2050 = vpop.f32.mrf.mxu0
    %v2051 = vadd.f32 %v1743, %v2050
    %v2052 = vpop.f32.mrf.mxu0
    %2053 = vmatprep.mubr.bf16.mxu0 0
    %2054 = vmatmul.mubr.bf16.gmra.mxu0 %v1813
    %v2055 = vpop.f32.mrf.mxu0
    %v2056 = vadd.f32 %v1743, %v2055
    %v2057 = vpop.f32.mrf.mxu0
    %v2058 = vpop.f32.mrf.mxu0
    %v2059 = vadd.f32 %v1743, %v2058
    %v2060 = vpop.f32.mrf.mxu0
    %2061 = vmatprep.mubr.bf16.mxu0 0
    %2062 = vmatmul.mubr.bf16.gmra.mxu0 %v1816
    %v2063 = vpop.f32.mrf.mxu0
    %v2064 = vadd.f32 %v1743, %v2063
    %v2065 = vpop.f32.mrf.mxu0
    %v2066 = vpop.f32.mrf.mxu0
    %v2067 = vadd.f32 %v1743, %v2066
    %v2068 = vpop.f32.mrf.mxu0
    %2069 = vmatprep.mubr.bf16.mxu0 0
    %2070 = vmatmul.mubr.bf16.gmra.mxu0 %v1819
    %v2071 = vpop.f32.mrf.mxu0
    %v2072 = vadd.f32 %v1743, %v2071
    %v2073 = vpop.f32.mrf.mxu0
    %v2074 = vpop.f32.mrf.mxu0
    %v2075 = vadd.f32 %v1743, %v2074
    %v2076 = vpop.f32.mrf.mxu0
    %2077 = vmatprep.mubr.bf16.mxu0 0
    %2078 = vmatmul.mubr.bf16.gmra.mxu0 %v1822
    %v2079 = vpop.f32.mrf.mxu0
    %v2080 = vadd.f32 %v1743, %v2079
    %v2081 = vpop.f32.mrf.mxu0
    %v2082 = vpop.f32.mrf.mxu0
    %v2083 = vadd.f32 %v1743, %v2082
    %v2084 = vpop.f32.mrf.mxu0
    %2085 = vmatprep.mubr.bf16.mxu0 0
    %2086 = vmatmul.mubr.bf16.gmra.mxu0 %v1825
    %v2087 = vpop.f32.mrf.mxu0
    %v2088 = vadd.f32 %v1743, %v2087
    %v2089 = vpop.f32.mrf.mxu0
    %v2090 = vpop.f32.mrf.mxu0
    %v2091 = vadd.f32 %v1743, %v2090
    %v2092 = vpop.f32.mrf.mxu0
    %2093 = vmatprep.mubr.bf16.mxu0 0
    %2094 = vmatmul.mubr.bf16.gmra.mxu0 %v1828
    %v2095 = vpop.f32.mrf.mxu0
    %v2096 = vadd.f32 %v1743, %v2095
    %v2097 = vpop.f32.mrf.mxu0
    %v2098 = vpop.f32.mrf.mxu0
    %v2099 = vadd.f32 %v1743, %v2098
    %v2100 = vpop.f32.mrf.mxu0
    %2101 = vmatprep.mubr.bf16.mxu0 0
    %2102 = vmatmul.mubr.bf16.gmra.mxu0 %v1831
    %v2103 = vpop.f32.mrf.mxu0
    %v2104 = vadd.f32 %v1743, %v2103
    %v2105 = vpop.f32.mrf.mxu0
    %v2106 = vpop.f32.mrf.mxu0
    %v2107 = vadd.f32 %v1743, %v2106
    %v2108 = vpop.f32.mrf.mxu0
    %2109 = vmatprep.mubr.bf16.mxu0 0
    %2110 = vmatmul.mubr.bf16.gmra.mxu0 %v1834
    %v2111 = vpop.f32.mrf.mxu0
    %v2112 = vadd.f32 %v1743, %v2111
    %v2113 = vpop.f32.mrf.mxu0
    %v2114 = vpop.f32.mrf.mxu0
    %v2115 = vadd.f32 %v1743, %v2114
    %v2116 = vpop.f32.mrf.mxu0
    %2117 = vmatprep.mubr.bf16.mxu0 0
    %2118 = vmatmul.mubr.bf16.gmra.mxu0 %v1837
    %v2119 = vpop.f32.mrf.mxu0
    %v2120 = vadd.f32 %v1743, %v2119
    %v2121 = vpop.f32.mrf.mxu0
    %v2122 = vpop.f32.mrf.mxu0
    %v2123 = vadd.f32 %v1743, %v2122
    %v2124 = vpop.f32.mrf.mxu0
    %2125 = vmatprep.mubr.bf16.mxu0 0
    %2126 = vmatmul.mubr.bf16.gmra.mxu0 %v1840
    %v2127 = vpop.f32.mrf.mxu0
    %v2128 = vadd.f32 %v1743, %v2127
    %v2129 = vpop.f32.mrf.mxu0
    %v2130 = vpop.f32.mrf.mxu0
    %v2131 = vadd.f32 %v1743, %v2130
    %v2132 = vpop.f32.mrf.mxu0
    %2133 = vdwg.mxu0
    %v2134 = vmax.f32 %v1880, 0.0
    %v2135 = vmax.f32 %v1883, 0.0
    %v2136 = vmax.f32 %v1888, 0.0
    %v2137 = vmax.f32 %v1891, 0.0
    %v2138 = vmax.f32 %v1896, 0.0
    %v2139 = vmax.f32 %v1899, 0.0
    %v2140 = vmax.f32 %v1904, 0.0
    %v2141 = vmax.f32 %v1907, 0.0
    %v2142 = vmax.f32 %v1912, 0.0
    %v2143 = vmax.f32 %v1915, 0.0
    %v2144 = vmax.f32 %v1920, 0.0
    %v2145 = vmax.f32 %v1923, 0.0
    %v2146 = vmax.f32 %v1928, 0.0
    %v2147 = vmax.f32 %v1931, 0.0
    %v2148 = vmax.f32 %v1936, 0.0
    %v2149 = vmax.f32 %v1939, 0.0
    %v2150 = vmax.f32 %v1944, 0.0
    %v2151 = vmax.f32 %v1947, 0.0
    %v2152 = vmax.f32 %v1952, 0.0
    %v2153 = vmax.f32 %v1955, 0.0
    %v2154 = vmax.f32 %v1960, 0.0
    %v2155 = vmax.f32 %v1963, 0.0
    %v2156 = vmax.f32 %v1968, 0.0
    %v2157 = vmax.f32 %v1971, 0.0
    %v2158 = vmax.f32 %v1976, 0.0
    %v2159 = vmax.f32 %v1979, 0.0
    %v2160 = vmax.f32 %v1984, 0.0
    %v2161 = vmax.f32 %v1987, 0.0
    %v2162 = vmax.f32 %v1992, 0.0
    %v2163 = vmax.f32 %v1995, 0.0
    %v2164 = vmax.f32 %v2000, 0.0
    %v2165 = vmax.f32 %v2003, 0.0
    %v2166 = vmax.f32 %v2008, 0.0
    %v2167 = vmax.f32 %v2011, 0.0
    %v2168 = vmax.f32 %v2016, 0.0
    %v2169 = vmax.f32 %v2019, 0.0
    %v2170 = vmax.f32 %v2024, 0.0
    %v2171 = vmax.f32 %v2027, 0.0
    %v2172 = vmax.f32 %v2032, 0.0
    %v2173 = vmax.f32 %v2035, 0.0
    %v2174 = vmax.f32 %v2040, 0.0
    %v2175 = vmax.f32 %v2043, 0.0
    %v2176 = vmax.f32 %v2048, 0.0
    %v2177 = vmax.f32 %v2051, 0.0
    %v2178 = vmax.f32 %v2056, 0.0
    %v2179 = vmax.f32 %v2059, 0.0
    %v2180 = vmax.f32 %v2064, 0.0
    %v2181 = vmax.f32 %v2067, 0.0
    %v2182 = vmax.f32 %v2072, 0.0
    %v2183 = vmax.f32 %v2075, 0.0
    %v2184 = vmax.f32 %v2080, 0.0
    %v2185 = vmax.f32 %v2083, 0.0
    %v2186 = vmax.f32 %v2088, 0.0
    %v2187 = vmax.f32 %v2091, 0.0
    %v2188 = vmax.f32 %v2096, 0.0
    %v2189 = vmax.f32 %v2099, 0.0
    %v2190 = vmax.f32 %v2104, 0.0
    %v2191 = vmax.f32 %v2107, 0.0
    %v2192 = vmax.f32 %v2112, 0.0
    %v2193 = vmax.f32 %v2115, 0.0
    %v2194 = vmax.f32 %v2120, 0.0
    %v2195 = vmax.f32 %v2123, 0.0
    %v2196 = vmax.f32 %v2128, 0.0
    %v2197 = vmax.f32 %v2131, 0.0
    %v2262 = vrot.slane %v2134, 1
    %v2263 = vrot.slane %v2135, 1
    %v2264 = vsel %vm203, %v2262, %v2263
    %v2265 = vrot.slane %v2136, 1
    %v2266 = vsel %vm203, %v2263, %v2265
    %v2267 = vrot.slane %v2137, 1
    %v2268 = vsel %vm203, %v2265, %v2267
    %v2269 = vrot.slane %v2138, 1
    %v2270 = vsel %vm203, %v2267, %v2269
    %v2271 = vrot.slane %v2139, 1
    %v2272 = vsel %vm203, %v2269, %v2271
    %v2273 = vrot.slane %v2140, 1
    %v2274 = vsel %vm203, %v2271, %v2273
    %v2275 = vrot.slane %v2141, 1
    %v2276 = vsel %vm203, %v2273, %v2275
    %v2277 = vrot.slane %v2142, 1
    %v2278 = vsel %vm203, %v2275, %v2277
    %v2279 = vrot.slane %v2143, 1
    %v2280 = vsel %vm203, %v2277, %v2279
    %v2281 = vrot.slane %v2144, 1
    %v2282 = vsel %vm203, %v2279, %v2281
    %v2283 = vrot.slane %v2145, 1
    %v2284 = vsel %vm203, %v2281, %v2283
    %v2285 = vrot.slane %v2146, 1
    %v2286 = vsel %vm203, %v2283, %v2285
    %v2287 = vrot.slane %v2147, 1
    %v2288 = vsel %vm203, %v2285, %v2287
    %v2289 = vrot.slane %v2148, 1
    %v2290 = vsel %vm203, %v2287, %v2289
    %v2291 = vrot.slane %v2149, 1
    %v2292 = vsel %vm203, %v2289, %v2291
    %v2293 = vrot.slane %v2150, 1
    %v2294 = vrot.slane %v2151, 1
    %v2295 = vsel %vm203, %v2293, %v2294
    %v2296 = vrot.slane %v2152, 1
    %v2297 = vsel %vm203, %v2294, %v2296
    %v2298 = vrot.slane %v2153, 1
    %v2299 = vsel %vm203, %v2296, %v2298
    %v2300 = vrot.slane %v2154, 1
    %v2301 = vsel %vm203, %v2298, %v2300
    %v2302 = vrot.slane %v2155, 1
    %v2303 = vsel %vm203, %v2300, %v2302
    %v2304 = vrot.slane %v2156, 1
    %v2305 = vsel %vm203, %v2302, %v2304
    %v2306 = vrot.slane %v2157, 1
    %v2307 = vsel %vm203, %v2304, %v2306
    %v2308 = vrot.slane %v2158, 1
    %v2309 = vsel %vm203, %v2306, %v2308
    %v2310 = vrot.slane %v2159, 1
    %v2311 = vsel %vm203, %v2308, %v2310
    %v2312 = vrot.slane %v2160, 1
    %v2313 = vsel %vm203, %v2310, %v2312
    %v2314 = vrot.slane %v2161, 1
    %v2315 = vsel %vm203, %v2312, %v2314
    %v2316 = vrot.slane %v2162, 1
    %v2317 = vsel %vm203, %v2314, %v2316
    %v2318 = vrot.slane %v2163, 1
    %v2319 = vsel %vm203, %v2316, %v2318
    %v2320 = vrot.slane %v2164, 1
    %v2321 = vsel %vm203, %v2318, %v2320
    %v2322 = vrot.slane %v2165, 1
    %v2323 = vsel %vm203, %v2320, %v2322
    %v2324 = vrot.slane %v2166, 1
    %v2325 = vrot.slane %v2167, 1
    %v2326 = vsel %vm203, %v2324, %v2325
    %v2327 = vrot.slane %v2168, 1
    %v2328 = vsel %vm203, %v2325, %v2327
    %v2329 = vrot.slane %v2169, 1
    %v2330 = vsel %vm203, %v2327, %v2329
    %v2331 = vrot.slane %v2170, 1
    %v2332 = vsel %vm203, %v2329, %v2331
    %v2333 = vrot.slane %v2171, 1
    %v2334 = vsel %vm203, %v2331, %v2333
    %v2335 = vrot.slane %v2172, 1
    %v2336 = vsel %vm203, %v2333, %v2335
    %v2337 = vrot.slane %v2173, 1
    %v2338 = vsel %vm203, %v2335, %v2337
    %v2339 = vrot.slane %v2174, 1
    %v2340 = vsel %vm203, %v2337, %v2339
    %v2341 = vrot.slane %v2175, 1
    %v2342 = vsel %vm203, %v2339, %v2341
    %v2343 = vrot.slane %v2176, 1
    %v2344 = vsel %vm203, %v2341, %v2343
    %v2345 = vrot.slane %v2177, 1
    %v2346 = vsel %vm203, %v2343, %v2345
    %v2347 = vrot.slane %v2178, 1
    %v2348 = vsel %vm203, %v2345, %v2347
    %v2349 = vrot.slane %v2179, 1
    %v2350 = vsel %vm203, %v2347, %v2349
    %v2351 = vrot.slane %v2180, 1
    %v2352 = vsel %vm203, %v2349, %v2351
    %v2353 = vrot.slane %v2181, 1
    %v2354 = vsel %vm203, %v2351, %v2353
    %v2355 = vrot.slane %v2182, 1
    %v2356 = vrot.slane %v2183, 1
    %v2357 = vsel %vm203, %v2355, %v2356
    %v2358 = vrot.slane %v2184, 1
    %v2359 = vsel %vm203, %v2356, %v2358
    %v2360 = vrot.slane %v2185, 1
    %v2361 = vsel %vm203, %v2358, %v2360
    %v2362 = vrot.slane %v2186, 1
    %v2363 = vsel %vm203, %v2360, %v2362
    %v2364 = vrot.slane %v2187, 1
    %v2365 = vsel %vm203, %v2362, %v2364
    %v2366 = vrot.slane %v2188, 1
    %v2367 = vsel %vm203, %v2364, %v2366
    %v2368 = vrot.slane %v2189, 1
    %v2369 = vsel %vm203, %v2366, %v2368
    %v2370 = vrot.slane %v2190, 1
    %v2371 = vsel %vm203, %v2368, %v2370
    %v2372 = vrot.slane %v2191, 1
    %v2373 = vsel %vm203, %v2370, %v2372
    %v2374 = vrot.slane %v2192, 1
    %v2375 = vsel %vm203, %v2372, %v2374
    %v2376 = vrot.slane %v2193, 1
    %v2377 = vsel %vm203, %v2374, %v2376
    %v2378 = vrot.slane %v2194, 1
    %v2379 = vsel %vm203, %v2376, %v2378
    %v2380 = vrot.slane %v2195, 1
    %v2381 = vsel %vm203, %v2378, %v2380
    %v2382 = vrot.slane %v2196, 1
    %v2383 = vsel %vm203, %v2380, %v2382
    %v2384 = vrot.slane %v2197, 1
    %v2385 = vsel %vm203, %v2382, %v2384
    %v2450 = vmax.f32 %v2134, %v2264
    %v2451 = vmax.f32 %v2135, %v2266
    %v2452 = vmax.f32 %v2136, %v2268
    %v2453 = vmax.f32 %v2137, %v2270
    %v2454 = vmax.f32 %v2138, %v2272
    %v2455 = vmax.f32 %v2139, %v2274
    %v2456 = vmax.f32 %v2140, %v2276
    %v2457 = vmax.f32 %v2141, %v2278
    %v2458 = vmax.f32 %v2142, %v2280
    %v2459 = vmax.f32 %v2143, %v2282
    %v2460 = vmax.f32 %v2144, %v2284
    %v2461 = vmax.f32 %v2145, %v2286
    %v2462 = vmax.f32 %v2146, %v2288
    %v2463 = vmax.f32 %v2147, %v2290
    %v2464 = vmax.f32 %v2148, %v2292
    %v2465 = vmax.f32 %v2149, %v2291
    %v2466 = vmax.f32 %v2150, %v2295
    %v2467 = vmax.f32 %v2151, %v2297
    %v2468 = vmax.f32 %v2152, %v2299
    %v2469 = vmax.f32 %v2153, %v2301
    %v2470 = vmax.f32 %v2154, %v2303
    %v2471 = vmax.f32 %v2155, %v2305
    %v2472 = vmax.f32 %v2156, %v2307
    %v2473 = vmax.f32 %v2157, %v2309
    %v2474 = vmax.f32 %v2158, %v2311
    %v2475 = vmax.f32 %v2159, %v2313
    %v2476 = vmax.f32 %v2160, %v2315
    %v2477 = vmax.f32 %v2161, %v2317
    %v2478 = vmax.f32 %v2162, %v2319
    %v2479 = vmax.f32 %v2163, %v2321
    %v2480 = vmax.f32 %v2164, %v2323
    %v2481 = vmax.f32 %v2165, %v2322
    %v2482 = vmax.f32 %v2166, %v2326
    %v2483 = vmax.f32 %v2167, %v2328
    %v2484 = vmax.f32 %v2168, %v2330
    %v2485 = vmax.f32 %v2169, %v2332
    %v2486 = vmax.f32 %v2170, %v2334
    %v2487 = vmax.f32 %v2171, %v2336
    %v2488 = vmax.f32 %v2172, %v2338
    %v2489 = vmax.f32 %v2173, %v2340
    %v2490 = vmax.f32 %v2174, %v2342
    %v2491 = vmax.f32 %v2175, %v2344
    %v2492 = vmax.f32 %v2176, %v2346
    %v2493 = vmax.f32 %v2177, %v2348
    %v2494 = vmax.f32 %v2178, %v2350
    %v2495 = vmax.f32 %v2179, %v2352
    %v2496 = vmax.f32 %v2180, %v2354
    %v2497 = vmax.f32 %v2181, %v2353
    %v2498 = vmax.f32 %v2182, %v2357
    %v2499 = vmax.f32 %v2183, %v2359
    %v2500 = vmax.f32 %v2184, %v2361
    %v2501 = vmax.f32 %v2185, %v2363
    %v2502 = vmax.f32 %v2186, %v2365
    %v2503 = vmax.f32 %v2187, %v2367
    %v2504 = vmax.f32 %v2188, %v2369
    %v2505 = vmax.f32 %v2189, %v2371
    %v2506 = vmax.f32 %v2190, %v2373
    %v2507 = vmax.f32 %v2191, %v2375
    %v2508 = vmax.f32 %v2192, %v2377
    %v2509 = vmax.f32 %v2193, %v2379
    %v2510 = vmax.f32 %v2194, %v2381
    %v2511 = vmax.f32 %v2195, %v2383
    %v2512 = vmax.f32 %v2196, %v2385
    %v2513 = vmax.f32 %v2197, %v2384
    %v2514 = vsel %vm203, %v2465, %v2149
    %v2515 = vsel %vm203, %v2481, %v2165
    %v2516 = vsel %vm203, %v2497, %v2181
    %v2517 = vsel %vm203, %v2513, %v2197
    %v2518 = vmax.f32 %v2450, %v2466
    %v2519 = vmax.f32 %v2451, %v2467
    %v2520 = vmax.f32 %v2452, %v2468
    %v2521 = vmax.f32 %v2453, %v2469
    %v2522 = vmax.f32 %v2454, %v2470
    %v2523 = vmax.f32 %v2455, %v2471
    %v2524 = vmax.f32 %v2456, %v2472
    %v2525 = vmax.f32 %v2457, %v2473
    %v2526 = vmax.f32 %v2458, %v2474
    %v2527 = vmax.f32 %v2459, %v2475
    %v2528 = vmax.f32 %v2460, %v2476
    %v2529 = vmax.f32 %v2461, %v2477
    %v2530 = vmax.f32 %v2462, %v2478
    %v2531 = vmax.f32 %v2463, %v2479
    %v2532 = vmax.f32 %v2464, %v2480
    %v2533 = vmax.f32 %v2514, %v2515
    %v2534 = vmax.f32 %v2482, %v2498
    %v2535 = vmax.f32 %v2483, %v2499
    %v2536 = vmax.f32 %v2484, %v2500
    %v2537 = vmax.f32 %v2485, %v2501
    %v2538 = vmax.f32 %v2486, %v2502
    %v2539 = vmax.f32 %v2487, %v2503
    %v2540 = vmax.f32 %v2488, %v2504
    %v2541 = vmax.f32 %v2489, %v2505
    %v2542 = vmax.f32 %v2490, %v2506
    %v2543 = vmax.f32 %v2491, %v2507
    %v2544 = vmax.f32 %v2492, %v2508
    %v2545 = vmax.f32 %v2493, %v2509
    %v2546 = vmax.f32 %v2494, %v2510
    %v2547 = vmax.f32 %v2495, %v2511
    %v2548 = vmax.f32 %v2496, %v2512
    %v2549 = vmax.f32 %v2516, %v2517
    %vm2614 = vcmask 1041408
    %v2615 = vrot.slane %v2518, 6
    %v2616 = vrot.slane %v2519, 6
    %v2617 = vsel %vm2614, %v2615, %v2616
    %v2618 = vrot.slane %v2520, 6
    %v2619 = vsel %vm2614, %v2616, %v2618
    %v2620 = vrot.slane %v2521, 6
    %v2621 = vsel %vm2614, %v2618, %v2620
    %v2622 = vrot.slane %v2522, 6
    %v2623 = vsel %vm2614, %v2620, %v2622
    %v2624 = vrot.slane %v2523, 6
    %v2625 = vsel %vm2614, %v2622, %v2624
    %v2626 = vrot.slane %v2524, 6
    %v2627 = vsel %vm2614, %v2624, %v2626
    %v2628 = vrot.slane %v2525, 6
    %v2629 = vsel %vm2614, %v2626, %v2628
    %v2630 = vrot.slane %v2526, 6
    %v2631 = vsel %vm2614, %v2628, %v2630
    %v2632 = vrot.slane %v2527, 6
    %v2633 = vsel %vm2614, %v2630, %v2632
    %v2634 = vrot.slane %v2528, 6
    %v2635 = vsel %vm2614, %v2632, %v2634
    %v2636 = vrot.slane %v2529, 6
    %v2637 = vsel %vm2614, %v2634, %v2636
    %v2638 = vrot.slane %v2530, 6
    %v2639 = vsel %vm2614, %v2636, %v2638
    %v2640 = vrot.slane %v2531, 6
    %v2641 = vsel %vm2614, %v2638, %v2640
    %v2642 = vrot.slane %v2532, 6
    %v2643 = vsel %vm2614, %v2640, %v2642
    %v2644 = vrot.slane %v2533, 6
    %v2645 = vsel %vm2614, %v2642, %v2644
    %v2646 = vrot.slane %v2466, 6
    %v2647 = vrot.slane %v2467, 6
    %v2648 = vsel %vm2614, %v2646, %v2647
    %v2649 = vrot.slane %v2468, 6
    %v2650 = vsel %vm2614, %v2647, %v2649
    %v2651 = vrot.slane %v2469, 6
    %v2652 = vsel %vm2614, %v2649, %v2651
    %v2653 = vrot.slane %v2470, 6
    %v2654 = vsel %vm2614, %v2651, %v2653
    %v2655 = vrot.slane %v2471, 6
    %v2656 = vsel %vm2614, %v2653, %v2655
    %v2657 = vrot.slane %v2472, 6
    %v2658 = vsel %vm2614, %v2655, %v2657
    %v2659 = vrot.slane %v2473, 6
    %v2660 = vsel %vm2614, %v2657, %v2659
    %v2661 = vrot.slane %v2474, 6
    %v2662 = vsel %vm2614, %v2659, %v2661
    %v2663 = vrot.slane %v2475, 6
    %v2664 = vsel %vm2614, %v2661, %v2663
    %v2665 = vrot.slane %v2476, 6
    %v2666 = vsel %vm2614, %v2663, %v2665
    %v2667 = vrot.slane %v2477, 6
    %v2668 = vsel %vm2614, %v2665, %v2667
    %v2669 = vrot.slane %v2478, 6
    %v2670 = vsel %vm2614, %v2667, %v2669
    %v2671 = vrot.slane %v2479, 6
    %v2672 = vsel %vm2614, %v2669, %v2671
    %v2673 = vrot.slane %v2480, 6
    %v2674 = vsel %vm2614, %v2671, %v2673
    %v2675 = vrot.slane %v2515, 6
    %v2676 = vsel %vm2614, %v2673, %v2675
    %v2677 = vrot.slane %v2534, 6
    %v2678 = vrot.slane %v2535, 6
    %v2679 = vsel %vm2614, %v2677, %v2678
    %v2680 = vrot.slane %v2536, 6
    %v2681 = vsel %vm2614, %v2678, %v2680
    %v2682 = vrot.slane %v2537, 6
    %v2683 = vsel %vm2614, %v2680, %v2682
    %v2684 = vrot.slane %v2538, 6
    %v2685 = vsel %vm2614, %v2682, %v2684
    %v2686 = vrot.slane %v2539, 6
    %v2687 = vsel %vm2614, %v2684, %v2686
    %v2688 = vrot.slane %v2540, 6
    %v2689 = vsel %vm2614, %v2686, %v2688
    %v2690 = vrot.slane %v2541, 6
    %v2691 = vsel %vm2614, %v2688, %v2690
    %v2692 = vrot.slane %v2542, 6
    %v2693 = vsel %vm2614, %v2690, %v2692
    %v2694 = vrot.slane %v2543, 6
    %v2695 = vsel %vm2614, %v2692, %v2694
    %v2696 = vrot.slane %v2544, 6
    %v2697 = vsel %vm2614, %v2694, %v2696
    %v2698 = vrot.slane %v2545, 6
    %v2699 = vsel %vm2614, %v2696, %v2698
    %v2700 = vrot.slane %v2546, 6
    %v2701 = vsel %vm2614, %v2698, %v2700
    %v2702 = vrot.slane %v2547, 6
    %v2703 = vsel %vm2614, %v2700, %v2702
    %v2704 = vrot.slane %v2548, 6
    %v2705 = vsel %vm2614, %v2702, %v2704
    %v2706 = vrot.slane %v2549, 6
    %v2707 = vsel %vm2614, %v2704, %v2706
    %v2708 = vrot.slane %v2498, 6
    %v2709 = vrot.slane %v2499, 6
    %v2710 = vsel %vm2614, %v2708, %v2709
    %v2711 = vrot.slane %v2500, 6
    %v2712 = vsel %vm2614, %v2709, %v2711
    %v2713 = vrot.slane %v2501, 6
    %v2714 = vsel %vm2614, %v2711, %v2713
    %v2715 = vrot.slane %v2502, 6
    %v2716 = vsel %vm2614, %v2713, %v2715
    %v2717 = vrot.slane %v2503, 6
    %v2718 = vsel %vm2614, %v2715, %v2717
    %v2719 = vrot.slane %v2504, 6
    %v2720 = vsel %vm2614, %v2717, %v2719
    %v2721 = vrot.slane %v2505, 6
    %v2722 = vsel %vm2614, %v2719, %v2721
    %v2723 = vrot.slane %v2506, 6
    %v2724 = vsel %vm2614, %v2721, %v2723
    %v2725 = vrot.slane %v2507, 6
    %v2726 = vsel %vm2614, %v2723, %v2725
    %v2727 = vrot.slane %v2508, 6
    %v2728 = vsel %vm2614, %v2725, %v2727
    %v2729 = vrot.slane %v2509, 6
    %v2730 = vsel %vm2614, %v2727, %v2729
    %v2731 = vrot.slane %v2510, 6
    %v2732 = vsel %vm2614, %v2729, %v2731
    %v2733 = vrot.slane %v2511, 6
    %v2734 = vsel %vm2614, %v2731, %v2733
    %v2735 = vrot.slane %v2512, 6
    %v2736 = vsel %vm2614, %v2733, %v2735
    %v2737 = vrot.slane %v2517, 6
    %v2738 = vsel %vm2614, %v2735, %v2737
    %v2807 = vsel %vm2614, 0.0, %v2615
    %v2808 = vsel %vm2614, 0.0, %v2646
    %v2809 = vsel %vm2614, 0.0, %v2677
    %v2810 = vsel %vm2614, 0.0, %v2708
    %v2811 = vsel %vm2614, %v2644, 0.0
    %v2812 = vsel %vm2614, %v2675, 0.0
    %v2813 = vsel %vm2614, %v2706, 0.0
    %v2814 = vsel %vm2614, %v2737, 0.0
    %v2823 = vrot.slane %v2807, 1
    %v2824 = vrot.slane %v2617, 1
    %v2825 = vsel %vm203, %v2823, %v2824
    %v2826 = vrot.slane %v2619, 1
    %v2827 = vsel %vm203, %v2824, %v2826
    %v2828 = vrot.slane %v2621, 1
    %v2829 = vsel %vm203, %v2826, %v2828
    %v2830 = vrot.slane %v2623, 1
    %v2831 = vsel %vm203, %v2828, %v2830
    %v2832 = vrot.slane %v2625, 1
    %v2833 = vsel %vm203, %v2830, %v2832
    %v2834 = vrot.slane %v2627, 1
    %v2835 = vsel %vm203, %v2832, %v2834
    %v2836 = vrot.slane %v2629, 1
    %v2837 = vsel %vm203, %v2834, %v2836
    %v2838 = vrot.slane %v2631, 1
    %v2839 = vsel %vm203, %v2836, %v2838
    %v2840 = vrot.slane %v2633, 1
    %v2841 = vsel %vm203, %v2838, %v2840
    %v2842 = vrot.slane %v2635, 1
    %v2843 = vsel %vm203, %v2840, %v2842
    %v2844 = vrot.slane %v2637, 1
    %v2845 = vsel %vm203, %v2842, %v2844
    %v2846 = vrot.slane %v2639, 1
    %v2847 = vsel %vm203, %v2844, %v2846
    %v2848 = vrot.slane %v2641, 1
    %v2849 = vsel %vm203, %v2846, %v2848
    %v2850 = vrot.slane %v2643, 1
    %v2851 = vsel %vm203, %v2848, %v2850
    %v2852 = vrot.slane %v2645, 1
    %v2853 = vsel %vm203, %v2850, %v2852
    %v2854 = vrot.slane %v2811, 1
    %v2855 = vsel %vm203, %v2852, %v2854
    %v2856 = vrot.slane %v2808, 1
    %v2857 = vrot.slane %v2648, 1
    %v2858 = vsel %vm203, %v2856, %v2857
    %v2859 = vrot.slane %v2650, 1
    %v2860 = vsel %vm203, %v2857, %v2859
    %v2861 = vrot.slane %v2652, 1
    %v2862 = vsel %vm203, %v2859, %v2861
    %v2863 = vrot.slane %v2654, 1
    %v2864 = vsel %vm203, %v2861, %v2863
    %v2865 = vrot.slane %v2656, 1
    %v2866 = vsel %vm203, %v2863, %v2865
    %v2867 = vrot.slane %v2658, 1
    %v2868 = vsel %vm203, %v2865, %v2867
    %v2869 = vrot.slane %v2660, 1
    %v2870 = vsel %vm203, %v2867, %v2869
    %v2871 = vrot.slane %v2662, 1
    %v2872 = vsel %vm203, %v2869, %v2871
    %v2873 = vrot.slane %v2664, 1
    %v2874 = vsel %vm203, %v2871, %v2873
    %v2875 = vrot.slane %v2666, 1
    %v2876 = vsel %vm203, %v2873, %v2875
    %v2877 = vrot.slane %v2668, 1
    %v2878 = vsel %vm203, %v2875, %v2877
    %v2879 = vrot.slane %v2670, 1
    %v2880 = vsel %vm203, %v2877, %v2879
    %v2881 = vrot.slane %v2672, 1
    %v2882 = vsel %vm203, %v2879, %v2881
    %v2883 = vrot.slane %v2674, 1
    %v2884 = vsel %vm203, %v2881, %v2883
    %v2885 = vrot.slane %v2676, 1
    %v2886 = vsel %vm203, %v2883, %v2885
    %v2887 = vrot.slane %v2812, 1
    %v2888 = vsel %vm203, %v2885, %v2887
    %v2889 = vrot.slane %v2809, 1
    %v2890 = vrot.slane %v2679, 1
    %v2891 = vsel %vm203, %v2889, %v2890
    %v2892 = vrot.slane %v2681, 1
    %v2893 = vsel %vm203, %v2890, %v2892
    %v2894 = vrot.slane %v2683, 1
    %v2895 = vsel %vm203, %v2892, %v2894
    %v2896 = vrot.slane %v2685, 1
    %v2897 = vsel %vm203, %v2894, %v2896
    %v2898 = vrot.slane %v2687, 1
    %v2899 = vsel %vm203, %v2896, %v2898
    %v2900 = vrot.slane %v2689, 1
    %v2901 = vsel %vm203, %v2898, %v2900
    %v2902 = vrot.slane %v2691, 1
    %v2903 = vsel %vm203, %v2900, %v2902
    %v2904 = vrot.slane %v2693, 1
    %v2905 = vsel %vm203, %v2902, %v2904
    %v2906 = vrot.slane %v2695, 1
    %v2907 = vsel %vm203, %v2904, %v2906
    %v2908 = vrot.slane %v2697, 1
    %v2909 = vsel %vm203, %v2906, %v2908
    %v2910 = vrot.slane %v2699, 1
    %v2911 = vsel %vm203, %v2908, %v2910
    %v2912 = vrot.slane %v2701, 1
    %v2913 = vsel %vm203, %v2910, %v2912
    %v2914 = vrot.slane %v2703, 1
    %v2915 = vsel %vm203, %v2912, %v2914
    %v2916 = vrot.slane %v2705, 1
    %v2917 = vsel %vm203, %v2914, %v2916
    %v2918 = vrot.slane %v2707, 1
    %v2919 = vsel %vm203, %v2916, %v2918
    %v2920 = vrot.slane %v2813, 1
    %v2921 = vsel %vm203, %v2918, %v2920
    %v2922 = vrot.slane %v2810, 1
    %v2923 = vrot.slane %v2710, 1
    %v2924 = vsel %vm203, %v2922, %v2923
    %v2925 = vrot.slane %v2712, 1
    %v2926 = vsel %vm203, %v2923, %v2925
    %v2927 = vrot.slane %v2714, 1
    %v2928 = vsel %vm203, %v2925, %v2927
    %v2929 = vrot.slane %v2716, 1
    %v2930 = vsel %vm203, %v2927, %v2929
    %v2931 = vrot.slane %v2718, 1
    %v2932 = vsel %vm203, %v2929, %v2931
    %v2933 = vrot.slane %v2720, 1
    %v2934 = vsel %vm203, %v2931, %v2933
    %v2935 = vrot.slane %v2722, 1
    %v2936 = vsel %vm203, %v2933, %v2935
    %v2937 = vrot.slane %v2724, 1
    %v2938 = vsel %vm203, %v2935, %v2937
    %v2939 = vrot.slane %v2726, 1
    %v2940 = vsel %vm203, %v2937, %v2939
    %v2941 = vrot.slane %v2728, 1
    %v2942 = vsel %vm203, %v2939, %v2941
    %v2943 = vrot.slane %v2730, 1
    %v2944 = vsel %vm203, %v2941, %v2943
    %v2945 = vrot.slane %v2732, 1
    %v2946 = vsel %vm203, %v2943, %v2945
    %v2947 = vrot.slane %v2734, 1
    %v2948 = vsel %vm203, %v2945, %v2947
    %v2949 = vrot.slane %v2736, 1
    %v2950 = vsel %vm203, %v2947, %v2949
    %v2951 = vrot.slane %v2738, 1
    %v2952 = vsel %vm203, %v2949, %v2951
    %v2953 = vrot.slane %v2814, 1
    %v2954 = vsel %vm203, %v2951, %v2953
    %2955 = vrot.lane.b32.xlu0 %v2825, 50
    %v2956 = vpop.permute.xlu0 %2955
    %2957 = vrot.lane.b32.xlu0 %v2827, 50
    %v2958 = vpop.permute.xlu0 %2957
    %2959 = vrot.lane.b32.xlu0 %v2829, 50
    %v2960 = vpop.permute.xlu0 %2959
    %2961 = vrot.lane.b32.xlu0 %v2831, 50
    %v2962 = vpop.permute.xlu0 %2961
    %2963 = vrot.lane.b32.xlu0 %v2833, 50
    %v2964 = vpop.permute.xlu0 %2963
    %2965 = vrot.lane.b32.xlu0 %v2835, 50
    %v2966 = vpop.permute.xlu0 %2965
    %2967 = vrot.lane.b32.xlu0 %v2837, 50
    %v2968 = vpop.permute.xlu0 %2967
    %2969 = vrot.lane.b32.xlu0 %v2839, 50
    %v2970 = vpop.permute.xlu0 %2969
    %2971 = vrot.lane.b32.xlu0 %v2841, 50
    %v2972 = vpop.permute.xlu0 %2971
    %2973 = vrot.lane.b32.xlu0 %v2843, 50
    %v2974 = vpop.permute.xlu0 %2973
    %2975 = vrot.lane.b32.xlu0 %v2845, 50
    %v2976 = vpop.permute.xlu0 %2975
    %2977 = vrot.lane.b32.xlu0 %v2847, 50
    %v2978 = vpop.permute.xlu0 %2977
    %2979 = vrot.lane.b32.xlu0 %v2849, 50
    %v2980 = vpop.permute.xlu0 %2979
    %2981 = vrot.lane.b32.xlu0 %v2851, 50
    %v2982 = vpop.permute.xlu0 %2981
    %2983 = vrot.lane.b32.xlu0 %v2853, 50
    %v2984 = vpop.permute.xlu0 %2983
    %2985 = vrot.lane.b32.xlu0 %v2855, 50
    %v2986 = vpop.permute.xlu0 %2985
    %2987 = vrot.lane.b32.xlu0 %v2858, 50
    %v2988 = vpop.permute.xlu0 %2987
    %2989 = vrot.lane.b32.xlu0 %v2860, 50
    %v2990 = vpop.permute.xlu0 %2989
    %2991 = vrot.lane.b32.xlu0 %v2862, 50
    %v2992 = vpop.permute.xlu0 %2991
    %2993 = vrot.lane.b32.xlu0 %v2864, 50
    %v2994 = vpop.permute.xlu0 %2993
    %2995 = vrot.lane.b32.xlu0 %v2866, 50
    %v2996 = vpop.permute.xlu0 %2995
    %2997 = vrot.lane.b32.xlu0 %v2868, 50
    %v2998 = vpop.permute.xlu0 %2997
    %2999 = vrot.lane.b32.xlu0 %v2870, 50
    %v3000 = vpop.permute.xlu0 %2999
    %3001 = vrot.lane.b32.xlu0 %v2872, 50
    %v3002 = vpop.permute.xlu0 %3001
    %3003 = vrot.lane.b32.xlu0 %v2874, 50
    %v3004 = vpop.permute.xlu0 %3003
    %3005 = vrot.lane.b32.xlu0 %v2876, 50
    %v3006 = vpop.permute.xlu0 %3005
    %3007 = vrot.lane.b32.xlu0 %v2878, 50
    %v3008 = vpop.permute.xlu0 %3007
    %3009 = vrot.lane.b32.xlu0 %v2880, 50
    %v3010 = vpop.permute.xlu0 %3009
    %3011 = vrot.lane.b32.xlu0 %v2882, 50
    %v3012 = vpop.permute.xlu0 %3011
    %3013 = vrot.lane.b32.xlu0 %v2884, 50
    %v3014 = vpop.permute.xlu0 %3013
    %3015 = vrot.lane.b32.xlu0 %v2886, 50
    %v3016 = vpop.permute.xlu0 %3015
    %3017 = vrot.lane.b32.xlu0 %v2888, 50
    %v3018 = vpop.permute.xlu0 %3017
    %3019 = vrot.lane.b32.xlu0 %v2891, 50
    %v3020 = vpop.permute.xlu0 %3019
    %3021 = vrot.lane.b32.xlu0 %v2893, 50
    %v3022 = vpop.permute.xlu0 %3021
    %3023 = vrot.lane.b32.xlu0 %v2895, 50
    %v3024 = vpop.permute.xlu0 %3023
    %3025 = vrot.lane.b32.xlu0 %v2897, 50
    %v3026 = vpop.permute.xlu0 %3025
    %3027 = vrot.lane.b32.xlu0 %v2899, 50
    %v3028 = vpop.permute.xlu0 %3027
    %3029 = vrot.lane.b32.xlu0 %v2901, 50
    %v3030 = vpop.permute.xlu0 %3029
    %3031 = vrot.lane.b32.xlu0 %v2903, 50
    %v3032 = vpop.permute.xlu0 %3031
    %3033 = vrot.lane.b32.xlu0 %v2905, 50
    %v3034 = vpop.permute.xlu0 %3033
    %3035 = vrot.lane.b32.xlu0 %v2907, 50
    %v3036 = vpop.permute.xlu0 %3035
    %3037 = vrot.lane.b32.xlu0 %v2909, 50
    %v3038 = vpop.permute.xlu0 %3037
    %3039 = vrot.lane.b32.xlu0 %v2911, 50
    %v3040 = vpop.permute.xlu0 %3039
    %3041 = vrot.lane.b32.xlu0 %v2913, 50
    %v3042 = vpop.permute.xlu0 %3041
    %3043 = vrot.lane.b32.xlu0 %v2915, 50
    %v3044 = vpop.permute.xlu0 %3043
    %3045 = vrot.lane.b32.xlu0 %v2917, 50
    %v3046 = vpop.permute.xlu0 %3045
    %3047 = vrot.lane.b32.xlu0 %v2919, 50
    %v3048 = vpop.permute.xlu0 %3047
    %3049 = vrot.lane.b32.xlu0 %v2921, 50
    %v3050 = vpop.permute.xlu0 %3049
    %3051 = vrot.lane.b32.xlu0 %v2924, 50
    %v3052 = vpop.permute.xlu0 %3051
    %3053 = vrot.lane.b32.xlu0 %v2926, 50
    %v3054 = vpop.permute.xlu0 %3053
    %3055 = vrot.lane.b32.xlu0 %v2928, 50
    %v3056 = vpop.permute.xlu0 %3055
    %3057 = vrot.lane.b32.xlu0 %v2930, 50
    %v3058 = vpop.permute.xlu0 %3057
    %3059 = vrot.lane.b32.xlu0 %v2932, 50
    %v3060 = vpop.permute.xlu0 %3059
    %3061 = vrot.lane.b32.xlu0 %v2934, 50
    %v3062 = vpop.permute.xlu0 %3061
    %3063 = vrot.lane.b32.xlu0 %v2936, 50
    %v3064 = vpop.permute.xlu0 %3063
    %3065 = vrot.lane.b32.xlu0 %v2938, 50
    %v3066 = vpop.permute.xlu0 %3065
    %3067 = vrot.lane.b32.xlu0 %v2940, 50
    %v3068 = vpop.permute.xlu0 %3067
    %3069 = vrot.lane.b32.xlu0 %v2942, 50
    %v3070 = vpop.permute.xlu0 %3069
    %3071 = vrot.lane.b32.xlu0 %v2944, 50
    %v3072 = vpop.permute.xlu0 %3071
    %3073 = vrot.lane.b32.xlu0 %v2946, 50
    %v3074 = vpop.permute.xlu0 %3073
    %3075 = vrot.lane.b32.xlu0 %v2948, 50
    %v3076 = vpop.permute.xlu0 %3075
    %3077 = vrot.lane.b32.xlu0 %v2950, 50
    %v3078 = vpop.permute.xlu0 %3077
    %3079 = vrot.lane.b32.xlu0 %v2952, 50
    %v3080 = vpop.permute.xlu0 %3079
    %3081 = vrot.lane.b32.xlu0 %v2954, 50
    %v3082 = vpop.permute.xlu0 %3081
    %v3147 = vrot.slane %v2807, 2
    %v3148 = vrot.slane %v2617, 2
    %v3149 = vsel %vm285, %v3147, %v3148
    %v3150 = vrot.slane %v2619, 2
    %v3151 = vsel %vm285, %v3148, %v3150
    %v3152 = vrot.slane %v2621, 2
    %v3153 = vsel %vm285, %v3150, %v3152
    %v3154 = vrot.slane %v2623, 2
    %v3155 = vsel %vm285, %v3152, %v3154
    %v3156 = vrot.slane %v2625, 2
    %v3157 = vsel %vm285, %v3154, %v3156
    %v3158 = vrot.slane %v2627, 2
    %v3159 = vsel %vm285, %v3156, %v3158
    %v3160 = vrot.slane %v2629, 2
    %v3161 = vsel %vm285, %v3158, %v3160
    %v3162 = vrot.slane %v2631, 2
    %v3163 = vsel %vm285, %v3160, %v3162
    %v3164 = vrot.slane %v2633, 2
    %v3165 = vsel %vm285, %v3162, %v3164
    %v3166 = vrot.slane %v2635, 2
    %v3167 = vsel %vm285, %v3164, %v3166
    %v3168 = vrot.slane %v2637, 2
    %v3169 = vsel %vm285, %v3166, %v3168
    %v3170 = vrot.slane %v2639, 2
    %v3171 = vsel %vm285, %v3168, %v3170
    %v3172 = vrot.slane %v2641, 2
    %v3173 = vsel %vm285, %v3170, %v3172
    %v3174 = vrot.slane %v2643, 2
    %v3175 = vsel %vm285, %v3172, %v3174
    %v3176 = vrot.slane %v2645, 2
    %v3177 = vsel %vm285, %v3174, %v3176
    %v3178 = vrot.slane %v2811, 2
    %v3179 = vsel %vm285, %v3176, %v3178
    %v3180 = vrot.slane %v2808, 2
    %v3181 = vrot.slane %v2648, 2
    %v3182 = vsel %vm285, %v3180, %v3181
    %v3183 = vrot.slane %v2650, 2
    %v3184 = vsel %vm285, %v3181, %v3183
    %v3185 = vrot.slane %v2652, 2
    %v3186 = vsel %vm285, %v3183, %v3185
    %v3187 = vrot.slane %v2654, 2
    %v3188 = vsel %vm285, %v3185, %v3187
    %v3189 = vrot.slane %v2656, 2
    %v3190 = vsel %vm285, %v3187, %v3189
    %v3191 = vrot.slane %v2658, 2
    %v3192 = vsel %vm285, %v3189, %v3191
    %v3193 = vrot.slane %v2660, 2
    %v3194 = vsel %vm285, %v3191, %v3193
    %v3195 = vrot.slane %v2662, 2
    %v3196 = vsel %vm285, %v3193, %v3195
    %v3197 = vrot.slane %v2664, 2
    %v3198 = vsel %vm285, %v3195, %v3197
    %v3199 = vrot.slane %v2666, 2
    %v3200 = vsel %vm285, %v3197, %v3199
    %v3201 = vrot.slane %v2668, 2
    %v3202 = vsel %vm285, %v3199, %v3201
    %v3203 = vrot.slane %v2670, 2
    %v3204 = vsel %vm285, %v3201, %v3203
    %v3205 = vrot.slane %v2672, 2
    %v3206 = vsel %vm285, %v3203, %v3205
    %v3207 = vrot.slane %v2674, 2
    %v3208 = vsel %vm285, %v3205, %v3207
    %v3209 = vrot.slane %v2676, 2
    %v3210 = vsel %vm285, %v3207, %v3209
    %v3211 = vrot.slane %v2812, 2
    %v3212 = vsel %vm285, %v3209, %v3211
    %v3213 = vrot.slane %v2809, 2
    %v3214 = vrot.slane %v2679, 2
    %v3215 = vsel %vm285, %v3213, %v3214
    %v3216 = vrot.slane %v2681, 2
    %v3217 = vsel %vm285, %v3214, %v3216
    %v3218 = vrot.slane %v2683, 2
    %v3219 = vsel %vm285, %v3216, %v3218
    %v3220 = vrot.slane %v2685, 2
    %v3221 = vsel %vm285, %v3218, %v3220
    %v3222 = vrot.slane %v2687, 2
    %v3223 = vsel %vm285, %v3220, %v3222
    %v3224 = vrot.slane %v2689, 2
    %v3225 = vsel %vm285, %v3222, %v3224
    %v3226 = vrot.slane %v2691, 2
    %v3227 = vsel %vm285, %v3224, %v3226
    %v3228 = vrot.slane %v2693, 2
    %v3229 = vsel %vm285, %v3226, %v3228
    %v3230 = vrot.slane %v2695, 2
    %v3231 = vsel %vm285, %v3228, %v3230
    %v3232 = vrot.slane %v2697, 2
    %v3233 = vsel %vm285, %v3230, %v3232
    %v3234 = vrot.slane %v2699, 2
    %v3235 = vsel %vm285, %v3232, %v3234
    %v3236 = vrot.slane %v2701, 2
    %v3237 = vsel %vm285, %v3234, %v3236
    %v3238 = vrot.slane %v2703, 2
    %v3239 = vsel %vm285, %v3236, %v3238
    %v3240 = vrot.slane %v2705, 2
    %v3241 = vsel %vm285, %v3238, %v3240
    %v3242 = vrot.slane %v2707, 2
    %v3243 = vsel %vm285, %v3240, %v3242
    %v3244 = vrot.slane %v2813, 2
    %v3245 = vsel %vm285, %v3242, %v3244
    %v3246 = vrot.slane %v2810, 2
    %v3247 = vrot.slane %v2710, 2
    %v3248 = vsel %vm285, %v3246, %v3247
    %v3249 = vrot.slane %v2712, 2
    %v3250 = vsel %vm285, %v3247, %v3249
    %v3251 = vrot.slane %v2714, 2
    %v3252 = vsel %vm285, %v3249, %v3251
    %v3253 = vrot.slane %v2716, 2
    %v3254 = vsel %vm285, %v3251, %v3253
    %v3255 = vrot.slane %v2718, 2
    %v3256 = vsel %vm285, %v3253, %v3255
    %v3257 = vrot.slane %v2720, 2
    %v3258 = vsel %vm285, %v3255, %v3257
    %v3259 = vrot.slane %v2722, 2
    %v3260 = vsel %vm285, %v3257, %v3259
    %v3261 = vrot.slane %v2724, 2
    %v3262 = vsel %vm285, %v3259, %v3261
    %v3263 = vrot.slane %v2726, 2
    %v3264 = vsel %vm285, %v3261, %v3263
    %v3265 = vrot.slane %v2728, 2
    %v3266 = vsel %vm285, %v3263, %v3265
    %v3267 = vrot.slane %v2730, 2
    %v3268 = vsel %vm285, %v3265, %v3267
    %v3269 = vrot.slane %v2732, 2
    %v3270 = vsel %vm285, %v3267, %v3269
    %v3271 = vrot.slane %v2734, 2
    %v3272 = vsel %vm285, %v3269, %v3271
    %v3273 = vrot.slane %v2736, 2
    %v3274 = vsel %vm285, %v3271, %v3273
    %v3275 = vrot.slane %v2738, 2
    %v3276 = vsel %vm285, %v3273, %v3275
    %v3277 = vrot.slane %v2814, 2
    %v3278 = vsel %vm285, %v3275, %v3277
    %3279 = vrot.lane.b32.xlu0 %v3149, 100
    %v3280 = vpop.permute.xlu0 %3279
    %3281 = vrot.lane.b32.xlu0 %v3151, 100
    %v3282 = vpop.permute.xlu0 %3281
    %3283 = vrot.lane.b32.xlu0 %v3153, 100
    %v3284 = vpop.permute.xlu0 %3283
    %3285 = vrot.lane.b32.xlu0 %v3155, 100
    %v3286 = vpop.permute.xlu0 %3285
    %3287 = vrot.lane.b32.xlu0 %v3157, 100
    %v3288 = vpop.permute.xlu0 %3287
    %3289 = vrot.lane.b32.xlu0 %v3159, 100
    %v3290 = vpop.permute.xlu0 %3289
    %3291 = vrot.lane.b32.xlu0 %v3161, 100
    %v3292 = vpop.permute.xlu0 %3291
    %3293 = vrot.lane.b32.xlu0 %v3163, 100
    %v3294 = vpop.permute.xlu0 %3293
    %3295 = vrot.lane.b32.xlu0 %v3165, 100
    %v3296 = vpop.permute.xlu0 %3295
    %3297 = vrot.lane.b32.xlu0 %v3167, 100
    %v3298 = vpop.permute.xlu0 %3297
    %3299 = vrot.lane.b32.xlu0 %v3169, 100
    %v3300 = vpop.permute.xlu0 %3299
    %3301 = vrot.lane.b32.xlu0 %v3171, 100
    %v3302 = vpop.permute.xlu0 %3301
    %3303 = vrot.lane.b32.xlu0 %v3173, 100
    %v3304 = vpop.permute.xlu0 %3303
    %3305 = vrot.lane.b32.xlu0 %v3175, 100
    %v3306 = vpop.permute.xlu0 %3305
    %3307 = vrot.lane.b32.xlu0 %v3177, 100
    %v3308 = vpop.permute.xlu0 %3307
    %3309 = vrot.lane.b32.xlu0 %v3179, 100
    %v3310 = vpop.permute.xlu0 %3309
    %3311 = vrot.lane.b32.xlu0 %v3182, 100
    %v3312 = vpop.permute.xlu0 %3311
    %3313 = vrot.lane.b32.xlu0 %v3184, 100
    %v3314 = vpop.permute.xlu0 %3313
    %3315 = vrot.lane.b32.xlu0 %v3186, 100
    %v3316 = vpop.permute.xlu0 %3315
    %3317 = vrot.lane.b32.xlu0 %v3188, 100
    %v3318 = vpop.permute.xlu0 %3317
    %3319 = vrot.lane.b32.xlu0 %v3190, 100
    %v3320 = vpop.permute.xlu0 %3319
    %3321 = vrot.lane.b32.xlu0 %v3192, 100
    %v3322 = vpop.permute.xlu0 %3321
    %3323 = vrot.lane.b32.xlu0 %v3194, 100
    %v3324 = vpop.permute.xlu0 %3323
    %3325 = vrot.lane.b32.xlu0 %v3196, 100
    %v3326 = vpop.permute.xlu0 %3325
    %3327 = vrot.lane.b32.xlu0 %v3198, 100
    %v3328 = vpop.permute.xlu0 %3327
    %3329 = vrot.lane.b32.xlu0 %v3200, 100
    %v3330 = vpop.permute.xlu0 %3329
    %3331 = vrot.lane.b32.xlu0 %v3202, 100
    %v3332 = vpop.permute.xlu0 %3331
    %3333 = vrot.lane.b32.xlu0 %v3204, 100
    %v3334 = vpop.permute.xlu0 %3333
    %3335 = vrot.lane.b32.xlu0 %v3206, 100
    %v3336 = vpop.permute.xlu0 %3335
    %3337 = vrot.lane.b32.xlu0 %v3208, 100
    %v3338 = vpop.permute.xlu0 %3337
    %3339 = vrot.lane.b32.xlu0 %v3210, 100
    %v3340 = vpop.permute.xlu0 %3339
    %3341 = vrot.lane.b32.xlu0 %v3212, 100
    %v3342 = vpop.permute.xlu0 %3341
    %3343 = vrot.lane.b32.xlu0 %v3215, 100
    %v3344 = vpop.permute.xlu0 %3343
    %3345 = vrot.lane.b32.xlu0 %v3217, 100
    %v3346 = vpop.permute.xlu0 %3345
    %3347 = vrot.lane.b32.xlu0 %v3219, 100
    %v3348 = vpop.permute.xlu0 %3347
    %3349 = vrot.lane.b32.xlu0 %v3221, 100
    %v3350 = vpop.permute.xlu0 %3349
    %3351 = vrot.lane.b32.xlu0 %v3223, 100
    %v3352 = vpop.permute.xlu0 %3351
    %3353 = vrot.lane.b32.xlu0 %v3225, 100
    %v3354 = vpop.permute.xlu0 %3353
    %3355 = vrot.lane.b32.xlu0 %v3227, 100
    %v3356 = vpop.permute.xlu0 %3355
    %3357 = vrot.lane.b32.xlu0 %v3229, 100
    %v3358 = vpop.permute.xlu0 %3357
    %3359 = vrot.lane.b32.xlu0 %v3231, 100
    %v3360 = vpop.permute.xlu0 %3359
    %3361 = vrot.lane.b32.xlu0 %v3233, 100
    %v3362 = vpop.permute.xlu0 %3361
    %3363 = vrot.lane.b32.xlu0 %v3235, 100
    %v3364 = vpop.permute.xlu0 %3363
    %3365 = vrot.lane.b32.xlu0 %v3237, 100
    %v3366 = vpop.permute.xlu0 %3365
    %3367 = vrot.lane.b32.xlu0 %v3239, 100
    %v3368 = vpop.permute.xlu0 %3367
    %3369 = vrot.lane.b32.xlu0 %v3241, 100
    %v3370 = vpop.permute.xlu0 %3369
    %3371 = vrot.lane.b32.xlu0 %v3243, 100
    %v3372 = vpop.permute.xlu0 %3371
    %3373 = vrot.lane.b32.xlu0 %v3245, 100
    %v3374 = vpop.permute.xlu0 %3373
    %3375 = vrot.lane.b32.xlu0 %v3248, 100
    %v3376 = vpop.permute.xlu0 %3375
    %3377 = vrot.lane.b32.xlu0 %v3250, 100
    %v3378 = vpop.permute.xlu0 %3377
    %3379 = vrot.lane.b32.xlu0 %v3252, 100
    %v3380 = vpop.permute.xlu0 %3379
    %3381 = vrot.lane.b32.xlu0 %v3254, 100
    %v3382 = vpop.permute.xlu0 %3381
    %3383 = vrot.lane.b32.xlu0 %v3256, 100
    %v3384 = vpop.permute.xlu0 %3383
    %3385 = vrot.lane.b32.xlu0 %v3258, 100
    %v3386 = vpop.permute.xlu0 %3385
    %3387 = vrot.lane.b32.xlu0 %v3260, 100
    %v3388 = vpop.permute.xlu0 %3387
    %3389 = vrot.lane.b32.xlu0 %v3262, 100
    %v3390 = vpop.permute.xlu0 %3389
    %3391 = vrot.lane.b32.xlu0 %v3264, 100
    %v3392 = vpop.permute.xlu0 %3391
    %3393 = vrot.lane.b32.xlu0 %v3266, 100
    %v3394 = vpop.permute.xlu0 %3393
    %3395 = vrot.lane.b32.xlu0 %v3268, 100
    %v3396 = vpop.permute.xlu0 %3395
    %3397 = vrot.lane.b32.xlu0 %v3270, 100
    %v3398 = vpop.permute.xlu0 %3397
    %3399 = vrot.lane.b32.xlu0 %v3272, 100
    %v3400 = vpop.permute.xlu0 %3399
    %3401 = vrot.lane.b32.xlu0 %v3274, 100
    %v3402 = vpop.permute.xlu0 %3401
    %3403 = vrot.lane.b32.xlu0 %v3276, 100
    %v3404 = vpop.permute.xlu0 %3403
    %3405 = vrot.lane.b32.xlu0 %v3278, 100
    %v3406 = vpop.permute.xlu0 %3405
    %v3471 = vrot.slane %v2807, 3
    %v3472 = vrot.slane %v2617, 3
    %v3473 = vsel %vm367, %v3471, %v3472
    %v3474 = vrot.slane %v2619, 3
    %v3475 = vsel %vm367, %v3472, %v3474
    %v3476 = vrot.slane %v2621, 3
    %v3477 = vsel %vm367, %v3474, %v3476
    %v3478 = vrot.slane %v2623, 3
    %v3479 = vsel %vm367, %v3476, %v3478
    %v3480 = vrot.slane %v2625, 3
    %v3481 = vsel %vm367, %v3478, %v3480
    %v3482 = vrot.slane %v2627, 3
    %v3483 = vsel %vm367, %v3480, %v3482
    %v3484 = vrot.slane %v2629, 3
    %v3485 = vsel %vm367, %v3482, %v3484
    %v3486 = vrot.slane %v2631, 3
    %v3487 = vsel %vm367, %v3484, %v3486
    %v3488 = vrot.slane %v2633, 3
    %v3489 = vsel %vm367, %v3486, %v3488
    %v3490 = vrot.slane %v2635, 3
    %v3491 = vsel %vm367, %v3488, %v3490
    %v3492 = vrot.slane %v2637, 3
    %v3493 = vsel %vm367, %v3490, %v3492
    %v3494 = vrot.slane %v2639, 3
    %v3495 = vsel %vm367, %v3492, %v3494
    %v3496 = vrot.slane %v2641, 3
    %v3497 = vsel %vm367, %v3494, %v3496
    %v3498 = vrot.slane %v2643, 3
    %v3499 = vsel %vm367, %v3496, %v3498
    %v3500 = vrot.slane %v2645, 3
    %v3501 = vsel %vm367, %v3498, %v3500
    %v3502 = vrot.slane %v2811, 3
    %v3503 = vsel %vm367, %v3500, %v3502
    %v3504 = vrot.slane %v2808, 3
    %v3505 = vrot.slane %v2648, 3
    %v3506 = vsel %vm367, %v3504, %v3505
    %v3507 = vrot.slane %v2650, 3
    %v3508 = vsel %vm367, %v3505, %v3507
    %v3509 = vrot.slane %v2652, 3
    %v3510 = vsel %vm367, %v3507, %v3509
    %v3511 = vrot.slane %v2654, 3
    %v3512 = vsel %vm367, %v3509, %v3511
    %v3513 = vrot.slane %v2656, 3
    %v3514 = vsel %vm367, %v3511, %v3513
    %v3515 = vrot.slane %v2658, 3
    %v3516 = vsel %vm367, %v3513, %v3515
    %v3517 = vrot.slane %v2660, 3
    %v3518 = vsel %vm367, %v3515, %v3517
    %v3519 = vrot.slane %v2662, 3
    %v3520 = vsel %vm367, %v3517, %v3519
    %v3521 = vrot.slane %v2664, 3
    %v3522 = vsel %vm367, %v3519, %v3521
    %v3523 = vrot.slane %v2666, 3
    %v3524 = vsel %vm367, %v3521, %v3523
    %v3525 = vrot.slane %v2668, 3
    %v3526 = vsel %vm367, %v3523, %v3525
    %v3527 = vrot.slane %v2670, 3
    %v3528 = vsel %vm367, %v3525, %v3527
    %v3529 = vrot.slane %v2672, 3
    %v3530 = vsel %vm367, %v3527, %v3529
    %v3531 = vrot.slane %v2674, 3
    %v3532 = vsel %vm367, %v3529, %v3531
    %v3533 = vrot.slane %v2676, 3
    %v3534 = vsel %vm367, %v3531, %v3533
    %v3535 = vrot.slane %v2812, 3
    %v3536 = vsel %vm367, %v3533, %v3535
    %v3537 = vrot.slane %v2809, 3
    %v3538 = vrot.slane %v2679, 3
    %v3539 = vsel %vm367, %v3537, %v3538
    %v3540 = vrot.slane %v2681, 3
    %v3541 = vsel %vm367, %v3538, %v3540
    %v3542 = vrot.slane %v2683, 3
    %v3543 = vsel %vm367, %v3540, %v3542
    %v3544 = vrot.slane %v2685, 3
    %v3545 = vsel %vm367, %v3542, %v3544
    %v3546 = vrot.slane %v2687, 3
    %v3547 = vsel %vm367, %v3544, %v3546
    %v3548 = vrot.slane %v2689, 3
    %v3549 = vsel %vm367, %v3546, %v3548
    %v3550 = vrot.slane %v2691, 3
    %v3551 = vsel %vm367, %v3548, %v3550
    %v3552 = vrot.slane %v2693, 3
    %v3553 = vsel %vm367, %v3550, %v3552
    %v3554 = vrot.slane %v2695, 3
    %v3555 = vsel %vm367, %v3552, %v3554
    %v3556 = vrot.slane %v2697, 3
    %v3557 = vsel %vm367, %v3554, %v3556
    %v3558 = vrot.slane %v2699, 3
    %v3559 = vsel %vm367, %v3556, %v3558
    %v3560 = vrot.slane %v2701, 3
    %v3561 = vsel %vm367, %v3558, %v3560
    %v3562 = vrot.slane %v2703, 3
    %v3563 = vsel %vm367, %v3560, %v3562
    %v3564 = vrot.slane %v2705, 3
    %v3565 = vsel %vm367, %v3562, %v3564
    %v3566 = vrot.slane %v2707, 3
    %v3567 = vsel %vm367, %v3564, %v3566
    %v3568 = vrot.slane %v2813, 3
    %v3569 = vsel %vm367, %v3566, %v3568
    %v3570 = vrot.slane %v2810, 3
    %v3571 = vrot.slane %v2710, 3
    %v3572 = vsel %vm367, %v3570, %v3571
    %v3573 = vrot.slane %v2712, 3
    %v3574 = vsel %vm367, %v3571, %v3573
    %v3575 = vrot.slane %v2714, 3
    %v3576 = vsel %vm367, %v3573, %v3575
    %v3577 = vrot.slane %v2716, 3
    %v3578 = vsel %vm367, %v3575, %v3577
    %v3579 = vrot.slane %v2718, 3
    %v3580 = vsel %vm367, %v3577, %v3579
    %v3581 = vrot.slane %v2720, 3
    %v3582 = vsel %vm367, %v3579, %v3581
    %v3583 = vrot.slane %v2722, 3
    %v3584 = vsel %vm367, %v3581, %v3583
    %v3585 = vrot.slane %v2724, 3
    %v3586 = vsel %vm367, %v3583, %v3585
    %v3587 = vrot.slane %v2726, 3
    %v3588 = vsel %vm367, %v3585, %v3587
    %v3589 = vrot.slane %v2728, 3
    %v3590 = vsel %vm367, %v3587, %v3589
    %v3591 = vrot.slane %v2730, 3
    %v3592 = vsel %vm367, %v3589, %v3591
    %v3593 = vrot.slane %v2732, 3
    %v3594 = vsel %vm367, %v3591, %v3593
    %v3595 = vrot.slane %v2734, 3
    %v3596 = vsel %vm367, %v3593, %v3595
    %v3597 = vrot.slane %v2736, 3
    %v3598 = vsel %vm367, %v3595, %v3597
    %v3599 = vrot.slane %v2738, 3
    %v3600 = vsel %vm367, %v3597, %v3599
    %v3601 = vrot.slane %v2814, 3
    %v3602 = vsel %vm367, %v3599, %v3601
    %3603 = vrot.lane.b32.xlu0 %v3473, 22
    %v3604 = vpop.permute.xlu0 %3603
    %3605 = vrot.lane.b32.xlu0 %v3475, 22
    %v3606 = vpop.permute.xlu0 %3605
    %3607 = vrot.lane.b32.xlu0 %v3477, 22
    %v3608 = vpop.permute.xlu0 %3607
    %3609 = vrot.lane.b32.xlu0 %v3479, 22
    %v3610 = vpop.permute.xlu0 %3609
    %3611 = vrot.lane.b32.xlu0 %v3481, 22
    %v3612 = vpop.permute.xlu0 %3611
    %3613 = vrot.lane.b32.xlu0 %v3483, 22
    %v3614 = vpop.permute.xlu0 %3613
    %3615 = vrot.lane.b32.xlu0 %v3485, 22
    %v3616 = vpop.permute.xlu0 %3615
    %3617 = vrot.lane.b32.xlu0 %v3487, 22
    %v3618 = vpop.permute.xlu0 %3617
    %3619 = vrot.lane.b32.xlu0 %v3489, 22
    %v3620 = vpop.permute.xlu0 %3619
    %3621 = vrot.lane.b32.xlu0 %v3491, 22
    %v3622 = vpop.permute.xlu0 %3621
    %3623 = vrot.lane.b32.xlu0 %v3493, 22
    %v3624 = vpop.permute.xlu0 %3623
    %3625 = vrot.lane.b32.xlu0 %v3495, 22
    %v3626 = vpop.permute.xlu0 %3625
    %3627 = vrot.lane.b32.xlu0 %v3497, 22
    %v3628 = vpop.permute.xlu0 %3627
    %3629 = vrot.lane.b32.xlu0 %v3499, 22
    %v3630 = vpop.permute.xlu0 %3629
    %3631 = vrot.lane.b32.xlu0 %v3501, 22
    %v3632 = vpop.permute.xlu0 %3631
    %3633 = vrot.lane.b32.xlu0 %v3503, 22
    %v3634 = vpop.permute.xlu0 %3633
    %3635 = vrot.lane.b32.xlu0 %v3506, 22
    %v3636 = vpop.permute.xlu0 %3635
    %3637 = vrot.lane.b32.xlu0 %v3508, 22
    %v3638 = vpop.permute.xlu0 %3637
    %3639 = vrot.lane.b32.xlu0 %v3510, 22
    %v3640 = vpop.permute.xlu0 %3639
    %3641 = vrot.lane.b32.xlu0 %v3512, 22
    %v3642 = vpop.permute.xlu0 %3641
    %3643 = vrot.lane.b32.xlu0 %v3514, 22
    %v3644 = vpop.permute.xlu0 %3643
    %3645 = vrot.lane.b32.xlu0 %v3516, 22
    %v3646 = vpop.permute.xlu0 %3645
    %3647 = vrot.lane.b32.xlu0 %v3518, 22
    %v3648 = vpop.permute.xlu0 %3647
    %3649 = vrot.lane.b32.xlu0 %v3520, 22
    %v3650 = vpop.permute.xlu0 %3649
    %3651 = vrot.lane.b32.xlu0 %v3522, 22
    %v3652 = vpop.permute.xlu0 %3651
    %3653 = vrot.lane.b32.xlu0 %v3524, 22
    %v3654 = vpop.permute.xlu0 %3653
    %3655 = vrot.lane.b32.xlu0 %v3526, 22
    %v3656 = vpop.permute.xlu0 %3655
    %3657 = vrot.lane.b32.xlu0 %v3528, 22
    %v3658 = vpop.permute.xlu0 %3657
    %3659 = vrot.lane.b32.xlu0 %v3530, 22
    %v3660 = vpop.permute.xlu0 %3659
    %3661 = vrot.lane.b32.xlu0 %v3532, 22
    %v3662 = vpop.permute.xlu0 %3661
    %3663 = vrot.lane.b32.xlu0 %v3534, 22
    %v3664 = vpop.permute.xlu0 %3663
    %3665 = vrot.lane.b32.xlu0 %v3536, 22
    %v3666 = vpop.permute.xlu0 %3665
    %3667 = vrot.lane.b32.xlu0 %v3539, 22
    %v3668 = vpop.permute.xlu0 %3667
    %3669 = vrot.lane.b32.xlu0 %v3541, 22
    %v3670 = vpop.permute.xlu0 %3669
    %3671 = vrot.lane.b32.xlu0 %v3543, 22
    %v3672 = vpop.permute.xlu0 %3671
    %3673 = vrot.lane.b32.xlu0 %v3545, 22
    %v3674 = vpop.permute.xlu0 %3673
    %3675 = vrot.lane.b32.xlu0 %v3547, 22
    %v3676 = vpop.permute.xlu0 %3675
    %3677 = vrot.lane.b32.xlu0 %v3549, 22
    %v3678 = vpop.permute.xlu0 %3677
    %3679 = vrot.lane.b32.xlu0 %v3551, 22
    %v3680 = vpop.permute.xlu0 %3679
    %3681 = vrot.lane.b32.xlu0 %v3553, 22
    %v3682 = vpop.permute.xlu0 %3681
    %3683 = vrot.lane.b32.xlu0 %v3555, 22
    %v3684 = vpop.permute.xlu0 %3683
    %3685 = vrot.lane.b32.xlu0 %v3557, 22
    %v3686 = vpop.permute.xlu0 %3685
    %3687 = vrot.lane.b32.xlu0 %v3559, 22
    %v3688 = vpop.permute.xlu0 %3687
    %3689 = vrot.lane.b32.xlu0 %v3561, 22
    %v3690 = vpop.permute.xlu0 %3689
    %3691 = vrot.lane.b32.xlu0 %v3563, 22
    %v3692 = vpop.permute.xlu0 %3691
    %3693 = vrot.lane.b32.xlu0 %v3565, 22
    %v3694 = vpop.permute.xlu0 %3693
    %3695 = vrot.lane.b32.xlu0 %v3567, 22
    %v3696 = vpop.permute.xlu0 %3695
    %3697 = vrot.lane.b32.xlu0 %v3569, 22
    %v3698 = vpop.permute.xlu0 %3697
    %3699 = vrot.lane.b32.xlu0 %v3572, 22
    %v3700 = vpop.permute.xlu0 %3699
    %3701 = vrot.lane.b32.xlu0 %v3574, 22
    %v3702 = vpop.permute.xlu0 %3701
    %3703 = vrot.lane.b32.xlu0 %v3576, 22
    %v3704 = vpop.permute.xlu0 %3703
    %3705 = vrot.lane.b32.xlu0 %v3578, 22
    %v3706 = vpop.permute.xlu0 %3705
    %3707 = vrot.lane.b32.xlu0 %v3580, 22
    %v3708 = vpop.permute.xlu0 %3707
    %3709 = vrot.lane.b32.xlu0 %v3582, 22
    %v3710 = vpop.permute.xlu0 %3709
    %3711 = vrot.lane.b32.xlu0 %v3584, 22
    %v3712 = vpop.permute.xlu0 %3711
    %3713 = vrot.lane.b32.xlu0 %v3586, 22
    %v3714 = vpop.permute.xlu0 %3713
    %3715 = vrot.lane.b32.xlu0 %v3588, 22
    %v3716 = vpop.permute.xlu0 %3715
    %3717 = vrot.lane.b32.xlu0 %v3590, 22
    %v3718 = vpop.permute.xlu0 %3717
    %3719 = vrot.lane.b32.xlu0 %v3592, 22
    %v3720 = vpop.permute.xlu0 %3719
    %3721 = vrot.lane.b32.xlu0 %v3594, 22
    %v3722 = vpop.permute.xlu0 %3721
    %3723 = vrot.lane.b32.xlu0 %v3596, 22
    %v3724 = vpop.permute.xlu0 %3723
    %3725 = vrot.lane.b32.xlu0 %v3598, 22
    %v3726 = vpop.permute.xlu0 %3725
    %3727 = vrot.lane.b32.xlu0 %v3600, 22
    %v3728 = vpop.permute.xlu0 %3727
    %3729 = vrot.lane.b32.xlu0 %v3602, 22
    %v3730 = vpop.permute.xlu0 %3729
    %v3795 = vrot.slane %v2807, 4
    %v3796 = vrot.slane %v2617, 4
    %v3797 = vsel %vm449, %v3795, %v3796
    %v3798 = vrot.slane %v2619, 4
    %v3799 = vsel %vm449, %v3796, %v3798
    %v3800 = vrot.slane %v2621, 4
    %v3801 = vsel %vm449, %v3798, %v3800
    %v3802 = vrot.slane %v2623, 4
    %v3803 = vsel %vm449, %v3800, %v3802
    %v3804 = vrot.slane %v2625, 4
    %v3805 = vsel %vm449, %v3802, %v3804
    %v3806 = vrot.slane %v2627, 4
    %v3807 = vsel %vm449, %v3804, %v3806
    %v3808 = vrot.slane %v2629, 4
    %v3809 = vsel %vm449, %v3806, %v3808
    %v3810 = vrot.slane %v2631, 4
    %v3811 = vsel %vm449, %v3808, %v3810
    %v3812 = vrot.slane %v2633, 4
    %v3813 = vsel %vm449, %v3810, %v3812
    %v3814 = vrot.slane %v2635, 4
    %v3815 = vsel %vm449, %v3812, %v3814
    %v3816 = vrot.slane %v2637, 4
    %v3817 = vsel %vm449, %v3814, %v3816
    %v3818 = vrot.slane %v2639, 4
    %v3819 = vsel %vm449, %v3816, %v3818
    %v3820 = vrot.slane %v2641, 4
    %v3821 = vsel %vm449, %v3818, %v3820
    %v3822 = vrot.slane %v2643, 4
    %v3823 = vsel %vm449, %v3820, %v3822
    %v3824 = vrot.slane %v2645, 4
    %v3825 = vsel %vm449, %v3822, %v3824
    %v3826 = vrot.slane %v2811, 4
    %v3827 = vsel %vm449, %v3824, %v3826
    %v3828 = vrot.slane %v2808, 4
    %v3829 = vrot.slane %v2648, 4
    %v3830 = vsel %vm449, %v3828, %v3829
    %v3831 = vrot.slane %v2650, 4
    %v3832 = vsel %vm449, %v3829, %v3831
    %v3833 = vrot.slane %v2652, 4
    %v3834 = vsel %vm449, %v3831, %v3833
    %v3835 = vrot.slane %v2654, 4
    %v3836 = vsel %vm449, %v3833, %v3835
    %v3837 = vrot.slane %v2656, 4
    %v3838 = vsel %vm449, %v3835, %v3837
    %v3839 = vrot.slane %v2658, 4
    %v3840 = vsel %vm449, %v3837, %v3839
    %v3841 = vrot.slane %v2660, 4
    %v3842 = vsel %vm449, %v3839, %v3841
    %v3843 = vrot.slane %v2662, 4
    %v3844 = vsel %vm449, %v3841, %v3843
    %v3845 = vrot.slane %v2664, 4
    %v3846 = vsel %vm449, %v3843, %v3845
    %v3847 = vrot.slane %v2666, 4
    %v3848 = vsel %vm449, %v3845, %v3847
    %v3849 = vrot.slane %v2668, 4
    %v3850 = vsel %vm449, %v3847, %v3849
    %v3851 = vrot.slane %v2670, 4
    %v3852 = vsel %vm449, %v3849, %v3851
    %v3853 = vrot.slane %v2672, 4
    %v3854 = vsel %vm449, %v3851, %v3853
    %v3855 = vrot.slane %v2674, 4
    %v3856 = vsel %vm449, %v3853, %v3855
    %v3857 = vrot.slane %v2676, 4
    %v3858 = vsel %vm449, %v3855, %v3857
    %v3859 = vrot.slane %v2812, 4
    %v3860 = vsel %vm449, %v3857, %v3859
    %v3861 = vrot.slane %v2809, 4
    %v3862 = vrot.slane %v2679, 4
    %v3863 = vsel %vm449, %v3861, %v3862
    %v3864 = vrot.slane %v2681, 4
    %v3865 = vsel %vm449, %v3862, %v3864
    %v3866 = vrot.slane %v2683, 4
    %v3867 = vsel %vm449, %v3864, %v3866
    %v3868 = vrot.slane %v2685, 4
    %v3869 = vsel %vm449, %v3866, %v3868
    %v3870 = vrot.slane %v2687, 4
    %v3871 = vsel %vm449, %v3868, %v3870
    %v3872 = vrot.slane %v2689, 4
    %v3873 = vsel %vm449, %v3870, %v3872
    %v3874 = vrot.slane %v2691, 4
    %v3875 = vsel %vm449, %v3872, %v3874
    %v3876 = vrot.slane %v2693, 4
    %v3877 = vsel %vm449, %v3874, %v3876
    %v3878 = vrot.slane %v2695, 4
    %v3879 = vsel %vm449, %v3876, %v3878
    %v3880 = vrot.slane %v2697, 4
    %v3881 = vsel %vm449, %v3878, %v3880
    %v3882 = vrot.slane %v2699, 4
    %v3883 = vsel %vm449, %v3880, %v3882
    %v3884 = vrot.slane %v2701, 4
    %v3885 = vsel %vm449, %v3882, %v3884
    %v3886 = vrot.slane %v2703, 4
    %v3887 = vsel %vm449, %v3884, %v3886
    %v3888 = vrot.slane %v2705, 4
    %v3889 = vsel %vm449, %v3886, %v3888
    %v3890 = vrot.slane %v2707, 4
    %v3891 = vsel %vm449, %v3888, %v3890
    %v3892 = vrot.slane %v2813, 4
    %v3893 = vsel %vm449, %v3890, %v3892
    %v3894 = vrot.slane %v2810, 4
    %v3895 = vrot.slane %v2710, 4
    %v3896 = vsel %vm449, %v3894, %v3895
    %v3897 = vrot.slane %v2712, 4
    %v3898 = vsel %vm449, %v3895, %v3897
    %v3899 = vrot.slane %v2714, 4
    %v3900 = vsel %vm449, %v3897, %v3899
    %v3901 = vrot.slane %v2716, 4
    %v3902 = vsel %vm449, %v3899, %v3901
    %v3903 = vrot.slane %v2718, 4
    %v3904 = vsel %vm449, %v3901, %v3903
    %v3905 = vrot.slane %v2720, 4
    %v3906 = vsel %vm449, %v3903, %v3905
    %v3907 = vrot.slane %v2722, 4
    %v3908 = vsel %vm449, %v3905, %v3907
    %v3909 = vrot.slane %v2724, 4
    %v3910 = vsel %vm449, %v3907, %v3909
    %v3911 = vrot.slane %v2726, 4
    %v3912 = vsel %vm449, %v3909, %v3911
    %v3913 = vrot.slane %v2728, 4
    %v3914 = vsel %vm449, %v3911, %v3913
    %v3915 = vrot.slane %v2730, 4
    %v3916 = vsel %vm449, %v3913, %v3915
    %v3917 = vrot.slane %v2732, 4
    %v3918 = vsel %vm449, %v3915, %v3917
    %v3919 = vrot.slane %v2734, 4
    %v3920 = vsel %vm449, %v3917, %v3919
    %v3921 = vrot.slane %v2736, 4
    %v3922 = vsel %vm449, %v3919, %v3921
    %v3923 = vrot.slane %v2738, 4
    %v3924 = vsel %vm449, %v3921, %v3923
    %v3925 = vrot.slane %v2814, 4
    %v3926 = vsel %vm449, %v3923, %v3925
    %3927 = vrot.lane.b32.xlu0 %v3797, 72
    %v3928 = vpop.permute.xlu0 %3927
    %3929 = vrot.lane.b32.xlu0 %v3799, 72
    %v3930 = vpop.permute.xlu0 %3929
    %3931 = vrot.lane.b32.xlu0 %v3801, 72
    %v3932 = vpop.permute.xlu0 %3931
    %3933 = vrot.lane.b32.xlu0 %v3803, 72
    %v3934 = vpop.permute.xlu0 %3933
    %3935 = vrot.lane.b32.xlu0 %v3805, 72
    %v3936 = vpop.permute.xlu0 %3935
    %3937 = vrot.lane.b32.xlu0 %v3807, 72
    %v3938 = vpop.permute.xlu0 %3937
    %3939 = vrot.lane.b32.xlu0 %v3809, 72
    %v3940 = vpop.permute.xlu0 %3939
    %3941 = vrot.lane.b32.xlu0 %v3811, 72
    %v3942 = vpop.permute.xlu0 %3941
    %3943 = vrot.lane.b32.xlu0 %v3813, 72
    %v3944 = vpop.permute.xlu0 %3943
    %3945 = vrot.lane.b32.xlu0 %v3815, 72
    %v3946 = vpop.permute.xlu0 %3945
    %3947 = vrot.lane.b32.xlu0 %v3817, 72
    %v3948 = vpop.permute.xlu0 %3947
    %3949 = vrot.lane.b32.xlu0 %v3819, 72
    %v3950 = vpop.permute.xlu0 %3949
    %3951 = vrot.lane.b32.xlu0 %v3821, 72
    %v3952 = vpop.permute.xlu0 %3951
    %3953 = vrot.lane.b32.xlu0 %v3823, 72
    %v3954 = vpop.permute.xlu0 %3953
    %3955 = vrot.lane.b32.xlu0 %v3825, 72
    %v3956 = vpop.permute.xlu0 %3955
    %3957 = vrot.lane.b32.xlu0 %v3827, 72
    %v3958 = vpop.permute.xlu0 %3957
    %3959 = vrot.lane.b32.xlu0 %v3830, 72
    %v3960 = vpop.permute.xlu0 %3959
    %3961 = vrot.lane.b32.xlu0 %v3832, 72
    %v3962 = vpop.permute.xlu0 %3961
    %3963 = vrot.lane.b32.xlu0 %v3834, 72
    %v3964 = vpop.permute.xlu0 %3963
    %3965 = vrot.lane.b32.xlu0 %v3836, 72
    %v3966 = vpop.permute.xlu0 %3965
    %3967 = vrot.lane.b32.xlu0 %v3838, 72
    %v3968 = vpop.permute.xlu0 %3967
    %3969 = vrot.lane.b32.xlu0 %v3840, 72
    %v3970 = vpop.permute.xlu0 %3969
    %3971 = vrot.lane.b32.xlu0 %v3842, 72
    %v3972 = vpop.permute.xlu0 %3971
    %3973 = vrot.lane.b32.xlu0 %v3844, 72
    %v3974 = vpop.permute.xlu0 %3973
    %3975 = vrot.lane.b32.xlu0 %v3846, 72
    %v3976 = vpop.permute.xlu0 %3975
    %3977 = vrot.lane.b32.xlu0 %v3848, 72
    %v3978 = vpop.permute.xlu0 %3977
    %3979 = vrot.lane.b32.xlu0 %v3850, 72
    %v3980 = vpop.permute.xlu0 %3979
    %3981 = vrot.lane.b32.xlu0 %v3852, 72
    %v3982 = vpop.permute.xlu0 %3981
    %3983 = vrot.lane.b32.xlu0 %v3854, 72
    %v3984 = vpop.permute.xlu0 %3983
    %3985 = vrot.lane.b32.xlu0 %v3856, 72
    %v3986 = vpop.permute.xlu0 %3985
    %3987 = vrot.lane.b32.xlu0 %v3858, 72
    %v3988 = vpop.permute.xlu0 %3987
    %3989 = vrot.lane.b32.xlu0 %v3860, 72
    %v3990 = vpop.permute.xlu0 %3989
    %3991 = vrot.lane.b32.xlu0 %v3863, 72
    %v3992 = vpop.permute.xlu0 %3991
    %3993 = vrot.lane.b32.xlu0 %v3865, 72
    %v3994 = vpop.permute.xlu0 %3993
    %3995 = vrot.lane.b32.xlu0 %v3867, 72
    %v3996 = vpop.permute.xlu0 %3995
    %3997 = vrot.lane.b32.xlu0 %v3869, 72
    %v3998 = vpop.permute.xlu0 %3997
    %3999 = vrot.lane.b32.xlu0 %v3871, 72
    %v4000 = vpop.permute.xlu0 %3999
    %4001 = vrot.lane.b32.xlu0 %v3873, 72
    %v4002 = vpop.permute.xlu0 %4001
    %4003 = vrot.lane.b32.xlu0 %v3875, 72
    %v4004 = vpop.permute.xlu0 %4003
    %4005 = vrot.lane.b32.xlu0 %v3877, 72
    %v4006 = vpop.permute.xlu0 %4005
    %4007 = vrot.lane.b32.xlu0 %v3879, 72
    %v4008 = vpop.permute.xlu0 %4007
    %4009 = vrot.lane.b32.xlu0 %v3881, 72
    %v4010 = vpop.permute.xlu0 %4009
    %4011 = vrot.lane.b32.xlu0 %v3883, 72
    %v4012 = vpop.permute.xlu0 %4011
    %4013 = vrot.lane.b32.xlu0 %v3885, 72
    %v4014 = vpop.permute.xlu0 %4013
    %4015 = vrot.lane.b32.xlu0 %v3887, 72
    %v4016 = vpop.permute.xlu0 %4015
    %4017 = vrot.lane.b32.xlu0 %v3889, 72
    %v4018 = vpop.permute.xlu0 %4017
    %4019 = vrot.lane.b32.xlu0 %v3891, 72
    %v4020 = vpop.permute.xlu0 %4019
    %4021 = vrot.lane.b32.xlu0 %v3893, 72
    %v4022 = vpop.permute.xlu0 %4021
    %4023 = vrot.lane.b32.xlu0 %v3896, 72
    %v4024 = vpop.permute.xlu0 %4023
    %4025 = vrot.lane.b32.xlu0 %v3898, 72
    %v4026 = vpop.permute.xlu0 %4025
    %4027 = vrot.lane.b32.xlu0 %v3900, 72
    %v4028 = vpop.permute.xlu0 %4027
    %4029 = vrot.lane.b32.xlu0 %v3902, 72
    %v4030 = vpop.permute.xlu0 %4029
    %4031 = vrot.lane.b32.xlu0 %v3904, 72
    %v4032 = vpop.permute.xlu0 %4031
    %4033 = vrot.lane.b32.xlu0 %v3906, 72
    %v4034 = vpop.permute.xlu0 %4033
    %4035 = vrot.lane.b32.xlu0 %v3908, 72
    %v4036 = vpop.permute.xlu0 %4035
    %4037 = vrot.lane.b32.xlu0 %v3910, 72
    %v4038 = vpop.permute.xlu0 %4037
    %4039 = vrot.lane.b32.xlu0 %v3912, 72
    %v4040 = vpop.permute.xlu0 %4039
    %4041 = vrot.lane.b32.xlu0 %v3914, 72
    %v4042 = vpop.permute.xlu0 %4041
    %4043 = vrot.lane.b32.xlu0 %v3916, 72
    %v4044 = vpop.permute.xlu0 %4043
    %4045 = vrot.lane.b32.xlu0 %v3918, 72
    %v4046 = vpop.permute.xlu0 %4045
    %4047 = vrot.lane.b32.xlu0 %v3920, 72
    %v4048 = vpop.permute.xlu0 %4047
    %4049 = vrot.lane.b32.xlu0 %v3922, 72
    %v4050 = vpop.permute.xlu0 %4049
    %4051 = vrot.lane.b32.xlu0 %v3924, 72
    %v4052 = vpop.permute.xlu0 %4051
    %4053 = vrot.lane.b32.xlu0 %v3926, 72
    %v4054 = vpop.permute.xlu0 %4053
    %v4119 = vrot.slane %v2807, 5
    %v4120 = vrot.slane %v2617, 5
    %v4121 = vsel %vm531, %v4119, %v4120
    %v4122 = vrot.slane %v2619, 5
    %v4123 = vsel %vm531, %v4120, %v4122
    %v4124 = vrot.slane %v2621, 5
    %v4125 = vsel %vm531, %v4122, %v4124
    %v4126 = vrot.slane %v2623, 5
    %v4127 = vsel %vm531, %v4124, %v4126
    %v4128 = vrot.slane %v2625, 5
    %v4129 = vsel %vm531, %v4126, %v4128
    %v4130 = vrot.slane %v2627, 5
    %v4131 = vsel %vm531, %v4128, %v4130
    %v4132 = vrot.slane %v2629, 5
    %v4133 = vsel %vm531, %v4130, %v4132
    %v4134 = vrot.slane %v2631, 5
    %v4135 = vsel %vm531, %v4132, %v4134
    %v4136 = vrot.slane %v2633, 5
    %v4137 = vsel %vm531, %v4134, %v4136
    %v4138 = vrot.slane %v2635, 5
    %v4139 = vsel %vm531, %v4136, %v4138
    %v4140 = vrot.slane %v2637, 5
    %v4141 = vsel %vm531, %v4138, %v4140
    %v4142 = vrot.slane %v2639, 5
    %v4143 = vsel %vm531, %v4140, %v4142
    %v4144 = vrot.slane %v2641, 5
    %v4145 = vsel %vm531, %v4142, %v4144
    %v4146 = vrot.slane %v2643, 5
    %v4147 = vsel %vm531, %v4144, %v4146
    %v4148 = vrot.slane %v2645, 5
    %v4149 = vsel %vm531, %v4146, %v4148
    %v4150 = vrot.slane %v2811, 5
    %v4151 = vsel %vm531, %v4148, %v4150
    %v4152 = vrot.slane %v2808, 5
    %v4153 = vrot.slane %v2648, 5
    %v4154 = vsel %vm531, %v4152, %v4153
    %v4155 = vrot.slane %v2650, 5
    %v4156 = vsel %vm531, %v4153, %v4155
    %v4157 = vrot.slane %v2652, 5
    %v4158 = vsel %vm531, %v4155, %v4157
    %v4159 = vrot.slane %v2654, 5
    %v4160 = vsel %vm531, %v4157, %v4159
    %v4161 = vrot.slane %v2656, 5
    %v4162 = vsel %vm531, %v4159, %v4161
    %v4163 = vrot.slane %v2658, 5
    %v4164 = vsel %vm531, %v4161, %v4163
    %v4165 = vrot.slane %v2660, 5
    %v4166 = vsel %vm531, %v4163, %v4165
    %v4167 = vrot.slane %v2662, 5
    %v4168 = vsel %vm531, %v4165, %v4167
    %v4169 = vrot.slane %v2664, 5
    %v4170 = vsel %vm531, %v4167, %v4169
    %v4171 = vrot.slane %v2666, 5
    %v4172 = vsel %vm531, %v4169, %v4171
    %v4173 = vrot.slane %v2668, 5
    %v4174 = vsel %vm531, %v4171, %v4173
    %v4175 = vrot.slane %v2670, 5
    %v4176 = vsel %vm531, %v4173, %v4175
    %v4177 = vrot.slane %v2672, 5
    %v4178 = vsel %vm531, %v4175, %v4177
    %v4179 = vrot.slane %v2674, 5
    %v4180 = vsel %vm531, %v4177, %v4179
    %v4181 = vrot.slane %v2676, 5
    %v4182 = vsel %vm531, %v4179, %v4181
    %v4183 = vrot.slane %v2812, 5
    %v4184 = vsel %vm531, %v4181, %v4183
    %v4185 = vrot.slane %v2809, 5
    %v4186 = vrot.slane %v2679, 5
    %v4187 = vsel %vm531, %v4185, %v4186
    %v4188 = vrot.slane %v2681, 5
    %v4189 = vsel %vm531, %v4186, %v4188
    %v4190 = vrot.slane %v2683, 5
    %v4191 = vsel %vm531, %v4188, %v4190
    %v4192 = vrot.slane %v2685, 5
    %v4193 = vsel %vm531, %v4190, %v4192
    %v4194 = vrot.slane %v2687, 5
    %v4195 = vsel %vm531, %v4192, %v4194
    %v4196 = vrot.slane %v2689, 5
    %v4197 = vsel %vm531, %v4194, %v4196
    %v4198 = vrot.slane %v2691, 5
    %v4199 = vsel %vm531, %v4196, %v4198
    %v4200 = vrot.slane %v2693, 5
    %v4201 = vsel %vm531, %v4198, %v4200
    %v4202 = vrot.slane %v2695, 5
    %v4203 = vsel %vm531, %v4200, %v4202
    %v4204 = vrot.slane %v2697, 5
    %v4205 = vsel %vm531, %v4202, %v4204
    %v4206 = vrot.slane %v2699, 5
    %v4207 = vsel %vm531, %v4204, %v4206
    %v4208 = vrot.slane %v2701, 5
    %v4209 = vsel %vm531, %v4206, %v4208
    %v4210 = vrot.slane %v2703, 5
    %v4211 = vsel %vm531, %v4208, %v4210
    %v4212 = vrot.slane %v2705, 5
    %v4213 = vsel %vm531, %v4210, %v4212
    %v4214 = vrot.slane %v2707, 5
    %v4215 = vsel %vm531, %v4212, %v4214
    %v4216 = vrot.slane %v2813, 5
    %v4217 = vsel %vm531, %v4214, %v4216
    %v4218 = vrot.slane %v2810, 5
    %v4219 = vrot.slane %v2710, 5
    %v4220 = vsel %vm531, %v4218, %v4219
    %v4221 = vrot.slane %v2712, 5
    %v4222 = vsel %vm531, %v4219, %v4221
    %v4223 = vrot.slane %v2714, 5
    %v4224 = vsel %vm531, %v4221, %v4223
    %v4225 = vrot.slane %v2716, 5
    %v4226 = vsel %vm531, %v4223, %v4225
    %v4227 = vrot.slane %v2718, 5
    %v4228 = vsel %vm531, %v4225, %v4227
    %v4229 = vrot.slane %v2720, 5
    %v4230 = vsel %vm531, %v4227, %v4229
    %v4231 = vrot.slane %v2722, 5
    %v4232 = vsel %vm531, %v4229, %v4231
    %v4233 = vrot.slane %v2724, 5
    %v4234 = vsel %vm531, %v4231, %v4233
    %v4235 = vrot.slane %v2726, 5
    %v4236 = vsel %vm531, %v4233, %v4235
    %v4237 = vrot.slane %v2728, 5
    %v4238 = vsel %vm531, %v4235, %v4237
    %v4239 = vrot.slane %v2730, 5
    %v4240 = vsel %vm531, %v4237, %v4239
    %v4241 = vrot.slane %v2732, 5
    %v4242 = vsel %vm531, %v4239, %v4241
    %v4243 = vrot.slane %v2734, 5
    %v4244 = vsel %vm531, %v4241, %v4243
    %v4245 = vrot.slane %v2736, 5
    %v4246 = vsel %vm531, %v4243, %v4245
    %v4247 = vrot.slane %v2738, 5
    %v4248 = vsel %vm531, %v4245, %v4247
    %v4249 = vrot.slane %v2814, 5
    %v4250 = vsel %vm531, %v4247, %v4249
    %4251 = vrot.lane.b32.xlu0 %v4121, 122
    %v4252 = vpop.permute.xlu0 %4251
    %4253 = vrot.lane.b32.xlu0 %v4123, 122
    %v4254 = vpop.permute.xlu0 %4253
    %4255 = vrot.lane.b32.xlu0 %v4125, 122
    %v4256 = vpop.permute.xlu0 %4255
    %4257 = vrot.lane.b32.xlu0 %v4127, 122
    %v4258 = vpop.permute.xlu0 %4257
    %4259 = vrot.lane.b32.xlu0 %v4129, 122
    %v4260 = vpop.permute.xlu0 %4259
    %4261 = vrot.lane.b32.xlu0 %v4131, 122
    %v4262 = vpop.permute.xlu0 %4261
    %4263 = vrot.lane.b32.xlu0 %v4133, 122
    %v4264 = vpop.permute.xlu0 %4263
    %4265 = vrot.lane.b32.xlu0 %v4135, 122
    %v4266 = vpop.permute.xlu0 %4265
    %4267 = vrot.lane.b32.xlu0 %v4137, 122
    %v4268 = vpop.permute.xlu0 %4267
    %4269 = vrot.lane.b32.xlu0 %v4139, 122
    %v4270 = vpop.permute.xlu0 %4269
    %4271 = vrot.lane.b32.xlu0 %v4141, 122
    %v4272 = vpop.permute.xlu0 %4271
    %4273 = vrot.lane.b32.xlu0 %v4143, 122
    %v4274 = vpop.permute.xlu0 %4273
    %4275 = vrot.lane.b32.xlu0 %v4145, 122
    %v4276 = vpop.permute.xlu0 %4275
    %4277 = vrot.lane.b32.xlu0 %v4147, 122
    %v4278 = vpop.permute.xlu0 %4277
    %4279 = vrot.lane.b32.xlu0 %v4149, 122
    %v4280 = vpop.permute.xlu0 %4279
    %4281 = vrot.lane.b32.xlu0 %v4151, 122
    %v4282 = vpop.permute.xlu0 %4281
    %4283 = vrot.lane.b32.xlu0 %v4154, 122
    %v4284 = vpop.permute.xlu0 %4283
    %4285 = vrot.lane.b32.xlu0 %v4156, 122
    %v4286 = vpop.permute.xlu0 %4285
    %4287 = vrot.lane.b32.xlu0 %v4158, 122
    %v4288 = vpop.permute.xlu0 %4287
    %4289 = vrot.lane.b32.xlu0 %v4160, 122
    %v4290 = vpop.permute.xlu0 %4289
    %4291 = vrot.lane.b32.xlu0 %v4162, 122
    %v4292 = vpop.permute.xlu0 %4291
    %4293 = vrot.lane.b32.xlu0 %v4164, 122
    %v4294 = vpop.permute.xlu0 %4293
    %4295 = vrot.lane.b32.xlu0 %v4166, 122
    %v4296 = vpop.permute.xlu0 %4295
    %4297 = vrot.lane.b32.xlu0 %v4168, 122
    %v4298 = vpop.permute.xlu0 %4297
    %4299 = vrot.lane.b32.xlu0 %v4170, 122
    %v4300 = vpop.permute.xlu0 %4299
    %4301 = vrot.lane.b32.xlu0 %v4172, 122
    %v4302 = vpop.permute.xlu0 %4301
    %4303 = vrot.lane.b32.xlu0 %v4174, 122
    %v4304 = vpop.permute.xlu0 %4303
    %4305 = vrot.lane.b32.xlu0 %v4176, 122
    %v4306 = vpop.permute.xlu0 %4305
    %4307 = vrot.lane.b32.xlu0 %v4178, 122
    %v4308 = vpop.permute.xlu0 %4307
    %4309 = vrot.lane.b32.xlu0 %v4180, 122
    %v4310 = vpop.permute.xlu0 %4309
    %4311 = vrot.lane.b32.xlu0 %v4182, 122
    %v4312 = vpop.permute.xlu0 %4311
    %4313 = vrot.lane.b32.xlu0 %v4184, 122
    %v4314 = vpop.permute.xlu0 %4313
    %4315 = vrot.lane.b32.xlu0 %v4187, 122
    %v4316 = vpop.permute.xlu0 %4315
    %4317 = vrot.lane.b32.xlu0 %v4189, 122
    %v4318 = vpop.permute.xlu0 %4317
    %4319 = vrot.lane.b32.xlu0 %v4191, 122
    %v4320 = vpop.permute.xlu0 %4319
    %4321 = vrot.lane.b32.xlu0 %v4193, 122
    %v4322 = vpop.permute.xlu0 %4321
    %4323 = vrot.lane.b32.xlu0 %v4195, 122
    %v4324 = vpop.permute.xlu0 %4323
    %4325 = vrot.lane.b32.xlu0 %v4197, 122
    %v4326 = vpop.permute.xlu0 %4325
    %4327 = vrot.lane.b32.xlu0 %v4199, 122
    %v4328 = vpop.permute.xlu0 %4327
    %4329 = vrot.lane.b32.xlu0 %v4201, 122
    %v4330 = vpop.permute.xlu0 %4329
    %4331 = vrot.lane.b32.xlu0 %v4203, 122
    %v4332 = vpop.permute.xlu0 %4331
    %4333 = vrot.lane.b32.xlu0 %v4205, 122
    %v4334 = vpop.permute.xlu0 %4333
    %4335 = vrot.lane.b32.xlu0 %v4207, 122
    %v4336 = vpop.permute.xlu0 %4335
    %4337 = vrot.lane.b32.xlu0 %v4209, 122
    %v4338 = vpop.permute.xlu0 %4337
    %4339 = vrot.lane.b32.xlu0 %v4211, 122
    %v4340 = vpop.permute.xlu0 %4339
    %4341 = vrot.lane.b32.xlu0 %v4213, 122
    %v4342 = vpop.permute.xlu0 %4341
    %4343 = vrot.lane.b32.xlu0 %v4215, 122
    %v4344 = vpop.permute.xlu0 %4343
    %4345 = vrot.lane.b32.xlu0 %v4217, 122
    %v4346 = vpop.permute.xlu0 %4345
    %4347 = vrot.lane.b32.xlu0 %v4220, 122
    %v4348 = vpop.permute.xlu0 %4347
    %4349 = vrot.lane.b32.xlu0 %v4222, 122
    %v4350 = vpop.permute.xlu0 %4349
    %4351 = vrot.lane.b32.xlu0 %v4224, 122
    %v4352 = vpop.permute.xlu0 %4351
    %4353 = vrot.lane.b32.xlu0 %v4226, 122
    %v4354 = vpop.permute.xlu0 %4353
    %4355 = vrot.lane.b32.xlu0 %v4228, 122
    %v4356 = vpop.permute.xlu0 %4355
    %4357 = vrot.lane.b32.xlu0 %v4230, 122
    %v4358 = vpop.permute.xlu0 %4357
    %4359 = vrot.lane.b32.xlu0 %v4232, 122
    %v4360 = vpop.permute.xlu0 %4359
    %4361 = vrot.lane.b32.xlu0 %v4234, 122
    %v4362 = vpop.permute.xlu0 %4361
    %4363 = vrot.lane.b32.xlu0 %v4236, 122
    %v4364 = vpop.permute.xlu0 %4363
    %4365 = vrot.lane.b32.xlu0 %v4238, 122
    %v4366 = vpop.permute.xlu0 %4365
    %4367 = vrot.lane.b32.xlu0 %v4240, 122
    %v4368 = vpop.permute.xlu0 %4367
    %4369 = vrot.lane.b32.xlu0 %v4242, 122
    %v4370 = vpop.permute.xlu0 %4369
    %4371 = vrot.lane.b32.xlu0 %v4244, 122
    %v4372 = vpop.permute.xlu0 %4371
    %4373 = vrot.lane.b32.xlu0 %v4246, 122
    %v4374 = vpop.permute.xlu0 %4373
    %4375 = vrot.lane.b32.xlu0 %v4248, 122
    %v4376 = vpop.permute.xlu0 %4375
    %4377 = vrot.lane.b32.xlu0 %v4250, 122
    %v4378 = vpop.permute.xlu0 %4377
    %vm4443 = vcmask 408576
    %v4444 = vsel %vm4443, %v2807, %v2956
    %v4445 = vsel %vm4443, %v2617, %v2958
    %v4446 = vsel %vm4443, %v2619, %v2960
    %v4447 = vsel %vm4443, %v2621, %v2962
    %v4448 = vsel %vm4443, %v2623, %v2964
    %v4449 = vsel %vm4443, %v2625, %v2966
    %v4450 = vsel %vm4443, %v2627, %v2968
    %v4451 = vsel %vm4443, %v2629, %v2970
    %v4452 = vsel %vm4443, %v2631, %v2972
    %v4453 = vsel %vm4443, %v2633, %v2974
    %v4454 = vsel %vm4443, %v2635, %v2976
    %v4455 = vsel %vm4443, %v2637, %v2978
    %v4456 = vsel %vm4443, %v2639, %v2980
    %v4457 = vsel %vm4443, %v2641, %v2982
    %v4458 = vsel %vm4443, %v2643, %v2984
    %v4459 = vsel %vm4443, %v2645, %v2986
    %v4460 = vsel %vm4443, %v2808, %v2988
    %v4461 = vsel %vm4443, %v2648, %v2990
    %v4462 = vsel %vm4443, %v2650, %v2992
    %v4463 = vsel %vm4443, %v2652, %v2994
    %v4464 = vsel %vm4443, %v2654, %v2996
    %v4465 = vsel %vm4443, %v2656, %v2998
    %v4466 = vsel %vm4443, %v2658, %v3000
    %v4467 = vsel %vm4443, %v2660, %v3002
    %v4468 = vsel %vm4443, %v2662, %v3004
    %v4469 = vsel %vm4443, %v2664, %v3006
    %v4470 = vsel %vm4443, %v2666, %v3008
    %v4471 = vsel %vm4443, %v2668, %v3010
    %v4472 = vsel %vm4443, %v2670, %v3012
    %v4473 = vsel %vm4443, %v2672, %v3014
    %v4474 = vsel %vm4443, %v2674, %v3016
    %v4475 = vsel %vm4443, %v2676, %v3018
    %v4476 = vsel %vm4443, %v2809, %v3020
    %v4477 = vsel %vm4443, %v2679, %v3022
    %v4478 = vsel %vm4443, %v2681, %v3024
    %v4479 = vsel %vm4443, %v2683, %v3026
    %v4480 = vsel %vm4443, %v2685, %v3028
    %v4481 = vsel %vm4443, %v2687, %v3030
    %v4482 = vsel %vm4443, %v2689, %v3032
    %v4483 = vsel %vm4443, %v2691, %v3034
    %v4484 = vsel %vm4443, %v2693, %v3036
    %v4485 = vsel %vm4443, %v2695, %v3038
    %v4486 = vsel %vm4443, %v2697, %v3040
    %v4487 = vsel %vm4443, %v2699, %v3042
    %v4488 = vsel %vm4443, %v2701, %v3044
    %v4489 = vsel %vm4443, %v2703, %v3046
    %v4490 = vsel %vm4443, %v2705, %v3048
    %v4491 = vsel %vm4443, %v2707, %v3050
    %v4492 = vsel %vm4443, %v2810, %v3052
    %v4493 = vsel %vm4443, %v2710, %v3054
    %v4494 = vsel %vm4443, %v2712, %v3056
    %v4495 = vsel %vm4443, %v2714, %v3058
    %v4496 = vsel %vm4443, %v2716, %v3060
    %v4497 = vsel %vm4443, %v2718, %v3062
    %v4498 = vsel %vm4443, %v2720, %v3064
    %v4499 = vsel %vm4443, %v2722, %v3066
    %v4500 = vsel %vm4443, %v2724, %v3068
    %v4501 = vsel %vm4443, %v2726, %v3070
    %v4502 = vsel %vm4443, %v2728, %v3072
    %v4503 = vsel %vm4443, %v2730, %v3074
    %v4504 = vsel %vm4443, %v2732, %v3076
    %v4505 = vsel %vm4443, %v2734, %v3078
    %v4506 = vsel %vm4443, %v2736, %v3080
    %v4507 = vsel %vm4443, %v2738, %v3082
    %vm4508 = vcmask 818176
    %v4509 = vsel %vm4508, %v4444, %v3280
    %v4510 = vsel %vm4508, %v4445, %v3282
    %v4511 = vsel %vm4508, %v4446, %v3284
    %v4512 = vsel %vm4508, %v4447, %v3286
    %v4513 = vsel %vm4508, %v4448, %v3288
    %v4514 = vsel %vm4508, %v4449, %v3290
    %v4515 = vsel %vm4508, %v4450, %v3292
    %v4516 = vsel %vm4508, %v4451, %v3294
    %v4517 = vsel %vm4508, %v4452, %v3296
    %v4518 = vsel %vm4508, %v4453, %v3298
    %v4519 = vsel %vm4508, %v4454, %v3300
    %v4520 = vsel %vm4508, %v4455, %v3302
    %v4521 = vsel %vm4508, %v4456, %v3304
    %v4522 = vsel %vm4508, %v4457, %v3306
    %v4523 = vsel %vm4508, %v4458, %v3308
    %v4524 = vsel %vm4508, %v4459, %v3310
    %v4525 = vsel %vm4508, %v4460, %v3312
    %v4526 = vsel %vm4508, %v4461, %v3314
    %v4527 = vsel %vm4508, %v4462, %v3316
    %v4528 = vsel %vm4508, %v4463, %v3318
    %v4529 = vsel %vm4508, %v4464, %v3320
    %v4530 = vsel %vm4508, %v4465, %v3322
    %v4531 = vsel %vm4508, %v4466, %v3324
    %v4532 = vsel %vm4508, %v4467, %v3326
    %v4533 = vsel %vm4508, %v4468, %v3328
    %v4534 = vsel %vm4508, %v4469, %v3330
    %v4535 = vsel %vm4508, %v4470, %v3332
    %v4536 = vsel %vm4508, %v4471, %v3334
    %v4537 = vsel %vm4508, %v4472, %v3336
    %v4538 = vsel %vm4508, %v4473, %v3338
    %v4539 = vsel %vm4508, %v4474, %v3340
    %v4540 = vsel %vm4508, %v4475, %v3342
    %v4541 = vsel %vm4508, %v4476, %v3344
    %v4542 = vsel %vm4508, %v4477, %v3346
    %v4543 = vsel %vm4508, %v4478, %v3348
    %v4544 = vsel %vm4508, %v4479, %v3350
    %v4545 = vsel %vm4508, %v4480, %v3352
    %v4546 = vsel %vm4508, %v4481, %v3354
    %v4547 = vsel %vm4508, %v4482, %v3356
    %v4548 = vsel %vm4508, %v4483, %v3358
    %v4549 = vsel %vm4508, %v4484, %v3360
    %v4550 = vsel %vm4508, %v4485, %v3362
    %v4551 = vsel %vm4508, %v4486, %v3364
    %v4552 = vsel %vm4508, %v4487, %v3366
    %v4553 = vsel %vm4508, %v4488, %v3368
    %v4554 = vsel %vm4508, %v4489, %v3370
    %v4555 = vsel %vm4508, %v4490, %v3372
    %v4556 = vsel %vm4508, %v4491, %v3374
    %v4557 = vsel %vm4508, %v4492, %v3376
    %v4558 = vsel %vm4508, %v4493, %v3378
    %v4559 = vsel %vm4508, %v4494, %v3380
    %v4560 = vsel %vm4508, %v4495, %v3382
    %v4561 = vsel %vm4508, %v4496, %v3384
    %v4562 = vsel %vm4508, %v4497, %v3386
    %v4563 = vsel %vm4508, %v4498, %v3388
    %v4564 = vsel %vm4508, %v4499, %v3390
    %v4565 = vsel %vm4508, %v4500, %v3392
    %v4566 = vsel %vm4508, %v4501, %v3394
    %v4567 = vsel %vm4508, %v4502, %v3396
    %v4568 = vsel %vm4508, %v4503, %v3398
    %v4569 = vsel %vm4508, %v4504, %v3400
    %v4570 = vsel %vm4508, %v4505, %v3402
    %v4571 = vsel %vm4508, %v4506, %v3404
    %v4572 = vsel %vm4508, %v4507, %v3406
    %vm4573 = vcmask 179200
    %v4574 = vsel %vm4573, %v3280, %v3604
    %v4575 = vsel %vm4573, %v3282, %v3606
    %v4576 = vsel %vm4573, %v3284, %v3608
    %v4577 = vsel %vm4573, %v3286, %v3610
    %v4578 = vsel %vm4573, %v3288, %v3612
    %v4579 = vsel %vm4573, %v3290, %v3614
    %v4580 = vsel %vm4573, %v3292, %v3616
    %v4581 = vsel %vm4573, %v3294, %v3618
    %v4582 = vsel %vm4573, %v3296, %v3620
    %v4583 = vsel %vm4573, %v3298, %v3622
    %v4584 = vsel %vm4573, %v3300, %v3624
    %v4585 = vsel %vm4573, %v3302, %v3626
    %v4586 = vsel %vm4573, %v3304, %v3628
    %v4587 = vsel %vm4573, %v3306, %v3630
    %v4588 = vsel %vm4573, %v3308, %v3632
    %v4589 = vsel %vm4573, %v3310, %v3634
    %v4590 = vsel %vm4573, %v3312, %v3636
    %v4591 = vsel %vm4573, %v3314, %v3638
    %v4592 = vsel %vm4573, %v3316, %v3640
    %v4593 = vsel %vm4573, %v3318, %v3642
    %v4594 = vsel %vm4573, %v3320, %v3644
    %v4595 = vsel %vm4573, %v3322, %v3646
    %v4596 = vsel %vm4573, %v3324, %v3648
    %v4597 = vsel %vm4573, %v3326, %v3650
    %v4598 = vsel %vm4573, %v3328, %v3652
    %v4599 = vsel %vm4573, %v3330, %v3654
    %v4600 = vsel %vm4573, %v3332, %v3656
    %v4601 = vsel %vm4573, %v3334, %v3658
    %v4602 = vsel %vm4573, %v3336, %v3660
    %v4603 = vsel %vm4573, %v3338, %v3662
    %v4604 = vsel %vm4573, %v3340, %v3664
    %v4605 = vsel %vm4573, %v3342, %v3666
    %v4606 = vsel %vm4573, %v3344, %v3668
    %v4607 = vsel %vm4573, %v3346, %v3670
    %v4608 = vsel %vm4573, %v3348, %v3672
    %v4609 = vsel %vm4573, %v3350, %v3674
    %v4610 = vsel %vm4573, %v3352, %v3676
    %v4611 = vsel %vm4573, %v3354, %v3678
    %v4612 = vsel %vm4573, %v3356, %v3680
    %v4613 = vsel %vm4573, %v3358, %v3682
    %v4614 = vsel %vm4573, %v3360, %v3684
    %v4615 = vsel %vm4573, %v3362, %v3686
    %v4616 = vsel %vm4573, %v3364, %v3688
    %v4617 = vsel %vm4573, %v3366, %v3690
    %v4618 = vsel %vm4573, %v3368, %v3692
    %v4619 = vsel %vm4573, %v3370, %v3694
    %v4620 = vsel %vm4573, %v3372, %v3696
    %v4621 = vsel %vm4573, %v3374, %v3698
    %v4622 = vsel %vm4573, %v3376, %v3700
    %v4623 = vsel %vm4573, %v3378, %v3702
    %v4624 = vsel %vm4573, %v3380, %v3704
    %v4625 = vsel %vm4573, %v3382, %v3706
    %v4626 = vsel %vm4573, %v3384, %v3708
    %v4627 = vsel %vm4573, %v3386, %v3710
    %v4628 = vsel %vm4573, %v3388, %v3712
    %v4629 = vsel %vm4573, %v3390, %v3714
    %v4630 = vsel %vm4573, %v3392, %v3716
    %v4631 = vsel %vm4573, %v3394, %v3718
    %v4632 = vsel %vm4573, %v3396, %v3720
    %v4633 = vsel %vm4573, %v3398, %v3722
    %v4634 = vsel %vm4573, %v3400, %v3724
    %v4635 = vsel %vm4573, %v3402, %v3726
    %v4636 = vsel %vm4573, %v3404, %v3728
    %v4637 = vsel %vm4573, %v3406, %v3730
    %vm4638 = vcmask 588800
    %v4639 = vsel %vm4638, %v4574, %v3928
    %v4640 = vsel %vm4638, %v4575, %v3930
    %v4641 = vsel %vm4638, %v4576, %v3932
    %v4642 = vsel %vm4638, %v4577, %v3934
    %v4643 = vsel %vm4638, %v4578, %v3936
    %v4644 = vsel %vm4638, %v4579, %v3938
    %v4645 = vsel %vm4638, %v4580, %v3940
    %v4646 = vsel %vm4638, %v4581, %v3942
    %v4647 = vsel %vm4638, %v4582, %v3944
    %v4648 = vsel %vm4638, %v4583, %v3946
    %v4649 = vsel %vm4638, %v4584, %v3948
    %v4650 = vsel %vm4638, %v4585, %v3950
    %v4651 = vsel %vm4638, %v4586, %v3952
    %v4652 = vsel %vm4638, %v4587, %v3954
    %v4653 = vsel %vm4638, %v4588, %v3956
    %v4654 = vsel %vm4638, %v4589, %v3958
    %v4655 = vsel %vm4638, %v4590, %v3960
    %v4656 = vsel %vm4638, %v4591, %v3962
    %v4657 = vsel %vm4638, %v4592, %v3964
    %v4658 = vsel %vm4638, %v4593, %v3966
    %v4659 = vsel %vm4638, %v4594, %v3968
    %v4660 = vsel %vm4638, %v4595, %v3970
    %v4661 = vsel %vm4638, %v4596, %v3972
    %v4662 = vsel %vm4638, %v4597, %v3974
    %v4663 = vsel %vm4638, %v4598, %v3976
    %v4664 = vsel %vm4638, %v4599, %v3978
    %v4665 = vsel %vm4638, %v4600, %v3980
    %v4666 = vsel %vm4638, %v4601, %v3982
    %v4667 = vsel %vm4638, %v4602, %v3984
    %v4668 = vsel %vm4638, %v4603, %v3986
    %v4669 = vsel %vm4638, %v4604, %v3988
    %v4670 = vsel %vm4638, %v4605, %v3990
    %v4671 = vsel %vm4638, %v4606, %v3992
    %v4672 = vsel %vm4638, %v4607, %v3994
    %v4673 = vsel %vm4638, %v4608, %v3996
    %v4674 = vsel %vm4638, %v4609, %v3998
    %v4675 = vsel %vm4638, %v4610, %v4000
    %v4676 = vsel %vm4638, %v4611, %v4002
    %v4677 = vsel %vm4638, %v4612, %v4004
    %v4678 = vsel %vm4638, %v4613, %v4006
    %v4679 = vsel %vm4638, %v4614, %v4008
    %v4680 = vsel %vm4638, %v4615, %v4010
    %v4681 = vsel %vm4638, %v4616, %v4012
    %v4682 = vsel %vm4638, %v4617, %v4014
    %v4683 = vsel %vm4638, %v4618, %v4016
    %v4684 = vsel %vm4638, %v4619, %v4018
    %v4685 = vsel %vm4638, %v4620, %v4020
    %v4686 = vsel %vm4638, %v4621, %v4022
    %v4687 = vsel %vm4638, %v4622, %v4024
    %v4688 = vsel %vm4638, %v4623, %v4026
    %v4689 = vsel %vm4638, %v4624, %v4028
    %v4690 = vsel %vm4638, %v4625, %v4030
    %v4691 = vsel %vm4638, %v4626, %v4032
    %v4692 = vsel %vm4638, %v4627, %v4034
    %v4693 = vsel %vm4638, %v4628, %v4036
    %v4694 = vsel %vm4638, %v4629, %v4038
    %v4695 = vsel %vm4638, %v4630, %v4040
    %v4696 = vsel %vm4638, %v4631, %v4042
    %v4697 = vsel %vm4638, %v4632, %v4044
    %v4698 = vsel %vm4638, %v4633, %v4046
    %v4699 = vsel %vm4638, %v4634, %v4048
    %v4700 = vsel %vm4638, %v4635, %v4050
    %v4701 = vsel %vm4638, %v4636, %v4052
    %v4702 = vsel %vm4638, %v4637, %v4054
    %vm4703 = vcmask 998400
    %v4704 = vsel %vm4703, %v4639, %v4252
    %v4705 = vsel %vm4703, %v4640, %v4254
    %v4706 = vsel %vm4703, %v4641, %v4256
    %v4707 = vsel %vm4703, %v4642, %v4258
    %v4708 = vsel %vm4703, %v4643, %v4260
    %v4709 = vsel %vm4703, %v4644, %v4262
    %v4710 = vsel %vm4703, %v4645, %v4264
    %v4711 = vsel %vm4703, %v4646, %v4266
    %v4712 = vsel %vm4703, %v4647, %v4268
    %v4713 = vsel %vm4703, %v4648, %v4270
    %v4714 = vsel %vm4703, %v4649, %v4272
    %v4715 = vsel %vm4703, %v4650, %v4274
    %v4716 = vsel %vm4703, %v4651, %v4276
    %v4717 = vsel %vm4703, %v4652, %v4278
    %v4718 = vsel %vm4703, %v4653, %v4280
    %v4719 = vsel %vm4703, %v4654, %v4282
    %v4720 = vsel %vm4703, %v4655, %v4284
    %v4721 = vsel %vm4703, %v4656, %v4286
    %v4722 = vsel %vm4703, %v4657, %v4288
    %v4723 = vsel %vm4703, %v4658, %v4290
    %v4724 = vsel %vm4703, %v4659, %v4292
    %v4725 = vsel %vm4703, %v4660, %v4294
    %v4726 = vsel %vm4703, %v4661, %v4296
    %v4727 = vsel %vm4703, %v4662, %v4298
    %v4728 = vsel %vm4703, %v4663, %v4300
    %v4729 = vsel %vm4703, %v4664, %v4302
    %v4730 = vsel %vm4703, %v4665, %v4304
    %v4731 = vsel %vm4703, %v4666, %v4306
    %v4732 = vsel %vm4703, %v4667, %v4308
    %v4733 = vsel %vm4703, %v4668, %v4310
    %v4734 = vsel %vm4703, %v4669, %v4312
    %v4735 = vsel %vm4703, %v4670, %v4314
    %v4736 = vsel %vm4703, %v4671, %v4316
    %v4737 = vsel %vm4703, %v4672, %v4318
    %v4738 = vsel %vm4703, %v4673, %v4320
    %v4739 = vsel %vm4703, %v4674, %v4322
    %v4740 = vsel %vm4703, %v4675, %v4324
    %v4741 = vsel %vm4703, %v4676, %v4326
    %v4742 = vsel %vm4703, %v4677, %v4328
    %v4743 = vsel %vm4703, %v4678, %v4330
    %v4744 = vsel %vm4703, %v4679, %v4332
    %v4745 = vsel %vm4703, %v4680, %v4334
    %v4746 = vsel %vm4703, %v4681, %v4336
    %v4747 = vsel %vm4703, %v4682, %v4338
    %v4748 = vsel %vm4703, %v4683, %v4340
    %v4749 = vsel %vm4703, %v4684, %v4342
    %v4750 = vsel %vm4703, %v4685, %v4344
    %v4751 = vsel %vm4703, %v4686, %v4346
    %v4752 = vsel %vm4703, %v4687, %v4348
    %v4753 = vsel %vm4703, %v4688, %v4350
    %v4754 = vsel %vm4703, %v4689, %v4352
    %v4755 = vsel %vm4703, %v4690, %v4354
    %v4756 = vsel %vm4703, %v4691, %v4356
    %v4757 = vsel %vm4703, %v4692, %v4358
    %v4758 = vsel %vm4703, %v4693, %v4360
    %v4759 = vsel %vm4703, %v4694, %v4362
    %v4760 = vsel %vm4703, %v4695, %v4364
    %v4761 = vsel %vm4703, %v4696, %v4366
    %v4762 = vsel %vm4703, %v4697, %v4368
    %v4763 = vsel %vm4703, %v4698, %v4370
    %v4764 = vsel %vm4703, %v4699, %v4372
    %v4765 = vsel %vm4703, %v4700, %v4374
    %v4766 = vsel %vm4703, %v4701, %v4376
    %v4767 = vsel %vm4703, %v4702, %v4378
    %v4768 = vpack.c.bf16 %v4510, %v4509
    %v4769 = vpack.c.bf16 %v4705, %v4704
    %v4770 = vpack.c.bf16 %v4254, %v4252
    %v4771 = vpack.c.bf16 %v4512, %v4511
    %v4772 = vpack.c.bf16 %v4707, %v4706
    %v4773 = vpack.c.bf16 %v4258, %v4256
    %v4774 = vpack.c.bf16 %v4514, %v4513
    %v4775 = vpack.c.bf16 %v4709, %v4708
    %v4776 = vpack.c.bf16 %v4262, %v4260
    %v4777 = vpack.c.bf16 %v4516, %v4515
    %v4778 = vpack.c.bf16 %v4711, %v4710
    %v4779 = vpack.c.bf16 %v4266, %v4264
    %v4780 = vpack.c.bf16 %v4518, %v4517
    %v4781 = vpack.c.bf16 %v4713, %v4712
    %v4782 = vpack.c.bf16 %v4270, %v4268
    %v4783 = vpack.c.bf16 %v4520, %v4519
    %v4784 = vpack.c.bf16 %v4715, %v4714
    %v4785 = vpack.c.bf16 %v4274, %v4272
    %v4786 = vpack.c.bf16 %v4522, %v4521
    %v4787 = vpack.c.bf16 %v4717, %v4716
    %v4788 = vpack.c.bf16 %v4278, %v4276
    %v4789 = vpack.c.bf16 %v4524, %v4523
    %v4790 = vpack.c.bf16 %v4719, %v4718
    %v4791 = vpack.c.bf16 %v4282, %v4280
    %v4792 = vpack.c.bf16 %v4526, %v4525
    %v4793 = vpack.c.bf16 %v4721, %v4720
    %v4794 = vpack.c.bf16 %v4286, %v4284
    %v4795 = vpack.c.bf16 %v4528, %v4527
    %v4796 = vpack.c.bf16 %v4723, %v4722
    %v4797 = vpack.c.bf16 %v4290, %v4288
    %v4798 = vpack.c.bf16 %v4530, %v4529
    %v4799 = vpack.c.bf16 %v4725, %v4724
    %v4800 = vpack.c.bf16 %v4294, %v4292
    %v4801 = vpack.c.bf16 %v4532, %v4531
    %v4802 = vpack.c.bf16 %v4727, %v4726
    %v4803 = vpack.c.bf16 %v4298, %v4296
    %v4804 = vpack.c.bf16 %v4534, %v4533
    %v4805 = vpack.c.bf16 %v4729, %v4728
    %v4806 = vpack.c.bf16 %v4302, %v4300
    %v4807 = vpack.c.bf16 %v4536, %v4535
    %v4808 = vpack.c.bf16 %v4731, %v4730
    %v4809 = vpack.c.bf16 %v4306, %v4304
    %v4810 = vpack.c.bf16 %v4538, %v4537
    %v4811 = vpack.c.bf16 %v4733, %v4732
    %v4812 = vpack.c.bf16 %v4310, %v4308
    %v4813 = vpack.c.bf16 %v4540, %v4539
    %v4814 = vpack.c.bf16 %v4735, %v4734
    %v4815 = vpack.c.bf16 %v4314, %v4312
    %v4816 = vpack.c.bf16 %v4542, %v4541
    %v4817 = vpack.c.bf16 %v4737, %v4736
    %v4818 = vpack.c.bf16 %v4318, %v4316
    %v4819 = vpack.c.bf16 %v4544, %v4543
    %v4820 = vpack.c.bf16 %v4739, %v4738
    %v4821 = vpack.c.bf16 %v4322, %v4320
    %v4822 = vpack.c.bf16 %v4546, %v4545
    %v4823 = vpack.c.bf16 %v4741, %v4740
    %v4824 = vpack.c.bf16 %v4326, %v4324
    %v4825 = vpack.c.bf16 %v4548, %v4547
    %v4826 = vpack.c.bf16 %v4743, %v4742
    %v4827 = vpack.c.bf16 %v4330, %v4328
    %v4828 = vpack.c.bf16 %v4550, %v4549
    %v4829 = vpack.c.bf16 %v4745, %v4744
    %v4830 = vpack.c.bf16 %v4334, %v4332
    %v4831 = vpack.c.bf16 %v4552, %v4551
    %v4832 = vpack.c.bf16 %v4747, %v4746
    %v4833 = vpack.c.bf16 %v4338, %v4336
    %v4834 = vpack.c.bf16 %v4554, %v4553
    %v4835 = vpack.c.bf16 %v4749, %v4748
    %v4836 = vpack.c.bf16 %v4342, %v4340
    %v4837 = vpack.c.bf16 %v4556, %v4555
    %v4838 = vpack.c.bf16 %v4751, %v4750
    %v4839 = vpack.c.bf16 %v4346, %v4344
    %v4840 = vpack.c.bf16 %v4558, %v4557
    %v4841 = vpack.c.bf16 %v4753, %v4752
    %v4842 = vpack.c.bf16 %v4350, %v4348
    %v4843 = vpack.c.bf16 %v4560, %v4559
    %v4844 = vpack.c.bf16 %v4755, %v4754
    %v4845 = vpack.c.bf16 %v4354, %v4352
    %v4846 = vpack.c.bf16 %v4562, %v4561
    %v4847 = vpack.c.bf16 %v4757, %v4756
    %v4848 = vpack.c.bf16 %v4358, %v4356
    %v4849 = vpack.c.bf16 %v4564, %v4563
    %v4850 = vpack.c.bf16 %v4759, %v4758
    %v4851 = vpack.c.bf16 %v4362, %v4360
    %v4852 = vpack.c.bf16 %v4566, %v4565
    %v4853 = vpack.c.bf16 %v4761, %v4760
    %v4854 = vpack.c.bf16 %v4366, %v4364
    %v4855 = vpack.c.bf16 %v4568, %v4567
    %v4856 = vpack.c.bf16 %v4763, %v4762
    %v4857 = vpack.c.bf16 %v4370, %v4368
    %v4858 = vpack.c.bf16 %v4570, %v4569
    %v4859 = vpack.c.bf16 %v4765, %v4764
    %v4860 = vpack.c.bf16 %v4374, %v4372
    %v4861 = vpack.c.bf16 %v4572, %v4571
    %v4862 = vpack.c.bf16 %v4767, %v4766
    %v4863 = vpack.c.bf16 %v4378, %v4376
    %v4864 = vld [vmem:[%s3] sm:$0xf]
    %v4865 = vld [vmem:[%s3 + $0x4] sm:$0xf]
    %v4866 = vld [vmem:[%s3 + $0x8] sm:$0xf]
    %v4867 = vld [vmem:[%s3 + $0xc] sm:$0xf]
    %v4868 = vld [vmem:[%s3 + $0x10] sm:$0xf]
    %v4869 = vld [vmem:[%s3 + $0x14] sm:$0xf]
    %v4870 = vld [vmem:[%s3 + $0x18] sm:$0xf]
    %v4871 = vld [vmem:[%s3 + $0x1c] sm:$0xf]
    %v4872 = vld [vmem:[%s3 + $0x20] sm:$0xf]
    %v4873 = vld [vmem:[%s3 + $0x24] sm:$0xf]
    %v4874 = vld [vmem:[%s3 + $0x28] sm:$0xf]
    %v4875 = vld [vmem:[%s3 + $0x2c] sm:$0xf]
    %v4876 = vld [vmem:[%s3 + $0x30] sm:$0xf]
    %v4877 = vld [vmem:[%s3 + $0x34] sm:$0xf]
    %v4878 = vld [vmem:[%s3 + $0x38] sm:$0xf]
    %v4879 = vld [vmem:[%s3 + $0x3c] sm:$0xf]
    %v4880 = vld [vmem:[%s3 + $0x40] sm:$0xf]
    %v4881 = vld [vmem:[%s3 + $0x44] sm:$0xf]
    %v4882 = vld [vmem:[%s3 + $0x48] sm:$0xf]
    %v4883 = vld [vmem:[%s3 + $0x4c] sm:$0xf]
    %v4884 = vld [vmem:[%s3 + $0x50] sm:$0xf]
    %v4885 = vld [vmem:[%s3 + $0x54] sm:$0xf]
    %v4886 = vld [vmem:[%s3 + $0x58] sm:$0xf]
    %v4887 = vld [vmem:[%s3 + $0x5c] sm:$0xf]
    %v4888 = vld [vmem:[%s3 + $0x60] sm:$0xf]
    %v4889 = vld [vmem:[%s3 + $0x64] sm:$0xf]
    %v4890 = vld [vmem:[%s3 + $0x68] sm:$0xf]
    %v4891 = vld [vmem:[%s3 + $0x6c] sm:$0xf]
    %v4892 = vld [vmem:[%s3 + $0x70] sm:$0xf]
    %v4893 = vld [vmem:[%s3 + $0x74] sm:$0xf]
    %v4894 = vld [vmem:[%s3 + $0x78] sm:$0xf]
    %v4895 = vld [vmem:[%s3 + $0x7c] sm:$0xf]
    %v4896 = vld [vmem:[%s3 + $0x80] sm:$0xf]
    %v4897 = vld [vmem:[%s3 + $0x84] sm:$0xf]
    %v4898 = vld [vmem:[%s3 + $0x88] sm:$0xf]
    %v4899 = vld [vmem:[%s3 + $0x8c] sm:$0xf]
    %v4900 = vld [vmem:[%s3 + $0x90] sm:$0xf]
    %v4901 = vld [vmem:[%s3 + $0x94] sm:$0x3]
    %v4902 = vld [vmem:[#allocation3] sm:$0x1]
    %v4904 = vlaneseq
    %v4905 = vshrl.u32 %v4904, 7
    %v4906 = vsub.s32 0, %v4905
    %v4907 = vrot.slane %v4902, %v4906
    %v4947 = vunpack.c.l.b16 %v4864
    %v4948 = vunpack.c.l.b16 %v4865
    %v4949 = vunpack.c.l.b16 %v4866
    %v4950 = vunpack.c.l.b16 %v4867
    %v4951 = vunpack.c.l.b16 %v4868
    %v4952 = vunpack.c.l.b16 %v4869
    %v4953 = vunpack.c.l.b16 %v4870
    %v4954 = vunpack.c.l.b16 %v4871
    %v4955 = vunpack.c.l.b16 %v4872
    %v4956 = vunpack.c.l.b16 %v4873
    %v4957 = vunpack.c.l.b16 %v4874
    %v4958 = vunpack.c.l.b16 %v4875
    %v4959 = vunpack.c.l.b16 %v4876
    %v4960 = vunpack.c.l.b16 %v4877
    %v4961 = vunpack.c.l.b16 %v4878
    %v4962 = vunpack.c.l.b16 %v4879
    %v4963 = vunpack.c.l.b16 %v4880
    %v4964 = vunpack.c.l.b16 %v4881
    %v4965 = vunpack.c.l.b16 %v4882
    %v4966 = vunpack.c.l.b16 %v4883
    %v4967 = vunpack.c.l.b16 %v4884
    %v4968 = vunpack.c.l.b16 %v4885
    %v4969 = vunpack.c.l.b16 %v4886
    %v4970 = vunpack.c.l.b16 %v4887
    %v4971 = vunpack.c.l.b16 %v4888
    %v4972 = vunpack.c.l.b16 %v4889
    %v4973 = vunpack.c.l.b16 %v4890
    %v4974 = vunpack.c.l.b16 %v4891
    %v4975 = vunpack.c.l.b16 %v4892
    %v4976 = vunpack.c.l.b16 %v4893
    %v4977 = vunpack.c.l.b16 %v4894
    %v4978 = vunpack.c.l.b16 %v4895
    %v4979 = vunpack.c.l.b16 %v4896
    %v4980 = vunpack.c.l.b16 %v4897
    %v4981 = vunpack.c.l.b16 %v4898
    %v4982 = vunpack.c.l.b16 %v4899
    %v4983 = vunpack.c.l.b16 %v4900
    %v4984 = vunpack.c.l.b16 %v4901
    %v4985 = vpack.c.b16 %v4948, %v4947
    %v4986 = vpack.c.b16 %v4950, %v4949
    %v4987 = vpack.c.b16 %v4952, %v4951
    %v4988 = vpack.c.b16 %v4954, %v4953
    %v4989 = vpack.c.b16 %v4956, %v4955
    %v4990 = vpack.c.b16 %v4958, %v4957
    %v4991 = vpack.c.b16 %v4960, %v4959
    %v4992 = vpack.c.b16 %v4962, %v4961
    %v4993 = vpack.c.b16 %v4964, %v4963
    %v4994 = vpack.c.b16 %v4966, %v4965
    %v4995 = vpack.c.b16 %v4968, %v4967
    %v4996 = vpack.c.b16 %v4970, %v4969
    %v4997 = vpack.c.b16 %v4972, %v4971
    %v4998 = vpack.c.b16 %v4974, %v4973
    %v4999 = vpack.c.b16 %v4976, %v4975
    %v5000 = vpack.c.b16 %v4978, %v4977
    %v5001 = vpack.c.b16 %v4980, %v4979
    %v5002 = vpack.c.b16 %v4982, %v4981
    %v5003 = vpack.c.b16 %v4984, %v4983
    %vm5022 = vcmask 359424
    %v5024 = vsel %vm5022, %v4770, 0
    %v5027 = vsel %vm5022, %v4773, 0
    %v5030 = vsel %vm5022, %v4776, 0
    %v5033 = vsel %vm5022, %v4779, 0
    %v5036 = vsel %vm5022, %v4782, 0
    %v5039 = vsel %vm5022, %v4785, 0
    %v5042 = vsel %vm5022, %v4788, 0
    %v5045 = vsel %vm5022, %v4791, 0
    %v5048 = vsel %vm5022, %v4794, 0
    %v5051 = vsel %vm5022, %v4797, 0
    %v5054 = vsel %vm5022, %v4800, 0
    %v5057 = vsel %vm5022, %v4803, 0
    %v5060 = vsel %vm5022, %v4806, 0
    %v5063 = vsel %vm5022, %v4809, 0
    %v5066 = vsel %vm5022, %v4812, 0
    %v5069 = vsel %vm5022, %v4815, 0
    %v5072 = vsel %vm5022, %v4818, 0
    %v5075 = vsel %vm5022, %v4821, 0
    %v5078 = vsel %vm5022, %v4824, 0
    %v5081 = vsel %vm5022, %v4827, 0
    %v5084 = vsel %vm5022, %v4830, 0
    %v5087 = vsel %vm5022, %v4833, 0
    %v5090 = vsel %vm5022, %v4836, 0
    %v5093 = vsel %vm5022, %v4839, 0
    %v5096 = vsel %vm5022, %v4842, 0
    %v5099 = vsel %vm5022, %v4845, 0
    %v5102 = vsel %vm5022, %v4848, 0
    %v5105 = vsel %vm5022, %v4851, 0
    %v5108 = vsel %vm5022, %v4854, 0
    %v5111 = vsel %vm5022, %v4857, 0
    %v5114 = vsel %vm5022, %v4860, 0
    %v5117 = vsel %vm5022, %v4863, 0
    %v5120 = vsel %vm285, %v5003, 0
    %5122 = vmatprep.subr.bf16.mxu0 0
    %5123 = vmatpush1.bf16.msra.mxu0 %v4992
    %5124 = vmatprep.subr.bf16.mxu0 0
    %5125 = vmatpush1.bf16.msra.mxu0 %v4991
    %5126 = vmatprep.subr.bf16.mxu0 0
    %5127 = vmatpush1.bf16.msra.mxu0 %v4990
    %5128 = vmatprep.subr.bf16.mxu0 0
    %5129 = vmatpush1.bf16.msra.mxu0 %v4989
    %5130 = vmatprep.subr.bf16.mxu0 0
    %5131 = vmatpush1.bf16.msra.mxu0 %v4988
    %5132 = vmatprep.subr.bf16.mxu0 0
    %5133 = vmatpush1.bf16.msra.mxu0 %v4987
    %5134 = vmatprep.subr.bf16.mxu0 0
    %5135 = vmatpush1.bf16.msra.mxu0 %v4986
    %5136 = vmatprep.subr.bf16.mxu0 0
    %5137 = vmatpush1.bf16.msra.mxu0 %v4985
    %5138 = vmatprep.subr.bf16.mxu0 0
    %5139 = vmatpush2.bf16.msra.mxu0 %v5000
    %5140 = vmatprep.subr.bf16.mxu0 0
    %5141 = vmatpush2.bf16.msra.mxu0 %v4999
    %5142 = vmatprep.subr.bf16.mxu0 0
    %5143 = vmatpush2.bf16.msra.mxu0 %v4998
    %5144 = vmatprep.subr.bf16.mxu0 0
    %5145 = vmatpush2.bf16.msra.mxu0 %v4997
    %5146 = vmatprep.subr.bf16.mxu0 0
    %5147 = vmatpush2.bf16.msra.mxu0 %v4996
    %5148 = vmatprep.subr.bf16.mxu0 0
    %5149 = vmatpush2.bf16.msra.mxu0 %v4995
    %5150 = vmatprep.subr.bf16.mxu0 0
    %5151 = vmatpush2.bf16.msra.mxu0 %v4994
    %5152 = vmatprep.subr.bf16.mxu0 0
    %5153 = vmatpush2.bf16.msra.mxu0 %v4993
    %5154 = vmatprep.mubr.bf16.mxu0 %v4769
    %5155 = vmatmul.mubr.bf16.gmra.mxu0 %v4768
    %v5156 = vpop.f32.mrf.mxu0
    %v5157 = vadd.f32 %v4907, %v5156
    %v5158 = vpop.f32.mrf.mxu0
    %v5159 = vpop.f32.mrf.mxu0
    %v5160 = vadd.f32 %v4907, %v5159
    %v5161 = vpop.f32.mrf.mxu0
    %5162 = vmatprep.mubr.bf16.mxu0 %v4772
    %5163 = vmatmul.mubr.bf16.gmra.mxu0 %v4771
    %v5164 = vpop.f32.mrf.mxu0
    %v5165 = vadd.f32 %v4907, %v5164
    %v5166 = vpop.f32.mrf.mxu0
    %v5167 = vpop.f32.mrf.mxu0
    %v5168 = vadd.f32 %v4907, %v5167
    %v5169 = vpop.f32.mrf.mxu0
    %5170 = vmatprep.mubr.bf16.mxu0 %v4775
    %5171 = vmatmul.mubr.bf16.gmra.mxu0 %v4774
    %v5172 = vpop.f32.mrf.mxu0
    %v5173 = vadd.f32 %v4907, %v5172
    %v5174 = vpop.f32.mrf.mxu0
    %v5175 = vpop.f32.mrf.mxu0
    %v5176 = vadd.f32 %v4907, %v5175
    %v5177 = vpop.f32.mrf.mxu0
    %5178 = vmatprep.mubr.bf16.mxu0 %v4778
    %5179 = vmatmul.mubr.bf16.gmra.mxu0 %v4777
    %v5180 = vpop.f32.mrf.mxu0
    %v5181 = vadd.f32 %v4907, %v5180
    %v5182 = vpop.f32.mrf.mxu0
    %v5183 = vpop.f32.mrf.mxu0
    %v5184 = vadd.f32 %v4907, %v5183
    %v5185 = vpop.f32.mrf.mxu0
    %5186 = vmatprep.mubr.bf16.mxu0 %v4781
    %5187 = vmatmul.mubr.bf16.gmra.mxu0 %v4780
    %v5188 = vpop.f32.mrf.mxu0
    %v5189 = vadd.f32 %v4907, %v5188
    %v5190 = vpop.f32.mrf.mxu0
    %v5191 = vpop.f32.mrf.mxu0
    %v5192 = vadd.f32 %v4907, %v5191
    %v5193 = vpop.f32.mrf.mxu0
    %5194 = vmatprep.mubr.bf16.mxu0 %v4784
    %5195 = vmatmul.mubr.bf16.gmra.mxu0 %v4783
    %v5196 = vpop.f32.mrf.mxu0
    %v5197 = vadd.f32 %v4907, %v5196
    %v5198 = vpop.f32.mrf.mxu0
    %v5199 = vpop.f32.mrf.mxu0
    %v5200 = vadd.f32 %v4907, %v5199
    %v5201 = vpop.f32.mrf.mxu0
    %5202 = vmatprep.mubr.bf16.mxu0 %v4787
    %5203 = vmatmul.mubr.bf16.gmra.mxu0 %v4786
    %v5204 = vpop.f32.mrf.mxu0
    %v5205 = vadd.f32 %v4907, %v5204
    %v5206 = vpop.f32.mrf.mxu0
    %v5207 = vpop.f32.mrf.mxu0
    %v5208 = vadd.f32 %v4907, %v5207
    %v5209 = vpop.f32.mrf.mxu0
    %5210 = vmatprep.mubr.bf16.mxu0 %v4790
    %5211 = vmatmul.mubr.bf16.gmra.mxu0 %v4789
    %v5212 = vpop.f32.mrf.mxu0
    %v5213 = vadd.f32 %v4907, %v5212
    %v5214 = vpop.f32.mrf.mxu0
    %v5215 = vpop.f32.mrf.mxu0
    %v5216 = vadd.f32 %v4907, %v5215
    %v5217 = vpop.f32.mrf.mxu0
    %5218 = vmatprep.mubr.bf16.mxu0 %v4793
    %5219 = vmatmul.mubr.bf16.gmra.mxu0 %v4792
    %v5220 = vpop.f32.mrf.mxu0
    %v5221 = vadd.f32 %v4907, %v5220
    %v5222 = vpop.f32.mrf.mxu0
    %v5223 = vpop.f32.mrf.mxu0
    %v5224 = vadd.f32 %v4907, %v5223
    %v5225 = vpop.f32.mrf.mxu0
    %5226 = vmatprep.mubr.bf16.mxu0 %v4796
    %5227 = vmatmul.mubr.bf16.gmra.mxu0 %v4795
    %v5228 = vpop.f32.mrf.mxu0
    %v5229 = vadd.f32 %v4907, %v5228
    %v5230 = vpop.f32.mrf.mxu0
    %v5231 = vpop.f32.mrf.mxu0
    %v5232 = vadd.f32 %v4907, %v5231
    %v5233 = vpop.f32.mrf.mxu0
    %5234 = vmatprep.mubr.bf16.mxu0 %v4799
    %5235 = vmatmul.mubr.bf16.gmra.mxu0 %v4798
    %v5236 = vpop.f32.mrf.mxu0
    %v5237 = vadd.f32 %v4907, %v5236
    %v5238 = vpop.f32.mrf.mxu0
    %v5239 = vpop.f32.mrf.mxu0
    %v5240 = vadd.f32 %v4907, %v5239
    %v5241 = vpop.f32.mrf.mxu0
    %5242 = vmatprep.mubr.bf16.mxu0 %v4802
    %5243 = vmatmul.mubr.bf16.gmra.mxu0 %v4801
    %v5244 = vpop.f32.mrf.mxu0
    %v5245 = vadd.f32 %v4907, %v5244
    %v5246 = vpop.f32.mrf.mxu0
    %v5247 = vpop.f32.mrf.mxu0
    %v5248 = vadd.f32 %v4907, %v5247
    %v5249 = vpop.f32.mrf.mxu0
    %5250 = vmatprep.mubr.bf16.mxu0 %v4805
    %5251 = vmatmul.mubr.bf16.gmra.mxu0 %v4804
    %v5252 = vpop.f32.mrf.mxu0
    %v5253 = vadd.f32 %v4907, %v5252
    %v5254 = vpop.f32.mrf.mxu0
    %v5255 = vpop.f32.mrf.mxu0
    %v5256 = vadd.f32 %v4907, %v5255
    %v5257 = vpop.f32.mrf.mxu0
    %5258 = vmatprep.mubr.bf16.mxu0 %v4808
    %5259 = vmatmul.mubr.bf16.gmra.mxu0 %v4807
    %v5260 = vpop.f32.mrf.mxu0
    %v5261 = vadd.f32 %v4907, %v5260
    %v5262 = vpop.f32.mrf.mxu0
    %v5263 = vpop.f32.mrf.mxu0
    %v5264 = vadd.f32 %v4907, %v5263
    %v5265 = vpop.f32.mrf.mxu0
    %5266 = vmatprep.mubr.bf16.mxu0 %v4811
    %5267 = vmatmul.mubr.bf16.gmra.mxu0 %v4810
    %v5268 = vpop.f32.mrf.mxu0
    %v5269 = vadd.f32 %v4907, %v5268
    %v5270 = vpop.f32.mrf.mxu0
    %v5271 = vpop.f32.mrf.mxu0
    %v5272 = vadd.f32 %v4907, %v5271
    %v5273 = vpop.f32.mrf.mxu0
    %5274 = vmatprep.mubr.bf16.mxu0 %v4814
    %5275 = vmatmul.mubr.bf16.gmra.mxu0 %v4813
    %v5276 = vpop.f32.mrf.mxu0
    %v5277 = vadd.f32 %v4907, %v5276
    %v5278 = vpop.f32.mrf.mxu0
    %v5279 = vpop.f32.mrf.mxu0
    %v5280 = vadd.f32 %v4907, %v5279
    %v5281 = vpop.f32.mrf.mxu0
    %5282 = vmatprep.mubr.bf16.mxu0 %v4817
    %5283 = vmatmul.mubr.bf16.gmra.mxu0 %v4816
    %v5284 = vpop.f32.mrf.mxu0
    %v5285 = vadd.f32 %v4907, %v5284
    %v5286 = vpop.f32.mrf.mxu0
    %v5287 = vpop.f32.mrf.mxu0
    %v5288 = vadd.f32 %v4907, %v5287
    %v5289 = vpop.f32.mrf.mxu0
    %5290 = vmatprep.mubr.bf16.mxu0 %v4820
    %5291 = vmatmul.mubr.bf16.gmra.mxu0 %v4819
    %v5292 = vpop.f32.mrf.mxu0
    %v5293 = vadd.f32 %v4907, %v5292
    %v5294 = vpop.f32.mrf.mxu0
    %v5295 = vpop.f32.mrf.mxu0
    %v5296 = vadd.f32 %v4907, %v5295
    %v5297 = vpop.f32.mrf.mxu0
    %5298 = vmatprep.mubr.bf16.mxu0 %v4823
    %5299 = vmatmul.mubr.bf16.gmra.mxu0 %v4822
    %v5300 = vpop.f32.mrf.mxu0
    %v5301 = vadd.f32 %v4907, %v5300
    %v5302 = vpop.f32.mrf.mxu0
    %v5303 = vpop.f32.mrf.mxu0
    %v5304 = vadd.f32 %v4907, %v5303
    %v5305 = vpop.f32.mrf.mxu0
    %5306 = vmatprep.mubr.bf16.mxu0 %v4826
    %5307 = vmatmul.mubr.bf16.gmra.mxu0 %v4825
    %v5308 = vpop.f32.mrf.mxu0
    %v5309 = vadd.f32 %v4907, %v5308
    %v5310 = vpop.f32.mrf.mxu0
    %v5311 = vpop.f32.mrf.mxu0
    %v5312 = vadd.f32 %v4907, %v5311
    %v5313 = vpop.f32.mrf.mxu0
    %5314 = vmatprep.mubr.bf16.mxu0 %v4829
    %5315 = vmatmul.mubr.bf16.gmra.mxu0 %v4828
    %v5316 = vpop.f32.mrf.mxu0
    %v5317 = vadd.f32 %v4907, %v5316
    %v5318 = vpop.f32.mrf.mxu0
    %v5319 = vpop.f32.mrf.mxu0
    %v5320 = vadd.f32 %v4907, %v5319
    %v5321 = vpop.f32.mrf.mxu0
    %5322 = vmatprep.mubr.bf16.mxu0 %v4832
    %5323 = vmatmul.mubr.bf16.gmra.mxu0 %v4831
    %v5324 = vpop.f32.mrf.mxu0
    %v5325 = vadd.f32 %v4907, %v5324
    %v5326 = vpop.f32.mrf.mxu0
    %v5327 = vpop.f32.mrf.mxu0
    %v5328 = vadd.f32 %v4907, %v5327
    %v5329 = vpop.f32.mrf.mxu0
    %5330 = vmatprep.mubr.bf16.mxu0 %v4835
    %5331 = vmatmul.mubr.bf16.gmra.mxu0 %v4834
    %v5332 = vpop.f32.mrf.mxu0
    %v5333 = vadd.f32 %v4907, %v5332
    %v5334 = vpop.f32.mrf.mxu0
    %v5335 = vpop.f32.mrf.mxu0
    %v5336 = vadd.f32 %v4907, %v5335
    %v5337 = vpop.f32.mrf.mxu0
    %5338 = vmatprep.mubr.bf16.mxu0 %v4838
    %5339 = vmatmul.mubr.bf16.gmra.mxu0 %v4837
    %v5340 = vpop.f32.mrf.mxu0
    %v5341 = vadd.f32 %v4907, %v5340
    %v5342 = vpop.f32.mrf.mxu0
    %v5343 = vpop.f32.mrf.mxu0
    %v5344 = vadd.f32 %v4907, %v5343
    %v5345 = vpop.f32.mrf.mxu0
    %5346 = vmatprep.mubr.bf16.mxu0 %v4841
    %5347 = vmatmul.mubr.bf16.gmra.mxu0 %v4840
    %v5348 = vpop.f32.mrf.mxu0
    %v5349 = vadd.f32 %v4907, %v5348
    %v5350 = vpop.f32.mrf.mxu0
    %v5351 = vpop.f32.mrf.mxu0
    %v5352 = vadd.f32 %v4907, %v5351
    %v5353 = vpop.f32.mrf.mxu0
    %5354 = vmatprep.mubr.bf16.mxu0 %v4844
    %5355 = vmatmul.mubr.bf16.gmra.mxu0 %v4843
    %v5356 = vpop.f32.mrf.mxu0
    %v5357 = vadd.f32 %v4907, %v5356
    %v5358 = vpop.f32.mrf.mxu0
    %v5359 = vpop.f32.mrf.mxu0
    %v5360 = vadd.f32 %v4907, %v5359
    %v5361 = vpop.f32.mrf.mxu0
    %5362 = vmatprep.mubr.bf16.mxu0 %v4847
    %5363 = vmatmul.mubr.bf16.gmra.mxu0 %v4846
    %v5364 = vpop.f32.mrf.mxu0
    %v5365 = vadd.f32 %v4907, %v5364
    %v5366 = vpop.f32.mrf.mxu0
    %v5367 = vpop.f32.mrf.mxu0
    %v5368 = vadd.f32 %v4907, %v5367
    %v5369 = vpop.f32.mrf.mxu0
    %5370 = vmatprep.mubr.bf16.mxu0 %v4850
    %5371 = vmatmul.mubr.bf16.gmra.mxu0 %v4849
    %v5372 = vpop.f32.mrf.mxu0
    %v5373 = vadd.f32 %v4907, %v5372
    %v5374 = vpop.f32.mrf.mxu0
    %v5375 = vpop.f32.mrf.mxu0
    %v5376 = vadd.f32 %v4907, %v5375
    %v5377 = vpop.f32.mrf.mxu0
    %5378 = vmatprep.mubr.bf16.mxu0 %v4853
    %5379 = vmatmul.mubr.bf16.gmra.mxu0 %v4852
    %v5380 = vpop.f32.mrf.mxu0
    %v5381 = vadd.f32 %v4907, %v5380
    %v5382 = vpop.f32.mrf.mxu0
    %v5383 = vpop.f32.mrf.mxu0
    %v5384 = vadd.f32 %v4907, %v5383
    %v5385 = vpop.f32.mrf.mxu0
    %5386 = vmatprep.mubr.bf16.mxu0 %v4856
    %5387 = vmatmul.mubr.bf16.gmra.mxu0 %v4855
    %v5388 = vpop.f32.mrf.mxu0
    %v5389 = vadd.f32 %v4907, %v5388
    %v5390 = vpop.f32.mrf.mxu0
    %v5391 = vpop.f32.mrf.mxu0
    %v5392 = vadd.f32 %v4907, %v5391
    %v5393 = vpop.f32.mrf.mxu0
    %5394 = vmatprep.mubr.bf16.mxu0 %v4859
    %5395 = vmatmul.mubr.bf16.gmra.mxu0 %v4858
    %v5396 = vpop.f32.mrf.mxu0
    %v5397 = vadd.f32 %v4907, %v5396
    %v5398 = vpop.f32.mrf.mxu0
    %v5399 = vpop.f32.mrf.mxu0
    %v5400 = vadd.f32 %v4907, %v5399
    %v5401 = vpop.f32.mrf.mxu0
    %5402 = vmatprep.mubr.bf16.mxu0 %v4862
    %5403 = vmatmul.mubr.bf16.gmra.mxu0 %v4861
    %v5404 = vpop.f32.mrf.mxu0
    %v5405 = vadd.f32 %v4907, %v5404
    %v5406 = vpop.f32.mrf.mxu0
    %v5407 = vpop.f32.mrf.mxu0
    %v5408 = vadd.f32 %v4907, %v5407
    %v5409 = vpop.f32.mrf.mxu0
    %5410 = vdwg.mxu0
    %5411 = vmatprep.subr.bf16.mxu0 0
    %5412 = vmatpush1.bf16.msra.mxu0 0
    %5413 = vmatprep.subr.bf16.mxu0 0
    %5414 = vmatpush1.bf16.msra.mxu0 0
    %5415 = vmatprep.subr.bf16.mxu0 0
    %5416 = vmatpush1.bf16.msra.mxu0 0
    %5417 = vmatprep.subr.bf16.mxu0 0
    %5418 = vmatpush1.bf16.msra.mxu0 0
    %5419 = vmatprep.subr.bf16.mxu0 0
    %5420 = vmatpush1.bf16.msra.mxu0 0
    %5421 = vmatprep.subr.bf16.mxu0 0
    %5422 = vmatpush1.bf16.msra.mxu0 %v5120
    %5423 = vmatprep.subr.bf16.mxu0 0
    %5424 = vmatpush1.bf16.msra.mxu0 %v5002
    %5425 = vmatprep.subr.bf16.mxu0 0
    %5426 = vmatpush1.bf16.msra.mxu0 %v5001
    %5427 = vmatprep.subr.bf16.mxu0 0
    %5428 = vmatpush2.bf16.msra.mxu0 0
    %5429 = vmatprep.subr.bf16.mxu0 0
    %5430 = vmatpush2.bf16.msra.mxu0 0
    %5431 = vmatprep.subr.bf16.mxu0 0
    %5432 = vmatpush2.bf16.msra.mxu0 0
    %5433 = vmatprep.subr.bf16.mxu0 0
    %5434 = vmatpush2.bf16.msra.mxu0 0
    %5435 = vmatprep.subr.bf16.mxu0 0
    %5436 = vmatpush2.bf16.msra.mxu0 0
    %5437 = vmatprep.subr.bf16.mxu0 0
    %5438 = vmatpush2.bf16.msra.mxu0 0
    %5439 = vmatprep.subr.bf16.mxu0 0
    %5440 = vmatpush2.bf16.msra.mxu0 0
    %5441 = vmatprep.subr.bf16.mxu0 0
    %5442 = vmatpush2.bf16.msra.mxu0 0
    %5443 = vmatprep.mubr.bf16.mxu0 0
    %5444 = vmatmul.mubr.bf16.gmra.mxu0 %v5024
    %v5445 = vpop.f32.mrf.mxu0
    %v5446 = vadd.f32 %v5157, %v5445
    %v5447 = vpop.f32.mrf.mxu0
    %v5448 = vpop.f32.mrf.mxu0
    %v5449 = vadd.f32 %v5160, %v5448
    %v5450 = vpop.f32.mrf.mxu0
    %5451 = vmatprep.mubr.bf16.mxu0 0
    %5452 = vmatmul.mubr.bf16.gmra.mxu0 %v5027
    %v5453 = vpop.f32.mrf.mxu0
    %v5454 = vadd.f32 %v5165, %v5453
    %v5455 = vpop.f32.mrf.mxu0
    %v5456 = vpop.f32.mrf.mxu0
    %v5457 = vadd.f32 %v5168, %v5456
    %v5458 = vpop.f32.mrf.mxu0
    %5459 = vmatprep.mubr.bf16.mxu0 0
    %5460 = vmatmul.mubr.bf16.gmra.mxu0 %v5030
    %v5461 = vpop.f32.mrf.mxu0
    %v5462 = vadd.f32 %v5173, %v5461
    %v5463 = vpop.f32.mrf.mxu0
    %v5464 = vpop.f32.mrf.mxu0
    %v5465 = vadd.f32 %v5176, %v5464
    %v5466 = vpop.f32.mrf.mxu0
    %5467 = vmatprep.mubr.bf16.mxu0 0
    %5468 = vmatmul.mubr.bf16.gmra.mxu0 %v5033
    %v5469 = vpop.f32.mrf.mxu0
    %v5470 = vadd.f32 %v5181, %v5469
    %v5471 = vpop.f32.mrf.mxu0
    %v5472 = vpop.f32.mrf.mxu0
    %v5473 = vadd.f32 %v5184, %v5472
    %v5474 = vpop.f32.mrf.mxu0
    %5475 = vmatprep.mubr.bf16.mxu0 0
    %5476 = vmatmul.mubr.bf16.gmra.mxu0 %v5036
    %v5477 = vpop.f32.mrf.mxu0
    %v5478 = vadd.f32 %v5189, %v5477
    %v5479 = vpop.f32.mrf.mxu0
    %v5480 = vpop.f32.mrf.mxu0
    %v5481 = vadd.f32 %v5192, %v5480
    %v5482 = vpop.f32.mrf.mxu0
    %5483 = vmatprep.mubr.bf16.mxu0 0
    %5484 = vmatmul.mubr.bf16.gmra.mxu0 %v5039
    %v5485 = vpop.f32.mrf.mxu0
    %v5486 = vadd.f32 %v5197, %v5485
    %v5487 = vpop.f32.mrf.mxu0
    %v5488 = vpop.f32.mrf.mxu0
    %v5489 = vadd.f32 %v5200, %v5488
    %v5490 = vpop.f32.mrf.mxu0
    %5491 = vmatprep.mubr.bf16.mxu0 0
    %5492 = vmatmul.mubr.bf16.gmra.mxu0 %v5042
    %v5493 = vpop.f32.mrf.mxu0
    %v5494 = vadd.f32 %v5205, %v5493
    %v5495 = vpop.f32.mrf.mxu0
    %v5496 = vpop.f32.mrf.mxu0
    %v5497 = vadd.f32 %v5208, %v5496
    %v5498 = vpop.f32.mrf.mxu0
    %5499 = vmatprep.mubr.bf16.mxu0 0
    %5500 = vmatmul.mubr.bf16.gmra.mxu0 %v5045
    %v5501 = vpop.f32.mrf.mxu0
    %v5502 = vadd.f32 %v5213, %v5501
    %v5503 = vpop.f32.mrf.mxu0
    %v5504 = vpop.f32.mrf.mxu0
    %v5505 = vadd.f32 %v5216, %v5504
    %v5506 = vpop.f32.mrf.mxu0
    %5507 = vmatprep.mubr.bf16.mxu0 0
    %5508 = vmatmul.mubr.bf16.gmra.mxu0 %v5048
    %v5509 = vpop.f32.mrf.mxu0
    %v5510 = vadd.f32 %v5221, %v5509
    %v5511 = vpop.f32.mrf.mxu0
    %v5512 = vpop.f32.mrf.mxu0
    %v5513 = vadd.f32 %v5224, %v5512
    %v5514 = vpop.f32.mrf.mxu0
    %5515 = vmatprep.mubr.bf16.mxu0 0
    %5516 = vmatmul.mubr.bf16.gmra.mxu0 %v5051
    %v5517 = vpop.f32.mrf.mxu0
    %v5518 = vadd.f32 %v5229, %v5517
    %v5519 = vpop.f32.mrf.mxu0
    %v5520 = vpop.f32.mrf.mxu0
    %v5521 = vadd.f32 %v5232, %v5520
    %v5522 = vpop.f32.mrf.mxu0
    %5523 = vmatprep.mubr.bf16.mxu0 0
    %5524 = vmatmul.mubr.bf16.gmra.mxu0 %v5054
    %v5525 = vpop.f32.mrf.mxu0
    %v5526 = vadd.f32 %v5237, %v5525
    %v5527 = vpop.f32.mrf.mxu0
    %v5528 = vpop.f32.mrf.mxu0
    %v5529 = vadd.f32 %v5240, %v5528
    %v5530 = vpop.f32.mrf.mxu0
    %5531 = vmatprep.mubr.bf16.mxu0 0
    %5532 = vmatmul.mubr.bf16.gmra.mxu0 %v5057
    %v5533 = vpop.f32.mrf.mxu0
    %v5534 = vadd.f32 %v5245, %v5533
    %v5535 = vpop.f32.mrf.mxu0
    %v5536 = vpop.f32.mrf.mxu0
    %v5537 = vadd.f32 %v5248, %v5536
    %v5538 = vpop.f32.mrf.mxu0
    %5539 = vmatprep.mubr.bf16.mxu0 0
    %5540 = vmatmul.mubr.bf16.gmra.mxu0 %v5060
    %v5541 = vpop.f32.mrf.mxu0
    %v5542 = vadd.f32 %v5253, %v5541
    %v5543 = vpop.f32.mrf.mxu0
    %v5544 = vpop.f32.mrf.mxu0
    %v5545 = vadd.f32 %v5256, %v5544
    %v5546 = vpop.f32.mrf.mxu0
    %5547 = vmatprep.mubr.bf16.mxu0 0
    %5548 = vmatmul.mubr.bf16.gmra.mxu0 %v5063
    %v5549 = vpop.f32.mrf.mxu0
    %v5550 = vadd.f32 %v5261, %v5549
    %v5551 = vpop.f32.mrf.mxu0
    %v5552 = vpop.f32.mrf.mxu0
    %v5553 = vadd.f32 %v5264, %v5552
    %v5554 = vpop.f32.mrf.mxu0
    %5555 = vmatprep.mubr.bf16.mxu0 0
    %5556 = vmatmul.mubr.bf16.gmra.mxu0 %v5066
    %v5557 = vpop.f32.mrf.mxu0
    %v5558 = vadd.f32 %v5269, %v5557
    %v5559 = vpop.f32.mrf.mxu0
    %v5560 = vpop.f32.mrf.mxu0
    %v5561 = vadd.f32 %v5272, %v5560
    %v5562 = vpop.f32.mrf.mxu0
    %5563 = vmatprep.mubr.bf16.mxu0 0
    %5564 = vmatmul.mubr.bf16.gmra.mxu0 %v5069
    %v5565 = vpop.f32.mrf.mxu0
    %v5566 = vadd.f32 %v5277, %v5565
    %v5567 = vpop.f32.mrf.mxu0
    %v5568 = vpop.f32.mrf.mxu0
    %v5569 = vadd.f32 %v5280, %v5568
    %v5570 = vpop.f32.mrf.mxu0
    %5571 = vmatprep.mubr.bf16.mxu0 0
    %5572 = vmatmul.mubr.bf16.gmra.mxu0 %v5072
    %v5573 = vpop.f32.mrf.mxu0
    %v5574 = vadd.f32 %v5285, %v5573
    %v5575 = vpop.f32.mrf.mxu0
    %v5576 = vpop.f32.mrf.mxu0
    %v5577 = vadd.f32 %v5288, %v5576
    %v5578 = vpop.f32.mrf.mxu0
    %5579 = vmatprep.mubr.bf16.mxu0 0
    %5580 = vmatmul.mubr.bf16.gmra.mxu0 %v5075
    %v5581 = vpop.f32.mrf.mxu0
    %v5582 = vadd.f32 %v5293, %v5581
    %v5583 = vpop.f32.mrf.mxu0
    %v5584 = vpop.f32.mrf.mxu0
    %v5585 = vadd.f32 %v5296, %v5584
    %v5586 = vpop.f32.mrf.mxu0
    %5587 = vmatprep.mubr.bf16.mxu0 0
    %5588 = vmatmul.mubr.bf16.gmra.mxu0 %v5078
    %v5589 = vpop.f32.mrf.mxu0
    %v5590 = vadd.f32 %v5301, %v5589
    %v5591 = vpop.f32.mrf.mxu0
    %v5592 = vpop.f32.mrf.mxu0
    %v5593 = vadd.f32 %v5304, %v5592
    %v5594 = vpop.f32.mrf.mxu0
    %5595 = vmatprep.mubr.bf16.mxu0 0
    %5596 = vmatmul.mubr.bf16.gmra.mxu0 %v5081
    %v5597 = vpop.f32.mrf.mxu0
    %v5598 = vadd.f32 %v5309, %v5597
    %v5599 = vpop.f32.mrf.mxu0
    %v5600 = vpop.f32.mrf.mxu0
    %v5601 = vadd.f32 %v5312, %v5600
    %v5602 = vpop.f32.mrf.mxu0
    %5603 = vmatprep.mubr.bf16.mxu0 0
    %5604 = vmatmul.mubr.bf16.gmra.mxu0 %v5084
    %v5605 = vpop.f32.mrf.mxu0
    %v5606 = vadd.f32 %v5317, %v5605
    %v5607 = vpop.f32.mrf.mxu0
    %v5608 = vpop.f32.mrf.mxu0
    %v5609 = vadd.f32 %v5320, %v5608
    %v5610 = vpop.f32.mrf.mxu0
    %5611 = vmatprep.mubr.bf16.mxu0 0
    %5612 = vmatmul.mubr.bf16.gmra.mxu0 %v5087
    %v5613 = vpop.f32.mrf.mxu0
    %v5614 = vadd.f32 %v5325, %v5613
    %v5615 = vpop.f32.mrf.mxu0
    %v5616 = vpop.f32.mrf.mxu0
    %v5617 = vadd.f32 %v5328, %v5616
    %v5618 = vpop.f32.mrf.mxu0
    %5619 = vmatprep.mubr.bf16.mxu0 0
    %5620 = vmatmul.mubr.bf16.gmra.mxu0 %v5090
    %v5621 = vpop.f32.mrf.mxu0
    %v5622 = vadd.f32 %v5333, %v5621
    %v5623 = vpop.f32.mrf.mxu0
    %v5624 = vpop.f32.mrf.mxu0
    %v5625 = vadd.f32 %v5336, %v5624
    %v5626 = vpop.f32.mrf.mxu0
    %5627 = vmatprep.mubr.bf16.mxu0 0
    %5628 = vmatmul.mubr.bf16.gmra.mxu0 %v5093
    %v5629 = vpop.f32.mrf.mxu0
    %v5630 = vadd.f32 %v5341, %v5629
    %v5631 = vpop.f32.mrf.mxu0
    %v5632 = vpop.f32.mrf.mxu0
    %v5633 = vadd.f32 %v5344, %v5632
    %v5634 = vpop.f32.mrf.mxu0
    %5635 = vmatprep.mubr.bf16.mxu0 0
    %5636 = vmatmul.mubr.bf16.gmra.mxu0 %v5096
    %v5637 = vpop.f32.mrf.mxu0
    %v5638 = vadd.f32 %v5349, %v5637
    %v5639 = vpop.f32.mrf.mxu0
    %v5640 = vpop.f32.mrf.mxu0
    %v5641 = vadd.f32 %v5352, %v5640
    %v5642 = vpop.f32.mrf.mxu0
    %5643 = vmatprep.mubr.bf16.mxu0 0
    %5644 = vmatmul.mubr.bf16.gmra.mxu0 %v5099
    %v5645 = vpop.f32.mrf.mxu0
    %v5646 = vadd.f32 %v5357, %v5645
    %v5647 = vpop.f32.mrf.mxu0
    %v5648 = vpop.f32.mrf.mxu0
    %v5649 = vadd.f32 %v5360, %v5648
    %v5650 = vpop.f32.mrf.mxu0
    %5651 = vmatprep.mubr.bf16.mxu0 0
    %5652 = vmatmul.mubr.bf16.gmra.mxu0 %v5102
    %v5653 = vpop.f32.mrf.mxu0
    %v5654 = vadd.f32 %v5365, %v5653
    %v5655 = vpop.f32.mrf.mxu0
    %v5656 = vpop.f32.mrf.mxu0
    %v5657 = vadd.f32 %v5368, %v5656
    %v5658 = vpop.f32.mrf.mxu0
    %5659 = vmatprep.mubr.bf16.mxu0 0
    %5660 = vmatmul.mubr.bf16.gmra.mxu0 %v5105
    %v5661 = vpop.f32.mrf.mxu0
    %v5662 = vadd.f32 %v5373, %v5661
    %v5663 = vpop.f32.mrf.mxu0
    %v5664 = vpop.f32.mrf.mxu0
    %v5665 = vadd.f32 %v5376, %v5664
    %v5666 = vpop.f32.mrf.mxu0
    %5667 = vmatprep.mubr.bf16.mxu0 0
    %5668 = vmatmul.mubr.bf16.gmra.mxu0 %v5108
    %v5669 = vpop.f32.mrf.mxu0
    %v5670 = vadd.f32 %v5381, %v5669
    %v5671 = vpop.f32.mrf.mxu0
    %v5672 = vpop.f32.mrf.mxu0
    %v5673 = vadd.f32 %v5384, %v5672
    %v5674 = vpop.f32.mrf.mxu0
    %5675 = vmatprep.mubr.bf16.mxu0 0
    %5676 = vmatmul.mubr.bf16.gmra.mxu0 %v5111
    %v5677 = vpop.f32.mrf.mxu0
    %v5678 = vadd.f32 %v5389, %v5677
    %v5679 = vpop.f32.mrf.mxu0
    %v5680 = vpop.f32.mrf.mxu0
    %v5681 = vadd.f32 %v5392, %v5680
    %v5682 = vpop.f32.mrf.mxu0
    %5683 = vmatprep.mubr.bf16.mxu0 0
    %5684 = vmatmul.mubr.bf16.gmra.mxu0 %v5114
    %v5685 = vpop.f32.mrf.mxu0
    %v5686 = vadd.f32 %v5397, %v5685
    %v5687 = vpop.f32.mrf.mxu0
    %v5688 = vpop.f32.mrf.mxu0
    %v5689 = vadd.f32 %v5400, %v5688
    %v5690 = vpop.f32.mrf.mxu0
    %5691 = vmatprep.mubr.bf16.mxu0 0
    %5692 = vmatmul.mubr.bf16.gmra.mxu0 %v5117
    %v5693 = vpop.f32.mrf.mxu0
    %v5694 = vadd.f32 %v5405, %v5693
    %v5695 = vpop.f32.mrf.mxu0
    %v5696 = vpop.f32.mrf.mxu0
    %v5697 = vadd.f32 %v5408, %v5696
    %v5698 = vpop.f32.mrf.mxu0
    %5699 = vdwg.mxu0
    %v5700 = vmax.f32 %v5446, 0.0
    %v5701 = vmax.f32 %v5449, 0.0
    %v5702 = vmax.f32 %v5454, 0.0
    %v5703 = vmax.f32 %v5457, 0.0
    %v5704 = vmax.f32 %v5462, 0.0
    %v5705 = vmax.f32 %v5465, 0.0
    %v5706 = vmax.f32 %v5470, 0.0
    %v5707 = vmax.f32 %v5473, 0.0
    %v5708 = vmax.f32 %v5478, 0.0
    %v5709 = vmax.f32 %v5481, 0.0
    %v5710 = vmax.f32 %v5486, 0.0
    %v5711 = vmax.f32 %v5489, 0.0
    %v5712 = vmax.f32 %v5494, 0.0
    %v5713 = vmax.f32 %v5497, 0.0
    %v5714 = vmax.f32 %v5502, 0.0
    %v5715 = vmax.f32 %v5505, 0.0
    %v5716 = vmax.f32 %v5510, 0.0
    %v5717 = vmax.f32 %v5513, 0.0
    %v5718 = vmax.f32 %v5518, 0.0
    %v5719 = vmax.f32 %v5521, 0.0
    %v5720 = vmax.f32 %v5526, 0.0
    %v5721 = vmax.f32 %v5529, 0.0
    %v5722 = vmax.f32 %v5534, 0.0
    %v5723 = vmax.f32 %v5537, 0.0
    %v5724 = vmax.f32 %v5542, 0.0
    %v5725 = vmax.f32 %v5545, 0.0
    %v5726 = vmax.f32 %v5550, 0.0
    %v5727 = vmax.f32 %v5553, 0.0
    %v5728 = vmax.f32 %v5558, 0.0
    %v5729 = vmax.f32 %v5561, 0.0
    %v5730 = vmax.f32 %v5566, 0.0
    %v5731 = vmax.f32 %v5569, 0.0
    %v5732 = vmax.f32 %v5574, 0.0
    %v5733 = vmax.f32 %v5577, 0.0
    %v5734 = vmax.f32 %v5582, 0.0
    %v5735 = vmax.f32 %v5585, 0.0
    %v5736 = vmax.f32 %v5590, 0.0
    %v5737 = vmax.f32 %v5593, 0.0
    %v5738 = vmax.f32 %v5598, 0.0
    %v5739 = vmax.f32 %v5601, 0.0
    %v5740 = vmax.f32 %v5606, 0.0
    %v5741 = vmax.f32 %v5609, 0.0
    %v5742 = vmax.f32 %v5614, 0.0
    %v5743 = vmax.f32 %v5617, 0.0
    %v5744 = vmax.f32 %v5622, 0.0
    %v5745 = vmax.f32 %v5625, 0.0
    %v5746 = vmax.f32 %v5630, 0.0
    %v5747 = vmax.f32 %v5633, 0.0
    %v5748 = vmax.f32 %v5638, 0.0
    %v5749 = vmax.f32 %v5641, 0.0
    %v5750 = vmax.f32 %v5646, 0.0
    %v5751 = vmax.f32 %v5649, 0.0
    %v5752 = vmax.f32 %v5654, 0.0
    %v5753 = vmax.f32 %v5657, 0.0
    %v5754 = vmax.f32 %v5662, 0.0
    %v5755 = vmax.f32 %v5665, 0.0
    %v5756 = vmax.f32 %v5670, 0.0
    %v5757 = vmax.f32 %v5673, 0.0
    %v5758 = vmax.f32 %v5678, 0.0
    %v5759 = vmax.f32 %v5681, 0.0
    %v5760 = vmax.f32 %v5686, 0.0
    %v5761 = vmax.f32 %v5689, 0.0
    %v5762 = vmax.f32 %v5694, 0.0
    %v5763 = vmax.f32 %v5697, 0.0
    %v5828 = vrot.slane %v5700, 1
    %v5829 = vrot.slane %v5701, 1
    %v5830 = vsel %vm203, %v5828, %v5829
    %v5831 = vrot.slane %v5702, 1
    %v5832 = vsel %vm203, %v5829, %v5831
    %v5833 = vrot.slane %v5703, 1
    %v5834 = vsel %vm203, %v5831, %v5833
    %v5835 = vrot.slane %v5704, 1
    %v5836 = vsel %vm203, %v5833, %v5835
    %v5837 = vrot.slane %v5705, 1
    %v5838 = vsel %vm203, %v5835, %v5837
    %v5839 = vrot.slane %v5706, 1
    %v5840 = vsel %vm203, %v5837, %v5839
    %v5841 = vrot.slane %v5707, 1
    %v5842 = vsel %vm203, %v5839, %v5841
    %v5843 = vrot.slane %v5708, 1
    %v5844 = vsel %vm203, %v5841, %v5843
    %v5845 = vrot.slane %v5709, 1
    %v5846 = vsel %vm203, %v5843, %v5845
    %v5847 = vrot.slane %v5710, 1
    %v5848 = vsel %vm203, %v5845, %v5847
    %v5849 = vrot.slane %v5711, 1
    %v5850 = vsel %vm203, %v5847, %v5849
    %v5851 = vrot.slane %v5712, 1
    %v5852 = vsel %vm203, %v5849, %v5851
    %v5853 = vrot.slane %v5713, 1
    %v5854 = vsel %vm203, %v5851, %v5853
    %v5855 = vrot.slane %v5714, 1
    %v5856 = vsel %vm203, %v5853, %v5855
    %v5857 = vrot.slane %v5715, 1
    %v5858 = vsel %vm203, %v5855, %v5857
    %v5859 = vrot.slane %v5716, 1
    %v5860 = vrot.slane %v5717, 1
    %v5861 = vsel %vm203, %v5859, %v5860
    %v5862 = vrot.slane %v5718, 1
    %v5863 = vsel %vm203, %v5860, %v5862
    %v5864 = vrot.slane %v5719, 1
    %v5865 = vsel %vm203, %v5862, %v5864
    %v5866 = vrot.slane %v5720, 1
    %v5867 = vsel %vm203, %v5864, %v5866
    %v5868 = vrot.slane %v5721, 1
    %v5869 = vsel %vm203, %v5866, %v5868
    %v5870 = vrot.slane %v5722, 1
    %v5871 = vsel %vm203, %v5868, %v5870
    %v5872 = vrot.slane %v5723, 1
    %v5873 = vsel %vm203, %v5870, %v5872
    %v5874 = vrot.slane %v5724, 1
    %v5875 = vsel %vm203, %v5872, %v5874
    %v5876 = vrot.slane %v5725, 1
    %v5877 = vsel %vm203, %v5874, %v5876
    %v5878 = vrot.slane %v5726, 1
    %v5879 = vsel %vm203, %v5876, %v5878
    %v5880 = vrot.slane %v5727, 1
    %v5881 = vsel %vm203, %v5878, %v5880
    %v5882 = vrot.slane %v5728, 1
    %v5883 = vsel %vm203, %v5880, %v5882
    %v5884 = vrot.slane %v5729, 1
    %v5885 = vsel %vm203, %v5882, %v5884
    %v5886 = vrot.slane %v5730, 1
    %v5887 = vsel %vm203, %v5884, %v5886
    %v5888 = vrot.slane %v5731, 1
    %v5889 = vsel %vm203, %v5886, %v5888
    %v5890 = vrot.slane %v5732, 1
    %v5891 = vrot.slane %v5733, 1
    %v5892 = vsel %vm203, %v5890, %v5891
    %v5893 = vrot.slane %v5734, 1
    %v5894 = vsel %vm203, %v5891, %v5893
    %v5895 = vrot.slane %v5735, 1
    %v5896 = vsel %vm203, %v5893, %v5895
    %v5897 = vrot.slane %v5736, 1
    %v5898 = vsel %vm203, %v5895, %v5897
    %v5899 = vrot.slane %v5737, 1
    %v5900 = vsel %vm203, %v5897, %v5899
    %v5901 = vrot.slane %v5738, 1
    %v5902 = vsel %vm203, %v5899, %v5901
    %v5903 = vrot.slane %v5739, 1
    %v5904 = vsel %vm203, %v5901, %v5903
    %v5905 = vrot.slane %v5740, 1
    %v5906 = vsel %vm203, %v5903, %v5905
    %v5907 = vrot.slane %v5741, 1
    %v5908 = vsel %vm203, %v5905, %v5907
    %v5909 = vrot.slane %v5742, 1
    %v5910 = vsel %vm203, %v5907, %v5909
    %v5911 = vrot.slane %v5743, 1
    %v5912 = vsel %vm203, %v5909, %v5911
    %v5913 = vrot.slane %v5744, 1
    %v5914 = vsel %vm203, %v5911, %v5913
    %v5915 = vrot.slane %v5745, 1
    %v5916 = vsel %vm203, %v5913, %v5915
    %v5917 = vrot.slane %v5746, 1
    %v5918 = vsel %vm203, %v5915, %v5917
    %v5919 = vrot.slane %v5747, 1
    %v5920 = vsel %vm203, %v5917, %v5919
    %v5921 = vrot.slane %v5748, 1
    %v5922 = vrot.slane %v5749, 1
    %v5923 = vsel %vm203, %v5921, %v5922
    %v5924 = vrot.slane %v5750, 1
    %v5925 = vsel %vm203, %v5922, %v5924
    %v5926 = vrot.slane %v5751, 1
    %v5927 = vsel %vm203, %v5924, %v5926
    %v5928 = vrot.slane %v5752, 1
    %v5929 = vsel %vm203, %v5926, %v5928
    %v5930 = vrot.slane %v5753, 1
    %v5931 = vsel %vm203, %v5928, %v5930
    %v5932 = vrot.slane %v5754, 1
    %v5933 = vsel %vm203, %v5930, %v5932
    %v5934 = vrot.slane %v5755, 1
    %v5935 = vsel %vm203, %v5932, %v5934
    %v5936 = vrot.slane %v5756, 1
    %v5937 = vsel %vm203, %v5934, %v5936
    %v5938 = vrot.slane %v5757, 1
    %v5939 = vsel %vm203, %v5936, %v5938
    %v5940 = vrot.slane %v5758, 1
    %v5941 = vsel %vm203, %v5938, %v5940
    %v5942 = vrot.slane %v5759, 1
    %v5943 = vsel %vm203, %v5940, %v5942
    %v5944 = vrot.slane %v5760, 1
    %v5945 = vsel %vm203, %v5942, %v5944
    %v5946 = vrot.slane %v5761, 1
    %v5947 = vsel %vm203, %v5944, %v5946
    %v5948 = vrot.slane %v5762, 1
    %v5949 = vsel %vm203, %v5946, %v5948
    %v5950 = vrot.slane %v5763, 1
    %v5951 = vsel %vm203, %v5948, %v5950
    %v6016 = vmax.f32 %v5700, %v5830
    %v6017 = vmax.f32 %v5701, %v5832
    %v6018 = vmax.f32 %v5702, %v5834
    %v6019 = vmax.f32 %v5703, %v5836
    %v6020 = vmax.f32 %v5704, %v5838
    %v6021 = vmax.f32 %v5705, %v5840
    %v6022 = vmax.f32 %v5706, %v5842
    %v6023 = vmax.f32 %v5707, %v5844
    %v6024 = vmax.f32 %v5708, %v5846
    %v6025 = vmax.f32 %v5709, %v5848
    %v6026 = vmax.f32 %v5710, %v5850
    %v6027 = vmax.f32 %v5711, %v5852
    %v6028 = vmax.f32 %v5712, %v5854
    %v6029 = vmax.f32 %v5713, %v5856
    %v6030 = vmax.f32 %v5714, %v5858
    %v6031 = vmax.f32 %v5715, %v5857
    %v6032 = vmax.f32 %v5716, %v5861
    %v6033 = vmax.f32 %v5717, %v5863
    %v6034 = vmax.f32 %v5718, %v5865
    %v6035 = vmax.f32 %v5719, %v5867
    %v6036 = vmax.f32 %v5720, %v5869
    %v6037 = vmax.f32 %v5721, %v5871
    %v6038 = vmax.f32 %v5722, %v5873
    %v6039 = vmax.f32 %v5723, %v5875
    %v6040 = vmax.f32 %v5724, %v5877
    %v6041 = vmax.f32 %v5725, %v5879
    %v6042 = vmax.f32 %v5726, %v5881
    %v6043 = vmax.f32 %v5727, %v5883
    %v6044 = vmax.f32 %v5728, %v5885
    %v6045 = vmax.f32 %v5729, %v5887
    %v6046 = vmax.f32 %v5730, %v5889
    %v6047 = vmax.f32 %v5731, %v5888
    %v6048 = vmax.f32 %v5732, %v5892
    %v6049 = vmax.f32 %v5733, %v5894
    %v6050 = vmax.f32 %v5734, %v5896
    %v6051 = vmax.f32 %v5735, %v5898
    %v6052 = vmax.f32 %v5736, %v5900
    %v6053 = vmax.f32 %v5737, %v5902
    %v6054 = vmax.f32 %v5738, %v5904
    %v6055 = vmax.f32 %v5739, %v5906
    %v6056 = vmax.f32 %v5740, %v5908
    %v6057 = vmax.f32 %v5741, %v5910
    %v6058 = vmax.f32 %v5742, %v5912
    %v6059 = vmax.f32 %v5743, %v5914
    %v6060 = vmax.f32 %v5744, %v5916
    %v6061 = vmax.f32 %v5745, %v5918
    %v6062 = vmax.f32 %v5746, %v5920
    %v6063 = vmax.f32 %v5747, %v5919
    %v6064 = vmax.f32 %v5748, %v5923
    %v6065 = vmax.f32 %v5749, %v5925
    %v6066 = vmax.f32 %v5750, %v5927
    %v6067 = vmax.f32 %v5751, %v5929
    %v6068 = vmax.f32 %v5752, %v5931
    %v6069 = vmax.f32 %v5753, %v5933
    %v6070 = vmax.f32 %v5754, %v5935
    %v6071 = vmax.f32 %v5755, %v5937
    %v6072 = vmax.f32 %v5756, %v5939
    %v6073 = vmax.f32 %v5757, %v5941
    %v6074 = vmax.f32 %v5758, %v5943
    %v6075 = vmax.f32 %v5759, %v5945
    %v6076 = vmax.f32 %v5760, %v5947
    %v6077 = vmax.f32 %v5761, %v5949
    %v6078 = vmax.f32 %v5762, %v5951
    %v6079 = vmax.f32 %v5763, %v5950
    %v6080 = vsel %vm203, %v6031, %v5715
    %v6081 = vsel %vm203, %v6047, %v5731
    %v6082 = vsel %vm203, %v6063, %v5747
    %v6083 = vsel %vm203, %v6079, %v5763
    %v6084 = vmax.f32 %v6016, %v6032
    %v6085 = vmax.f32 %v6017, %v6033
    %v6086 = vmax.f32 %v6018, %v6034
    %v6087 = vmax.f32 %v6019, %v6035
    %v6088 = vmax.f32 %v6020, %v6036
    %v6089 = vmax.f32 %v6021, %v6037
    %v6090 = vmax.f32 %v6022, %v6038
    %v6091 = vmax.f32 %v6023, %v6039
    %v6092 = vmax.f32 %v6024, %v6040
    %v6093 = vmax.f32 %v6025, %v6041
    %v6094 = vmax.f32 %v6026, %v6042
    %v6095 = vmax.f32 %v6027, %v6043
    %v6096 = vmax.f32 %v6028, %v6044
    %v6097 = vmax.f32 %v6029, %v6045
    %v6098 = vmax.f32 %v6030, %v6046
    %v6099 = vmax.f32 %v6080, %v6081
    %v6100 = vmax.f32 %v6048, %v6064
    %v6101 = vmax.f32 %v6049, %v6065
    %v6102 = vmax.f32 %v6050, %v6066
    %v6103 = vmax.f32 %v6051, %v6067
    %v6104 = vmax.f32 %v6052, %v6068
    %v6105 = vmax.f32 %v6053, %v6069
    %v6106 = vmax.f32 %v6054, %v6070
    %v6107 = vmax.f32 %v6055, %v6071
    %v6108 = vmax.f32 %v6056, %v6072
    %v6109 = vmax.f32 %v6057, %v6073
    %v6110 = vmax.f32 %v6058, %v6074
    %v6111 = vmax.f32 %v6059, %v6075
    %v6112 = vmax.f32 %v6060, %v6076
    %v6113 = vmax.f32 %v6061, %v6077
    %v6114 = vmax.f32 %v6062, %v6078
    %v6115 = vmax.f32 %v6082, %v6083
    %v6180 = vrot.slane %v6084, 6
    %v6181 = vrot.slane %v6085, 6
    %v6182 = vsel %vm2614, %v6180, %v6181
    %v6183 = vrot.slane %v6086, 6
    %v6184 = vsel %vm2614, %v6181, %v6183
    %v6185 = vrot.slane %v6087, 6
    %v6186 = vsel %vm2614, %v6183, %v6185
    %v6187 = vrot.slane %v6088, 6
    %v6188 = vsel %vm2614, %v6185, %v6187
    %v6189 = vrot.slane %v6089, 6
    %v6190 = vsel %vm2614, %v6187, %v6189
    %v6191 = vrot.slane %v6090, 6
    %v6192 = vsel %vm2614, %v6189, %v6191
    %v6193 = vrot.slane %v6091, 6
    %v6194 = vsel %vm2614, %v6191, %v6193
    %v6195 = vrot.slane %v6092, 6
    %v6196 = vsel %vm2614, %v6193, %v6195
    %v6197 = vrot.slane %v6093, 6
    %v6198 = vsel %vm2614, %v6195, %v6197
    %v6199 = vrot.slane %v6094, 6
    %v6200 = vsel %vm2614, %v6197, %v6199
    %v6201 = vrot.slane %v6095, 6
    %v6202 = vsel %vm2614, %v6199, %v6201
    %v6203 = vrot.slane %v6096, 6
    %v6204 = vsel %vm2614, %v6201, %v6203
    %v6205 = vrot.slane %v6097, 6
    %v6206 = vsel %vm2614, %v6203, %v6205
    %v6207 = vrot.slane %v6098, 6
    %v6208 = vsel %vm2614, %v6205, %v6207
    %v6209 = vrot.slane %v6099, 6
    %v6210 = vsel %vm2614, %v6207, %v6209
    %v6211 = vrot.slane %v6032, 6
    %v6212 = vrot.slane %v6033, 6
    %v6213 = vsel %vm2614, %v6211, %v6212
    %v6214 = vrot.slane %v6034, 6
    %v6215 = vsel %vm2614, %v6212, %v6214
    %v6216 = vrot.slane %v6035, 6
    %v6217 = vsel %vm2614, %v6214, %v6216
    %v6218 = vrot.slane %v6036, 6
    %v6219 = vsel %vm2614, %v6216, %v6218
    %v6220 = vrot.slane %v6037, 6
    %v6221 = vsel %vm2614, %v6218, %v6220
    %v6222 = vrot.slane %v6038, 6
    %v6223 = vsel %vm2614, %v6220, %v6222
    %v6224 = vrot.slane %v6039, 6
    %v6225 = vsel %vm2614, %v6222, %v6224
    %v6226 = vrot.slane %v6040, 6
    %v6227 = vsel %vm2614, %v6224, %v6226
    %v6228 = vrot.slane %v6041, 6
    %v6229 = vsel %vm2614, %v6226, %v6228
    %v6230 = vrot.slane %v6042, 6
    %v6231 = vsel %vm2614, %v6228, %v6230
    %v6232 = vrot.slane %v6043, 6
    %v6233 = vsel %vm2614, %v6230, %v6232
    %v6234 = vrot.slane %v6044, 6
    %v6235 = vsel %vm2614, %v6232, %v6234
    %v6236 = vrot.slane %v6045, 6
    %v6237 = vsel %vm2614, %v6234, %v6236
    %v6238 = vrot.slane %v6046, 6
    %v6239 = vsel %vm2614, %v6236, %v6238
    %v6240 = vrot.slane %v6081, 6
    %v6241 = vsel %vm2614, %v6238, %v6240
    %v6242 = vrot.slane %v6100, 6
    %v6243 = vrot.slane %v6101, 6
    %v6244 = vsel %vm2614, %v6242, %v6243
    %v6245 = vrot.slane %v6102, 6
    %v6246 = vsel %vm2614, %v6243, %v6245
    %v6247 = vrot.slane %v6103, 6
    %v6248 = vsel %vm2614, %v6245, %v6247
    %v6249 = vrot.slane %v6104, 6
    %v6250 = vsel %vm2614, %v6247, %v6249
    %v6251 = vrot.slane %v6105, 6
    %v6252 = vsel %vm2614, %v6249, %v6251
    %v6253 = vrot.slane %v6106, 6
    %v6254 = vsel %vm2614, %v6251, %v6253
    %v6255 = vrot.slane %v6107, 6
    %v6256 = vsel %vm2614, %v6253, %v6255
    %v6257 = vrot.slane %v6108, 6
    %v6258 = vsel %vm2614, %v6255, %v6257
    %v6259 = vrot.slane %v6109, 6
    %v6260 = vsel %vm2614, %v6257, %v6259
    %v6261 = vrot.slane %v6110, 6
    %v6262 = vsel %vm2614, %v6259, %v6261
    %v6263 = vrot.slane %v6111, 6
    %v6264 = vsel %vm2614, %v6261, %v6263
    %v6265 = vrot.slane %v6112, 6
    %v6266 = vsel %vm2614, %v6263, %v6265
    %v6267 = vrot.slane %v6113, 6
    %v6268 = vsel %vm2614, %v6265, %v6267
    %v6269 = vrot.slane %v6114, 6
    %v6270 = vsel %vm2614, %v6267, %v6269
    %v6271 = vrot.slane %v6115, 6
    %v6272 = vsel %vm2614, %v6269, %v6271
    %v6273 = vrot.slane %v6064, 6
    %v6274 = vrot.slane %v6065, 6
    %v6275 = vsel %vm2614, %v6273, %v6274
    %v6276 = vrot.slane %v6066, 6
    %v6277 = vsel %vm2614, %v6274, %v6276
    %v6278 = vrot.slane %v6067, 6
    %v6279 = vsel %vm2614, %v6276, %v6278
    %v6280 = vrot.slane %v6068, 6
    %v6281 = vsel %vm2614, %v6278, %v6280
    %v6282 = vrot.slane %v6069, 6
    %v6283 = vsel %vm2614, %v6280, %v6282
    %v6284 = vrot.slane %v6070, 6
    %v6285 = vsel %vm2614, %v6282, %v6284
    %v6286 = vrot.slane %v6071, 6
    %v6287 = vsel %vm2614, %v6284, %v6286
    %v6288 = vrot.slane %v6072, 6
    %v6289 = vsel %vm2614, %v6286, %v6288
    %v6290 = vrot.slane %v6073, 6
    %v6291 = vsel %vm2614, %v6288, %v6290
    %v6292 = vrot.slane %v6074, 6
    %v6293 = vsel %vm2614, %v6290, %v6292
    %v6294 = vrot.slane %v6075, 6
    %v6295 = vsel %vm2614, %v6292, %v6294
    %v6296 = vrot.slane %v6076, 6
    %v6297 = vsel %vm2614, %v6294, %v6296
    %v6298 = vrot.slane %v6077, 6
    %v6299 = vsel %vm2614, %v6296, %v6298
    %v6300 = vrot.slane %v6078, 6
    %v6301 = vsel %vm2614, %v6298, %v6300
    %v6302 = vrot.slane %v6083, 6
    %v6303 = vsel %vm2614, %v6300, %v6302
    %v6372 = vsel %vm2614, 0.0, %v6180
    %v6373 = vsel %vm2614, 0.0, %v6211
    %v6374 = vsel %vm2614, 0.0, %v6242
    %v6375 = vsel %vm2614, 0.0, %v6273
    %v6376 = vsel %vm2614, %v6209, 0.0
    %v6377 = vsel %vm2614, %v6240, 0.0
    %v6378 = vsel %vm2614, %v6271, 0.0
    %v6379 = vsel %vm2614, %v6302, 0.0
    %v6388 = vrot.slane %v6372, 1
    %v6389 = vrot.slane %v6182, 1
    %v6390 = vsel %vm203, %v6388, %v6389
    %v6391 = vrot.slane %v6184, 1
    %v6392 = vsel %vm203, %v6389, %v6391
    %v6393 = vrot.slane %v6186, 1
    %v6394 = vsel %vm203, %v6391, %v6393
    %v6395 = vrot.slane %v6188, 1
    %v6396 = vsel %vm203, %v6393, %v6395
    %v6397 = vrot.slane %v6190, 1
    %v6398 = vsel %vm203, %v6395, %v6397
    %v6399 = vrot.slane %v6192, 1
    %v6400 = vsel %vm203, %v6397, %v6399
    %v6401 = vrot.slane %v6194, 1
    %v6402 = vsel %vm203, %v6399, %v6401
    %v6403 = vrot.slane %v6196, 1
    %v6404 = vsel %vm203, %v6401, %v6403
    %v6405 = vrot.slane %v6198, 1
    %v6406 = vsel %vm203, %v6403, %v6405
    %v6407 = vrot.slane %v6200, 1
    %v6408 = vsel %vm203, %v6405, %v6407
    %v6409 = vrot.slane %v6202, 1
    %v6410 = vsel %vm203, %v6407, %v6409
    %v6411 = vrot.slane %v6204, 1
    %v6412 = vsel %vm203, %v6409, %v6411
    %v6413 = vrot.slane %v6206, 1
    %v6414 = vsel %vm203, %v6411, %v6413
    %v6415 = vrot.slane %v6208, 1
    %v6416 = vsel %vm203, %v6413, %v6415
    %v6417 = vrot.slane %v6210, 1
    %v6418 = vsel %vm203, %v6415, %v6417
    %v6419 = vrot.slane %v6376, 1
    %v6420 = vsel %vm203, %v6417, %v6419
    %v6421 = vrot.slane %v6373, 1
    %v6422 = vrot.slane %v6213, 1
    %v6423 = vsel %vm203, %v6421, %v6422
    %v6424 = vrot.slane %v6215, 1
    %v6425 = vsel %vm203, %v6422, %v6424
    %v6426 = vrot.slane %v6217, 1
    %v6427 = vsel %vm203, %v6424, %v6426
    %v6428 = vrot.slane %v6219, 1
    %v6429 = vsel %vm203, %v6426, %v6428
    %v6430 = vrot.slane %v6221, 1
    %v6431 = vsel %vm203, %v6428, %v6430
    %v6432 = vrot.slane %v6223, 1
    %v6433 = vsel %vm203, %v6430, %v6432
    %v6434 = vrot.slane %v6225, 1
    %v6435 = vsel %vm203, %v6432, %v6434
    %v6436 = vrot.slane %v6227, 1
    %v6437 = vsel %vm203, %v6434, %v6436
    %v6438 = vrot.slane %v6229, 1
    %v6439 = vsel %vm203, %v6436, %v6438
    %v6440 = vrot.slane %v6231, 1
    %v6441 = vsel %vm203, %v6438, %v6440
    %v6442 = vrot.slane %v6233, 1
    %v6443 = vsel %vm203, %v6440, %v6442
    %v6444 = vrot.slane %v6235, 1
    %v6445 = vsel %vm203, %v6442, %v6444
    %v6446 = vrot.slane %v6237, 1
    %v6447 = vsel %vm203, %v6444, %v6446
    %v6448 = vrot.slane %v6239, 1
    %v6449 = vsel %vm203, %v6446, %v6448
    %v6450 = vrot.slane %v6241, 1
    %v6451 = vsel %vm203, %v6448, %v6450
    %v6452 = vrot.slane %v6377, 1
    %v6453 = vsel %vm203, %v6450, %v6452
    %v6454 = vrot.slane %v6374, 1
    %v6455 = vrot.slane %v6244, 1
    %v6456 = vsel %vm203, %v6454, %v6455
    %v6457 = vrot.slane %v6246, 1
    %v6458 = vsel %vm203, %v6455, %v6457
    %v6459 = vrot.slane %v6248, 1
    %v6460 = vsel %vm203, %v6457, %v6459
    %v6461 = vrot.slane %v6250, 1
    %v6462 = vsel %vm203, %v6459, %v6461
    %v6463 = vrot.slane %v6252, 1
    %v6464 = vsel %vm203, %v6461, %v6463
    %v6465 = vrot.slane %v6254, 1
    %v6466 = vsel %vm203, %v6463, %v6465
    %v6467 = vrot.slane %v6256, 1
    %v6468 = vsel %vm203, %v6465, %v6467
    %v6469 = vrot.slane %v6258, 1
    %v6470 = vsel %vm203, %v6467, %v6469
    %v6471 = vrot.slane %v6260, 1
    %v6472 = vsel %vm203, %v6469, %v6471
    %v6473 = vrot.slane %v6262, 1
    %v6474 = vsel %vm203, %v6471, %v6473
    %v6475 = vrot.slane %v6264, 1
    %v6476 = vsel %vm203, %v6473, %v6475
    %v6477 = vrot.slane %v6266, 1
    %v6478 = vsel %vm203, %v6475, %v6477
    %v6479 = vrot.slane %v6268, 1
    %v6480 = vsel %vm203, %v6477, %v6479
    %v6481 = vrot.slane %v6270, 1
    %v6482 = vsel %vm203, %v6479, %v6481
    %v6483 = vrot.slane %v6272, 1
    %v6484 = vsel %vm203, %v6481, %v6483
    %v6485 = vrot.slane %v6378, 1
    %v6486 = vsel %vm203, %v6483, %v6485
    %v6487 = vrot.slane %v6375, 1
    %v6488 = vrot.slane %v6275, 1
    %v6489 = vsel %vm203, %v6487, %v6488
    %v6490 = vrot.slane %v6277, 1
    %v6491 = vsel %vm203, %v6488, %v6490
    %v6492 = vrot.slane %v6279, 1
    %v6493 = vsel %vm203, %v6490, %v6492
    %v6494 = vrot.slane %v6281, 1
    %v6495 = vsel %vm203, %v6492, %v6494
    %v6496 = vrot.slane %v6283, 1
    %v6497 = vsel %vm203, %v6494, %v6496
    %v6498 = vrot.slane %v6285, 1
    %v6499 = vsel %vm203, %v6496, %v6498
    %v6500 = vrot.slane %v6287, 1
    %v6501 = vsel %vm203, %v6498, %v6500
    %v6502 = vrot.slane %v6289, 1
    %v6503 = vsel %vm203, %v6500, %v6502
    %v6504 = vrot.slane %v6291, 1
    %v6505 = vsel %vm203, %v6502, %v6504
    %v6506 = vrot.slane %v6293, 1
    %v6507 = vsel %vm203, %v6504, %v6506
    %v6508 = vrot.slane %v6295, 1
    %v6509 = vsel %vm203, %v6506, %v6508
    %v6510 = vrot.slane %v6297, 1
    %v6511 = vsel %vm203, %v6508, %v6510
    %v6512 = vrot.slane %v6299, 1
    %v6513 = vsel %vm203, %v6510, %v6512
    %v6514 = vrot.slane %v6301, 1
    %v6515 = vsel %vm203, %v6512, %v6514
    %v6516 = vrot.slane %v6303, 1
    %v6517 = vsel %vm203, %v6514, %v6516
    %v6518 = vrot.slane %v6379, 1
    %v6519 = vsel %vm203, %v6516, %v6518
    %6520 = vrot.lane.b32.xlu0 %v6390, 50
    %v6521 = vpop.permute.xlu0 %6520
    %6522 = vrot.lane.b32.xlu0 %v6392, 50
    %v6523 = vpop.permute.xlu0 %6522
    %6524 = vrot.lane.b32.xlu0 %v6394, 50
    %v6525 = vpop.permute.xlu0 %6524
    %6526 = vrot.lane.b32.xlu0 %v6396, 50
    %v6527 = vpop.permute.xlu0 %6526
    %6528 = vrot.lane.b32.xlu0 %v6398, 50
    %v6529 = vpop.permute.xlu0 %6528
    %6530 = vrot.lane.b32.xlu0 %v6400, 50
    %v6531 = vpop.permute.xlu0 %6530
    %6532 = vrot.lane.b32.xlu0 %v6402, 50
    %v6533 = vpop.permute.xlu0 %6532
    %6534 = vrot.lane.b32.xlu0 %v6404, 50
    %v6535 = vpop.permute.xlu0 %6534
    %6536 = vrot.lane.b32.xlu0 %v6406, 50
    %v6537 = vpop.permute.xlu0 %6536
    %6538 = vrot.lane.b32.xlu0 %v6408, 50
    %v6539 = vpop.permute.xlu0 %6538
    %6540 = vrot.lane.b32.xlu0 %v6410, 50
    %v6541 = vpop.permute.xlu0 %6540
    %6542 = vrot.lane.b32.xlu0 %v6412, 50
    %v6543 = vpop.permute.xlu0 %6542
    %6544 = vrot.lane.b32.xlu0 %v6414, 50
    %v6545 = vpop.permute.xlu0 %6544
    %6546 = vrot.lane.b32.xlu0 %v6416, 50
    %v6547 = vpop.permute.xlu0 %6546
    %6548 = vrot.lane.b32.xlu0 %v6418, 50
    %v6549 = vpop.permute.xlu0 %6548
    %6550 = vrot.lane.b32.xlu0 %v6420, 50
    %v6551 = vpop.permute.xlu0 %6550
    %6552 = vrot.lane.b32.xlu0 %v6423, 50
    %v6553 = vpop.permute.xlu0 %6552
    %6554 = vrot.lane.b32.xlu0 %v6425, 50
    %v6555 = vpop.permute.xlu0 %6554
    %6556 = vrot.lane.b32.xlu0 %v6427, 50
    %v6557 = vpop.permute.xlu0 %6556
    %6558 = vrot.lane.b32.xlu0 %v6429, 50
    %v6559 = vpop.permute.xlu0 %6558
    %6560 = vrot.lane.b32.xlu0 %v6431, 50
    %v6561 = vpop.permute.xlu0 %6560
    %6562 = vrot.lane.b32.xlu0 %v6433, 50
    %v6563 = vpop.permute.xlu0 %6562
    %6564 = vrot.lane.b32.xlu0 %v6435, 50
    %v6565 = vpop.permute.xlu0 %6564
    %6566 = vrot.lane.b32.xlu0 %v6437, 50
    %v6567 = vpop.permute.xlu0 %6566
    %6568 = vrot.lane.b32.xlu0 %v6439, 50
    %v6569 = vpop.permute.xlu0 %6568
    %6570 = vrot.lane.b32.xlu0 %v6441, 50
    %v6571 = vpop.permute.xlu0 %6570
    %6572 = vrot.lane.b32.xlu0 %v6443, 50
    %v6573 = vpop.permute.xlu0 %6572
    %6574 = vrot.lane.b32.xlu0 %v6445, 50
    %v6575 = vpop.permute.xlu0 %6574
    %6576 = vrot.lane.b32.xlu0 %v6447, 50
    %v6577 = vpop.permute.xlu0 %6576
    %6578 = vrot.lane.b32.xlu0 %v6449, 50
    %v6579 = vpop.permute.xlu0 %6578
    %6580 = vrot.lane.b32.xlu0 %v6451, 50
    %v6581 = vpop.permute.xlu0 %6580
    %6582 = vrot.lane.b32.xlu0 %v6453, 50
    %v6583 = vpop.permute.xlu0 %6582
    %6584 = vrot.lane.b32.xlu0 %v6456, 50
    %v6585 = vpop.permute.xlu0 %6584
    %6586 = vrot.lane.b32.xlu0 %v6458, 50
    %v6587 = vpop.permute.xlu0 %6586
    %6588 = vrot.lane.b32.xlu0 %v6460, 50
    %v6589 = vpop.permute.xlu0 %6588
    %6590 = vrot.lane.b32.xlu0 %v6462, 50
    %v6591 = vpop.permute.xlu0 %6590
    %6592 = vrot.lane.b32.xlu0 %v6464, 50
    %v6593 = vpop.permute.xlu0 %6592
    %6594 = vrot.lane.b32.xlu0 %v6466, 50
    %v6595 = vpop.permute.xlu0 %6594
    %6596 = vrot.lane.b32.xlu0 %v6468, 50
    %v6597 = vpop.permute.xlu0 %6596
    %6598 = vrot.lane.b32.xlu0 %v6470, 50
    %v6599 = vpop.permute.xlu0 %6598
    %6600 = vrot.lane.b32.xlu0 %v6472, 50
    %v6601 = vpop.permute.xlu0 %6600
    %6602 = vrot.lane.b32.xlu0 %v6474, 50
    %v6603 = vpop.permute.xlu0 %6602
    %6604 = vrot.lane.b32.xlu0 %v6476, 50
    %v6605 = vpop.permute.xlu0 %6604
    %6606 = vrot.lane.b32.xlu0 %v6478, 50
    %v6607 = vpop.permute.xlu0 %6606
    %6608 = vrot.lane.b32.xlu0 %v6480, 50
    %v6609 = vpop.permute.xlu0 %6608
    %6610 = vrot.lane.b32.xlu0 %v6482, 50
    %v6611 = vpop.permute.xlu0 %6610
    %6612 = vrot.lane.b32.xlu0 %v6484, 50
    %v6613 = vpop.permute.xlu0 %6612
    %6614 = vrot.lane.b32.xlu0 %v6486, 50
    %v6615 = vpop.permute.xlu0 %6614
    %6616 = vrot.lane.b32.xlu0 %v6489, 50
    %v6617 = vpop.permute.xlu0 %6616
    %6618 = vrot.lane.b32.xlu0 %v6491, 50
    %v6619 = vpop.permute.xlu0 %6618
    %6620 = vrot.lane.b32.xlu0 %v6493, 50
    %v6621 = vpop.permute.xlu0 %6620
    %6622 = vrot.lane.b32.xlu0 %v6495, 50
    %v6623 = vpop.permute.xlu0 %6622
    %6624 = vrot.lane.b32.xlu0 %v6497, 50
    %v6625 = vpop.permute.xlu0 %6624
    %6626 = vrot.lane.b32.xlu0 %v6499, 50
    %v6627 = vpop.permute.xlu0 %6626
    %6628 = vrot.lane.b32.xlu0 %v6501, 50
    %v6629 = vpop.permute.xlu0 %6628
    %6630 = vrot.lane.b32.xlu0 %v6503, 50
    %v6631 = vpop.permute.xlu0 %6630
    %6632 = vrot.lane.b32.xlu0 %v6505, 50
    %v6633 = vpop.permute.xlu0 %6632
    %6634 = vrot.lane.b32.xlu0 %v6507, 50
    %v6635 = vpop.permute.xlu0 %6634
    %6636 = vrot.lane.b32.xlu0 %v6509, 50
    %v6637 = vpop.permute.xlu0 %6636
    %6638 = vrot.lane.b32.xlu0 %v6511, 50
    %v6639 = vpop.permute.xlu0 %6638
    %6640 = vrot.lane.b32.xlu0 %v6513, 50
    %v6641 = vpop.permute.xlu0 %6640
    %6642 = vrot.lane.b32.xlu0 %v6515, 50
    %v6643 = vpop.permute.xlu0 %6642
    %6644 = vrot.lane.b32.xlu0 %v6517, 50
    %v6645 = vpop.permute.xlu0 %6644
    %6646 = vrot.lane.b32.xlu0 %v6519, 50
    %v6647 = vpop.permute.xlu0 %6646
    %v6712 = vrot.slane %v6372, 2
    %v6713 = vrot.slane %v6182, 2
    %v6714 = vsel %vm285, %v6712, %v6713
    %v6715 = vrot.slane %v6184, 2
    %v6716 = vsel %vm285, %v6713, %v6715
    %v6717 = vrot.slane %v6186, 2
    %v6718 = vsel %vm285, %v6715, %v6717
    %v6719 = vrot.slane %v6188, 2
    %v6720 = vsel %vm285, %v6717, %v6719
    %v6721 = vrot.slane %v6190, 2
    %v6722 = vsel %vm285, %v6719, %v6721
    %v6723 = vrot.slane %v6192, 2
    %v6724 = vsel %vm285, %v6721, %v6723
    %v6725 = vrot.slane %v6194, 2
    %v6726 = vsel %vm285, %v6723, %v6725
    %v6727 = vrot.slane %v6196, 2
    %v6728 = vsel %vm285, %v6725, %v6727
    %v6729 = vrot.slane %v6198, 2
    %v6730 = vsel %vm285, %v6727, %v6729
    %v6731 = vrot.slane %v6200, 2
    %v6732 = vsel %vm285, %v6729, %v6731
    %v6733 = vrot.slane %v6202, 2
    %v6734 = vsel %vm285, %v6731, %v6733
    %v6735 = vrot.slane %v6204, 2
    %v6736 = vsel %vm285, %v6733, %v6735
    %v6737 = vrot.slane %v6206, 2
    %v6738 = vsel %vm285, %v6735, %v6737
    %v6739 = vrot.slane %v6208, 2
    %v6740 = vsel %vm285, %v6737, %v6739
    %v6741 = vrot.slane %v6210, 2
    %v6742 = vsel %vm285, %v6739, %v6741
    %v6743 = vrot.slane %v6376, 2
    %v6744 = vsel %vm285, %v6741, %v6743
    %v6745 = vrot.slane %v6373, 2
    %v6746 = vrot.slane %v6213, 2
    %v6747 = vsel %vm285, %v6745, %v6746
    %v6748 = vrot.slane %v6215, 2
    %v6749 = vsel %vm285, %v6746, %v6748
    %v6750 = vrot.slane %v6217, 2
    %v6751 = vsel %vm285, %v6748, %v6750
    %v6752 = vrot.slane %v6219, 2
    %v6753 = vsel %vm285, %v6750, %v6752
    %v6754 = vrot.slane %v6221, 2
    %v6755 = vsel %vm285, %v6752, %v6754
    %v6756 = vrot.slane %v6223, 2
    %v6757 = vsel %vm285, %v6754, %v6756
    %v6758 = vrot.slane %v6225, 2
    %v6759 = vsel %vm285, %v6756, %v6758
    %v6760 = vrot.slane %v6227, 2
    %v6761 = vsel %vm285, %v6758, %v6760
    %v6762 = vrot.slane %v6229, 2
    %v6763 = vsel %vm285, %v6760, %v6762
    %v6764 = vrot.slane %v6231, 2
    %v6765 = vsel %vm285, %v6762, %v6764
    %v6766 = vrot.slane %v6233, 2
    %v6767 = vsel %vm285, %v6764, %v6766
    %v6768 = vrot.slane %v6235, 2
    %v6769 = vsel %vm285, %v6766, %v6768
    %v6770 = vrot.slane %v6237, 2
    %v6771 = vsel %vm285, %v6768, %v6770
    %v6772 = vrot.slane %v6239, 2
    %v6773 = vsel %vm285, %v6770, %v6772
    %v6774 = vrot.slane %v6241, 2
    %v6775 = vsel %vm285, %v6772, %v6774
    %v6776 = vrot.slane %v6377, 2
    %v6777 = vsel %vm285, %v6774, %v6776
    %v6778 = vrot.slane %v6374, 2
    %v6779 = vrot.slane %v6244, 2
    %v6780 = vsel %vm285, %v6778, %v6779
    %v6781 = vrot.slane %v6246, 2
    %v6782 = vsel %vm285, %v6779, %v6781
    %v6783 = vrot.slane %v6248, 2
    %v6784 = vsel %vm285, %v6781, %v6783
    %v6785 = vrot.slane %v6250, 2
    %v6786 = vsel %vm285, %v6783, %v6785
    %v6787 = vrot.slane %v6252, 2
    %v6788 = vsel %vm285, %v6785, %v6787
    %v6789 = vrot.slane %v6254, 2
    %v6790 = vsel %vm285, %v6787, %v6789
    %v6791 = vrot.slane %v6256, 2
    %v6792 = vsel %vm285, %v6789, %v6791
    %v6793 = vrot.slane %v6258, 2
    %v6794 = vsel %vm285, %v6791, %v6793
    %v6795 = vrot.slane %v6260, 2
    %v6796 = vsel %vm285, %v6793, %v6795
    %v6797 = vrot.slane %v6262, 2
    %v6798 = vsel %vm285, %v6795, %v6797
    %v6799 = vrot.slane %v6264, 2
    %v6800 = vsel %vm285, %v6797, %v6799
    %v6801 = vrot.slane %v6266, 2
    %v6802 = vsel %vm285, %v6799, %v6801
    %v6803 = vrot.slane %v6268, 2
    %v6804 = vsel %vm285, %v6801, %v6803
    %v6805 = vrot.slane %v6270, 2
    %v6806 = vsel %vm285, %v6803, %v6805
    %v6807 = vrot.slane %v6272, 2
    %v6808 = vsel %vm285, %v6805, %v6807
    %v6809 = vrot.slane %v6378, 2
    %v6810 = vsel %vm285, %v6807, %v6809
    %v6811 = vrot.slane %v6375, 2
    %v6812 = vrot.slane %v6275, 2
    %v6813 = vsel %vm285, %v6811, %v6812
    %v6814 = vrot.slane %v6277, 2
    %v6815 = vsel %vm285, %v6812, %v6814
    %v6816 = vrot.slane %v6279, 2
    %v6817 = vsel %vm285, %v6814, %v6816
    %v6818 = vrot.slane %v6281, 2
    %v6819 = vsel %vm285, %v6816, %v6818
    %v6820 = vrot.slane %v6283, 2
    %v6821 = vsel %vm285, %v6818, %v6820
    %v6822 = vrot.slane %v6285, 2
    %v6823 = vsel %vm285, %v6820, %v6822
    %v6824 = vrot.slane %v6287, 2
    %v6825 = vsel %vm285, %v6822, %v6824
    %v6826 = vrot.slane %v6289, 2
    %v6827 = vsel %vm285, %v6824, %v6826
    %v6828 = vrot.slane %v6291, 2
    %v6829 = vsel %vm285, %v6826, %v6828
    %v6830 = vrot.slane %v6293, 2
    %v6831 = vsel %vm285, %v6828, %v6830
    %v6832 = vrot.slane %v6295, 2
    %v6833 = vsel %vm285, %v6830, %v6832
    %v6834 = vrot.slane %v6297, 2
    %v6835 = vsel %vm285, %v6832, %v6834
    %v6836 = vrot.slane %v6299, 2
    %v6837 = vsel %vm285, %v6834, %v6836
    %v6838 = vrot.slane %v6301, 2
    %v6839 = vsel %vm285, %v6836, %v6838
    %v6840 = vrot.slane %v6303, 2
    %v6841 = vsel %vm285, %v6838, %v6840
    %v6842 = vrot.slane %v6379, 2
    %v6843 = vsel %vm285, %v6840, %v6842
    %6844 = vrot.lane.b32.xlu0 %v6714, 100
    %v6845 = vpop.permute.xlu0 %6844
    %6846 = vrot.lane.b32.xlu0 %v6716, 100
    %v6847 = vpop.permute.xlu0 %6846
    %6848 = vrot.lane.b32.xlu0 %v6718, 100
    %v6849 = vpop.permute.xlu0 %6848
    %6850 = vrot.lane.b32.xlu0 %v6720, 100
    %v6851 = vpop.permute.xlu0 %6850
    %6852 = vrot.lane.b32.xlu0 %v6722, 100
    %v6853 = vpop.permute.xlu0 %6852
    %6854 = vrot.lane.b32.xlu0 %v6724, 100
    %v6855 = vpop.permute.xlu0 %6854
    %6856 = vrot.lane.b32.xlu0 %v6726, 100
    %v6857 = vpop.permute.xlu0 %6856
    %6858 = vrot.lane.b32.xlu0 %v6728, 100
    %v6859 = vpop.permute.xlu0 %6858
    %6860 = vrot.lane.b32.xlu0 %v6730, 100
    %v6861 = vpop.permute.xlu0 %6860
    %6862 = vrot.lane.b32.xlu0 %v6732, 100
    %v6863 = vpop.permute.xlu0 %6862
    %6864 = vrot.lane.b32.xlu0 %v6734, 100
    %v6865 = vpop.permute.xlu0 %6864
    %6866 = vrot.lane.b32.xlu0 %v6736, 100
    %v6867 = vpop.permute.xlu0 %6866
    %6868 = vrot.lane.b32.xlu0 %v6738, 100
    %v6869 = vpop.permute.xlu0 %6868
    %6870 = vrot.lane.b32.xlu0 %v6740, 100
    %v6871 = vpop.permute.xlu0 %6870
    %6872 = vrot.lane.b32.xlu0 %v6742, 100
    %v6873 = vpop.permute.xlu0 %6872
    %6874 = vrot.lane.b32.xlu0 %v6744, 100
    %v6875 = vpop.permute.xlu0 %6874
    %6876 = vrot.lane.b32.xlu0 %v6747, 100
    %v6877 = vpop.permute.xlu0 %6876
    %6878 = vrot.lane.b32.xlu0 %v6749, 100
    %v6879 = vpop.permute.xlu0 %6878
    %6880 = vrot.lane.b32.xlu0 %v6751, 100
    %v6881 = vpop.permute.xlu0 %6880
    %6882 = vrot.lane.b32.xlu0 %v6753, 100
    %v6883 = vpop.permute.xlu0 %6882
    %6884 = vrot.lane.b32.xlu0 %v6755, 100
    %v6885 = vpop.permute.xlu0 %6884
    %6886 = vrot.lane.b32.xlu0 %v6757, 100
    %v6887 = vpop.permute.xlu0 %6886
    %6888 = vrot.lane.b32.xlu0 %v6759, 100
    %v6889 = vpop.permute.xlu0 %6888
    %6890 = vrot.lane.b32.xlu0 %v6761, 100
    %v6891 = vpop.permute.xlu0 %6890
    %6892 = vrot.lane.b32.xlu0 %v6763, 100
    %v6893 = vpop.permute.xlu0 %6892
    %6894 = vrot.lane.b32.xlu0 %v6765, 100
    %v6895 = vpop.permute.xlu0 %6894
    %6896 = vrot.lane.b32.xlu0 %v6767, 100
    %v6897 = vpop.permute.xlu0 %6896
    %6898 = vrot.lane.b32.xlu0 %v6769, 100
    %v6899 = vpop.permute.xlu0 %6898
    %6900 = vrot.lane.b32.xlu0 %v6771, 100
    %v6901 = vpop.permute.xlu0 %6900
    %6902 = vrot.lane.b32.xlu0 %v6773, 100
    %v6903 = vpop.permute.xlu0 %6902
    %6904 = vrot.lane.b32.xlu0 %v6775, 100
    %v6905 = vpop.permute.xlu0 %6904
    %6906 = vrot.lane.b32.xlu0 %v6777, 100
    %v6907 = vpop.permute.xlu0 %6906
    %6908 = vrot.lane.b32.xlu0 %v6780, 100
    %v6909 = vpop.permute.xlu0 %6908
    %6910 = vrot.lane.b32.xlu0 %v6782, 100
    %v6911 = vpop.permute.xlu0 %6910
    %6912 = vrot.lane.b32.xlu0 %v6784, 100
    %v6913 = vpop.permute.xlu0 %6912
    %6914 = vrot.lane.b32.xlu0 %v6786, 100
    %v6915 = vpop.permute.xlu0 %6914
    %6916 = vrot.lane.b32.xlu0 %v6788, 100
    %v6917 = vpop.permute.xlu0 %6916
    %6918 = vrot.lane.b32.xlu0 %v6790, 100
    %v6919 = vpop.permute.xlu0 %6918
    %6920 = vrot.lane.b32.xlu0 %v6792, 100
    %v6921 = vpop.permute.xlu0 %6920
    %6922 = vrot.lane.b32.xlu0 %v6794, 100
    %v6923 = vpop.permute.xlu0 %6922
    %6924 = vrot.lane.b32.xlu0 %v6796, 100
    %v6925 = vpop.permute.xlu0 %6924
    %6926 = vrot.lane.b32.xlu0 %v6798, 100
    %v6927 = vpop.permute.xlu0 %6926
    %6928 = vrot.lane.b32.xlu0 %v6800, 100
    %v6929 = vpop.permute.xlu0 %6928
    %6930 = vrot.lane.b32.xlu0 %v6802, 100
    %v6931 = vpop.permute.xlu0 %6930
    %6932 = vrot.lane.b32.xlu0 %v6804, 100
    %v6933 = vpop.permute.xlu0 %6932
    %6934 = vrot.lane.b32.xlu0 %v6806, 100
    %v6935 = vpop.permute.xlu0 %6934
    %6936 = vrot.lane.b32.xlu0 %v6808, 100
    %v6937 = vpop.permute.xlu0 %6936
    %6938 = vrot.lane.b32.xlu0 %v6810, 100
    %v6939 = vpop.permute.xlu0 %6938
    %6940 = vrot.lane.b32.xlu0 %v6813, 100
    %v6941 = vpop.permute.xlu0 %6940
    %6942 = vrot.lane.b32.xlu0 %v6815, 100
    %v6943 = vpop.permute.xlu0 %6942
    %6944 = vrot.lane.b32.xlu0 %v6817, 100
    %v6945 = vpop.permute.xlu0 %6944
    %6946 = vrot.lane.b32.xlu0 %v6819, 100
    %v6947 = vpop.permute.xlu0 %6946
    %6948 = vrot.lane.b32.xlu0 %v6821, 100
    %v6949 = vpop.permute.xlu0 %6948
    %6950 = vrot.lane.b32.xlu0 %v6823, 100
    %v6951 = vpop.permute.xlu0 %6950
    %6952 = vrot.lane.b32.xlu0 %v6825, 100
    %v6953 = vpop.permute.xlu0 %6952
    %6954 = vrot.lane.b32.xlu0 %v6827, 100
    %v6955 = vpop.permute.xlu0 %6954
    %6956 = vrot.lane.b32.xlu0 %v6829, 100
    %v6957 = vpop.permute.xlu0 %6956
    %6958 = vrot.lane.b32.xlu0 %v6831, 100
    %v6959 = vpop.permute.xlu0 %6958
    %6960 = vrot.lane.b32.xlu0 %v6833, 100
    %v6961 = vpop.permute.xlu0 %6960
    %6962 = vrot.lane.b32.xlu0 %v6835, 100
    %v6963 = vpop.permute.xlu0 %6962
    %6964 = vrot.lane.b32.xlu0 %v6837, 100
    %v6965 = vpop.permute.xlu0 %6964
    %6966 = vrot.lane.b32.xlu0 %v6839, 100
    %v6967 = vpop.permute.xlu0 %6966
    %6968 = vrot.lane.b32.xlu0 %v6841, 100
    %v6969 = vpop.permute.xlu0 %6968
    %6970 = vrot.lane.b32.xlu0 %v6843, 100
    %v6971 = vpop.permute.xlu0 %6970
    %v7036 = vrot.slane %v6372, 3
    %v7037 = vrot.slane %v6182, 3
    %v7038 = vsel %vm367, %v7036, %v7037
    %v7039 = vrot.slane %v6184, 3
    %v7040 = vsel %vm367, %v7037, %v7039
    %v7041 = vrot.slane %v6186, 3
    %v7042 = vsel %vm367, %v7039, %v7041
    %v7043 = vrot.slane %v6188, 3
    %v7044 = vsel %vm367, %v7041, %v7043
    %v7045 = vrot.slane %v6190, 3
    %v7046 = vsel %vm367, %v7043, %v7045
    %v7047 = vrot.slane %v6192, 3
    %v7048 = vsel %vm367, %v7045, %v7047
    %v7049 = vrot.slane %v6194, 3
    %v7050 = vsel %vm367, %v7047, %v7049
    %v7051 = vrot.slane %v6196, 3
    %v7052 = vsel %vm367, %v7049, %v7051
    %v7053 = vrot.slane %v6198, 3
    %v7054 = vsel %vm367, %v7051, %v7053
    %v7055 = vrot.slane %v6200, 3
    %v7056 = vsel %vm367, %v7053, %v7055
    %v7057 = vrot.slane %v6202, 3
    %v7058 = vsel %vm367, %v7055, %v7057
    %v7059 = vrot.slane %v6204, 3
    %v7060 = vsel %vm367, %v7057, %v7059
    %v7061 = vrot.slane %v6206, 3
    %v7062 = vsel %vm367, %v7059, %v7061
    %v7063 = vrot.slane %v6208, 3
    %v7064 = vsel %vm367, %v7061, %v7063
    %v7065 = vrot.slane %v6210, 3
    %v7066 = vsel %vm367, %v7063, %v7065
    %v7067 = vrot.slane %v6376, 3
    %v7068 = vsel %vm367, %v7065, %v7067
    %v7069 = vrot.slane %v6373, 3
    %v7070 = vrot.slane %v6213, 3
    %v7071 = vsel %vm367, %v7069, %v7070
    %v7072 = vrot.slane %v6215, 3
    %v7073 = vsel %vm367, %v7070, %v7072
    %v7074 = vrot.slane %v6217, 3
    %v7075 = vsel %vm367, %v7072, %v7074
    %v7076 = vrot.slane %v6219, 3
    %v7077 = vsel %vm367, %v7074, %v7076
    %v7078 = vrot.slane %v6221, 3
    %v7079 = vsel %vm367, %v7076, %v7078
    %v7080 = vrot.slane %v6223, 3
    %v7081 = vsel %vm367, %v7078, %v7080
    %v7082 = vrot.slane %v6225, 3
    %v7083 = vsel %vm367, %v7080, %v7082
    %v7084 = vrot.slane %v6227, 3
    %v7085 = vsel %vm367, %v7082, %v7084
    %v7086 = vrot.slane %v6229, 3
    %v7087 = vsel %vm367, %v7084, %v7086
    %v7088 = vrot.slane %v6231, 3
    %v7089 = vsel %vm367, %v7086, %v7088
    %v7090 = vrot.slane %v6233, 3
    %v7091 = vsel %vm367, %v7088, %v7090
    %v7092 = vrot.slane %v6235, 3
    %v7093 = vsel %vm367, %v7090, %v7092
    %v7094 = vrot.slane %v6237, 3
    %v7095 = vsel %vm367, %v7092, %v7094
    %v7096 = vrot.slane %v6239, 3
    %v7097 = vsel %vm367, %v7094, %v7096
    %v7098 = vrot.slane %v6241, 3
    %v7099 = vsel %vm367, %v7096, %v7098
    %v7100 = vrot.slane %v6377, 3
    %v7101 = vsel %vm367, %v7098, %v7100
    %v7102 = vrot.slane %v6374, 3
    %v7103 = vrot.slane %v6244, 3
    %v7104 = vsel %vm367, %v7102, %v7103
    %v7105 = vrot.slane %v6246, 3
    %v7106 = vsel %vm367, %v7103, %v7105
    %v7107 = vrot.slane %v6248, 3
    %v7108 = vsel %vm367, %v7105, %v7107
    %v7109 = vrot.slane %v6250, 3
    %v7110 = vsel %vm367, %v7107, %v7109
    %v7111 = vrot.slane %v6252, 3
    %v7112 = vsel %vm367, %v7109, %v7111
    %v7113 = vrot.slane %v6254, 3
    %v7114 = vsel %vm367, %v7111, %v7113
    %v7115 = vrot.slane %v6256, 3
    %v7116 = vsel %vm367, %v7113, %v7115
    %v7117 = vrot.slane %v6258, 3
    %v7118 = vsel %vm367, %v7115, %v7117
    %v7119 = vrot.slane %v6260, 3
    %v7120 = vsel %vm367, %v7117, %v7119
    %v7121 = vrot.slane %v6262, 3
    %v7122 = vsel %vm367, %v7119, %v7121
    %v7123 = vrot.slane %v6264, 3
    %v7124 = vsel %vm367, %v7121, %v7123
    %v7125 = vrot.slane %v6266, 3
    %v7126 = vsel %vm367, %v7123, %v7125
    %v7127 = vrot.slane %v6268, 3
    %v7128 = vsel %vm367, %v7125, %v7127
    %v7129 = vrot.slane %v6270, 3
    %v7130 = vsel %vm367, %v7127, %v7129
    %v7131 = vrot.slane %v6272, 3
    %v7132 = vsel %vm367, %v7129, %v7131
    %v7133 = vrot.slane %v6378, 3
    %v7134 = vsel %vm367, %v7131, %v7133
    %v7135 = vrot.slane %v6375, 3
    %v7136 = vrot.slane %v6275, 3
    %v7137 = vsel %vm367, %v7135, %v7136
    %v7138 = vrot.slane %v6277, 3
    %v7139 = vsel %vm367, %v7136, %v7138
    %v7140 = vrot.slane %v6279, 3
    %v7141 = vsel %vm367, %v7138, %v7140
    %v7142 = vrot.slane %v6281, 3
    %v7143 = vsel %vm367, %v7140, %v7142
    %v7144 = vrot.slane %v6283, 3
    %v7145 = vsel %vm367, %v7142, %v7144
    %v7146 = vrot.slane %v6285, 3
    %v7147 = vsel %vm367, %v7144, %v7146
    %v7148 = vrot.slane %v6287, 3
    %v7149 = vsel %vm367, %v7146, %v7148
    %v7150 = vrot.slane %v6289, 3
    %v7151 = vsel %vm367, %v7148, %v7150
    %v7152 = vrot.slane %v6291, 3
    %v7153 = vsel %vm367, %v7150, %v7152
    %v7154 = vrot.slane %v6293, 3
    %v7155 = vsel %vm367, %v7152, %v7154
    %v7156 = vrot.slane %v6295, 3
    %v7157 = vsel %vm367, %v7154, %v7156
    %v7158 = vrot.slane %v6297, 3
    %v7159 = vsel %vm367, %v7156, %v7158
    %v7160 = vrot.slane %v6299, 3
    %v7161 = vsel %vm367, %v7158, %v7160
    %v7162 = vrot.slane %v6301, 3
    %v7163 = vsel %vm367, %v7160, %v7162
    %v7164 = vrot.slane %v6303, 3
    %v7165 = vsel %vm367, %v7162, %v7164
    %v7166 = vrot.slane %v6379, 3
    %v7167 = vsel %vm367, %v7164, %v7166
    %7168 = vrot.lane.b32.xlu0 %v7038, 22
    %v7169 = vpop.permute.xlu0 %7168
    %7170 = vrot.lane.b32.xlu0 %v7040, 22
    %v7171 = vpop.permute.xlu0 %7170
    %7172 = vrot.lane.b32.xlu0 %v7042, 22
    %v7173 = vpop.permute.xlu0 %7172
    %7174 = vrot.lane.b32.xlu0 %v7044, 22
    %v7175 = vpop.permute.xlu0 %7174
    %7176 = vrot.lane.b32.xlu0 %v7046, 22
    %v7177 = vpop.permute.xlu0 %7176
    %7178 = vrot.lane.b32.xlu0 %v7048, 22
    %v7179 = vpop.permute.xlu0 %7178
    %7180 = vrot.lane.b32.xlu0 %v7050, 22
    %v7181 = vpop.permute.xlu0 %7180
    %7182 = vrot.lane.b32.xlu0 %v7052, 22
    %v7183 = vpop.permute.xlu0 %7182
    %7184 = vrot.lane.b32.xlu0 %v7054, 22
    %v7185 = vpop.permute.xlu0 %7184
    %7186 = vrot.lane.b32.xlu0 %v7056, 22
    %v7187 = vpop.permute.xlu0 %7186
    %7188 = vrot.lane.b32.xlu0 %v7058, 22
    %v7189 = vpop.permute.xlu0 %7188
    %7190 = vrot.lane.b32.xlu0 %v7060, 22
    %v7191 = vpop.permute.xlu0 %7190
    %7192 = vrot.lane.b32.xlu0 %v7062, 22
    %v7193 = vpop.permute.xlu0 %7192
    %7194 = vrot.lane.b32.xlu0 %v7064, 22
    %v7195 = vpop.permute.xlu0 %7194
    %7196 = vrot.lane.b32.xlu0 %v7066, 22
    %v7197 = vpop.permute.xlu0 %7196
    %7198 = vrot.lane.b32.xlu0 %v7068, 22
    %v7199 = vpop.permute.xlu0 %7198
    %7200 = vrot.lane.b32.xlu0 %v7071, 22
    %v7201 = vpop.permute.xlu0 %7200
    %7202 = vrot.lane.b32.xlu0 %v7073, 22
    %v7203 = vpop.permute.xlu0 %7202
    %7204 = vrot.lane.b32.xlu0 %v7075, 22
    %v7205 = vpop.permute.xlu0 %7204
    %7206 = vrot.lane.b32.xlu0 %v7077, 22
    %v7207 = vpop.permute.xlu0 %7206
    %7208 = vrot.lane.b32.xlu0 %v7079, 22
    %v7209 = vpop.permute.xlu0 %7208
    %7210 = vrot.lane.b32.xlu0 %v7081, 22
    %v7211 = vpop.permute.xlu0 %7210
    %7212 = vrot.lane.b32.xlu0 %v7083, 22
    %v7213 = vpop.permute.xlu0 %7212
    %7214 = vrot.lane.b32.xlu0 %v7085, 22
    %v7215 = vpop.permute.xlu0 %7214
    %7216 = vrot.lane.b32.xlu0 %v7087, 22
    %v7217 = vpop.permute.xlu0 %7216
    %7218 = vrot.lane.b32.xlu0 %v7089, 22
    %v7219 = vpop.permute.xlu0 %7218
    %7220 = vrot.lane.b32.xlu0 %v7091, 22
    %v7221 = vpop.permute.xlu0 %7220
    %7222 = vrot.lane.b32.xlu0 %v7093, 22
    %v7223 = vpop.permute.xlu0 %7222
    %7224 = vrot.lane.b32.xlu0 %v7095, 22
    %v7225 = vpop.permute.xlu0 %7224
    %7226 = vrot.lane.b32.xlu0 %v7097, 22
    %v7227 = vpop.permute.xlu0 %7226
    %7228 = vrot.lane.b32.xlu0 %v7099, 22
    %v7229 = vpop.permute.xlu0 %7228
    %7230 = vrot.lane.b32.xlu0 %v7101, 22
    %v7231 = vpop.permute.xlu0 %7230
    %7232 = vrot.lane.b32.xlu0 %v7104, 22
    %v7233 = vpop.permute.xlu0 %7232
    %7234 = vrot.lane.b32.xlu0 %v7106, 22
    %v7235 = vpop.permute.xlu0 %7234
    %7236 = vrot.lane.b32.xlu0 %v7108, 22
    %v7237 = vpop.permute.xlu0 %7236
    %7238 = vrot.lane.b32.xlu0 %v7110, 22
    %v7239 = vpop.permute.xlu0 %7238
    %7240 = vrot.lane.b32.xlu0 %v7112, 22
    %v7241 = vpop.permute.xlu0 %7240
    %7242 = vrot.lane.b32.xlu0 %v7114, 22
    %v7243 = vpop.permute.xlu0 %7242
    %7244 = vrot.lane.b32.xlu0 %v7116, 22
    %v7245 = vpop.permute.xlu0 %7244
    %7246 = vrot.lane.b32.xlu0 %v7118, 22
    %v7247 = vpop.permute.xlu0 %7246
    %7248 = vrot.lane.b32.xlu0 %v7120, 22
    %v7249 = vpop.permute.xlu0 %7248
    %7250 = vrot.lane.b32.xlu0 %v7122, 22
    %v7251 = vpop.permute.xlu0 %7250
    %7252 = vrot.lane.b32.xlu0 %v7124, 22
    %v7253 = vpop.permute.xlu0 %7252
    %7254 = vrot.lane.b32.xlu0 %v7126, 22
    %v7255 = vpop.permute.xlu0 %7254
    %7256 = vrot.lane.b32.xlu0 %v7128, 22
    %v7257 = vpop.permute.xlu0 %7256
    %7258 = vrot.lane.b32.xlu0 %v7130, 22
    %v7259 = vpop.permute.xlu0 %7258
    %7260 = vrot.lane.b32.xlu0 %v7132, 22
    %v7261 = vpop.permute.xlu0 %7260
    %7262 = vrot.lane.b32.xlu0 %v7134, 22
    %v7263 = vpop.permute.xlu0 %7262
    %7264 = vrot.lane.b32.xlu0 %v7137, 22
    %v7265 = vpop.permute.xlu0 %7264
    %7266 = vrot.lane.b32.xlu0 %v7139, 22
    %v7267 = vpop.permute.xlu0 %7266
    %7268 = vrot.lane.b32.xlu0 %v7141, 22
    %v7269 = vpop.permute.xlu0 %7268
    %7270 = vrot.lane.b32.xlu0 %v7143, 22
    %v7271 = vpop.permute.xlu0 %7270
    %7272 = vrot.lane.b32.xlu0 %v7145, 22
    %v7273 = vpop.permute.xlu0 %7272
    %7274 = vrot.lane.b32.xlu0 %v7147, 22
    %v7275 = vpop.permute.xlu0 %7274
    %7276 = vrot.lane.b32.xlu0 %v7149, 22
    %v7277 = vpop.permute.xlu0 %7276
    %7278 = vrot.lane.b32.xlu0 %v7151, 22
    %v7279 = vpop.permute.xlu0 %7278
    %7280 = vrot.lane.b32.xlu0 %v7153, 22
    %v7281 = vpop.permute.xlu0 %7280
    %7282 = vrot.lane.b32.xlu0 %v7155, 22
    %v7283 = vpop.permute.xlu0 %7282
    %7284 = vrot.lane.b32.xlu0 %v7157, 22
    %v7285 = vpop.permute.xlu0 %7284
    %7286 = vrot.lane.b32.xlu0 %v7159, 22
    %v7287 = vpop.permute.xlu0 %7286
    %7288 = vrot.lane.b32.xlu0 %v7161, 22
    %v7289 = vpop.permute.xlu0 %7288
    %7290 = vrot.lane.b32.xlu0 %v7163, 22
    %v7291 = vpop.permute.xlu0 %7290
    %7292 = vrot.lane.b32.xlu0 %v7165, 22
    %v7293 = vpop.permute.xlu0 %7292
    %7294 = vrot.lane.b32.xlu0 %v7167, 22
    %v7295 = vpop.permute.xlu0 %7294
    %v7360 = vrot.slane %v6372, 4
    %v7361 = vrot.slane %v6182, 4
    %v7362 = vsel %vm449, %v7360, %v7361
    %v7363 = vrot.slane %v6184, 4
    %v7364 = vsel %vm449, %v7361, %v7363
    %v7365 = vrot.slane %v6186, 4
    %v7366 = vsel %vm449, %v7363, %v7365
    %v7367 = vrot.slane %v6188, 4
    %v7368 = vsel %vm449, %v7365, %v7367
    %v7369 = vrot.slane %v6190, 4
    %v7370 = vsel %vm449, %v7367, %v7369
    %v7371 = vrot.slane %v6192, 4
    %v7372 = vsel %vm449, %v7369, %v7371
    %v7373 = vrot.slane %v6194, 4
    %v7374 = vsel %vm449, %v7371, %v7373
    %v7375 = vrot.slane %v6196, 4
    %v7376 = vsel %vm449, %v7373, %v7375
    %v7377 = vrot.slane %v6198, 4
    %v7378 = vsel %vm449, %v7375, %v7377
    %v7379 = vrot.slane %v6200, 4
    %v7380 = vsel %vm449, %v7377, %v7379
    %v7381 = vrot.slane %v6202, 4
    %v7382 = vsel %vm449, %v7379, %v7381
    %v7383 = vrot.slane %v6204, 4
    %v7384 = vsel %vm449, %v7381, %v7383
    %v7385 = vrot.slane %v6206, 4
    %v7386 = vsel %vm449, %v7383, %v7385
    %v7387 = vrot.slane %v6208, 4
    %v7388 = vsel %vm449, %v7385, %v7387
    %v7389 = vrot.slane %v6210, 4
    %v7390 = vsel %vm449, %v7387, %v7389
    %v7391 = vrot.slane %v6376, 4
    %v7392 = vsel %vm449, %v7389, %v7391
    %v7393 = vrot.slane %v6373, 4
    %v7394 = vrot.slane %v6213, 4
    %v7395 = vsel %vm449, %v7393, %v7394
    %v7396 = vrot.slane %v6215, 4
    %v7397 = vsel %vm449, %v7394, %v7396
    %v7398 = vrot.slane %v6217, 4
    %v7399 = vsel %vm449, %v7396, %v7398
    %v7400 = vrot.slane %v6219, 4
    %v7401 = vsel %vm449, %v7398, %v7400
    %v7402 = vrot.slane %v6221, 4
    %v7403 = vsel %vm449, %v7400, %v7402
    %v7404 = vrot.slane %v6223, 4
    %v7405 = vsel %vm449, %v7402, %v7404
    %v7406 = vrot.slane %v6225, 4
    %v7407 = vsel %vm449, %v7404, %v7406
    %v7408 = vrot.slane %v6227, 4
    %v7409 = vsel %vm449, %v7406, %v7408
    %v7410 = vrot.slane %v6229, 4
    %v7411 = vsel %vm449, %v7408, %v7410
    %v7412 = vrot.slane %v6231, 4
    %v7413 = vsel %vm449, %v7410, %v7412
    %v7414 = vrot.slane %v6233, 4
    %v7415 = vsel %vm449, %v7412, %v7414
    %v7416 = vrot.slane %v6235, 4
    %v7417 = vsel %vm449, %v7414, %v7416
    %v7418 = vrot.slane %v6237, 4
    %v7419 = vsel %vm449, %v7416, %v7418
    %v7420 = vrot.slane %v6239, 4
    %v7421 = vsel %vm449, %v7418, %v7420
    %v7422 = vrot.slane %v6241, 4
    %v7423 = vsel %vm449, %v7420, %v7422
    %v7424 = vrot.slane %v6377, 4
    %v7425 = vsel %vm449, %v7422, %v7424
    %v7426 = vrot.slane %v6374, 4
    %v7427 = vrot.slane %v6244, 4
    %v7428 = vsel %vm449, %v7426, %v7427
    %v7429 = vrot.slane %v6246, 4
    %v7430 = vsel %vm449, %v7427, %v7429
    %v7431 = vrot.slane %v6248, 4
    %v7432 = vsel %vm449, %v7429, %v7431
    %v7433 = vrot.slane %v6250, 4
    %v7434 = vsel %vm449, %v7431, %v7433
    %v7435 = vrot.slane %v6252, 4
    %v7436 = vsel %vm449, %v7433, %v7435
    %v7437 = vrot.slane %v6254, 4
    %v7438 = vsel %vm449, %v7435, %v7437
    %v7439 = vrot.slane %v6256, 4
    %v7440 = vsel %vm449, %v7437, %v7439
    %v7441 = vrot.slane %v6258, 4
    %v7442 = vsel %vm449, %v7439, %v7441
    %v7443 = vrot.slane %v6260, 4
    %v7444 = vsel %vm449, %v7441, %v7443
    %v7445 = vrot.slane %v6262, 4
    %v7446 = vsel %vm449, %v7443, %v7445
    %v7447 = vrot.slane %v6264, 4
    %v7448 = vsel %vm449, %v7445, %v7447
    %v7449 = vrot.slane %v6266, 4
    %v7450 = vsel %vm449, %v7447, %v7449
    %v7451 = vrot.slane %v6268, 4
    %v7452 = vsel %vm449, %v7449, %v7451
    %v7453 = vrot.slane %v6270, 4
    %v7454 = vsel %vm449, %v7451, %v7453
    %v7455 = vrot.slane %v6272, 4
    %v7456 = vsel %vm449, %v7453, %v7455
    %v7457 = vrot.slane %v6378, 4
    %v7458 = vsel %vm449, %v7455, %v7457
    %v7459 = vrot.slane %v6375, 4
    %v7460 = vrot.slane %v6275, 4
    %v7461 = vsel %vm449, %v7459, %v7460
    %v7462 = vrot.slane %v6277, 4
    %v7463 = vsel %vm449, %v7460, %v7462
    %v7464 = vrot.slane %v6279, 4
    %v7465 = vsel %vm449, %v7462, %v7464
    %v7466 = vrot.slane %v6281, 4
    %v7467 = vsel %vm449, %v7464, %v7466
    %v7468 = vrot.slane %v6283, 4
    %v7469 = vsel %vm449, %v7466, %v7468
    %v7470 = vrot.slane %v6285, 4
    %v7471 = vsel %vm449, %v7468, %v7470
    %v7472 = vrot.slane %v6287, 4
    %v7473 = vsel %vm449, %v7470, %v7472
    %v7474 = vrot.slane %v6289, 4
    %v7475 = vsel %vm449, %v7472, %v7474
    %v7476 = vrot.slane %v6291, 4
    %v7477 = vsel %vm449, %v7474, %v7476
    %v7478 = vrot.slane %v6293, 4
    %v7479 = vsel %vm449, %v7476, %v7478
    %v7480 = vrot.slane %v6295, 4
    %v7481 = vsel %vm449, %v7478, %v7480
    %v7482 = vrot.slane %v6297, 4
    %v7483 = vsel %vm449, %v7480, %v7482
    %v7484 = vrot.slane %v6299, 4
    %v7485 = vsel %vm449, %v7482, %v7484
    %v7486 = vrot.slane %v6301, 4
    %v7487 = vsel %vm449, %v7484, %v7486
    %v7488 = vrot.slane %v6303, 4
    %v7489 = vsel %vm449, %v7486, %v7488
    %v7490 = vrot.slane %v6379, 4
    %v7491 = vsel %vm449, %v7488, %v7490
    %7492 = vrot.lane.b32.xlu0 %v7362, 72
    %v7493 = vpop.permute.xlu0 %7492
    %7494 = vrot.lane.b32.xlu0 %v7364, 72
    %v7495 = vpop.permute.xlu0 %7494
    %7496 = vrot.lane.b32.xlu0 %v7366, 72
    %v7497 = vpop.permute.xlu0 %7496
    %7498 = vrot.lane.b32.xlu0 %v7368, 72
    %v7499 = vpop.permute.xlu0 %7498
    %7500 = vrot.lane.b32.xlu0 %v7370, 72
    %v7501 = vpop.permute.xlu0 %7500
    %7502 = vrot.lane.b32.xlu0 %v7372, 72
    %v7503 = vpop.permute.xlu0 %7502
    %7504 = vrot.lane.b32.xlu0 %v7374, 72
    %v7505 = vpop.permute.xlu0 %7504
    %7506 = vrot.lane.b32.xlu0 %v7376, 72
    %v7507 = vpop.permute.xlu0 %7506
    %7508 = vrot.lane.b32.xlu0 %v7378, 72
    %v7509 = vpop.permute.xlu0 %7508
    %7510 = vrot.lane.b32.xlu0 %v7380, 72
    %v7511 = vpop.permute.xlu0 %7510
    %7512 = vrot.lane.b32.xlu0 %v7382, 72
    %v7513 = vpop.permute.xlu0 %7512
    %7514 = vrot.lane.b32.xlu0 %v7384, 72
    %v7515 = vpop.permute.xlu0 %7514
    %7516 = vrot.lane.b32.xlu0 %v7386, 72
    %v7517 = vpop.permute.xlu0 %7516
    %7518 = vrot.lane.b32.xlu0 %v7388, 72
    %v7519 = vpop.permute.xlu0 %7518
    %7520 = vrot.lane.b32.xlu0 %v7390, 72
    %v7521 = vpop.permute.xlu0 %7520
    %7522 = vrot.lane.b32.xlu0 %v7392, 72
    %v7523 = vpop.permute.xlu0 %7522
    %7524 = vrot.lane.b32.xlu0 %v7395, 72
    %v7525 = vpop.permute.xlu0 %7524
    %7526 = vrot.lane.b32.xlu0 %v7397, 72
    %v7527 = vpop.permute.xlu0 %7526
    %7528 = vrot.lane.b32.xlu0 %v7399, 72
    %v7529 = vpop.permute.xlu0 %7528
    %7530 = vrot.lane.b32.xlu0 %v7401, 72
    %v7531 = vpop.permute.xlu0 %7530
    %7532 = vrot.lane.b32.xlu0 %v7403, 72
    %v7533 = vpop.permute.xlu0 %7532
    %7534 = vrot.lane.b32.xlu0 %v7405, 72
    %v7535 = vpop.permute.xlu0 %7534
    %7536 = vrot.lane.b32.xlu0 %v7407, 72
    %v7537 = vpop.permute.xlu0 %7536
    %7538 = vrot.lane.b32.xlu0 %v7409, 72
    %v7539 = vpop.permute.xlu0 %7538
    %7540 = vrot.lane.b32.xlu0 %v7411, 72
    %v7541 = vpop.permute.xlu0 %7540
    %7542 = vrot.lane.b32.xlu0 %v7413, 72
    %v7543 = vpop.permute.xlu0 %7542
    %7544 = vrot.lane.b32.xlu0 %v7415, 72
    %v7545 = vpop.permute.xlu0 %7544
    %7546 = vrot.lane.b32.xlu0 %v7417, 72
    %v7547 = vpop.permute.xlu0 %7546
    %7548 = vrot.lane.b32.xlu0 %v7419, 72
    %v7549 = vpop.permute.xlu0 %7548
    %7550 = vrot.lane.b32.xlu0 %v7421, 72
    %v7551 = vpop.permute.xlu0 %7550
    %7552 = vrot.lane.b32.xlu0 %v7423, 72
    %v7553 = vpop.permute.xlu0 %7552
    %7554 = vrot.lane.b32.xlu0 %v7425, 72
    %v7555 = vpop.permute.xlu0 %7554
    %7556 = vrot.lane.b32.xlu0 %v7428, 72
    %v7557 = vpop.permute.xlu0 %7556
    %7558 = vrot.lane.b32.xlu0 %v7430, 72
    %v7559 = vpop.permute.xlu0 %7558
    %7560 = vrot.lane.b32.xlu0 %v7432, 72
    %v7561 = vpop.permute.xlu0 %7560
    %7562 = vrot.lane.b32.xlu0 %v7434, 72
    %v7563 = vpop.permute.xlu0 %7562
    %7564 = vrot.lane.b32.xlu0 %v7436, 72
    %v7565 = vpop.permute.xlu0 %7564
    %7566 = vrot.lane.b32.xlu0 %v7438, 72
    %v7567 = vpop.permute.xlu0 %7566
    %7568 = vrot.lane.b32.xlu0 %v7440, 72
    %v7569 = vpop.permute.xlu0 %7568
    %7570 = vrot.lane.b32.xlu0 %v7442, 72
    %v7571 = vpop.permute.xlu0 %7570
    %7572 = vrot.lane.b32.xlu0 %v7444, 72
    %v7573 = vpop.permute.xlu0 %7572
    %7574 = vrot.lane.b32.xlu0 %v7446, 72
    %v7575 = vpop.permute.xlu0 %7574
    %7576 = vrot.lane.b32.xlu0 %v7448, 72
    %v7577 = vpop.permute.xlu0 %7576
    %7578 = vrot.lane.b32.xlu0 %v7450, 72
    %v7579 = vpop.permute.xlu0 %7578
    %7580 = vrot.lane.b32.xlu0 %v7452, 72
    %v7581 = vpop.permute.xlu0 %7580
    %7582 = vrot.lane.b32.xlu0 %v7454, 72
    %v7583 = vpop.permute.xlu0 %7582
    %7584 = vrot.lane.b32.xlu0 %v7456, 72
    %v7585 = vpop.permute.xlu0 %7584
    %7586 = vrot.lane.b32.xlu0 %v7458, 72
    %v7587 = vpop.permute.xlu0 %7586
    %7588 = vrot.lane.b32.xlu0 %v7461, 72
    %v7589 = vpop.permute.xlu0 %7588
    %7590 = vrot.lane.b32.xlu0 %v7463, 72
    %v7591 = vpop.permute.xlu0 %7590
    %7592 = vrot.lane.b32.xlu0 %v7465, 72
    %v7593 = vpop.permute.xlu0 %7592
    %7594 = vrot.lane.b32.xlu0 %v7467, 72
    %v7595 = vpop.permute.xlu0 %7594
    %7596 = vrot.lane.b32.xlu0 %v7469, 72
    %v7597 = vpop.permute.xlu0 %7596
    %7598 = vrot.lane.b32.xlu0 %v7471, 72
    %v7599 = vpop.permute.xlu0 %7598
    %7600 = vrot.lane.b32.xlu0 %v7473, 72
    %v7601 = vpop.permute.xlu0 %7600
    %7602 = vrot.lane.b32.xlu0 %v7475, 72
    %v7603 = vpop.permute.xlu0 %7602
    %7604 = vrot.lane.b32.xlu0 %v7477, 72
    %v7605 = vpop.permute.xlu0 %7604
    %7606 = vrot.lane.b32.xlu0 %v7479, 72
    %v7607 = vpop.permute.xlu0 %7606
    %7608 = vrot.lane.b32.xlu0 %v7481, 72
    %v7609 = vpop.permute.xlu0 %7608
    %7610 = vrot.lane.b32.xlu0 %v7483, 72
    %v7611 = vpop.permute.xlu0 %7610
    %7612 = vrot.lane.b32.xlu0 %v7485, 72
    %v7613 = vpop.permute.xlu0 %7612
    %7614 = vrot.lane.b32.xlu0 %v7487, 72
    %v7615 = vpop.permute.xlu0 %7614
    %7616 = vrot.lane.b32.xlu0 %v7489, 72
    %v7617 = vpop.permute.xlu0 %7616
    %7618 = vrot.lane.b32.xlu0 %v7491, 72
    %v7619 = vpop.permute.xlu0 %7618
    %v7684 = vrot.slane %v6372, 5
    %v7685 = vrot.slane %v6182, 5
    %v7686 = vsel %vm531, %v7684, %v7685
    %v7687 = vrot.slane %v6184, 5
    %v7688 = vsel %vm531, %v7685, %v7687
    %v7689 = vrot.slane %v6186, 5
    %v7690 = vsel %vm531, %v7687, %v7689
    %v7691 = vrot.slane %v6188, 5
    %v7692 = vsel %vm531, %v7689, %v7691
    %v7693 = vrot.slane %v6190, 5
    %v7694 = vsel %vm531, %v7691, %v7693
    %v7695 = vrot.slane %v6192, 5
    %v7696 = vsel %vm531, %v7693, %v7695
    %v7697 = vrot.slane %v6194, 5
    %v7698 = vsel %vm531, %v7695, %v7697
    %v7699 = vrot.slane %v6196, 5
    %v7700 = vsel %vm531, %v7697, %v7699
    %v7701 = vrot.slane %v6198, 5
    %v7702 = vsel %vm531, %v7699, %v7701
    %v7703 = vrot.slane %v6200, 5
    %v7704 = vsel %vm531, %v7701, %v7703
    %v7705 = vrot.slane %v6202, 5
    %v7706 = vsel %vm531, %v7703, %v7705
    %v7707 = vrot.slane %v6204, 5
    %v7708 = vsel %vm531, %v7705, %v7707
    %v7709 = vrot.slane %v6206, 5
    %v7710 = vsel %vm531, %v7707, %v7709
    %v7711 = vrot.slane %v6208, 5
    %v7712 = vsel %vm531, %v7709, %v7711
    %v7713 = vrot.slane %v6210, 5
    %v7714 = vsel %vm531, %v7711, %v7713
    %v7715 = vrot.slane %v6376, 5
    %v7716 = vsel %vm531, %v7713, %v7715
    %v7717 = vrot.slane %v6373, 5
    %v7718 = vrot.slane %v6213, 5
    %v7719 = vsel %vm531, %v7717, %v7718
    %v7720 = vrot.slane %v6215, 5
    %v7721 = vsel %vm531, %v7718, %v7720
    %v7722 = vrot.slane %v6217, 5
    %v7723 = vsel %vm531, %v7720, %v7722
    %v7724 = vrot.slane %v6219, 5
    %v7725 = vsel %vm531, %v7722, %v7724
    %v7726 = vrot.slane %v6221, 5
    %v7727 = vsel %vm531, %v7724, %v7726
    %v7728 = vrot.slane %v6223, 5
    %v7729 = vsel %vm531, %v7726, %v7728
    %v7730 = vrot.slane %v6225, 5
    %v7731 = vsel %vm531, %v7728, %v7730
    %v7732 = vrot.slane %v6227, 5
    %v7733 = vsel %vm531, %v7730, %v7732
    %v7734 = vrot.slane %v6229, 5
    %v7735 = vsel %vm531, %v7732, %v7734
    %v7736 = vrot.slane %v6231, 5
    %v7737 = vsel %vm531, %v7734, %v7736
    %v7738 = vrot.slane %v6233, 5
    %v7739 = vsel %vm531, %v7736, %v7738
    %v7740 = vrot.slane %v6235, 5
    %v7741 = vsel %vm531, %v7738, %v7740
    %v7742 = vrot.slane %v6237, 5
    %v7743 = vsel %vm531, %v7740, %v7742
    %v7744 = vrot.slane %v6239, 5
    %v7745 = vsel %vm531, %v7742, %v7744
    %v7746 = vrot.slane %v6241, 5
    %v7747 = vsel %vm531, %v7744, %v7746
    %v7748 = vrot.slane %v6377, 5
    %v7749 = vsel %vm531, %v7746, %v7748
    %v7750 = vrot.slane %v6374, 5
    %v7751 = vrot.slane %v6244, 5
    %v7752 = vsel %vm531, %v7750, %v7751
    %v7753 = vrot.slane %v6246, 5
    %v7754 = vsel %vm531, %v7751, %v7753
    %v7755 = vrot.slane %v6248, 5
    %v7756 = vsel %vm531, %v7753, %v7755
    %v7757 = vrot.slane %v6250, 5
    %v7758 = vsel %vm531, %v7755, %v7757
    %v7759 = vrot.slane %v6252, 5
    %v7760 = vsel %vm531, %v7757, %v7759
    %v7761 = vrot.slane %v6254, 5
    %v7762 = vsel %vm531, %v7759, %v7761
    %v7763 = vrot.slane %v6256, 5
    %v7764 = vsel %vm531, %v7761, %v7763
    %v7765 = vrot.slane %v6258, 5
    %v7766 = vsel %vm531, %v7763, %v7765
    %v7767 = vrot.slane %v6260, 5
    %v7768 = vsel %vm531, %v7765, %v7767
    %v7769 = vrot.slane %v6262, 5
    %v7770 = vsel %vm531, %v7767, %v7769
    %v7771 = vrot.slane %v6264, 5
    %v7772 = vsel %vm531, %v7769, %v7771
    %v7773 = vrot.slane %v6266, 5
    %v7774 = vsel %vm531, %v7771, %v7773
    %v7775 = vrot.slane %v6268, 5
    %v7776 = vsel %vm531, %v7773, %v7775
    %v7777 = vrot.slane %v6270, 5
    %v7778 = vsel %vm531, %v7775, %v7777
    %v7779 = vrot.slane %v6272, 5
    %v7780 = vsel %vm531, %v7777, %v7779
    %v7781 = vrot.slane %v6378, 5
    %v7782 = vsel %vm531, %v7779, %v7781
    %v7783 = vrot.slane %v6375, 5
    %v7784 = vrot.slane %v6275, 5
    %v7785 = vsel %vm531, %v7783, %v7784
    %v7786 = vrot.slane %v6277, 5
    %v7787 = vsel %vm531, %v7784, %v7786
    %v7788 = vrot.slane %v6279, 5
    %v7789 = vsel %vm531, %v7786, %v7788
    %v7790 = vrot.slane %v6281, 5
    %v7791 = vsel %vm531, %v7788, %v7790
    %v7792 = vrot.slane %v6283, 5
    %v7793 = vsel %vm531, %v7790, %v7792
    %v7794 = vrot.slane %v6285, 5
    %v7795 = vsel %vm531, %v7792, %v7794
    %v7796 = vrot.slane %v6287, 5
    %v7797 = vsel %vm531, %v7794, %v7796
    %v7798 = vrot.slane %v6289, 5
    %v7799 = vsel %vm531, %v7796, %v7798
    %v7800 = vrot.slane %v6291, 5
    %v7801 = vsel %vm531, %v7798, %v7800
    %v7802 = vrot.slane %v6293, 5
    %v7803 = vsel %vm531, %v7800, %v7802
    %v7804 = vrot.slane %v6295, 5
    %v7805 = vsel %vm531, %v7802, %v7804
    %v7806 = vrot.slane %v6297, 5
    %v7807 = vsel %vm531, %v7804, %v7806
    %v7808 = vrot.slane %v6299, 5
    %v7809 = vsel %vm531, %v7806, %v7808
    %v7810 = vrot.slane %v6301, 5
    %v7811 = vsel %vm531, %v7808, %v7810
    %v7812 = vrot.slane %v6303, 5
    %v7813 = vsel %vm531, %v7810, %v7812
    %v7814 = vrot.slane %v6379, 5
    %v7815 = vsel %vm531, %v7812, %v7814
    %7816 = vrot.lane.b32.xlu0 %v7686, 122
    %v7817 = vpop.permute.xlu0 %7816
    %7818 = vrot.lane.b32.xlu0 %v7688, 122
    %v7819 = vpop.permute.xlu0 %7818
    %7820 = vrot.lane.b32.xlu0 %v7690, 122
    %v7821 = vpop.permute.xlu0 %7820
    %7822 = vrot.lane.b32.xlu0 %v7692, 122
    %v7823 = vpop.permute.xlu0 %7822
    %7824 = vrot.lane.b32.xlu0 %v7694, 122
    %v7825 = vpop.permute.xlu0 %7824
    %7826 = vrot.lane.b32.xlu0 %v7696, 122
    %v7827 = vpop.permute.xlu0 %7826
    %7828 = vrot.lane.b32.xlu0 %v7698, 122
    %v7829 = vpop.permute.xlu0 %7828
    %7830 = vrot.lane.b32.xlu0 %v7700, 122
    %v7831 = vpop.permute.xlu0 %7830
    %7832 = vrot.lane.b32.xlu0 %v7702, 122
    %v7833 = vpop.permute.xlu0 %7832
    %7834 = vrot.lane.b32.xlu0 %v7704, 122
    %v7835 = vpop.permute.xlu0 %7834
    %7836 = vrot.lane.b32.xlu0 %v7706, 122
    %v7837 = vpop.permute.xlu0 %7836
    %7838 = vrot.lane.b32.xlu0 %v7708, 122
    %v7839 = vpop.permute.xlu0 %7838
    %7840 = vrot.lane.b32.xlu0 %v7710, 122
    %v7841 = vpop.permute.xlu0 %7840
    %7842 = vrot.lane.b32.xlu0 %v7712, 122
    %v7843 = vpop.permute.xlu0 %7842
    %7844 = vrot.lane.b32.xlu0 %v7714, 122
    %v7845 = vpop.permute.xlu0 %7844
    %7846 = vrot.lane.b32.xlu0 %v7716, 122
    %v7847 = vpop.permute.xlu0 %7846
    %7848 = vrot.lane.b32.xlu0 %v7719, 122
    %v7849 = vpop.permute.xlu0 %7848
    %7850 = vrot.lane.b32.xlu0 %v7721, 122
    %v7851 = vpop.permute.xlu0 %7850
    %7852 = vrot.lane.b32.xlu0 %v7723, 122
    %v7853 = vpop.permute.xlu0 %7852
    %7854 = vrot.lane.b32.xlu0 %v7725, 122
    %v7855 = vpop.permute.xlu0 %7854
    %7856 = vrot.lane.b32.xlu0 %v7727, 122
    %v7857 = vpop.permute.xlu0 %7856
    %7858 = vrot.lane.b32.xlu0 %v7729, 122
    %v7859 = vpop.permute.xlu0 %7858
    %7860 = vrot.lane.b32.xlu0 %v7731, 122
    %v7861 = vpop.permute.xlu0 %7860
    %7862 = vrot.lane.b32.xlu0 %v7733, 122
    %v7863 = vpop.permute.xlu0 %7862
    %7864 = vrot.lane.b32.xlu0 %v7735, 122
    %v7865 = vpop.permute.xlu0 %7864
    %7866 = vrot.lane.b32.xlu0 %v7737, 122
    %v7867 = vpop.permute.xlu0 %7866
    %7868 = vrot.lane.b32.xlu0 %v7739, 122
    %v7869 = vpop.permute.xlu0 %7868
    %7870 = vrot.lane.b32.xlu0 %v7741, 122
    %v7871 = vpop.permute.xlu0 %7870
    %7872 = vrot.lane.b32.xlu0 %v7743, 122
    %v7873 = vpop.permute.xlu0 %7872
    %7874 = vrot.lane.b32.xlu0 %v7745, 122
    %v7875 = vpop.permute.xlu0 %7874
    %7876 = vrot.lane.b32.xlu0 %v7747, 122
    %v7877 = vpop.permute.xlu0 %7876
    %7878 = vrot.lane.b32.xlu0 %v7749, 122
    %v7879 = vpop.permute.xlu0 %7878
    %7880 = vrot.lane.b32.xlu0 %v7752, 122
    %v7881 = vpop.permute.xlu0 %7880
    %7882 = vrot.lane.b32.xlu0 %v7754, 122
    %v7883 = vpop.permute.xlu0 %7882
    %7884 = vrot.lane.b32.xlu0 %v7756, 122
    %v7885 = vpop.permute.xlu0 %7884
    %7886 = vrot.lane.b32.xlu0 %v7758, 122
    %v7887 = vpop.permute.xlu0 %7886
    %7888 = vrot.lane.b32.xlu0 %v7760, 122
    %v7889 = vpop.permute.xlu0 %7888
    %7890 = vrot.lane.b32.xlu0 %v7762, 122
    %v7891 = vpop.permute.xlu0 %7890
    %7892 = vrot.lane.b32.xlu0 %v7764, 122
    %v7893 = vpop.permute.xlu0 %7892
    %7894 = vrot.lane.b32.xlu0 %v7766, 122
    %v7895 = vpop.permute.xlu0 %7894
    %7896 = vrot.lane.b32.xlu0 %v7768, 122
    %v7897 = vpop.permute.xlu0 %7896
    %7898 = vrot.lane.b32.xlu0 %v7770, 122
    %v7899 = vpop.permute.xlu0 %7898
    %7900 = vrot.lane.b32.xlu0 %v7772, 122
    %v7901 = vpop.permute.xlu0 %7900
    %7902 = vrot.lane.b32.xlu0 %v7774, 122
    %v7903 = vpop.permute.xlu0 %7902
    %7904 = vrot.lane.b32.xlu0 %v7776, 122
    %v7905 = vpop.permute.xlu0 %7904
    %7906 = vrot.lane.b32.xlu0 %v7778, 122
    %v7907 = vpop.permute.xlu0 %7906
    %7908 = vrot.lane.b32.xlu0 %v7780, 122
    %v7909 = vpop.permute.xlu0 %7908
    %7910 = vrot.lane.b32.xlu0 %v7782, 122
    %v7911 = vpop.permute.xlu0 %7910
    %7912 = vrot.lane.b32.xlu0 %v7785, 122
    %v7913 = vpop.permute.xlu0 %7912
    %7914 = vrot.lane.b32.xlu0 %v7787, 122
    %v7915 = vpop.permute.xlu0 %7914
    %7916 = vrot.lane.b32.xlu0 %v7789, 122
    %v7917 = vpop.permute.xlu0 %7916
    %7918 = vrot.lane.b32.xlu0 %v7791, 122
    %v7919 = vpop.permute.xlu0 %7918
    %7920 = vrot.lane.b32.xlu0 %v7793, 122
    %v7921 = vpop.permute.xlu0 %7920
    %7922 = vrot.lane.b32.xlu0 %v7795, 122
    %v7923 = vpop.permute.xlu0 %7922
    %7924 = vrot.lane.b32.xlu0 %v7797, 122
    %v7925 = vpop.permute.xlu0 %7924
    %7926 = vrot.lane.b32.xlu0 %v7799, 122
    %v7927 = vpop.permute.xlu0 %7926
    %7928 = vrot.lane.b32.xlu0 %v7801, 122
    %v7929 = vpop.permute.xlu0 %7928
    %7930 = vrot.lane.b32.xlu0 %v7803, 122
    %v7931 = vpop.permute.xlu0 %7930
    %7932 = vrot.lane.b32.xlu0 %v7805, 122
    %v7933 = vpop.permute.xlu0 %7932
    %7934 = vrot.lane.b32.xlu0 %v7807, 122
    %v7935 = vpop.permute.xlu0 %7934
    %7936 = vrot.lane.b32.xlu0 %v7809, 122
    %v7937 = vpop.permute.xlu0 %7936
    %7938 = vrot.lane.b32.xlu0 %v7811, 122
    %v7939 = vpop.permute.xlu0 %7938
    %7940 = vrot.lane.b32.xlu0 %v7813, 122
    %v7941 = vpop.permute.xlu0 %7940
    %7942 = vrot.lane.b32.xlu0 %v7815, 122
    %v7943 = vpop.permute.xlu0 %7942
    %v8008 = vsel %vm4443, %v6372, %v6521
    %v8009 = vsel %vm4443, %v6182, %v6523
    %v8010 = vsel %vm4443, %v6184, %v6525
    %v8011 = vsel %vm4443, %v6186, %v6527
    %v8012 = vsel %vm4443, %v6188, %v6529
    %v8013 = vsel %vm4443, %v6190, %v6531
    %v8014 = vsel %vm4443, %v6192, %v6533
    %v8015 = vsel %vm4443, %v6194, %v6535
    %v8016 = vsel %vm4443, %v6196, %v6537
    %v8017 = vsel %vm4443, %v6198, %v6539
    %v8018 = vsel %vm4443, %v6200, %v6541
    %v8019 = vsel %vm4443, %v6202, %v6543
    %v8020 = vsel %vm4443, %v6204, %v6545
    %v8021 = vsel %vm4443, %v6206, %v6547
    %v8022 = vsel %vm4443, %v6208, %v6549
    %v8023 = vsel %vm4443, %v6210, %v6551
    %v8024 = vsel %vm4443, %v6373, %v6553
    %v8025 = vsel %vm4443, %v6213, %v6555
    %v8026 = vsel %vm4443, %v6215, %v6557
    %v8027 = vsel %vm4443, %v6217, %v6559
    %v8028 = vsel %vm4443, %v6219, %v6561
    %v8029 = vsel %vm4443, %v6221, %v6563
    %v8030 = vsel %vm4443, %v6223, %v6565
    %v8031 = vsel %vm4443, %v6225, %v6567
    %v8032 = vsel %vm4443, %v6227, %v6569
    %v8033 = vsel %vm4443, %v6229, %v6571
    %v8034 = vsel %vm4443, %v6231, %v6573
    %v8035 = vsel %vm4443, %v6233, %v6575
    %v8036 = vsel %vm4443, %v6235, %v6577
    %v8037 = vsel %vm4443, %v6237, %v6579
    %v8038 = vsel %vm4443, %v6239, %v6581
    %v8039 = vsel %vm4443, %v6241, %v6583
    %v8040 = vsel %vm4443, %v6374, %v6585
    %v8041 = vsel %vm4443, %v6244, %v6587
    %v8042 = vsel %vm4443, %v6246, %v6589
    %v8043 = vsel %vm4443, %v6248, %v6591
    %v8044 = vsel %vm4443, %v6250, %v6593
    %v8045 = vsel %vm4443, %v6252, %v6595
    %v8046 = vsel %vm4443, %v6254, %v6597
    %v8047 = vsel %vm4443, %v6256, %v6599
    %v8048 = vsel %vm4443, %v6258, %v6601
    %v8049 = vsel %vm4443, %v6260, %v6603
    %v8050 = vsel %vm4443, %v6262, %v6605
    %v8051 = vsel %vm4443, %v6264, %v6607
    %v8052 = vsel %vm4443, %v6266, %v6609
    %v8053 = vsel %vm4443, %v6268, %v6611
    %v8054 = vsel %vm4443, %v6270, %v6613
    %v8055 = vsel %vm4443, %v6272, %v6615
    %v8056 = vsel %vm4443, %v6375, %v6617
    %v8057 = vsel %vm4443, %v6275, %v6619
    %v8058 = vsel %vm4443, %v6277, %v6621
    %v8059 = vsel %vm4443, %v6279, %v6623
    %v8060 = vsel %vm4443, %v6281, %v6625
    %v8061 = vsel %vm4443, %v6283, %v6627
    %v8062 = vsel %vm4443, %v6285, %v6629
    %v8063 = vsel %vm4443, %v6287, %v6631
    %v8064 = vsel %vm4443, %v6289, %v6633
    %v8065 = vsel %vm4443, %v6291, %v6635
    %v8066 = vsel %vm4443, %v6293, %v6637
    %v8067 = vsel %vm4443, %v6295, %v6639
    %v8068 = vsel %vm4443, %v6297, %v6641
    %v8069 = vsel %vm4443, %v6299, %v6643
    %v8070 = vsel %vm4443, %v6301, %v6645
    %v8071 = vsel %vm4443, %v6303, %v6647
    %v8072 = vsel %vm4508, %v8008, %v6845
    %v8073 = vsel %vm4508, %v8009, %v6847
    %v8074 = vsel %vm4508, %v8010, %v6849
    %v8075 = vsel %vm4508, %v8011, %v6851
    %v8076 = vsel %vm4508, %v8012, %v6853
    %v8077 = vsel %vm4508, %v8013, %v6855
    %v8078 = vsel %vm4508, %v8014, %v6857
    %v8079 = vsel %vm4508, %v8015, %v6859
    %v8080 = vsel %vm4508, %v8016, %v6861
    %v8081 = vsel %vm4508, %v8017, %v6863
    %v8082 = vsel %vm4508, %v8018, %v6865
    %v8083 = vsel %vm4508, %v8019, %v6867
    %v8084 = vsel %vm4508, %v8020, %v6869
    %v8085 = vsel %vm4508, %v8021, %v6871
    %v8086 = vsel %vm4508, %v8022, %v6873
    %v8087 = vsel %vm4508, %v8023, %v6875
    %v8088 = vsel %vm4508, %v8024, %v6877
    %v8089 = vsel %vm4508, %v8025, %v6879
    %v8090 = vsel %vm4508, %v8026, %v6881
    %v8091 = vsel %vm4508, %v8027, %v6883
    %v8092 = vsel %vm4508, %v8028, %v6885
    %v8093 = vsel %vm4508, %v8029, %v6887
    %v8094 = vsel %vm4508, %v8030, %v6889
    %v8095 = vsel %vm4508, %v8031, %v6891
    %v8096 = vsel %vm4508, %v8032, %v6893
    %v8097 = vsel %vm4508, %v8033, %v6895
    %v8098 = vsel %vm4508, %v8034, %v6897
    %v8099 = vsel %vm4508, %v8035, %v6899
    %v8100 = vsel %vm4508, %v8036, %v6901
    %v8101 = vsel %vm4508, %v8037, %v6903
    %v8102 = vsel %vm4508, %v8038, %v6905
    %v8103 = vsel %vm4508, %v8039, %v6907
    %v8104 = vsel %vm4508, %v8040, %v6909
    %v8105 = vsel %vm4508, %v8041, %v6911
    %v8106 = vsel %vm4508, %v8042, %v6913
    %v8107 = vsel %vm4508, %v8043, %v6915
    %v8108 = vsel %vm4508, %v8044, %v6917
    %v8109 = vsel %vm4508, %v8045, %v6919
    %v8110 = vsel %vm4508, %v8046, %v6921
    %v8111 = vsel %vm4508, %v8047, %v6923
    %v8112 = vsel %vm4508, %v8048, %v6925
    %v8113 = vsel %vm4508, %v8049, %v6927
    %v8114 = vsel %vm4508, %v8050, %v6929
    %v8115 = vsel %vm4508, %v8051, %v6931
    %v8116 = vsel %vm4508, %v8052, %v6933
    %v8117 = vsel %vm4508, %v8053, %v6935
    %v8118 = vsel %vm4508, %v8054, %v6937
    %v8119 = vsel %vm4508, %v8055, %v6939
    %v8120 = vsel %vm4508, %v8056, %v6941
    %v8121 = vsel %vm4508, %v8057, %v6943
    %v8122 = vsel %vm4508, %v8058, %v6945
    %v8123 = vsel %vm4508, %v8059, %v6947
    %v8124 = vsel %vm4508, %v8060, %v6949
    %v8125 = vsel %vm4508, %v8061, %v6951
    %v8126 = vsel %vm4508, %v8062, %v6953
    %v8127 = vsel %vm4508, %v8063, %v6955
    %v8128 = vsel %vm4508, %v8064, %v6957
    %v8129 = vsel %vm4508, %v8065, %v6959
    %v8130 = vsel %vm4508, %v8066, %v6961
    %v8131 = vsel %vm4508, %v8067, %v6963
    %v8132 = vsel %vm4508, %v8068, %v6965
    %v8133 = vsel %vm4508, %v8069, %v6967
    %v8134 = vsel %vm4508, %v8070, %v6969
    %v8135 = vsel %vm4508, %v8071, %v6971
    %v8136 = vsel %vm4573, %v6845, %v7169
    %v8137 = vsel %vm4573, %v6847, %v7171
    %v8138 = vsel %vm4573, %v6849, %v7173
    %v8139 = vsel %vm4573, %v6851, %v7175
    %v8140 = vsel %vm4573, %v6853, %v7177
    %v8141 = vsel %vm4573, %v6855, %v7179
    %v8142 = vsel %vm4573, %v6857, %v7181
    %v8143 = vsel %vm4573, %v6859, %v7183
    %v8144 = vsel %vm4573, %v6861, %v7185
    %v8145 = vsel %vm4573, %v6863, %v7187
    %v8146 = vsel %vm4573, %v6865, %v7189
    %v8147 = vsel %vm4573, %v6867, %v7191
    %v8148 = vsel %vm4573, %v6869, %v7193
    %v8149 = vsel %vm4573, %v6871, %v7195
    %v8150 = vsel %vm4573, %v6873, %v7197
    %v8151 = vsel %vm4573, %v6875, %v7199
    %v8152 = vsel %vm4573, %v6877, %v7201
    %v8153 = vsel %vm4573, %v6879, %v7203
    %v8154 = vsel %vm4573, %v6881, %v7205
    %v8155 = vsel %vm4573, %v6883, %v7207
    %v8156 = vsel %vm4573, %v6885, %v7209
    %v8157 = vsel %vm4573, %v6887, %v7211
    %v8158 = vsel %vm4573, %v6889, %v7213
    %v8159 = vsel %vm4573, %v6891, %v7215
    %v8160 = vsel %vm4573, %v6893, %v7217
    %v8161 = vsel %vm4573, %v6895, %v7219
    %v8162 = vsel %vm4573, %v6897, %v7221
    %v8163 = vsel %vm4573, %v6899, %v7223
    %v8164 = vsel %vm4573, %v6901, %v7225
    %v8165 = vsel %vm4573, %v6903, %v7227
    %v8166 = vsel %vm4573, %v6905, %v7229
    %v8167 = vsel %vm4573, %v6907, %v7231
    %v8168 = vsel %vm4573, %v6909, %v7233
    %v8169 = vsel %vm4573, %v6911, %v7235
    %v8170 = vsel %vm4573, %v6913, %v7237
    %v8171 = vsel %vm4573, %v6915, %v7239
    %v8172 = vsel %vm4573, %v6917, %v7241
    %v8173 = vsel %vm4573, %v6919, %v7243
    %v8174 = vsel %vm4573, %v6921, %v7245
    %v8175 = vsel %vm4573, %v6923, %v7247
    %v8176 = vsel %vm4573, %v6925, %v7249
    %v8177 = vsel %vm4573, %v6927, %v7251
    %v8178 = vsel %vm4573, %v6929, %v7253
    %v8179 = vsel %vm4573, %v6931, %v7255
    %v8180 = vsel %vm4573, %v6933, %v7257
    %v8181 = vsel %vm4573, %v6935, %v7259
    %v8182 = vsel %vm4573, %v6937, %v7261
    %v8183 = vsel %vm4573, %v6939, %v7263
    %v8184 = vsel %vm4573, %v6941, %v7265
    %v8185 = vsel %vm4573, %v6943, %v7267
    %v8186 = vsel %vm4573, %v6945, %v7269
    %v8187 = vsel %vm4573, %v6947, %v7271
    %v8188 = vsel %vm4573, %v6949, %v7273
    %v8189 = vsel %vm4573, %v6951, %v7275
    %v8190 = vsel %vm4573, %v6953, %v7277
    %v8191 = vsel %vm4573, %v6955, %v7279
    %v8192 = vsel %vm4573, %v6957, %v7281
    %v8193 = vsel %vm4573, %v6959, %v7283
    %v8194 = vsel %vm4573, %v6961, %v7285
    %v8195 = vsel %vm4573, %v6963, %v7287
    %v8196 = vsel %vm4573, %v6965, %v7289
    %v8197 = vsel %vm4573, %v6967, %v7291
    %v8198 = vsel %vm4573, %v6969, %v7293
    %v8199 = vsel %vm4573, %v6971, %v7295
    %v8200 = vsel %vm4638, %v8136, %v7493
    %v8201 = vsel %vm4638, %v8137, %v7495
    %v8202 = vsel %vm4638, %v8138, %v7497
    %v8203 = vsel %vm4638, %v8139, %v7499
    %v8204 = vsel %vm4638, %v8140, %v7501
    %v8205 = vsel %vm4638, %v8141, %v7503
    %v8206 = vsel %vm4638, %v8142, %v7505
    %v8207 = vsel %vm4638, %v8143, %v7507
    %v8208 = vsel %vm4638, %v8144, %v7509
    %v8209 = vsel %vm4638, %v8145, %v7511
    %v8210 = vsel %vm4638, %v8146, %v7513
    %v8211 = vsel %vm4638, %v8147, %v7515
    %v8212 = vsel %vm4638, %v8148, %v7517
    %v8213 = vsel %vm4638, %v8149, %v7519
    %v8214 = vsel %vm4638, %v8150, %v7521
    %v8215 = vsel %vm4638, %v8151, %v7523
    %v8216 = vsel %vm4638, %v8152, %v7525
    %v8217 = vsel %vm4638, %v8153, %v7527
    %v8218 = vsel %vm4638, %v8154, %v7529
    %v8219 = vsel %vm4638, %v8155, %v7531
    %v8220 = vsel %vm4638, %v8156, %v7533
    %v8221 = vsel %vm4638, %v8157, %v7535
    %v8222 = vsel %vm4638, %v8158, %v7537
    %v8223 = vsel %vm4638, %v8159, %v7539
    %v8224 = vsel %vm4638, %v8160, %v7541
    %v8225 = vsel %vm4638, %v8161, %v7543
    %v8226 = vsel %vm4638, %v8162, %v7545
    %v8227 = vsel %vm4638, %v8163, %v7547
    %v8228 = vsel %vm4638, %v8164, %v7549
    %v8229 = vsel %vm4638, %v8165, %v7551
    %v8230 = vsel %vm4638, %v8166, %v7553
    %v8231 = vsel %vm4638, %v8167, %v7555
    %v8232 = vsel %vm4638, %v8168, %v7557
    %v8233 = vsel %vm4638, %v8169, %v7559
    %v8234 = vsel %vm4638, %v8170, %v7561
    %v8235 = vsel %vm4638, %v8171, %v7563
    %v8236 = vsel %vm4638, %v8172, %v7565
    %v8237 = vsel %vm4638, %v8173, %v7567
    %v8238 = vsel %vm4638, %v8174, %v7569
    %v8239 = vsel %vm4638, %v8175, %v7571
    %v8240 = vsel %vm4638, %v8176, %v7573
    %v8241 = vsel %vm4638, %v8177, %v7575
    %v8242 = vsel %vm4638, %v8178, %v7577
    %v8243 = vsel %vm4638, %v8179, %v7579
    %v8244 = vsel %vm4638, %v8180, %v7581
    %v8245 = vsel %vm4638, %v8181, %v7583
    %v8246 = vsel %vm4638, %v8182, %v7585
    %v8247 = vsel %vm4638, %v8183, %v7587
    %v8248 = vsel %vm4638, %v8184, %v7589
    %v8249 = vsel %vm4638, %v8185, %v7591
    %v8250 = vsel %vm4638, %v8186, %v7593
    %v8251 = vsel %vm4638, %v8187, %v7595
    %v8252 = vsel %vm4638, %v8188, %v7597
    %v8253 = vsel %vm4638, %v8189, %v7599
    %v8254 = vsel %vm4638, %v8190, %v7601
    %v8255 = vsel %vm4638, %v8191, %v7603
    %v8256 = vsel %vm4638, %v8192, %v7605
    %v8257 = vsel %vm4638, %v8193, %v7607
    %v8258 = vsel %vm4638, %v8194, %v7609
    %v8259 = vsel %vm4638, %v8195, %v7611
    %v8260 = vsel %vm4638, %v8196, %v7613
    %v8261 = vsel %vm4638, %v8197, %v7615
    %v8262 = vsel %vm4638, %v8198, %v7617
    %v8263 = vsel %vm4638, %v8199, %v7619
    %v8264 = vsel %vm4703, %v8200, %v7817
    %v8265 = vsel %vm4703, %v8201, %v7819
    %v8266 = vsel %vm4703, %v8202, %v7821
    %v8267 = vsel %vm4703, %v8203, %v7823
    %v8268 = vsel %vm4703, %v8204, %v7825
    %v8269 = vsel %vm4703, %v8205, %v7827
    %v8270 = vsel %vm4703, %v8206, %v7829
    %v8271 = vsel %vm4703, %v8207, %v7831
    %v8272 = vsel %vm4703, %v8208, %v7833
    %v8273 = vsel %vm4703, %v8209, %v7835
    %v8274 = vsel %vm4703, %v8210, %v7837
    %v8275 = vsel %vm4703, %v8211, %v7839
    %v8276 = vsel %vm4703, %v8212, %v7841
    %v8277 = vsel %vm4703, %v8213, %v7843
    %v8278 = vsel %vm4703, %v8214, %v7845
    %v8279 = vsel %vm4703, %v8215, %v7847
    %v8280 = vsel %vm4703, %v8216, %v7849
    %v8281 = vsel %vm4703, %v8217, %v7851
    %v8282 = vsel %vm4703, %v8218, %v7853
    %v8283 = vsel %vm4703, %v8219, %v7855
    %v8284 = vsel %vm4703, %v8220, %v7857
    %v8285 = vsel %vm4703, %v8221, %v7859
    %v8286 = vsel %vm4703, %v8222, %v7861
    %v8287 = vsel %vm4703, %v8223, %v7863
    %v8288 = vsel %vm4703, %v8224, %v7865
    %v8289 = vsel %vm4703, %v8225, %v7867
    %v8290 = vsel %vm4703, %v8226, %v7869
    %v8291 = vsel %vm4703, %v8227, %v7871
    %v8292 = vsel %vm4703, %v8228, %v7873
    %v8293 = vsel %vm4703, %v8229, %v7875
    %v8294 = vsel %vm4703, %v8230, %v7877
    %v8295 = vsel %vm4703, %v8231, %v7879
    %v8296 = vsel %vm4703, %v8232, %v7881
    %v8297 = vsel %vm4703, %v8233, %v7883
    %v8298 = vsel %vm4703, %v8234, %v7885
    %v8299 = vsel %vm4703, %v8235, %v7887
    %v8300 = vsel %vm4703, %v8236, %v7889
    %v8301 = vsel %vm4703, %v8237, %v7891
    %v8302 = vsel %vm4703, %v8238, %v7893
    %v8303 = vsel %vm4703, %v8239, %v7895
    %v8304 = vsel %vm4703, %v8240, %v7897
    %v8305 = vsel %vm4703, %v8241, %v7899
    %v8306 = vsel %vm4703, %v8242, %v7901
    %v8307 = vsel %vm4703, %v8243, %v7903
    %v8308 = vsel %vm4703, %v8244, %v7905
    %v8309 = vsel %vm4703, %v8245, %v7907
    %v8310 = vsel %vm4703, %v8246, %v7909
    %v8311 = vsel %vm4703, %v8247, %v7911
    %v8312 = vsel %vm4703, %v8248, %v7913
    %v8313 = vsel %vm4703, %v8249, %v7915
    %v8314 = vsel %vm4703, %v8250, %v7917
    %v8315 = vsel %vm4703, %v8251, %v7919
    %v8316 = vsel %vm4703, %v8252, %v7921
    %v8317 = vsel %vm4703, %v8253, %v7923
    %v8318 = vsel %vm4703, %v8254, %v7925
    %v8319 = vsel %vm4703, %v8255, %v7927
    %v8320 = vsel %vm4703, %v8256, %v7929
    %v8321 = vsel %vm4703, %v8257, %v7931
    %v8322 = vsel %vm4703, %v8258, %v7933
    %v8323 = vsel %vm4703, %v8259, %v7935
    %v8324 = vsel %vm4703, %v8260, %v7937
    %v8325 = vsel %vm4703, %v8261, %v7939
    %v8326 = vsel %vm4703, %v8262, %v7941
    %v8327 = vsel %vm4703, %v8263, %v7943
    %v8328 = vpack.c.bf16 %v8073, %v8072
    %v8329 = vpack.c.bf16 %v8265, %v8264
    %v8330 = vpack.c.bf16 %v7819, %v7817
    %v8331 = vpack.c.bf16 %v8075, %v8074
    %v8332 = vpack.c.bf16 %v8267, %v8266
    %v8333 = vpack.c.bf16 %v7823, %v7821
    %v8334 = vpack.c.bf16 %v8077, %v8076
    %v8335 = vpack.c.bf16 %v8269, %v8268
    %v8336 = vpack.c.bf16 %v7827, %v7825
    %v8337 = vpack.c.bf16 %v8079, %v8078
    %v8338 = vpack.c.bf16 %v8271, %v8270
    %v8339 = vpack.c.bf16 %v7831, %v7829
    %v8340 = vpack.c.bf16 %v8081, %v8080
    %v8341 = vpack.c.bf16 %v8273, %v8272
    %v8342 = vpack.c.bf16 %v7835, %v7833
    %v8343 = vpack.c.bf16 %v8083, %v8082
    %v8344 = vpack.c.bf16 %v8275, %v8274
    %v8345 = vpack.c.bf16 %v7839, %v7837
    %v8346 = vpack.c.bf16 %v8085, %v8084
    %v8347 = vpack.c.bf16 %v8277, %v8276
    %v8348 = vpack.c.bf16 %v7843, %v7841
    %v8349 = vpack.c.bf16 %v8087, %v8086
    %v8350 = vpack.c.bf16 %v8279, %v8278
    %v8351 = vpack.c.bf16 %v7847, %v7845
    %v8352 = vpack.c.bf16 %v8089, %v8088
    %v8353 = vpack.c.bf16 %v8281, %v8280
    %v8354 = vpack.c.bf16 %v7851, %v7849
    %v8355 = vpack.c.bf16 %v8091, %v8090
    %v8356 = vpack.c.bf16 %v8283, %v8282
    %v8357 = vpack.c.bf16 %v7855, %v7853
    %v8358 = vpack.c.bf16 %v8093, %v8092
    %v8359 = vpack.c.bf16 %v8285, %v8284
    %v8360 = vpack.c.bf16 %v7859, %v7857
    %v8361 = vpack.c.bf16 %v8095, %v8094
    %v8362 = vpack.c.bf16 %v8287, %v8286
    %v8363 = vpack.c.bf16 %v7863, %v7861
    %v8364 = vpack.c.bf16 %v8097, %v8096
    %v8365 = vpack.c.bf16 %v8289, %v8288
    %v8366 = vpack.c.bf16 %v7867, %v7865
    %v8367 = vpack.c.bf16 %v8099, %v8098
    %v8368 = vpack.c.bf16 %v8291, %v8290
    %v8369 = vpack.c.bf16 %v7871, %v7869
    %v8370 = vpack.c.bf16 %v8101, %v8100
    %v8371 = vpack.c.bf16 %v8293, %v8292
    %v8372 = vpack.c.bf16 %v7875, %v7873
    %v8373 = vpack.c.bf16 %v8103, %v8102
    %v8374 = vpack.c.bf16 %v8295, %v8294
    %v8375 = vpack.c.bf16 %v7879, %v7877
    %v8376 = vpack.c.bf16 %v8105, %v8104
    %v8377 = vpack.c.bf16 %v8297, %v8296
    %v8378 = vpack.c.bf16 %v7883, %v7881
    %v8379 = vpack.c.bf16 %v8107, %v8106
    %v8380 = vpack.c.bf16 %v8299, %v8298
    %v8381 = vpack.c.bf16 %v7887, %v7885
    %v8382 = vpack.c.bf16 %v8109, %v8108
    %v8383 = vpack.c.bf16 %v8301, %v8300
    %v8384 = vpack.c.bf16 %v7891, %v7889
    %v8385 = vpack.c.bf16 %v8111, %v8110
    %v8386 = vpack.c.bf16 %v8303, %v8302
    %v8387 = vpack.c.bf16 %v7895, %v7893
    %v8388 = vpack.c.bf16 %v8113, %v8112
    %v8389 = vpack.c.bf16 %v8305, %v8304
    %v8390 = vpack.c.bf16 %v7899, %v7897
    %v8391 = vpack.c.bf16 %v8115, %v8114
    %v8392 = vpack.c.bf16 %v8307, %v8306
    %v8393 = vpack.c.bf16 %v7903, %v7901
    %v8394 = vpack.c.bf16 %v8117, %v8116
    %v8395 = vpack.c.bf16 %v8309, %v8308
    %v8396 = vpack.c.bf16 %v7907, %v7905
    %v8397 = vpack.c.bf16 %v8119, %v8118
    %v8398 = vpack.c.bf16 %v8311, %v8310
    %v8399 = vpack.c.bf16 %v7911, %v7909
    %v8400 = vpack.c.bf16 %v8121, %v8120
    %v8401 = vpack.c.bf16 %v8313, %v8312
    %v8402 = vpack.c.bf16 %v7915, %v7913
    %v8403 = vpack.c.bf16 %v8123, %v8122
    %v8404 = vpack.c.bf16 %v8315, %v8314
    %v8405 = vpack.c.bf16 %v7919, %v7917
    %v8406 = vpack.c.bf16 %v8125, %v8124
    %v8407 = vpack.c.bf16 %v8317, %v8316
    %v8408 = vpack.c.bf16 %v7923, %v7921
    %v8409 = vpack.c.bf16 %v8127, %v8126
    %v8410 = vpack.c.bf16 %v8319, %v8318
    %v8411 = vpack.c.bf16 %v7927, %v7925
    %v8412 = vpack.c.bf16 %v8129, %v8128
    %v8413 = vpack.c.bf16 %v8321, %v8320
    %v8414 = vpack.c.bf16 %v7931, %v7929
    %v8415 = vpack.c.bf16 %v8131, %v8130
    %v8416 = vpack.c.bf16 %v8323, %v8322
    %v8417 = vpack.c.bf16 %v7935, %v7933
    %v8418 = vpack.c.bf16 %v8133, %v8132
    %v8419 = vpack.c.bf16 %v8325, %v8324
    %v8420 = vpack.c.bf16 %v7939, %v7937
    %v8421 = vpack.c.bf16 %v8135, %v8134
    %v8422 = vpack.c.bf16 %v8327, %v8326
    %v8423 = vpack.c.bf16 %v7943, %v7941
    %v8424 = vld [vmem:[%s5] sm:$0xf]
    %v8425 = vld [vmem:[%s5 + $0x4] sm:$0xf]
    %v8426 = vld [vmem:[%s5 + $0x8] sm:$0xf]
    %v8427 = vld [vmem:[%s5 + $0xc] sm:$0xf]
    %v8428 = vld [vmem:[%s5 + $0x10] sm:$0xf]
    %v8429 = vld [vmem:[%s5 + $0x14] sm:$0xf]
    %v8430 = vld [vmem:[%s5 + $0x18] sm:$0xf]
    %v8431 = vld [vmem:[%s5 + $0x1c] sm:$0xf]
    %v8432 = vld [vmem:[%s5 + $0x20] sm:$0xf]
    %v8433 = vld [vmem:[%s5 + $0x24] sm:$0xf]
    %v8434 = vld [vmem:[%s5 + $0x28] sm:$0xf]
    %v8435 = vld [vmem:[%s5 + $0x2c] sm:$0xf]
    %v8436 = vld [vmem:[%s5 + $0x30] sm:$0xf]
    %v8437 = vld [vmem:[%s5 + $0x34] sm:$0xf]
    %v8438 = vld [vmem:[%s5 + $0x38] sm:$0xf]
    %v8439 = vld [vmem:[%s5 + $0x3c] sm:$0xf]
    %v8440 = vld [vmem:[%s5 + $0x40] sm:$0xf]
    %v8441 = vld [vmem:[%s5 + $0x44] sm:$0xf]
    %v8442 = vld [vmem:[%s5 + $0x48] sm:$0xf]
    %v8443 = vld [vmem:[%s5 + $0x4c] sm:$0xf]
    %v8444 = vld [vmem:[%s5 + $0x50] sm:$0xf]
    %v8445 = vld [vmem:[%s5 + $0x54] sm:$0xf]
    %v8446 = vld [vmem:[%s5 + $0x58] sm:$0xf]
    %v8447 = vld [vmem:[%s5 + $0x5c] sm:$0xf]
    %v8448 = vld [vmem:[%s5 + $0x60] sm:$0xf]
    %v8449 = vld [vmem:[%s5 + $0x64] sm:$0xf]
    %v8450 = vld [vmem:[%s5 + $0x68] sm:$0xf]
    %v8451 = vld [vmem:[%s5 + $0x6c] sm:$0xf]
    %v8452 = vld [vmem:[%s5 + $0x70] sm:$0xf]
    %v8453 = vld [vmem:[%s5 + $0x74] sm:$0xf]
    %v8454 = vld [vmem:[%s5 + $0x78] sm:$0xf]
    %v8455 = vld [vmem:[%s5 + $0x7c] sm:$0xf]
    %v8456 = vld [vmem:[%s5 + $0x80] sm:$0xf]
    %v8457 = vld [vmem:[%s5 + $0x84] sm:$0xf]
    %v8458 = vld [vmem:[%s5 + $0x88] sm:$0xf]
    %v8459 = vld [vmem:[%s5 + $0x8c] sm:$0xf]
    %v8460 = vld [vmem:[%s5 + $0x90] sm:$0xf]
    %v8461 = vld [vmem:[%s5 + $0x94] sm:$0x3]
    %v8462 = vld [vmem:[#allocation6] sm:$0x1]
    %v8464 = vlaneseq
    %v8465 = vshrl.u32 %v8464, 7
    %v8466 = vsub.s32 0, %v8465
    %v8467 = vrot.slane %v8462, %v8466
    %v8507 = vunpack.c.l.b16 %v8424
    %v8508 = vunpack.c.l.b16 %v8425
    %v8509 = vunpack.c.l.b16 %v8426
    %v8510 = vunpack.c.l.b16 %v8427
    %v8511 = vunpack.c.l.b16 %v8428
    %v8512 = vunpack.c.l.b16 %v8429
    %v8513 = vunpack.c.l.b16 %v8430
    %v8514 = vunpack.c.l.b16 %v8431
    %v8515 = vunpack.c.l.b16 %v8432
    %v8516 = vunpack.c.l.b16 %v8433
    %v8517 = vunpack.c.l.b16 %v8434
    %v8518 = vunpack.c.l.b16 %v8435
    %v8519 = vunpack.c.l.b16 %v8436
    %v8520 = vunpack.c.l.b16 %v8437
    %v8521 = vunpack.c.l.b16 %v8438
    %v8522 = vunpack.c.l.b16 %v8439
    %v8523 = vunpack.c.l.b16 %v8440
    %v8524 = vunpack.c.l.b16 %v8441
    %v8525 = vunpack.c.l.b16 %v8442
    %v8526 = vunpack.c.l.b16 %v8443
    %v8527 = vunpack.c.l.b16 %v8444
    %v8528 = vunpack.c.l.b16 %v8445
    %v8529 = vunpack.c.l.b16 %v8446
    %v8530 = vunpack.c.l.b16 %v8447
    %v8531 = vunpack.c.l.b16 %v8448
    %v8532 = vunpack.c.l.b16 %v8449
    %v8533 = vunpack.c.l.b16 %v8450
    %v8534 = vunpack.c.l.b16 %v8451
    %v8535 = vunpack.c.l.b16 %v8452
    %v8536 = vunpack.c.l.b16 %v8453
    %v8537 = vunpack.c.l.b16 %v8454
    %v8538 = vunpack.c.l.b16 %v8455
    %v8539 = vunpack.c.l.b16 %v8456
    %v8540 = vunpack.c.l.b16 %v8457
    %v8541 = vunpack.c.l.b16 %v8458
    %v8542 = vunpack.c.l.b16 %v8459
    %v8543 = vunpack.c.l.b16 %v8460
    %v8544 = vunpack.c.l.b16 %v8461
    %v8545 = vpack.c.b16 %v8508, %v8507
    %v8546 = vpack.c.b16 %v8510, %v8509
    %v8547 = vpack.c.b16 %v8512, %v8511
    %v8548 = vpack.c.b16 %v8514, %v8513
    %v8549 = vpack.c.b16 %v8516, %v8515
    %v8550 = vpack.c.b16 %v8518, %v8517
    %v8551 = vpack.c.b16 %v8520, %v8519
    %v8552 = vpack.c.b16 %v8522, %v8521
    %v8553 = vpack.c.b16 %v8524, %v8523
    %v8554 = vpack.c.b16 %v8526, %v8525
    %v8555 = vpack.c.b16 %v8528, %v8527
    %v8556 = vpack.c.b16 %v8530, %v8529
    %v8557 = vpack.c.b16 %v8532, %v8531
    %v8558 = vpack.c.b16 %v8534, %v8533
    %v8559 = vpack.c.b16 %v8536, %v8535
    %v8560 = vpack.c.b16 %v8538, %v8537
    %v8561 = vpack.c.b16 %v8540, %v8539
    %v8562 = vpack.c.b16 %v8542, %v8541
    %v8563 = vpack.c.b16 %v8544, %v8543
    %v8583 = vsel %vm5022, %v8330, 0
    %v8586 = vsel %vm5022, %v8333, 0
    %v8589 = vsel %vm5022, %v8336, 0
    %v8592 = vsel %vm5022, %v8339, 0
    %v8595 = vsel %vm5022, %v8342, 0
    %v8598 = vsel %vm5022, %v8345, 0
    %v8601 = vsel %vm5022, %v8348, 0
    %v8604 = vsel %vm5022, %v8351, 0
    %v8607 = vsel %vm5022, %v8354, 0
    %v8610 = vsel %vm5022, %v8357, 0
    %v8613 = vsel %vm5022, %v8360, 0
    %v8616 = vsel %vm5022, %v8363, 0
    %v8619 = vsel %vm5022, %v8366, 0
    %v8622 = vsel %vm5022, %v8369, 0
    %v8625 = vsel %vm5022, %v8372, 0
    %v8628 = vsel %vm5022, %v8375, 0
    %v8631 = vsel %vm5022, %v8378, 0
    %v8634 = vsel %vm5022, %v8381, 0
    %v8637 = vsel %vm5022, %v8384, 0
    %v8640 = vsel %vm5022, %v8387, 0
    %v8643 = vsel %vm5022, %v8390, 0
    %v8646 = vsel %vm5022, %v8393, 0
    %v8649 = vsel %vm5022, %v8396, 0
    %v8652 = vsel %vm5022, %v8399, 0
    %v8655 = vsel %vm5022, %v8402, 0
    %v8658 = vsel %vm5022, %v8405, 0
    %v8661 = vsel %vm5022, %v8408, 0
    %v8664 = vsel %vm5022, %v8411, 0
    %v8667 = vsel %vm5022, %v8414, 0
    %v8670 = vsel %vm5022, %v8417, 0
    %v8673 = vsel %vm5022, %v8420, 0
    %v8676 = vsel %vm5022, %v8423, 0
    %v8679 = vsel %vm285, %v8563, 0
    %8681 = vmatprep.subr.bf16.mxu0 0
    %8682 = vmatpush1.bf16.msra.mxu0 %v8552
    %8683 = vmatprep.subr.bf16.mxu0 0
    %8684 = vmatpush1.bf16.msra.mxu0 %v8551
    %8685 = vmatprep.subr.bf16.mxu0 0
    %8686 = vmatpush1.bf16.msra.mxu0 %v8550
    %8687 = vmatprep.subr.bf16.mxu0 0
    %8688 = vmatpush1.bf16.msra.mxu0 %v8549
    %8689 = vmatprep.subr.bf16.mxu0 0
    %8690 = vmatpush1.bf16.msra.mxu0 %v8548
    %8691 = vmatprep.subr.bf16.mxu0 0
    %8692 = vmatpush1.bf16.msra.mxu0 %v8547
    %8693 = vmatprep.subr.bf16.mxu0 0
    %8694 = vmatpush1.bf16.msra.mxu0 %v8546
    %8695 = vmatprep.subr.bf16.mxu0 0
    %8696 = vmatpush1.bf16.msra.mxu0 %v8545
    %8697 = vmatprep.subr.bf16.mxu0 0
    %8698 = vmatpush2.bf16.msra.mxu0 %v8560
    %8699 = vmatprep.subr.bf16.mxu0 0
    %8700 = vmatpush2.bf16.msra.mxu0 %v8559
    %8701 = vmatprep.subr.bf16.mxu0 0
    %8702 = vmatpush2.bf16.msra.mxu0 %v8558
    %8703 = vmatprep.subr.bf16.mxu0 0
    %8704 = vmatpush2.bf16.msra.mxu0 %v8557
    %8705 = vmatprep.subr.bf16.mxu0 0
    %8706 = vmatpush2.bf16.msra.mxu0 %v8556
    %8707 = vmatprep.subr.bf16.mxu0 0
    %8708 = vmatpush2.bf16.msra.mxu0 %v8555
    %8709 = vmatprep.subr.bf16.mxu0 0
    %8710 = vmatpush2.bf16.msra.mxu0 %v8554
    %8711 = vmatprep.subr.bf16.mxu0 0
    %8712 = vmatpush2.bf16.msra.mxu0 %v8553
    %8713 = vmatprep.mubr.bf16.mxu0 %v8329
    %8714 = vmatmul.mubr.bf16.gmra.mxu0 %v8328
    %v8715 = vpop.f32.mrf.mxu0
    %v8716 = vadd.f32 %v8467, %v8715
    %v8717 = vpop.f32.mrf.mxu0
    %v8718 = vpop.f32.mrf.mxu0
    %v8719 = vadd.f32 %v8467, %v8718
    %v8720 = vpop.f32.mrf.mxu0
    %8721 = vmatprep.mubr.bf16.mxu0 %v8332
    %8722 = vmatmul.mubr.bf16.gmra.mxu0 %v8331
    %v8723 = vpop.f32.mrf.mxu0
    %v8724 = vadd.f32 %v8467, %v8723
    %v8725 = vpop.f32.mrf.mxu0
    %v8726 = vpop.f32.mrf.mxu0
    %v8727 = vadd.f32 %v8467, %v8726
    %v8728 = vpop.f32.mrf.mxu0
    %8729 = vmatprep.mubr.bf16.mxu0 %v8335
    %8730 = vmatmul.mubr.bf16.gmra.mxu0 %v8334
    %v8731 = vpop.f32.mrf.mxu0
    %v8732 = vadd.f32 %v8467, %v8731
    %v8733 = vpop.f32.mrf.mxu0
    %v8734 = vpop.f32.mrf.mxu0
    %v8735 = vadd.f32 %v8467, %v8734
    %v8736 = vpop.f32.mrf.mxu0
    %8737 = vmatprep.mubr.bf16.mxu0 %v8338
    %8738 = vmatmul.mubr.bf16.gmra.mxu0 %v8337
    %v8739 = vpop.f32.mrf.mxu0
    %v8740 = vadd.f32 %v8467, %v8739
    %v8741 = vpop.f32.mrf.mxu0
    %v8742 = vpop.f32.mrf.mxu0
    %v8743 = vadd.f32 %v8467, %v8742
    %v8744 = vpop.f32.mrf.mxu0
    %8745 = vmatprep.mubr.bf16.mxu0 %v8341
    %8746 = vmatmul.mubr.bf16.gmra.mxu0 %v8340
    %v8747 = vpop.f32.mrf.mxu0
    %v8748 = vadd.f32 %v8467, %v8747
    %v8749 = vpop.f32.mrf.mxu0
    %v8750 = vpop.f32.mrf.mxu0
    %v8751 = vadd.f32 %v8467, %v8750
    %v8752 = vpop.f32.mrf.mxu0
    %8753 = vmatprep.mubr.bf16.mxu0 %v8344
    %8754 = vmatmul.mubr.bf16.gmra.mxu0 %v8343
    %v8755 = vpop.f32.mrf.mxu0
    %v8756 = vadd.f32 %v8467, %v8755
    %v8757 = vpop.f32.mrf.mxu0
    %v8758 = vpop.f32.mrf.mxu0
    %v8759 = vadd.f32 %v8467, %v8758
    %v8760 = vpop.f32.mrf.mxu0
    %8761 = vmatprep.mubr.bf16.mxu0 %v8347
    %8762 = vmatmul.mubr.bf16.gmra.mxu0 %v8346
    %v8763 = vpop.f32.mrf.mxu0
    %v8764 = vadd.f32 %v8467, %v8763
    %v8765 = vpop.f32.mrf.mxu0
    %v8766 = vpop.f32.mrf.mxu0
    %v8767 = vadd.f32 %v8467, %v8766
    %v8768 = vpop.f32.mrf.mxu0
    %8769 = vmatprep.mubr.bf16.mxu0 %v8350
    %8770 = vmatmul.mubr.bf16.gmra.mxu0 %v8349
    %v8771 = vpop.f32.mrf.mxu0
    %v8772 = vadd.f32 %v8467, %v8771
    %v8773 = vpop.f32.mrf.mxu0
    %v8774 = vpop.f32.mrf.mxu0
    %v8775 = vadd.f32 %v8467, %v8774
    %v8776 = vpop.f32.mrf.mxu0
    %8777 = vmatprep.mubr.bf16.mxu0 %v8353
    %8778 = vmatmul.mubr.bf16.gmra.mxu0 %v8352
    %v8779 = vpop.f32.mrf.mxu0
    %v8780 = vadd.f32 %v8467, %v8779
    %v8781 = vpop.f32.mrf.mxu0
    %v8782 = vpop.f32.mrf.mxu0
    %v8783 = vadd.f32 %v8467, %v8782
    %v8784 = vpop.f32.mrf.mxu0
    %8785 = vmatprep.mubr.bf16.mxu0 %v8356
    %8786 = vmatmul.mubr.bf16.gmra.mxu0 %v8355
    %v8787 = vpop.f32.mrf.mxu0
    %v8788 = vadd.f32 %v8467, %v8787
    %v8789 = vpop.f32.mrf.mxu0
    %v8790 = vpop.f32.mrf.mxu0
    %v8791 = vadd.f32 %v8467, %v8790
    %v8792 = vpop.f32.mrf.mxu0
    %8793 = vmatprep.mubr.bf16.mxu0 %v8359
    %8794 = vmatmul.mubr.bf16.gmra.mxu0 %v8358
    %v8795 = vpop.f32.mrf.mxu0
    %v8796 = vadd.f32 %v8467, %v8795
    %v8797 = vpop.f32.mrf.mxu0
    %v8798 = vpop.f32.mrf.mxu0
    %v8799 = vadd.f32 %v8467, %v8798
    %v8800 = vpop.f32.mrf.mxu0
    %8801 = vmatprep.mubr.bf16.mxu0 %v8362
    %8802 = vmatmul.mubr.bf16.gmra.mxu0 %v8361
    %v8803 = vpop.f32.mrf.mxu0
    %v8804 = vadd.f32 %v8467, %v8803
    %v8805 = vpop.f32.mrf.mxu0
    %v8806 = vpop.f32.mrf.mxu0
    %v8807 = vadd.f32 %v8467, %v8806
    %v8808 = vpop.f32.mrf.mxu0
    %8809 = vmatprep.mubr.bf16.mxu0 %v8365
    %8810 = vmatmul.mubr.bf16.gmra.mxu0 %v8364
    %v8811 = vpop.f32.mrf.mxu0
    %v8812 = vadd.f32 %v8467, %v8811
    %v8813 = vpop.f32.mrf.mxu0
    %v8814 = vpop.f32.mrf.mxu0
    %v8815 = vadd.f32 %v8467, %v8814
    %v8816 = vpop.f32.mrf.mxu0
    %8817 = vmatprep.mubr.bf16.mxu0 %v8368
    %8818 = vmatmul.mubr.bf16.gmra.mxu0 %v8367
    %v8819 = vpop.f32.mrf.mxu0
    %v8820 = vadd.f32 %v8467, %v8819
    %v8821 = vpop.f32.mrf.mxu0
    %v8822 = vpop.f32.mrf.mxu0
    %v8823 = vadd.f32 %v8467, %v8822
    %v8824 = vpop.f32.mrf.mxu0
    %8825 = vmatprep.mubr.bf16.mxu0 %v8371
    %8826 = vmatmul.mubr.bf16.gmra.mxu0 %v8370
    %v8827 = vpop.f32.mrf.mxu0
    %v8828 = vadd.f32 %v8467, %v8827
    %v8829 = vpop.f32.mrf.mxu0
    %v8830 = vpop.f32.mrf.mxu0
    %v8831 = vadd.f32 %v8467, %v8830
    %v8832 = vpop.f32.mrf.mxu0
    %8833 = vmatprep.mubr.bf16.mxu0 %v8374
    %8834 = vmatmul.mubr.bf16.gmra.mxu0 %v8373
    %v8835 = vpop.f32.mrf.mxu0
    %v8836 = vadd.f32 %v8467, %v8835
    %v8837 = vpop.f32.mrf.mxu0
    %v8838 = vpop.f32.mrf.mxu0
    %v8839 = vadd.f32 %v8467, %v8838
    %v8840 = vpop.f32.mrf.mxu0
    %8841 = vmatprep.mubr.bf16.mxu0 %v8377
    %8842 = vmatmul.mubr.bf16.gmra.mxu0 %v8376
    %v8843 = vpop.f32.mrf.mxu0
    %v8844 = vadd.f32 %v8467, %v8843
    %v8845 = vpop.f32.mrf.mxu0
    %v8846 = vpop.f32.mrf.mxu0
    %v8847 = vadd.f32 %v8467, %v8846
    %v8848 = vpop.f32.mrf.mxu0
    %8849 = vmatprep.mubr.bf16.mxu0 %v8380
    %8850 = vmatmul.mubr.bf16.gmra.mxu0 %v8379
    %v8851 = vpop.f32.mrf.mxu0
    %v8852 = vadd.f32 %v8467, %v8851
    %v8853 = vpop.f32.mrf.mxu0
    %v8854 = vpop.f32.mrf.mxu0
    %v8855 = vadd.f32 %v8467, %v8854
    %v8856 = vpop.f32.mrf.mxu0
    %8857 = vmatprep.mubr.bf16.mxu0 %v8383
    %8858 = vmatmul.mubr.bf16.gmra.mxu0 %v8382
    %v8859 = vpop.f32.mrf.mxu0
    %v8860 = vadd.f32 %v8467, %v8859
    %v8861 = vpop.f32.mrf.mxu0
    %v8862 = vpop.f32.mrf.mxu0
    %v8863 = vadd.f32 %v8467, %v8862
    %v8864 = vpop.f32.mrf.mxu0
    %8865 = vmatprep.mubr.bf16.mxu0 %v8386
    %8866 = vmatmul.mubr.bf16.gmra.mxu0 %v8385
    %v8867 = vpop.f32.mrf.mxu0
    %v8868 = vadd.f32 %v8467, %v8867
    %v8869 = vpop.f32.mrf.mxu0
    %v8870 = vpop.f32.mrf.mxu0
    %v8871 = vadd.f32 %v8467, %v8870
    %v8872 = vpop.f32.mrf.mxu0
    %8873 = vmatprep.mubr.bf16.mxu0 %v8389
    %8874 = vmatmul.mubr.bf16.gmra.mxu0 %v8388
    %v8875 = vpop.f32.mrf.mxu0
    %v8876 = vadd.f32 %v8467, %v8875
    %v8877 = vpop.f32.mrf.mxu0
    %v8878 = vpop.f32.mrf.mxu0
    %v8879 = vadd.f32 %v8467, %v8878
    %v8880 = vpop.f32.mrf.mxu0
    %8881 = vmatprep.mubr.bf16.mxu0 %v8392
    %8882 = vmatmul.mubr.bf16.gmra.mxu0 %v8391
    %v8883 = vpop.f32.mrf.mxu0
    %v8884 = vadd.f32 %v8467, %v8883
    %v8885 = vpop.f32.mrf.mxu0
    %v8886 = vpop.f32.mrf.mxu0
    %v8887 = vadd.f32 %v8467, %v8886
    %v8888 = vpop.f32.mrf.mxu0
    %8889 = vmatprep.mubr.bf16.mxu0 %v8395
    %8890 = vmatmul.mubr.bf16.gmra.mxu0 %v8394
    %v8891 = vpop.f32.mrf.mxu0
    %v8892 = vadd.f32 %v8467, %v8891
    %v8893 = vpop.f32.mrf.mxu0
    %v8894 = vpop.f32.mrf.mxu0
    %v8895 = vadd.f32 %v8467, %v8894
    %v8896 = vpop.f32.mrf.mxu0
    %8897 = vmatprep.mubr.bf16.mxu0 %v8398
    %8898 = vmatmul.mubr.bf16.gmra.mxu0 %v8397
    %v8899 = vpop.f32.mrf.mxu0
    %v8900 = vadd.f32 %v8467, %v8899
    %v8901 = vpop.f32.mrf.mxu0
    %v8902 = vpop.f32.mrf.mxu0
    %v8903 = vadd.f32 %v8467, %v8902
    %v8904 = vpop.f32.mrf.mxu0
    %8905 = vmatprep.mubr.bf16.mxu0 %v8401
    %8906 = vmatmul.mubr.bf16.gmra.mxu0 %v8400
    %v8907 = vpop.f32.mrf.mxu0
    %v8908 = vadd.f32 %v8467, %v8907
    %v8909 = vpop.f32.mrf.mxu0
    %v8910 = vpop.f32.mrf.mxu0
    %v8911 = vadd.f32 %v8467, %v8910
    %v8912 = vpop.f32.mrf.mxu0
    %8913 = vmatprep.mubr.bf16.mxu0 %v8404
    %8914 = vmatmul.mubr.bf16.gmra.mxu0 %v8403
    %v8915 = vpop.f32.mrf.mxu0
    %v8916 = vadd.f32 %v8467, %v8915
    %v8917 = vpop.f32.mrf.mxu0
    %v8918 = vpop.f32.mrf.mxu0
    %v8919 = vadd.f32 %v8467, %v8918
    %v8920 = vpop.f32.mrf.mxu0
    %8921 = vmatprep.mubr.bf16.mxu0 %v8407
    %8922 = vmatmul.mubr.bf16.gmra.mxu0 %v8406
    %v8923 = vpop.f32.mrf.mxu0
    %v8924 = vadd.f32 %v8467, %v8923
    %v8925 = vpop.f32.mrf.mxu0
    %v8926 = vpop.f32.mrf.mxu0
    %v8927 = vadd.f32 %v8467, %v8926
    %v8928 = vpop.f32.mrf.mxu0
    %8929 = vmatprep.mubr.bf16.mxu0 %v8410
    %8930 = vmatmul.mubr.bf16.gmra.mxu0 %v8409
    %v8931 = vpop.f32.mrf.mxu0
    %v8932 = vadd.f32 %v8467, %v8931
    %v8933 = vpop.f32.mrf.mxu0
    %v8934 = vpop.f32.mrf.mxu0
    %v8935 = vadd.f32 %v8467, %v8934
    %v8936 = vpop.f32.mrf.mxu0
    %8937 = vmatprep.mubr.bf16.mxu0 %v8413
    %8938 = vmatmul.mubr.bf16.gmra.mxu0 %v8412
    %v8939 = vpop.f32.mrf.mxu0
    %v8940 = vadd.f32 %v8467, %v8939
    %v8941 = vpop.f32.mrf.mxu0
    %v8942 = vpop.f32.mrf.mxu0
    %v8943 = vadd.f32 %v8467, %v8942
    %v8944 = vpop.f32.mrf.mxu0
    %8945 = vmatprep.mubr.bf16.mxu0 %v8416
    %8946 = vmatmul.mubr.bf16.gmra.mxu0 %v8415
    %v8947 = vpop.f32.mrf.mxu0
    %v8948 = vadd.f32 %v8467, %v8947
    %v8949 = vpop.f32.mrf.mxu0
    %v8950 = vpop.f32.mrf.mxu0
    %v8951 = vadd.f32 %v8467, %v8950
    %v8952 = vpop.f32.mrf.mxu0
    %8953 = vmatprep.mubr.bf16.mxu0 %v8419
    %8954 = vmatmul.mubr.bf16.gmra.mxu0 %v8418
    %v8955 = vpop.f32.mrf.mxu0
    %v8956 = vadd.f32 %v8467, %v8955
    %v8957 = vpop.f32.mrf.mxu0
    %v8958 = vpop.f32.mrf.mxu0
    %v8959 = vadd.f32 %v8467, %v8958
    %v8960 = vpop.f32.mrf.mxu0
    %8961 = vmatprep.mubr.bf16.mxu0 %v8422
    %8962 = vmatmul.mubr.bf16.gmra.mxu0 %v8421
    %v8963 = vpop.f32.mrf.mxu0
    %v8964 = vadd.f32 %v8467, %v8963
    %v8965 = vpop.f32.mrf.mxu0
    %v8966 = vpop.f32.mrf.mxu0
    %v8967 = vadd.f32 %v8467, %v8966
    %v8968 = vpop.f32.mrf.mxu0
    %8969 = vdwg.mxu0
    %8970 = vmatprep.subr.bf16.mxu0 0
    %8971 = vmatpush1.bf16.msra.mxu0 0
    %8972 = vmatprep.subr.bf16.mxu0 0
    %8973 = vmatpush1.bf16.msra.mxu0 0
    %8974 = vmatprep.subr.bf16.mxu0 0
    %8975 = vmatpush1.bf16.msra.mxu0 0
    %8976 = vmatprep.subr.bf16.mxu0 0
    %8977 = vmatpush1.bf16.msra.mxu0 0
    %8978 = vmatprep.subr.bf16.mxu0 0
    %8979 = vmatpush1.bf16.msra.mxu0 0
    %8980 = vmatprep.subr.bf16.mxu0 0
    %8981 = vmatpush1.bf16.msra.mxu0 %v8679
    %8982 = vmatprep.subr.bf16.mxu0 0
    %8983 = vmatpush1.bf16.msra.mxu0 %v8562
    %8984 = vmatprep.subr.bf16.mxu0 0
    %8985 = vmatpush1.bf16.msra.mxu0 %v8561
    %8986 = vmatprep.subr.bf16.mxu0 0
    %8987 = vmatpush2.bf16.msra.mxu0 0
    %8988 = vmatprep.subr.bf16.mxu0 0
    %8989 = vmatpush2.bf16.msra.mxu0 0
    %8990 = vmatprep.subr.bf16.mxu0 0
    %8991 = vmatpush2.bf16.msra.mxu0 0
    %8992 = vmatprep.subr.bf16.mxu0 0
    %8993 = vmatpush2.bf16.msra.mxu0 0
    %8994 = vmatprep.subr.bf16.mxu0 0
    %8995 = vmatpush2.bf16.msra.mxu0 0
    %8996 = vmatprep.subr.bf16.mxu0 0
    %8997 = vmatpush2.bf16.msra.mxu0 0
    %8998 = vmatprep.subr.bf16.mxu0 0
    %8999 = vmatpush2.bf16.msra.mxu0 0
    %9000 = vmatprep.subr.bf16.mxu0 0
    %9001 = vmatpush2.bf16.msra.mxu0 0
    %9002 = vmatprep.mubr.bf16.mxu0 0
    %9003 = vmatmul.mubr.bf16.gmra.mxu0 %v8583
    %v9004 = vpop.f32.mrf.mxu0
    %v9005 = vadd.f32 %v8716, %v9004
    %v9006 = vpop.f32.mrf.mxu0
    %v9007 = vpop.f32.mrf.mxu0
    %v9008 = vadd.f32 %v8719, %v9007
    %v9009 = vpop.f32.mrf.mxu0
    %9010 = vmatprep.mubr.bf16.mxu0 0
    %9011 = vmatmul.mubr.bf16.gmra.mxu0 %v8586
    %v9012 = vpop.f32.mrf.mxu0
    %v9013 = vadd.f32 %v8724, %v9012
    %v9014 = vpop.f32.mrf.mxu0
    %v9015 = vpop.f32.mrf.mxu0
    %v9016 = vadd.f32 %v8727, %v9015
    %v9017 = vpop.f32.mrf.mxu0
    %9018 = vmatprep.mubr.bf16.mxu0 0
    %9019 = vmatmul.mubr.bf16.gmra.mxu0 %v8589
    %v9020 = vpop.f32.mrf.mxu0
    %v9021 = vadd.f32 %v8732, %v9020
    %v9022 = vpop.f32.mrf.mxu0
    %v9023 = vpop.f32.mrf.mxu0
    %v9024 = vadd.f32 %v8735, %v9023
    %v9025 = vpop.f32.mrf.mxu0
    %9026 = vmatprep.mubr.bf16.mxu0 0
    %9027 = vmatmul.mubr.bf16.gmra.mxu0 %v8592
    %v9028 = vpop.f32.mrf.mxu0
    %v9029 = vadd.f32 %v8740, %v9028
    %v9030 = vpop.f32.mrf.mxu0
    %v9031 = vpop.f32.mrf.mxu0
    %v9032 = vadd.f32 %v8743, %v9031
    %v9033 = vpop.f32.mrf.mxu0
    %9034 = vmatprep.mubr.bf16.mxu0 0
    %9035 = vmatmul.mubr.bf16.gmra.mxu0 %v8595
    %v9036 = vpop.f32.mrf.mxu0
    %v9037 = vadd.f32 %v8748, %v9036
    %v9038 = vpop.f32.mrf.mxu0
    %v9039 = vpop.f32.mrf.mxu0
    %v9040 = vadd.f32 %v8751, %v9039
    %v9041 = vpop.f32.mrf.mxu0
    %9042 = vmatprep.mubr.bf16.mxu0 0
    %9043 = vmatmul.mubr.bf16.gmra.mxu0 %v8598
    %v9044 = vpop.f32.mrf.mxu0
    %v9045 = vadd.f32 %v8756, %v9044
    %v9046 = vpop.f32.mrf.mxu0
    %v9047 = vpop.f32.mrf.mxu0
    %v9048 = vadd.f32 %v8759, %v9047
    %v9049 = vpop.f32.mrf.mxu0
    %9050 = vmatprep.mubr.bf16.mxu0 0
    %9051 = vmatmul.mubr.bf16.gmra.mxu0 %v8601
    %v9052 = vpop.f32.mrf.mxu0
    %v9053 = vadd.f32 %v8764, %v9052
    %v9054 = vpop.f32.mrf.mxu0
    %v9055 = vpop.f32.mrf.mxu0
    %v9056 = vadd.f32 %v8767, %v9055
    %v9057 = vpop.f32.mrf.mxu0
    %9058 = vmatprep.mubr.bf16.mxu0 0
    %9059 = vmatmul.mubr.bf16.gmra.mxu0 %v8604
    %v9060 = vpop.f32.mrf.mxu0
    %v9061 = vadd.f32 %v8772, %v9060
    %v9062 = vpop.f32.mrf.mxu0
    %v9063 = vpop.f32.mrf.mxu0
    %v9064 = vadd.f32 %v8775, %v9063
    %v9065 = vpop.f32.mrf.mxu0
    %9066 = vmatprep.mubr.bf16.mxu0 0
    %9067 = vmatmul.mubr.bf16.gmra.mxu0 %v8607
    %v9068 = vpop.f32.mrf.mxu0
    %v9069 = vadd.f32 %v8780, %v9068
    %v9070 = vpop.f32.mrf.mxu0
    %v9071 = vpop.f32.mrf.mxu0
    %v9072 = vadd.f32 %v8783, %v9071
    %v9073 = vpop.f32.mrf.mxu0
    %9074 = vmatprep.mubr.bf16.mxu0 0
    %9075 = vmatmul.mubr.bf16.gmra.mxu0 %v8610
    %v9076 = vpop.f32.mrf.mxu0
    %v9077 = vadd.f32 %v8788, %v9076
    %v9078 = vpop.f32.mrf.mxu0
    %v9079 = vpop.f32.mrf.mxu0
    %v9080 = vadd.f32 %v8791, %v9079
    %v9081 = vpop.f32.mrf.mxu0
    %9082 = vmatprep.mubr.bf16.mxu0 0
    %9083 = vmatmul.mubr.bf16.gmra.mxu0 %v8613
    %v9084 = vpop.f32.mrf.mxu0
    %v9085 = vadd.f32 %v8796, %v9084
    %v9086 = vpop.f32.mrf.mxu0
    %v9087 = vpop.f32.mrf.mxu0
    %v9088 = vadd.f32 %v8799, %v9087
    %v9089 = vpop.f32.mrf.mxu0
    %9090 = vmatprep.mubr.bf16.mxu0 0
    %9091 = vmatmul.mubr.bf16.gmra.mxu0 %v8616
    %v9092 = vpop.f32.mrf.mxu0
    %v9093 = vadd.f32 %v8804, %v9092
    %v9094 = vpop.f32.mrf.mxu0
    %v9095 = vpop.f32.mrf.mxu0
    %v9096 = vadd.f32 %v8807, %v9095
    %v9097 = vpop.f32.mrf.mxu0
    %9098 = vmatprep.mubr.bf16.mxu0 0
    %9099 = vmatmul.mubr.bf16.gmra.mxu0 %v8619
    %v9100 = vpop.f32.mrf.mxu0
    %v9101 = vadd.f32 %v8812, %v9100
    %v9102 = vpop.f32.mrf.mxu0
    %v9103 = vpop.f32.mrf.mxu0
    %v9104 = vadd.f32 %v8815, %v9103
    %v9105 = vpop.f32.mrf.mxu0
    %9106 = vmatprep.mubr.bf16.mxu0 0
    %9107 = vmatmul.mubr.bf16.gmra.mxu0 %v8622
    %v9108 = vpop.f32.mrf.mxu0
    %v9109 = vadd.f32 %v8820, %v9108
    %v9110 = vpop.f32.mrf.mxu0
    %v9111 = vpop.f32.mrf.mxu0
    %v9112 = vadd.f32 %v8823, %v9111
    %v9113 = vpop.f32.mrf.mxu0
    %9114 = vmatprep.mubr.bf16.mxu0 0
    %9115 = vmatmul.mubr.bf16.gmra.mxu0 %v8625
    %v9116 = vpop.f32.mrf.mxu0
    %v9117 = vadd.f32 %v8828, %v9116
    %v9118 = vpop.f32.mrf.mxu0
    %v9119 = vpop.f32.mrf.mxu0
    %v9120 = vadd.f32 %v8831, %v9119
    %v9121 = vpop.f32.mrf.mxu0
    %9122 = vmatprep.mubr.bf16.mxu0 0
    %9123 = vmatmul.mubr.bf16.gmra.mxu0 %v8628
    %v9124 = vpop.f32.mrf.mxu0
    %v9125 = vadd.f32 %v8836, %v9124
    %v9126 = vpop.f32.mrf.mxu0
    %v9127 = vpop.f32.mrf.mxu0
    %v9128 = vadd.f32 %v8839, %v9127
    %v9129 = vpop.f32.mrf.mxu0
    %9130 = vmatprep.mubr.bf16.mxu0 0
    %9131 = vmatmul.mubr.bf16.gmra.mxu0 %v8631
    %v9132 = vpop.f32.mrf.mxu0
    %v9133 = vadd.f32 %v8844, %v9132
    %v9134 = vpop.f32.mrf.mxu0
    %v9135 = vpop.f32.mrf.mxu0
    %v9136 = vadd.f32 %v8847, %v9135
    %v9137 = vpop.f32.mrf.mxu0
    %9138 = vmatprep.mubr.bf16.mxu0 0
    %9139 = vmatmul.mubr.bf16.gmra.mxu0 %v8634
    %v9140 = vpop.f32.mrf.mxu0
    %v9141 = vadd.f32 %v8852, %v9140
    %v9142 = vpop.f32.mrf.mxu0
    %v9143 = vpop.f32.mrf.mxu0
    %v9144 = vadd.f32 %v8855, %v9143
    %v9145 = vpop.f32.mrf.mxu0
    %9146 = vmatprep.mubr.bf16.mxu0 0
    %9147 = vmatmul.mubr.bf16.gmra.mxu0 %v8637
    %v9148 = vpop.f32.mrf.mxu0
    %v9149 = vadd.f32 %v8860, %v9148
    %v9150 = vpop.f32.mrf.mxu0
    %v9151 = vpop.f32.mrf.mxu0
    %v9152 = vadd.f32 %v8863, %v9151
    %v9153 = vpop.f32.mrf.mxu0
    %9154 = vmatprep.mubr.bf16.mxu0 0
    %9155 = vmatmul.mubr.bf16.gmra.mxu0 %v8640
    %v9156 = vpop.f32.mrf.mxu0
    %v9157 = vadd.f32 %v8868, %v9156
    %v9158 = vpop.f32.mrf.mxu0
    %v9159 = vpop.f32.mrf.mxu0
    %v9160 = vadd.f32 %v8871, %v9159
    %v9161 = vpop.f32.mrf.mxu0
    %9162 = vmatprep.mubr.bf16.mxu0 0
    %9163 = vmatmul.mubr.bf16.gmra.mxu0 %v8643
    %v9164 = vpop.f32.mrf.mxu0
    %v9165 = vadd.f32 %v8876, %v9164
    %v9166 = vpop.f32.mrf.mxu0
    %v9167 = vpop.f32.mrf.mxu0
    %v9168 = vadd.f32 %v8879, %v9167
    %v9169 = vpop.f32.mrf.mxu0
    %9170 = vmatprep.mubr.bf16.mxu0 0
    %9171 = vmatmul.mubr.bf16.gmra.mxu0 %v8646
    %v9172 = vpop.f32.mrf.mxu0
    %v9173 = vadd.f32 %v8884, %v9172
    %v9174 = vpop.f32.mrf.mxu0
    %v9175 = vpop.f32.mrf.mxu0
    %v9176 = vadd.f32 %v8887, %v9175
    %v9177 = vpop.f32.mrf.mxu0
    %9178 = vmatprep.mubr.bf16.mxu0 0
    %9179 = vmatmul.mubr.bf16.gmra.mxu0 %v8649
    %v9180 = vpop.f32.mrf.mxu0
    %v9181 = vadd.f32 %v8892, %v9180
    %v9182 = vpop.f32.mrf.mxu0
    %v9183 = vpop.f32.mrf.mxu0
    %v9184 = vadd.f32 %v8895, %v9183
    %v9185 = vpop.f32.mrf.mxu0
    %9186 = vmatprep.mubr.bf16.mxu0 0
    %9187 = vmatmul.mubr.bf16.gmra.mxu0 %v8652
    %v9188 = vpop.f32.mrf.mxu0
    %v9189 = vadd.f32 %v8900, %v9188
    %v9190 = vpop.f32.mrf.mxu0
    %v9191 = vpop.f32.mrf.mxu0
    %v9192 = vadd.f32 %v8903, %v9191
    %v9193 = vpop.f32.mrf.mxu0
    %9194 = vmatprep.mubr.bf16.mxu0 0
    %9195 = vmatmul.mubr.bf16.gmra.mxu0 %v8655
    %v9196 = vpop.f32.mrf.mxu0
    %v9197 = vadd.f32 %v8908, %v9196
    %v9198 = vpop.f32.mrf.mxu0
    %v9199 = vpop.f32.mrf.mxu0
    %v9200 = vadd.f32 %v8911, %v9199
    %v9201 = vpop.f32.mrf.mxu0
    %9202 = vmatprep.mubr.bf16.mxu0 0
    %9203 = vmatmul.mubr.bf16.gmra.mxu0 %v8658
    %v9204 = vpop.f32.mrf.mxu0
    %v9205 = vadd.f32 %v8916, %v9204
    %v9206 = vpop.f32.mrf.mxu0
    %v9207 = vpop.f32.mrf.mxu0
    %v9208 = vadd.f32 %v8919, %v9207
    %v9209 = vpop.f32.mrf.mxu0
    %9210 = vmatprep.mubr.bf16.mxu0 0
    %9211 = vmatmul.mubr.bf16.gmra.mxu0 %v8661
    %v9212 = vpop.f32.mrf.mxu0
    %v9213 = vadd.f32 %v8924, %v9212
    %v9214 = vpop.f32.mrf.mxu0
    %v9215 = vpop.f32.mrf.mxu0
    %v9216 = vadd.f32 %v8927, %v9215
    %v9217 = vpop.f32.mrf.mxu0
    %9218 = vmatprep.mubr.bf16.mxu0 0
    %9219 = vmatmul.mubr.bf16.gmra.mxu0 %v8664
    %v9220 = vpop.f32.mrf.mxu0
    %v9221 = vadd.f32 %v8932, %v9220
    %v9222 = vpop.f32.mrf.mxu0
    %v9223 = vpop.f32.mrf.mxu0
    %v9224 = vadd.f32 %v8935, %v9223
    %v9225 = vpop.f32.mrf.mxu0
    %9226 = vmatprep.mubr.bf16.mxu0 0
    %9227 = vmatmul.mubr.bf16.gmra.mxu0 %v8667
    %v9228 = vpop.f32.mrf.mxu0
    %v9229 = vadd.f32 %v8940, %v9228
    %v9230 = vpop.f32.mrf.mxu0
    %v9231 = vpop.f32.mrf.mxu0
    %v9232 = vadd.f32 %v8943, %v9231
    %v9233 = vpop.f32.mrf.mxu0
    %9234 = vmatprep.mubr.bf16.mxu0 0
    %9235 = vmatmul.mubr.bf16.gmra.mxu0 %v8670
    %v9236 = vpop.f32.mrf.mxu0
    %v9237 = vadd.f32 %v8948, %v9236
    %v9238 = vpop.f32.mrf.mxu0
    %v9239 = vpop.f32.mrf.mxu0
    %v9240 = vadd.f32 %v8951, %v9239
    %v9241 = vpop.f32.mrf.mxu0
    %9242 = vmatprep.mubr.bf16.mxu0 0
    %9243 = vmatmul.mubr.bf16.gmra.mxu0 %v8673
    %v9244 = vpop.f32.mrf.mxu0
    %v9245 = vadd.f32 %v8956, %v9244
    %v9246 = vpop.f32.mrf.mxu0
    %v9247 = vpop.f32.mrf.mxu0
    %v9248 = vadd.f32 %v8959, %v9247
    %v9249 = vpop.f32.mrf.mxu0
    %9250 = vmatprep.mubr.bf16.mxu0 0
    %9251 = vmatmul.mubr.bf16.gmra.mxu0 %v8676
    %v9252 = vpop.f32.mrf.mxu0
    %v9253 = vadd.f32 %v8964, %v9252
    %v9254 = vpop.f32.mrf.mxu0
    %v9255 = vpop.f32.mrf.mxu0
    %v9256 = vadd.f32 %v8967, %v9255
    %v9257 = vpop.f32.mrf.mxu0
    %9258 = vdwg.mxu0
    %v9259 = vmax.f32 %v9005, 0.0
    %v9260 = vmax.f32 %v9008, 0.0
    %v9261 = vmax.f32 %v9013, 0.0
    %v9262 = vmax.f32 %v9016, 0.0
    %v9263 = vmax.f32 %v9021, 0.0
    %v9264 = vmax.f32 %v9024, 0.0
    %v9265 = vmax.f32 %v9029, 0.0
    %v9266 = vmax.f32 %v9032, 0.0
    %v9267 = vmax.f32 %v9037, 0.0
    %v9268 = vmax.f32 %v9040, 0.0
    %v9269 = vmax.f32 %v9045, 0.0
    %v9270 = vmax.f32 %v9048, 0.0
    %v9271 = vmax.f32 %v9053, 0.0
    %v9272 = vmax.f32 %v9056, 0.0
    %v9273 = vmax.f32 %v9061, 0.0
    %v9274 = vmax.f32 %v9064, 0.0
    %v9275 = vmax.f32 %v9069, 0.0
    %v9276 = vmax.f32 %v9072, 0.0
    %v9277 = vmax.f32 %v9077, 0.0
    %v9278 = vmax.f32 %v9080, 0.0
    %v9279 = vmax.f32 %v9085, 0.0
    %v9280 = vmax.f32 %v9088, 0.0
    %v9281 = vmax.f32 %v9093, 0.0
    %v9282 = vmax.f32 %v9096, 0.0
    %v9283 = vmax.f32 %v9101, 0.0
    %v9284 = vmax.f32 %v9104, 0.0
    %v9285 = vmax.f32 %v9109, 0.0
    %v9286 = vmax.f32 %v9112, 0.0
    %v9287 = vmax.f32 %v9117, 0.0
    %v9288 = vmax.f32 %v9120, 0.0
    %v9289 = vmax.f32 %v9125, 0.0
    %v9290 = vmax.f32 %v9128, 0.0
    %v9291 = vmax.f32 %v9133, 0.0
    %v9292 = vmax.f32 %v9136, 0.0
    %v9293 = vmax.f32 %v9141, 0.0
    %v9294 = vmax.f32 %v9144, 0.0
    %v9295 = vmax.f32 %v9149, 0.0
    %v9296 = vmax.f32 %v9152, 0.0
    %v9297 = vmax.f32 %v9157, 0.0
    %v9298 = vmax.f32 %v9160, 0.0
    %v9299 = vmax.f32 %v9165, 0.0
    %v9300 = vmax.f32 %v9168, 0.0
    %v9301 = vmax.f32 %v9173, 0.0
    %v9302 = vmax.f32 %v9176, 0.0
    %v9303 = vmax.f32 %v9181, 0.0
    %v9304 = vmax.f32 %v9184, 0.0
    %v9305 = vmax.f32 %v9189, 0.0
    %v9306 = vmax.f32 %v9192, 0.0
    %v9307 = vmax.f32 %v9197, 0.0
    %v9308 = vmax.f32 %v9200, 0.0
    %v9309 = vmax.f32 %v9205, 0.0
    %v9310 = vmax.f32 %v9208, 0.0
    %v9311 = vmax.f32 %v9213, 0.0
    %v9312 = vmax.f32 %v9216, 0.0
    %v9313 = vmax.f32 %v9221, 0.0
    %v9314 = vmax.f32 %v9224, 0.0
    %v9315 = vmax.f32 %v9229, 0.0
    %v9316 = vmax.f32 %v9232, 0.0
    %v9317 = vmax.f32 %v9237, 0.0
    %v9318 = vmax.f32 %v9240, 0.0
    %v9319 = vmax.f32 %v9245, 0.0
    %v9320 = vmax.f32 %v9248, 0.0
    %v9321 = vmax.f32 %v9253, 0.0
    %v9322 = vmax.f32 %v9256, 0.0
    %v9387 = vrot.slane %v9259, 1
    %v9388 = vrot.slane %v9260, 1
    %v9389 = vsel %vm203, %v9387, %v9388
    %v9390 = vrot.slane %v9261, 1
    %v9391 = vsel %vm203, %v9388, %v9390
    %v9392 = vrot.slane %v9262, 1
    %v9393 = vsel %vm203, %v9390, %v9392
    %v9394 = vrot.slane %v9263, 1
    %v9395 = vsel %vm203, %v9392, %v9394
    %v9396 = vrot.slane %v9264, 1
    %v9397 = vsel %vm203, %v9394, %v9396
    %v9398 = vrot.slane %v9265, 1
    %v9399 = vsel %vm203, %v9396, %v9398
    %v9400 = vrot.slane %v9266, 1
    %v9401 = vsel %vm203, %v9398, %v9400
    %v9402 = vrot.slane %v9267, 1
    %v9403 = vsel %vm203, %v9400, %v9402
    %v9404 = vrot.slane %v9268, 1
    %v9405 = vsel %vm203, %v9402, %v9404
    %v9406 = vrot.slane %v9269, 1
    %v9407 = vsel %vm203, %v9404, %v9406
    %v9408 = vrot.slane %v9270, 1
    %v9409 = vsel %vm203, %v9406, %v9408
    %v9410 = vrot.slane %v9271, 1
    %v9411 = vsel %vm203, %v9408, %v9410
    %v9412 = vrot.slane %v9272, 1
    %v9413 = vsel %vm203, %v9410, %v9412
    %v9414 = vrot.slane %v9273, 1
    %v9415 = vsel %vm203, %v9412, %v9414
    %v9416 = vrot.slane %v9274, 1
    %v9417 = vsel %vm203, %v9414, %v9416
    %v9418 = vrot.slane %v9275, 1
    %v9419 = vrot.slane %v9276, 1
    %v9420 = vsel %vm203, %v9418, %v9419
    %v9421 = vrot.slane %v9277, 1
    %v9422 = vsel %vm203, %v9419, %v9421
    %v9423 = vrot.slane %v9278, 1
    %v9424 = vsel %vm203, %v9421, %v9423
    %v9425 = vrot.slane %v9279, 1
    %v9426 = vsel %vm203, %v9423, %v9425
    %v9427 = vrot.slane %v9280, 1
    %v9428 = vsel %vm203, %v9425, %v9427
    %v9429 = vrot.slane %v9281, 1
    %v9430 = vsel %vm203, %v9427, %v9429
    %v9431 = vrot.slane %v9282, 1
    %v9432 = vsel %vm203, %v9429, %v9431
    %v9433 = vrot.slane %v9283, 1
    %v9434 = vsel %vm203, %v9431, %v9433
    %v9435 = vrot.slane %v9284, 1
    %v9436 = vsel %vm203, %v9433, %v9435
    %v9437 = vrot.slane %v9285, 1
    %v9438 = vsel %vm203, %v9435, %v9437
    %v9439 = vrot.slane %v9286, 1
    %v9440 = vsel %vm203, %v9437, %v9439
    %v9441 = vrot.slane %v9287, 1
    %v9442 = vsel %vm203, %v9439, %v9441
    %v9443 = vrot.slane %v9288, 1
    %v9444 = vsel %vm203, %v9441, %v9443
    %v9445 = vrot.slane %v9289, 1
    %v9446 = vsel %vm203, %v9443, %v9445
    %v9447 = vrot.slane %v9290, 1
    %v9448 = vsel %vm203, %v9445, %v9447
    %v9449 = vrot.slane %v9291, 1
    %v9450 = vrot.slane %v9292, 1
    %v9451 = vsel %vm203, %v9449, %v9450
    %v9452 = vrot.slane %v9293, 1
    %v9453 = vsel %vm203, %v9450, %v9452
    %v9454 = vrot.slane %v9294, 1
    %v9455 = vsel %vm203, %v9452, %v9454
    %v9456 = vrot.slane %v9295, 1
    %v9457 = vsel %vm203, %v9454, %v9456
    %v9458 = vrot.slane %v9296, 1
    %v9459 = vsel %vm203, %v9456, %v9458
    %v9460 = vrot.slane %v9297, 1
    %v9461 = vsel %vm203, %v9458, %v9460
    %v9462 = vrot.slane %v9298, 1
    %v9463 = vsel %vm203, %v9460, %v9462
    %v9464 = vrot.slane %v9299, 1
    %v9465 = vsel %vm203, %v9462, %v9464
    %v9466 = vrot.slane %v9300, 1
    %v9467 = vsel %vm203, %v9464, %v9466
    %v9468 = vrot.slane %v9301, 1
    %v9469 = vsel %vm203, %v9466, %v9468
    %v9470 = vrot.slane %v9302, 1
    %v9471 = vsel %vm203, %v9468, %v9470
    %v9472 = vrot.slane %v9303, 1
    %v9473 = vsel %vm203, %v9470, %v9472
    %v9474 = vrot.slane %v9304, 1
    %v9475 = vsel %vm203, %v9472, %v9474
    %v9476 = vrot.slane %v9305, 1
    %v9477 = vsel %vm203, %v9474, %v9476
    %v9478 = vrot.slane %v9306, 1
    %v9479 = vsel %vm203, %v9476, %v9478
    %v9480 = vrot.slane %v9307, 1
    %v9481 = vrot.slane %v9308, 1
    %v9482 = vsel %vm203, %v9480, %v9481
    %v9483 = vrot.slane %v9309, 1
    %v9484 = vsel %vm203, %v9481, %v9483
    %v9485 = vrot.slane %v9310, 1
    %v9486 = vsel %vm203, %v9483, %v9485
    %v9487 = vrot.slane %v9311, 1
    %v9488 = vsel %vm203, %v9485, %v9487
    %v9489 = vrot.slane %v9312, 1
    %v9490 = vsel %vm203, %v9487, %v9489
    %v9491 = vrot.slane %v9313, 1
    %v9492 = vsel %vm203, %v9489, %v9491
    %v9493 = vrot.slane %v9314, 1
    %v9494 = vsel %vm203, %v9491, %v9493
    %v9495 = vrot.slane %v9315, 1
    %v9496 = vsel %vm203, %v9493, %v9495
    %v9497 = vrot.slane %v9316, 1
    %v9498 = vsel %vm203, %v9495, %v9497
    %v9499 = vrot.slane %v9317, 1
    %v9500 = vsel %vm203, %v9497, %v9499
    %v9501 = vrot.slane %v9318, 1
    %v9502 = vsel %vm203, %v9499, %v9501
    %v9503 = vrot.slane %v9319, 1
    %v9504 = vsel %vm203, %v9501, %v9503
    %v9505 = vrot.slane %v9320, 1
    %v9506 = vsel %vm203, %v9503, %v9505
    %v9507 = vrot.slane %v9321, 1
    %v9508 = vsel %vm203, %v9505, %v9507
    %v9509 = vrot.slane %v9322, 1
    %v9510 = vsel %vm203, %v9507, %v9509
    %v9575 = vmax.f32 %v9259, %v9389
    %v9576 = vmax.f32 %v9260, %v9391
    %v9577 = vmax.f32 %v9261, %v9393
    %v9578 = vmax.f32 %v9262, %v9395
    %v9579 = vmax.f32 %v9263, %v9397
    %v9580 = vmax.f32 %v9264, %v9399
    %v9581 = vmax.f32 %v9265, %v9401
    %v9582 = vmax.f32 %v9266, %v9403
    %v9583 = vmax.f32 %v9267, %v9405
    %v9584 = vmax.f32 %v9268, %v9407
    %v9585 = vmax.f32 %v9269, %v9409
    %v9586 = vmax.f32 %v9270, %v9411
    %v9587 = vmax.f32 %v9271, %v9413
    %v9588 = vmax.f32 %v9272, %v9415
    %v9589 = vmax.f32 %v9273, %v9417
    %v9590 = vmax.f32 %v9274, %v9416
    %v9591 = vmax.f32 %v9275, %v9420
    %v9592 = vmax.f32 %v9276, %v9422
    %v9593 = vmax.f32 %v9277, %v9424
    %v9594 = vmax.f32 %v9278, %v9426
    %v9595 = vmax.f32 %v9279, %v9428
    %v9596 = vmax.f32 %v9280, %v9430
    %v9597 = vmax.f32 %v9281, %v9432
    %v9598 = vmax.f32 %v9282, %v9434
    %v9599 = vmax.f32 %v9283, %v9436
    %v9600 = vmax.f32 %v9284, %v9438
    %v9601 = vmax.f32 %v9285, %v9440
    %v9602 = vmax.f32 %v9286, %v9442
    %v9603 = vmax.f32 %v9287, %v9444
    %v9604 = vmax.f32 %v9288, %v9446
    %v9605 = vmax.f32 %v9289, %v9448
    %v9606 = vmax.f32 %v9290, %v9447
    %v9607 = vmax.f32 %v9291, %v9451
    %v9608 = vmax.f32 %v9292, %v9453
    %v9609 = vmax.f32 %v9293, %v9455
    %v9610 = vmax.f32 %v9294, %v9457
    %v9611 = vmax.f32 %v9295, %v9459
    %v9612 = vmax.f32 %v9296, %v9461
    %v9613 = vmax.f32 %v9297, %v9463
    %v9614 = vmax.f32 %v9298, %v9465
    %v9615 = vmax.f32 %v9299, %v9467
    %v9616 = vmax.f32 %v9300, %v9469
    %v9617 = vmax.f32 %v9301, %v9471
    %v9618 = vmax.f32 %v9302, %v9473
    %v9619 = vmax.f32 %v9303, %v9475
    %v9620 = vmax.f32 %v9304, %v9477
    %v9621 = vmax.f32 %v9305, %v9479
    %v9622 = vmax.f32 %v9306, %v9478
    %v9623 = vmax.f32 %v9307, %v9482
    %v9624 = vmax.f32 %v9308, %v9484
    %v9625 = vmax.f32 %v9309, %v9486
    %v9626 = vmax.f32 %v9310, %v9488
    %v9627 = vmax.f32 %v9311, %v9490
    %v9628 = vmax.f32 %v9312, %v9492
    %v9629 = vmax.f32 %v9313, %v9494
    %v9630 = vmax.f32 %v9314, %v9496
    %v9631 = vmax.f32 %v9315, %v9498
    %v9632 = vmax.f32 %v9316, %v9500
    %v9633 = vmax.f32 %v9317, %v9502
    %v9634 = vmax.f32 %v9318, %v9504
    %v9635 = vmax.f32 %v9319, %v9506
    %v9636 = vmax.f32 %v9320, %v9508
    %v9637 = vmax.f32 %v9321, %v9510
    %v9638 = vmax.f32 %v9322, %v9509
    %v9639 = vsel %vm203, %v9590, %v9274
    %v9640 = vsel %vm203, %v9606, %v9290
    %v9641 = vsel %vm203, %v9622, %v9306
    %v9642 = vsel %vm203, %v9638, %v9322
    %v9643 = vmax.f32 %v9575, %v9591
    %v9644 = vmax.f32 %v9576, %v9592
    %v9645 = vmax.f32 %v9577, %v9593
    %v9646 = vmax.f32 %v9578, %v9594
    %v9647 = vmax.f32 %v9579, %v9595
    %v9648 = vmax.f32 %v9580, %v9596
    %v9649 = vmax.f32 %v9581, %v9597
    %v9650 = vmax.f32 %v9582, %v9598
    %v9651 = vmax.f32 %v9583, %v9599
    %v9652 = vmax.f32 %v9584, %v9600
    %v9653 = vmax.f32 %v9585, %v9601
    %v9654 = vmax.f32 %v9586, %v9602
    %v9655 = vmax.f32 %v9587, %v9603
    %v9656 = vmax.f32 %v9588, %v9604
    %v9657 = vmax.f32 %v9589, %v9605
    %v9658 = vmax.f32 %v9639, %v9640
    %v9659 = vmax.f32 %v9607, %v9623
    %v9660 = vmax.f32 %v9608, %v9624
    %v9661 = vmax.f32 %v9609, %v9625
    %v9662 = vmax.f32 %v9610, %v9626
    %v9663 = vmax.f32 %v9611, %v9627
    %v9664 = vmax.f32 %v9612, %v9628
    %v9665 = vmax.f32 %v9613, %v9629
    %v9666 = vmax.f32 %v9614, %v9630
    %v9667 = vmax.f32 %v9615, %v9631
    %v9668 = vmax.f32 %v9616, %v9632
    %v9669 = vmax.f32 %v9617, %v9633
    %v9670 = vmax.f32 %v9618, %v9634
    %v9671 = vmax.f32 %v9619, %v9635
    %v9672 = vmax.f32 %v9620, %v9636
    %v9673 = vmax.f32 %v9621, %v9637
    %v9674 = vmax.f32 %v9641, %v9642
    %9675 = vxpose.xlu0.b32.start [1/16] %v2518, 128
    %9676 = vxpose.xlu0.b32.cont [2/16] %v2519, 128
    %9677 = vxpose.xlu0.b32.cont [3/16] %v2520, 128
    %9678 = vxpose.xlu0.b32.cont [4/16] %v2521, 128
    %9679 = vxpose.xlu0.b32.cont [5/16] %v2522, 128
    %9680 = vxpose.xlu0.b32.cont [6/16] %v2523, 128
    %9681 = vxpose.xlu0.b32.cont [7/16] %v2524, 128
    %9682 = vxpose.xlu0.b32.cont [8/16] %v2525, 128
    %9683 = vxpose.xlu0.b32.cont [9/16] %v2526, 128
    %9684 = vxpose.xlu0.b32.cont [10/16] %v2527, 128
    %9685 = vxpose.xlu0.b32.cont [11/16] %v2528, 128
    %9686 = vxpose.xlu0.b32.cont [12/16] %v2529, 128
    %9687 = vxpose.xlu0.b32.cont [13/16] %v2530, 128
    %9688 = vxpose.xlu0.b32.cont [14/16] %v2531, 128
    %9689 = vxpose.xlu0.b32.cont [15/16] %v2532, 128
    %9690 = vxpose.xlu0.b32.end [16/16] %v2533, 128
    %v9691 = vpop.trf.xlu0
    %v9692 = vpop.trf.xlu0
    %v9693 = vpop.trf.xlu0
    %v9694 = vpop.trf.xlu0
    %v9695 = vpop.trf.xlu0
    %v9696 = vpop.trf.xlu0
    %v9697 = vpop.trf.xlu0
    %v9698 = vpop.trf.xlu0
    %v9699 = vpop.trf.xlu0
    %v9700 = vpop.trf.xlu0
    %v9701 = vpop.trf.xlu0
    %v9702 = vpop.trf.xlu0
    %v9703 = vpop.trf.xlu0
    %v9704 = vpop.trf.xlu0
    %v9705 = vpop.trf.xlu0
    %v9706 = vpop.trf.xlu0
    %9707 = vxpose.xlu0.b32.start [1/16] %v9643, 128
    %9708 = vxpose.xlu0.b32.cont [2/16] %v9644, 128
    %9709 = vxpose.xlu0.b32.cont [3/16] %v9645, 128
    %9710 = vxpose.xlu0.b32.cont [4/16] %v9646, 128
    %9711 = vxpose.xlu0.b32.cont [5/16] %v9647, 128
    %9712 = vxpose.xlu0.b32.cont [6/16] %v9648, 128
    %9713 = vxpose.xlu0.b32.cont [7/16] %v9649, 128
    %9714 = vxpose.xlu0.b32.cont [8/16] %v9650, 128
    %9715 = vxpose.xlu0.b32.cont [9/16] %v9651, 128
    %9716 = vxpose.xlu0.b32.cont [10/16] %v9652, 128
    %9717 = vxpose.xlu0.b32.cont [11/16] %v9653, 128
    %9718 = vxpose.xlu0.b32.cont [12/16] %v9654, 128
    %9719 = vxpose.xlu0.b32.cont [13/16] %v9655, 128
    %9720 = vxpose.xlu0.b32.cont [14/16] %v9656, 128
    %9721 = vxpose.xlu0.b32.cont [15/16] %v9657, 128
    %9722 = vxpose.xlu0.b32.end [16/16] %v9658, 128
    %v9723 = vpop.trf.xlu0
    %v9724 = vpop.trf.xlu0
    %v9725 = vpop.trf.xlu0
    %v9726 = vpop.trf.xlu0
    %v9727 = vpop.trf.xlu0
    %v9728 = vpop.trf.xlu0
    %v9729 = vpop.trf.xlu0
    %v9730 = vpop.trf.xlu0
    %v9731 = vpop.trf.xlu0
    %v9732 = vpop.trf.xlu0
    %v9733 = vpop.trf.xlu0
    %v9734 = vpop.trf.xlu0
    %v9735 = vpop.trf.xlu0
    %v9736 = vpop.trf.xlu0
    %v9737 = vpop.trf.xlu0
    %v9738 = vpop.trf.xlu0
    %9739 = vxpose.xlu0.b32.start [1/16] %v2466, 128
    %9740 = vxpose.xlu0.b32.cont [2/16] %v2467, 128
    %9741 = vxpose.xlu0.b32.cont [3/16] %v2468, 128
    %9742 = vxpose.xlu0.b32.cont [4/16] %v2469, 128
    %9743 = vxpose.xlu0.b32.cont [5/16] %v2470, 128
    %9744 = vxpose.xlu0.b32.cont [6/16] %v2471, 128
    %9745 = vxpose.xlu0.b32.cont [7/16] %v2472, 128
    %9746 = vxpose.xlu0.b32.cont [8/16] %v2473, 128
    %9747 = vxpose.xlu0.b32.cont [9/16] %v2474, 128
    %9748 = vxpose.xlu0.b32.cont [10/16] %v2475, 128
    %9749 = vxpose.xlu0.b32.cont [11/16] %v2476, 128
    %9750 = vxpose.xlu0.b32.cont [12/16] %v2477, 128
    %9751 = vxpose.xlu0.b32.cont [13/16] %v2478, 128
    %9752 = vxpose.xlu0.b32.cont [14/16] %v2479, 128
    %9753 = vxpose.xlu0.b32.cont [15/16] %v2480, 128
    %9754 = vxpose.xlu0.b32.end [16/16] %v2515, 128
    %v9755 = vpop.trf.xlu0
    %v9756 = vpop.trf.xlu0
    %v9757 = vpop.trf.xlu0
    %v9758 = vpop.trf.xlu0
    %v9759 = vpop.trf.xlu0
    %v9760 = vpop.trf.xlu0
    %v9761 = vpop.trf.xlu0
    %v9762 = vpop.trf.xlu0
    %v9763 = vpop.trf.xlu0
    %v9764 = vpop.trf.xlu0
    %v9765 = vpop.trf.xlu0
    %v9766 = vpop.trf.xlu0
    %v9767 = vpop.trf.xlu0
    %v9768 = vpop.trf.xlu0
    %v9769 = vpop.trf.xlu0
    %v9770 = vpop.trf.xlu0
    %9771 = vxpose.xlu0.b32.start [1/16] %v9591, 128
    %9772 = vxpose.xlu0.b32.cont [2/16] %v9592, 128
    %9773 = vxpose.xlu0.b32.cont [3/16] %v9593, 128
    %9774 = vxpose.xlu0.b32.cont [4/16] %v9594, 128
    %9775 = vxpose.xlu0.b32.cont [5/16] %v9595, 128
    %9776 = vxpose.xlu0.b32.cont [6/16] %v9596, 128
    %9777 = vxpose.xlu0.b32.cont [7/16] %v9597, 128
    %9778 = vxpose.xlu0.b32.cont [8/16] %v9598, 128
    %9779 = vxpose.xlu0.b32.cont [9/16] %v9599, 128
    %9780 = vxpose.xlu0.b32.cont [10/16] %v9600, 128
    %9781 = vxpose.xlu0.b32.cont [11/16] %v9601, 128
    %9782 = vxpose.xlu0.b32.cont [12/16] %v9602, 128
    %9783 = vxpose.xlu0.b32.cont [13/16] %v9603, 128
    %9784 = vxpose.xlu0.b32.cont [14/16] %v9604, 128
    %9785 = vxpose.xlu0.b32.cont [15/16] %v9605, 128
    %9786 = vxpose.xlu0.b32.end [16/16] %v9640, 128
    %v9787 = vpop.trf.xlu0
    %v9788 = vpop.trf.xlu0
    %v9789 = vpop.trf.xlu0
    %v9790 = vpop.trf.xlu0
    %v9791 = vpop.trf.xlu0
    %v9792 = vpop.trf.xlu0
    %v9793 = vpop.trf.xlu0
    %v9794 = vpop.trf.xlu0
    %v9795 = vpop.trf.xlu0
    %v9796 = vpop.trf.xlu0
    %v9797 = vpop.trf.xlu0
    %v9798 = vpop.trf.xlu0
    %v9799 = vpop.trf.xlu0
    %v9800 = vpop.trf.xlu0
    %v9801 = vpop.trf.xlu0
    %v9802 = vpop.trf.xlu0
    %9803 = vxpose.xlu0.b32.start [1/16] %v2534, 128
    %9804 = vxpose.xlu0.b32.cont [2/16] %v2535, 128
    %9805 = vxpose.xlu0.b32.cont [3/16] %v2536, 128
    %9806 = vxpose.xlu0.b32.cont [4/16] %v2537, 128
    %9807 = vxpose.xlu0.b32.cont [5/16] %v2538, 128
    %9808 = vxpose.xlu0.b32.cont [6/16] %v2539, 128
    %9809 = vxpose.xlu0.b32.cont [7/16] %v2540, 128
    %9810 = vxpose.xlu0.b32.cont [8/16] %v2541, 128
    %9811 = vxpose.xlu0.b32.cont [9/16] %v2542, 128
    %9812 = vxpose.xlu0.b32.cont [10/16] %v2543, 128
    %9813 = vxpose.xlu0.b32.cont [11/16] %v2544, 128
    %9814 = vxpose.xlu0.b32.cont [12/16] %v2545, 128
    %9815 = vxpose.xlu0.b32.cont [13/16] %v2546, 128
    %9816 = vxpose.xlu0.b32.cont [14/16] %v2547, 128
    %9817 = vxpose.xlu0.b32.cont [15/16] %v2548, 128
    %9818 = vxpose.xlu0.b32.end [16/16] %v2549, 128
    %v9819 = vpop.trf.xlu0
    %v9820 = vpop.trf.xlu0
    %v9821 = vpop.trf.xlu0
    %v9822 = vpop.trf.xlu0
    %v9823 = vpop.trf.xlu0
    %v9824 = vpop.trf.xlu0
    %v9825 = vpop.trf.xlu0
    %v9826 = vpop.trf.xlu0
    %v9827 = vpop.trf.xlu0
    %v9828 = vpop.trf.xlu0
    %v9829 = vpop.trf.xlu0
    %v9830 = vpop.trf.xlu0
    %v9831 = vpop.trf.xlu0
    %v9832 = vpop.trf.xlu0
    %v9833 = vpop.trf.xlu0
    %v9834 = vpop.trf.xlu0
    %9835 = vxpose.xlu0.b32.start [1/16] %v9659, 128
    %9836 = vxpose.xlu0.b32.cont [2/16] %v9660, 128
    %9837 = vxpose.xlu0.b32.cont [3/16] %v9661, 128
    %9838 = vxpose.xlu0.b32.cont [4/16] %v9662, 128
    %9839 = vxpose.xlu0.b32.cont [5/16] %v9663, 128
    %9840 = vxpose.xlu0.b32.cont [6/16] %v9664, 128
    %9841 = vxpose.xlu0.b32.cont [7/16] %v9665, 128
    %9842 = vxpose.xlu0.b32.cont [8/16] %v9666, 128
    %9843 = vxpose.xlu0.b32.cont [9/16] %v9667, 128
    %9844 = vxpose.xlu0.b32.cont [10/16] %v9668, 128
    %9845 = vxpose.xlu0.b32.cont [11/16] %v9669, 128
    %9846 = vxpose.xlu0.b32.cont [12/16] %v9670, 128
    %9847 = vxpose.xlu0.b32.cont [13/16] %v9671, 128
    %9848 = vxpose.xlu0.b32.cont [14/16] %v9672, 128
    %9849 = vxpose.xlu0.b32.cont [15/16] %v9673, 128
    %9850 = vxpose.xlu0.b32.end [16/16] %v9674, 128
    %v9851 = vpop.trf.xlu0
    %v9852 = vpop.trf.xlu0
    %v9853 = vpop.trf.xlu0
    %v9854 = vpop.trf.xlu0
    %v9855 = vpop.trf.xlu0
    %v9856 = vpop.trf.xlu0
    %v9857 = vpop.trf.xlu0
    %v9858 = vpop.trf.xlu0
    %v9859 = vpop.trf.xlu0
    %v9860 = vpop.trf.xlu0
    %v9861 = vpop.trf.xlu0
    %v9862 = vpop.trf.xlu0
    %v9863 = vpop.trf.xlu0
    %v9864 = vpop.trf.xlu0
    %v9865 = vpop.trf.xlu0
    %v9866 = vpop.trf.xlu0
    %9867 = vxpose.xlu0.b32.start [1/16] %v2498, 128
    %9868 = vxpose.xlu0.b32.cont [2/16] %v2499, 128
    %9869 = vxpose.xlu0.b32.cont [3/16] %v2500, 128
    %9870 = vxpose.xlu0.b32.cont [4/16] %v2501, 128
    %9871 = vxpose.xlu0.b32.cont [5/16] %v2502, 128
    %9872 = vxpose.xlu0.b32.cont [6/16] %v2503, 128
    %9873 = vxpose.xlu0.b32.cont [7/16] %v2504, 128
    %9874 = vxpose.xlu0.b32.cont [8/16] %v2505, 128
    %9875 = vxpose.xlu0.b32.cont [9/16] %v2506, 128
    %9876 = vxpose.xlu0.b32.cont [10/16] %v2507, 128
    %9877 = vxpose.xlu0.b32.cont [11/16] %v2508, 128
    %9878 = vxpose.xlu0.b32.cont [12/16] %v2509, 128
    %9879 = vxpose.xlu0.b32.cont [13/16] %v2510, 128
    %9880 = vxpose.xlu0.b32.cont [14/16] %v2511, 128
    %9881 = vxpose.xlu0.b32.cont [15/16] %v2512, 128
    %9882 = vxpose.xlu0.b32.end [16/16] %v2517, 128
    %v9883 = vpop.trf.xlu0
    %v9884 = vpop.trf.xlu0
    %v9885 = vpop.trf.xlu0
    %v9886 = vpop.trf.xlu0
    %v9887 = vpop.trf.xlu0
    %v9888 = vpop.trf.xlu0
    %v9889 = vpop.trf.xlu0
    %v9890 = vpop.trf.xlu0
    %v9891 = vpop.trf.xlu0
    %v9892 = vpop.trf.xlu0
    %v9893 = vpop.trf.xlu0
    %v9894 = vpop.trf.xlu0
    %v9895 = vpop.trf.xlu0
    %v9896 = vpop.trf.xlu0
    %v9897 = vpop.trf.xlu0
    %v9898 = vpop.trf.xlu0
    %9899 = vxpose.xlu0.b32.start [1/16] %v9623, 128
    %9900 = vxpose.xlu0.b32.cont [2/16] %v9624, 128
    %9901 = vxpose.xlu0.b32.cont [3/16] %v9625, 128
    %9902 = vxpose.xlu0.b32.cont [4/16] %v9626, 128
    %9903 = vxpose.xlu0.b32.cont [5/16] %v9627, 128
    %9904 = vxpose.xlu0.b32.cont [6/16] %v9628, 128
    %9905 = vxpose.xlu0.b32.cont [7/16] %v9629, 128
    %9906 = vxpose.xlu0.b32.cont [8/16] %v9630, 128
    %9907 = vxpose.xlu0.b32.cont [9/16] %v9631, 128
    %9908 = vxpose.xlu0.b32.cont [10/16] %v9632, 128
    %9909 = vxpose.xlu0.b32.cont [11/16] %v9633, 128
    %9910 = vxpose.xlu0.b32.cont [12/16] %v9634, 128
    %9911 = vxpose.xlu0.b32.cont [13/16] %v9635, 128
    %9912 = vxpose.xlu0.b32.cont [14/16] %v9636, 128
    %9913 = vxpose.xlu0.b32.cont [15/16] %v9637, 128
    %9914 = vxpose.xlu0.b32.end [16/16] %v9642, 128
    %v9915 = vpop.trf.xlu0
    %v9916 = vpop.trf.xlu0
    %v9917 = vpop.trf.xlu0
    %v9918 = vpop.trf.xlu0
    %v9919 = vpop.trf.xlu0
    %v9920 = vpop.trf.xlu0
    %v9921 = vpop.trf.xlu0
    %v9922 = vpop.trf.xlu0
    %v9923 = vpop.trf.xlu0
    %v9924 = vpop.trf.xlu0
    %v9925 = vpop.trf.xlu0
    %v9926 = vpop.trf.xlu0
    %v9927 = vpop.trf.xlu0
    %v9928 = vpop.trf.xlu0
    %v9929 = vpop.trf.xlu0
    %v9930 = vpop.trf.xlu0
    %v9959 = vrot.slane %v9819, 6
    %v9960 = vrot.slane %v9851, 6
    %v9961 = vrot.slane %v9883, 6
    %v9962 = vrot.slane %v9915, 6
    %v9963 = vrot.slane %v9820, 6
    %v9964 = vsel %vm2614, %v9959, %v9963
    %v9965 = vrot.slane %v9852, 6
    %v9966 = vsel %vm2614, %v9960, %v9965
    %v9967 = vrot.slane %v9884, 6
    %v9968 = vsel %vm2614, %v9961, %v9967
    %v9969 = vrot.slane %v9916, 6
    %v9970 = vsel %vm2614, %v9962, %v9969
    %v9971 = vrot.slane %v9821, 6
    %v9972 = vsel %vm2614, %v9963, %v9971
    %v9973 = vrot.slane %v9853, 6
    %v9974 = vsel %vm2614, %v9965, %v9973
    %v9975 = vrot.slane %v9885, 6
    %v9976 = vsel %vm2614, %v9967, %v9975
    %v9977 = vrot.slane %v9917, 6
    %v9978 = vsel %vm2614, %v9969, %v9977
    %v9979 = vrot.slane %v9822, 6
    %v9980 = vsel %vm2614, %v9971, %v9979
    %v9981 = vrot.slane %v9854, 6
    %v9982 = vsel %vm2614, %v9973, %v9981
    %v9983 = vrot.slane %v9886, 6
    %v9984 = vsel %vm2614, %v9975, %v9983
    %v9985 = vrot.slane %v9918, 6
    %v9986 = vsel %vm2614, %v9977, %v9985
    %v9987 = vrot.slane %v9823, 6
    %v9988 = vsel %vm2614, %v9979, %v9987
    %v9989 = vrot.slane %v9855, 6
    %v9990 = vsel %vm2614, %v9981, %v9989
    %v9991 = vrot.slane %v9887, 6
    %v9992 = vsel %vm2614, %v9983, %v9991
    %v9993 = vrot.slane %v9919, 6
    %v9994 = vsel %vm2614, %v9985, %v9993
    %v9995 = vrot.slane %v9824, 6
    %v9996 = vsel %vm2614, %v9987, %v9995
    %v9997 = vrot.slane %v9856, 6
    %v9998 = vsel %vm2614, %v9989, %v9997
    %v9999 = vrot.slane %v9888, 6
    %v10000 = vsel %vm2614, %v9991, %v9999
    %v10001 = vrot.slane %v9920, 6
    %v10002 = vsel %vm2614, %v9993, %v10001
    %v10003 = vrot.slane %v9825, 6
    %v10004 = vsel %vm2614, %v9995, %v10003
    %v10005 = vrot.slane %v9857, 6
    %v10006 = vsel %vm2614, %v9997, %v10005
    %v10007 = vrot.slane %v9889, 6
    %v10008 = vsel %vm2614, %v9999, %v10007
    %v10009 = vrot.slane %v9921, 6
    %v10010 = vsel %vm2614, %v10001, %v10009
    %v10039 = vsel %vm2614, %v9697, %v9959
    %v10040 = vsel %vm2614, %v9729, %v9960
    %v10041 = vsel %vm2614, %v9761, %v9961
    %v10042 = vsel %vm2614, %v9793, %v9962
    %v10043 = vpack.c.bf16 %v9692, %v9691
    %v10044 = vpack.c.bf16 %v9724, %v9723
    %v10045 = vpack.c.bf16 %v9756, %v9755
    %v10046 = vpack.c.bf16 %v9788, %v9787
    %v10047 = vpack.c.bf16 %v9694, %v9693
    %v10048 = vpack.c.bf16 %v9726, %v9725
    %v10049 = vpack.c.bf16 %v9758, %v9757
    %v10050 = vpack.c.bf16 %v9790, %v9789
    %v10051 = vpack.c.bf16 %v9696, %v9695
    %v10052 = vpack.c.bf16 %v9728, %v9727
    %v10053 = vpack.c.bf16 %v9760, %v9759
    %v10054 = vpack.c.bf16 %v9792, %v9791
    %v10055 = vpack.c.bf16 %v9964, %v10039
    %v10056 = vpack.c.bf16 %v9966, %v10040
    %v10057 = vpack.c.bf16 %v9968, %v10041
    %v10058 = vpack.c.bf16 %v9970, %v10042
    %v10059 = vpack.c.bf16 %v9980, %v9972
    %v10060 = vpack.c.bf16 %v9982, %v9974
    %v10061 = vpack.c.bf16 %v9984, %v9976
    %v10062 = vpack.c.bf16 %v9986, %v9978
    %v10063 = vpack.c.bf16 %v9996, %v9988
    %v10064 = vpack.c.bf16 %v9998, %v9990
    %v10065 = vpack.c.bf16 %v10000, %v9992
    %v10066 = vpack.c.bf16 %v10002, %v9994
    %v10067 = vpack.c.bf16 %v10004, %v10004
    %v10068 = vpack.c.bf16 %v10006, %v10006
    %v10069 = vpack.c.bf16 %v10008, %v10008
    %v10070 = vpack.c.bf16 %v10010, %v10010
    %v10071 = vld [vmem:[%s7] sm:$0xff]
    %v10072 = vld [vmem:[%s7 + $0x8] sm:$0xf]
    %v10073 = vld [vmem:[%s7 + $0xc] sm:$0xff]
    %v10074 = vld [vmem:[%s7 + $0x14] sm:$0xf]
    %v10075 = vld [vmem:[%s7 + $0x18] sm:$0xff]
    %v10076 = vld [vmem:[%s7 + $0x20] sm:$0xf]
    %v10077 = vld [vmem:[%s7 + $0x24] sm:$0xff]
    %v10078 = vld [vmem:[%s7 + $0x2c] sm:$0xf]
    %v10079 = vld [vmem:[%s7 + $0x30] sm:$0xff]
    %v10080 = vld [vmem:[%s7 + $0x38] sm:$0xf]
    %v10081 = vld [vmem:[%s7 + $0x3c] sm:$0xff]
    %v10082 = vld [vmem:[%s7 + $0x44] sm:$0xf]
    %v10083 = vld [vmem:[%s7 + $0x48] sm:$0xff]
    %v10084 = vld [vmem:[%s7 + $0x50] sm:$0xf]
    %v10085 = vld [vmem:[%s7 + $0x54] sm:$0xff]
    %v10086 = vld [vmem:[%s7 + $0x5c] sm:$0xf]
    %v10087 = vld [vmem:[%s7 + $0x60] sm:$0xff]
    %v10088 = vld [vmem:[%s7 + $0x68] sm:$0xf]
    %v10089 = vld [vmem:[%s7 + $0x6c] sm:$0xff]
    %v10090 = vld [vmem:[%s7 + $0x74] sm:$0xf]
    %v10091 = vld [vmem:[%s7 + $0x78] sm:$0xff]
    %v10092 = vld [vmem:[%s7 + $0x80] sm:$0xf]
    %v10093 = vld [vmem:[%s7 + $0x84] sm:$0xff]
    %v10094 = vld [vmem:[%s7 + $0x8c] sm:$0xf]
    %v10095 = vld [vmem:[%s7 + $0x90] sm:$0xff]
    %v10096 = vld [vmem:[%s7 + $0x98] sm:$0xf]
    %v10097 = vld [vmem:[%s7 + $0x9c] sm:$0xff]
    %v10098 = vld [vmem:[%s7 + $0xa4] sm:$0xf]
    %v10099 = vld [vmem:[%s7 + $0xa8] sm:$0xff]
    %v10100 = vld [vmem:[%s7 + $0xb0] sm:$0xf]
    %v10101 = vld [vmem:[%s7 + $0xb4] sm:$0xff]
    %v10102 = vld [vmem:[%s7 + $0xbc] sm:$0xf]
    %v10103 = vld [vmem:[%s7 + $0xc0] sm:$0xff]
    %v10104 = vld [vmem:[%s7 + $0xc8] sm:$0xf]
    %v10105 = vld [vmem:[%s7 + $0xcc] sm:$0xff]
    %v10106 = vld [vmem:[%s7 + $0xd4] sm:$0xf]
    %v10107 = vld [vmem:[%s7 + $0xd8] sm:$0xff]
    %v10108 = vld [vmem:[%s7 + $0xe0] sm:$0xf]
    %v10109 = vld [vmem:[%s7 + $0xe4] sm:$0xff]
    %v10110 = vld [vmem:[%s7 + $0xec] sm:$0xf]
    %v10111 = vld [vmem:[%s7 + $0xf0] sm:$0xff]
    %v10112 = vld [vmem:[%s7 + $0xf8] sm:$0xf]
    %v10113 = vld [vmem:[%s7 + $0xfc] sm:$0xff]
    %v10114 = vld [vmem:[%s7 + $0x104] sm:$0xf]
    %v10115 = vld [vmem:[%s7 + $0x108] sm:$0xff]
    %v10116 = vld [vmem:[%s7 + $0x110] sm:$0xf]
    %v10117 = vld [vmem:[%s7 + $0x114] sm:$0xff]
    %v10118 = vld [vmem:[%s7 + $0x11c] sm:$0xf]
    %v10119 = vld [vmem:[%s7 + $0x120] sm:$0xff]
    %v10120 = vld [vmem:[%s7 + $0x128] sm:$0xf]
    %v10121 = vld [vmem:[%s7 + $0x12c] sm:$0xff]
    %v10122 = vld [vmem:[%s7 + $0x134] sm:$0xf]
    %v10123 = vld [vmem:[%s7 + $0x138] sm:$0xff]
    %v10124 = vld [vmem:[%s7 + $0x140] sm:$0xf]
    %v10125 = vld [vmem:[%s7 + $0x144] sm:$0xff]
    %v10126 = vld [vmem:[%s7 + $0x14c] sm:$0xf]
    %v10127 = vld [vmem:[%s7 + $0x150] sm:$0xff]
    %v10128 = vld [vmem:[%s7 + $0x158] sm:$0xf]
    %v10129 = vld [vmem:[%s7 + $0x15c] sm:$0xff]
    %v10130 = vld [vmem:[%s7 + $0x164] sm:$0xf]
    %v10131 = vld [vmem:[%s7 + $0x168] sm:$0xff]
    %v10132 = vld [vmem:[%s7 + $0x170] sm:$0xf]
    %v10133 = vld [vmem:[%s7 + $0x174] sm:$0xff]
    %v10134 = vld [vmem:[%s7 + $0x17c] sm:$0xf]
    %v10135 = vld [vmem:[%s7 + $0x180] sm:$0xff]
    %v10136 = vld [vmem:[%s7 + $0x188] sm:$0xf]
    %v10137 = vld [vmem:[%s7 + $0x18c] sm:$0xff]
    %v10138 = vld [vmem:[%s7 + $0x194] sm:$0xf]
    %v10139 = vld [vmem:[%s7 + $0x198] sm:$0xff]
    %v10140 = vld [vmem:[%s7 + $0x1a0] sm:$0xf]
    %v10141 = vld [vmem:[%s7 + $0x1a4] sm:$0xff]
    %v10142 = vld [vmem:[%s7 + $0x1ac] sm:$0xf]
    %v10143 = vld [vmem:[%s7 + $0x1b0] sm:$0xff]
    %v10144 = vld [vmem:[%s7 + $0x1b8] sm:$0xf]
    %v10145 = vld [vmem:[%s7 + $0x1bc] sm:$0xff]
    %v10146 = vld [vmem:[%s7 + $0x1c4] sm:$0xf]
    %v10147 = vld [vmem:[%s7 + $0x1c8] sm:$0xff]
    %v10148 = vld [vmem:[%s7 + $0x1d0] sm:$0xf]
    %v10149 = vld [vmem:[%s7 + $0x1d4] sm:$0xff]
    %v10150 = vld [vmem:[%s7 + $0x1dc] sm:$0xf]
    %v10151 = vld [vmem:[%s7 + $0x1e0] sm:$0xff]
    %v10152 = vld [vmem:[%s7 + $0x1e8] sm:$0xf]
    %v10153 = vld [vmem:[%s7 + $0x1ec] sm:$0xff]
    %v10154 = vld [vmem:[%s7 + $0x1f4] sm:$0xf]
    %v10155 = vld [vmem:[%s7 + $0x1f8] sm:$0xff]
    %v10156 = vld [vmem:[%s7 + $0x200] sm:$0xf]
    %v10157 = vld [vmem:[%s7 + $0x204] sm:$0xff]
    %v10158 = vld [vmem:[%s7 + $0x20c] sm:$0xf]
    %v10159 = vld [vmem:[%s7 + $0x210] sm:$0xff]
    %v10160 = vld [vmem:[%s7 + $0x218] sm:$0xf]
    %v10161 = vld [vmem:[%s7 + $0x21c] sm:$0xff]
    %v10162 = vld [vmem:[%s7 + $0x224] sm:$0xf]
    %v10163 = vld [vmem:[%s7 + $0x228] sm:$0xff]
    %v10164 = vld [vmem:[%s7 + $0x230] sm:$0xf]
    %v10165 = vld [vmem:[%s7 + $0x234] sm:$0xff]
    %v10166 = vld [vmem:[%s7 + $0x23c] sm:$0xf]
    %v10167 = vld [vmem:[%s7 + $0x240] sm:$0xff]
    %v10168 = vld [vmem:[%s7 + $0x248] sm:$0xf]
    %v10169 = vld [vmem:[%s7 + $0x24c] sm:$0xff]
    %v10170 = vld [vmem:[%s7 + $0x254] sm:$0xf]
    %v10171 = vld [vmem:[%s7 + $0x258] sm:$0xff]
    %v10172 = vld [vmem:[%s7 + $0x260] sm:$0xf]
    %v10173 = vld [vmem:[%s7 + $0x264] sm:$0xff]
    %v10174 = vld [vmem:[%s7 + $0x26c] sm:$0xf]
    %v10175 = vld [vmem:[%s7 + $0x270] sm:$0xff]
    %v10176 = vld [vmem:[%s7 + $0x278] sm:$0xf]
    %v10177 = vld [vmem:[%s7 + $0x27c] sm:$0xff]
    %v10178 = vld [vmem:[%s7 + $0x284] sm:$0xf]
    %v10179 = vld [vmem:[%s7 + $0x288] sm:$0xff]
    %v10180 = vld [vmem:[%s7 + $0x290] sm:$0xf]
    %v10181 = vld [vmem:[%s7 + $0x294] sm:$0xff]
    %v10182 = vld [vmem:[%s7 + $0x29c] sm:$0xf]
    %v10183 = vld [vmem:[%s7 + $0x2a0] sm:$0xff]
    %v10184 = vld [vmem:[%s7 + $0x2a8] sm:$0xf]
    %v10185 = vld [vmem:[%s7 + $0x2ac] sm:$0xff]
    %v10186 = vld [vmem:[%s7 + $0x2b4] sm:$0xf]
    %v10187 = vld [vmem:[%s7 + $0x2b8] sm:$0xff]
    %v10188 = vld [vmem:[%s7 + $0x2c0] sm:$0xf]
    %v10189 = vld [vmem:[%s7 + $0x2c4] sm:$0xff]
    %v10190 = vld [vmem:[%s7 + $0x2cc] sm:$0xf]
    %v10191 = vld [vmem:[%s7 + $0x2d0] sm:$0xff]
    %v10192 = vld [vmem:[%s7 + $0x2d8] sm:$0xf]
    %v10193 = vld [vmem:[%s7 + $0x2dc] sm:$0xff]
    %v10194 = vld [vmem:[%s7 + $0x2e4] sm:$0xf]
    %v10195 = vld [vmem:[%s7 + $0x2e8] sm:$0xff]
    %v10196 = vld [vmem:[%s7 + $0x2f0] sm:$0xf]
    %v10197 = vld [vmem:[%s7 + $0x2f4] sm:$0xff]
    %v10198 = vld [vmem:[%s7 + $0x2fc] sm:$0xf]
    %v10199 = vld [vmem:[%s9] sm:$0x7]
    %v10201 = vlaneseq
    %v10202 = vshrl.u32 %v10201, 7
    %v10203 = vsub.s32 0, %v10202
    %v10204 = vrot.slane %v10199, %v10203
    %v10205 = vlaneseq
    %v10206 = vshrl.u32 %v10205, 7
    %v10207 = vsub.s32 1, %v10206
    %v10208 = vrot.slane %v10199, %v10207
    %v10209 = vlaneseq
    %v10210 = vshrl.u32 %v10209, 7
    %v10211 = vsub.s32 2, %v10210
    %v10212 = vrot.slane %v10199, %v10211
    %v10344 = vunpack.c.l.b16 %v10071
    %v10345 = vunpack.c.h.b16 %v10071
    %v10346 = vunpack.c.l.b16 %v10072
    %v10347 = vunpack.c.l.b16 %v10073
    %v10348 = vunpack.c.h.b16 %v10073
    %v10349 = vunpack.c.l.b16 %v10074
    %v10350 = vunpack.c.l.b16 %v10075
    %v10351 = vunpack.c.h.b16 %v10075
    %v10352 = vunpack.c.l.b16 %v10076
    %v10353 = vunpack.c.l.b16 %v10077
    %v10354 = vunpack.c.h.b16 %v10077
    %v10355 = vunpack.c.l.b16 %v10078
    %v10356 = vunpack.c.l.b16 %v10079
    %v10357 = vunpack.c.h.b16 %v10079
    %v10358 = vunpack.c.l.b16 %v10080
    %v10359 = vunpack.c.l.b16 %v10081
    %v10360 = vunpack.c.h.b16 %v10081
    %v10361 = vunpack.c.l.b16 %v10082
    %v10362 = vunpack.c.l.b16 %v10083
    %v10363 = vunpack.c.h.b16 %v10083
    %v10364 = vunpack.c.l.b16 %v10084
    %v10365 = vunpack.c.l.b16 %v10085
    %v10366 = vunpack.c.h.b16 %v10085
    %v10367 = vunpack.c.l.b16 %v10086
    %v10368 = vunpack.c.l.b16 %v10087
    %v10369 = vunpack.c.h.b16 %v10087
    %v10370 = vunpack.c.l.b16 %v10088
    %v10371 = vunpack.c.l.b16 %v10089
    %v10372 = vunpack.c.h.b16 %v10089
    %v10373 = vunpack.c.l.b16 %v10090
    %v10374 = vunpack.c.l.b16 %v10091
    %v10375 = vunpack.c.h.b16 %v10091
    %v10376 = vunpack.c.l.b16 %v10092
    %v10377 = vunpack.c.l.b16 %v10093
    %v10378 = vunpack.c.h.b16 %v10093
    %v10379 = vunpack.c.l.b16 %v10094
    %v10380 = vunpack.c.l.b16 %v10095
    %v10381 = vunpack.c.h.b16 %v10095
    %v10382 = vunpack.c.l.b16 %v10096
    %v10383 = vunpack.c.l.b16 %v10097
    %v10384 = vunpack.c.h.b16 %v10097
    %v10385 = vunpack.c.l.b16 %v10098
    %v10386 = vunpack.c.l.b16 %v10099
    %v10387 = vunpack.c.h.b16 %v10099
    %v10388 = vunpack.c.l.b16 %v10100
    %v10389 = vunpack.c.l.b16 %v10101
    %v10390 = vunpack.c.h.b16 %v10101
    %v10391 = vunpack.c.l.b16 %v10102
    %v10392 = vunpack.c.l.b16 %v10103
    %v10393 = vunpack.c.h.b16 %v10103
    %v10394 = vunpack.c.l.b16 %v10104
    %v10395 = vunpack.c.l.b16 %v10105
    %v10396 = vunpack.c.h.b16 %v10105
    %v10397 = vunpack.c.l.b16 %v10106
    %v10398 = vunpack.c.l.b16 %v10107
    %v10399 = vunpack.c.h.b16 %v10107
    %v10400 = vunpack.c.l.b16 %v10108
    %v10401 = vunpack.c.l.b16 %v10109
    %v10402 = vunpack.c.h.b16 %v10109
    %v10403 = vunpack.c.l.b16 %v10110
    %v10404 = vunpack.c.l.b16 %v10111
    %v10405 = vunpack.c.h.b16 %v10111
    %v10406 = vunpack.c.l.b16 %v10112
    %v10407 = vunpack.c.l.b16 %v10113
    %v10408 = vunpack.c.h.b16 %v10113
    %v10409 = vunpack.c.l.b16 %v10114
    %v10410 = vunpack.c.l.b16 %v10115
    %v10411 = vunpack.c.h.b16 %v10115
    %v10412 = vunpack.c.l.b16 %v10116
    %v10413 = vunpack.c.l.b16 %v10117
    %v10414 = vunpack.c.h.b16 %v10117
    %v10415 = vunpack.c.l.b16 %v10118
    %v10416 = vunpack.c.l.b16 %v10119
    %v10417 = vunpack.c.h.b16 %v10119
    %v10418 = vunpack.c.l.b16 %v10120
    %v10419 = vunpack.c.l.b16 %v10121
    %v10420 = vunpack.c.h.b16 %v10121
    %v10421 = vunpack.c.l.b16 %v10122
    %v10422 = vunpack.c.l.b16 %v10123
    %v10423 = vunpack.c.h.b16 %v10123
    %v10424 = vunpack.c.l.b16 %v10124
    %v10425 = vunpack.c.l.b16 %v10125
    %v10426 = vunpack.c.h.b16 %v10125
    %v10427 = vunpack.c.l.b16 %v10126
    %v10428 = vunpack.c.l.b16 %v10127
    %v10429 = vunpack.c.h.b16 %v10127
    %v10430 = vunpack.c.l.b16 %v10128
    %v10431 = vunpack.c.l.b16 %v10129
    %v10432 = vunpack.c.h.b16 %v10129
    %v10433 = vunpack.c.l.b16 %v10130
    %v10434 = vunpack.c.l.b16 %v10131
    %v10435 = vunpack.c.h.b16 %v10131
    %v10436 = vunpack.c.l.b16 %v10132
    %v10437 = vunpack.c.l.b16 %v10133
    %v10438 = vunpack.c.h.b16 %v10133
    %v10439 = vunpack.c.l.b16 %v10134
    %v10440 = vunpack.c.l.b16 %v10135
    %v10441 = vunpack.c.h.b16 %v10135
    %v10442 = vunpack.c.l.b16 %v10136
    %v10443 = vunpack.c.l.b16 %v10137
    %v10444 = vunpack.c.h.b16 %v10137
    %v10445 = vunpack.c.l.b16 %v10138
    %v10446 = vunpack.c.l.b16 %v10139
    %v10447 = vunpack.c.h.b16 %v10139
    %v10448 = vunpack.c.l.b16 %v10140
    %v10449 = vunpack.c.l.b16 %v10141
    %v10450 = vunpack.c.h.b16 %v10141
    %v10451 = vunpack.c.l.b16 %v10142
    %v10452 = vunpack.c.l.b16 %v10143
    %v10453 = vunpack.c.h.b16 %v10143
    %v10454 = vunpack.c.l.b16 %v10144
    %v10455 = vunpack.c.l.b16 %v10145
    %v10456 = vunpack.c.h.b16 %v10145
    %v10457 = vunpack.c.l.b16 %v10146
    %v10458 = vunpack.c.l.b16 %v10147
    %v10459 = vunpack.c.h.b16 %v10147
    %v10460 = vunpack.c.l.b16 %v10148
    %v10461 = vunpack.c.l.b16 %v10149
    %v10462 = vunpack.c.h.b16 %v10149
    %v10463 = vunpack.c.l.b16 %v10150
    %v10464 = vunpack.c.l.b16 %v10151
    %v10465 = vunpack.c.h.b16 %v10151
    %v10466 = vunpack.c.l.b16 %v10152
    %v10467 = vunpack.c.l.b16 %v10153
    %v10468 = vunpack.c.h.b16 %v10153
    %v10469 = vunpack.c.l.b16 %v10154
    %v10470 = vunpack.c.l.b16 %v10155
    %v10471 = vunpack.c.h.b16 %v10155
    %v10472 = vunpack.c.l.b16 %v10156
    %v10473 = vunpack.c.l.b16 %v10157
    %v10474 = vunpack.c.h.b16 %v10157
    %v10475 = vunpack.c.l.b16 %v10158
    %v10476 = vunpack.c.l.b16 %v10159
    %v10477 = vunpack.c.h.b16 %v10159
    %v10478 = vunpack.c.l.b16 %v10160
    %v10479 = vunpack.c.l.b16 %v10161
    %v10480 = vunpack.c.h.b16 %v10161
    %v10481 = vunpack.c.l.b16 %v10162
    %v10482 = vunpack.c.l.b16 %v10163
    %v10483 = vunpack.c.h.b16 %v10163
    %v10484 = vunpack.c.l.b16 %v10164
    %v10485 = vunpack.c.l.b16 %v10165
    %v10486 = vunpack.c.h.b16 %v10165
    %v10487 = vunpack.c.l.b16 %v10166
    %v10488 = vunpack.c.l.b16 %v10167
    %v10489 = vunpack.c.h.b16 %v10167
    %v10490 = vunpack.c.l.b16 %v10168
    %v10491 = vunpack.c.l.b16 %v10169
    %v10492 = vunpack.c.h.b16 %v10169
    %v10493 = vunpack.c.l.b16 %v10170
    %v10494 = vunpack.c.l.b16 %v10171
    %v10495 = vunpack.c.h.b16 %v10171
    %v10496 = vunpack.c.l.b16 %v10172
    %v10497 = vunpack.c.l.b16 %v10173
    %v10498 = vunpack.c.h.b16 %v10173
    %v10499 = vunpack.c.l.b16 %v10174
    %v10500 = vunpack.c.l.b16 %v10175
    %v10501 = vunpack.c.h.b16 %v10175
    %v10502 = vunpack.c.l.b16 %v10176
    %v10503 = vunpack.c.l.b16 %v10177
    %v10504 = vunpack.c.h.b16 %v10177
    %v10505 = vunpack.c.l.b16 %v10178
    %v10506 = vunpack.c.l.b16 %v10179
    %v10507 = vunpack.c.h.b16 %v10179
    %v10508 = vunpack.c.l.b16 %v10180
    %v10509 = vunpack.c.l.b16 %v10181
    %v10510 = vunpack.c.h.b16 %v10181
    %v10511 = vunpack.c.l.b16 %v10182
    %v10512 = vunpack.c.l.b16 %v10183
    %v10513 = vunpack.c.h.b16 %v10183
    %v10514 = vunpack.c.l.b16 %v10184
    %v10515 = vunpack.c.l.b16 %v10185
    %v10516 = vunpack.c.h.b16 %v10185
    %v10517 = vunpack.c.l.b16 %v10186
    %v10518 = vunpack.c.l.b16 %v10187
    %v10519 = vunpack.c.h.b16 %v10187
    %v10520 = vunpack.c.l.b16 %v10188
    %v10521 = vunpack.c.l.b16 %v10189
    %v10522 = vunpack.c.h.b16 %v10189
    %v10523 = vunpack.c.l.b16 %v10190
    %v10524 = vunpack.c.l.b16 %v10191
    %v10525 = vunpack.c.h.b16 %v10191
    %v10526 = vunpack.c.l.b16 %v10192
    %v10527 = vunpack.c.l.b16 %v10193
    %v10528 = vunpack.c.h.b16 %v10193
    %v10529 = vunpack.c.l.b16 %v10194
    %v10530 = vunpack.c.l.b16 %v10195
    %v10531 = vunpack.c.h.b16 %v10195
    %v10532 = vunpack.c.l.b16 %v10196
    %v10533 = vunpack.c.l.b16 %v10197
    %v10534 = vunpack.c.h.b16 %v10197
    %v10535 = vunpack.c.l.b16 %v10198
    %v10536 = vpack.c.b16 %v10347, %v10344
    %v10537 = vpack.c.b16 %v10348, %v10345
    %v10538 = vpack.c.b16 %v10349, %v10346
    %v10539 = vpack.c.b16 %v10353, %v10350
    %v10540 = vpack.c.b16 %v10354, %v10351
    %v10541 = vpack.c.b16 %v10355, %v10352
    %v10542 = vpack.c.b16 %v10359, %v10356
    %v10543 = vpack.c.b16 %v10360, %v10357
    %v10544 = vpack.c.b16 %v10361, %v10358
    %v10545 = vpack.c.b16 %v10365, %v10362
    %v10546 = vpack.c.b16 %v10366, %v10363
    %v10547 = vpack.c.b16 %v10367, %v10364
    %v10548 = vpack.c.b16 %v10371, %v10368
    %v10549 = vpack.c.b16 %v10372, %v10369
    %v10550 = vpack.c.b16 %v10373, %v10370
    %v10551 = vpack.c.b16 %v10377, %v10374
    %v10552 = vpack.c.b16 %v10378, %v10375
    %v10553 = vpack.c.b16 %v10379, %v10376
    %v10554 = vpack.c.b16 %v10383, %v10380
    %v10555 = vpack.c.b16 %v10384, %v10381
    %v10556 = vpack.c.b16 %v10385, %v10382
    %v10557 = vpack.c.b16 %v10389, %v10386
    %v10558 = vpack.c.b16 %v10390, %v10387
    %v10559 = vpack.c.b16 %v10391, %v10388
    %v10560 = vpack.c.b16 %v10395, %v10392
    %v10561 = vpack.c.b16 %v10396, %v10393
    %v10562 = vpack.c.b16 %v10397, %v10394
    %v10563 = vpack.c.b16 %v10401, %v10398
    %v10564 = vpack.c.b16 %v10402, %v10399
    %v10565 = vpack.c.b16 %v10403, %v10400
    %v10566 = vpack.c.b16 %v10407, %v10404
    %v10567 = vpack.c.b16 %v10408, %v10405
    %v10568 = vpack.c.b16 %v10409, %v10406
    %v10569 = vpack.c.b16 %v10413, %v10410
    %v10570 = vpack.c.b16 %v10414, %v10411
    %v10571 = vpack.c.b16 %v10415, %v10412
    %v10572 = vpack.c.b16 %v10419, %v10416
    %v10573 = vpack.c.b16 %v10420, %v10417
    %v10574 = vpack.c.b16 %v10421, %v10418
    %v10575 = vpack.c.b16 %v10425, %v10422
    %v10576 = vpack.c.b16 %v10426, %v10423
    %v10577 = vpack.c.b16 %v10427, %v10424
    %v10578 = vpack.c.b16 %v10431, %v10428
    %v10579 = vpack.c.b16 %v10432, %v10429
    %v10580 = vpack.c.b16 %v10433, %v10430
    %v10581 = vpack.c.b16 %v10437, %v10434
    %v10582 = vpack.c.b16 %v10438, %v10435
    %v10583 = vpack.c.b16 %v10439, %v10436
    %v10584 = vpack.c.b16 %v10443, %v10440
    %v10585 = vpack.c.b16 %v10444, %v10441
    %v10586 = vpack.c.b16 %v10445, %v10442
    %v10587 = vpack.c.b16 %v10449, %v10446
    %v10588 = vpack.c.b16 %v10450, %v10447
    %v10589 = vpack.c.b16 %v10451, %v10448
    %v10590 = vpack.c.b16 %v10455, %v10452
    %v10591 = vpack.c.b16 %v10456, %v10453
    %v10592 = vpack.c.b16 %v10457, %v10454
    %v10593 = vpack.c.b16 %v10461, %v10458
    %v10594 = vpack.c.b16 %v10462, %v10459
    %v10595 = vpack.c.b16 %v10463, %v10460
    %v10596 = vpack.c.b16 %v10467, %v10464
    %v10597 = vpack.c.b16 %v10468, %v10465
    %v10598 = vpack.c.b16 %v10469, %v10466
    %v10599 = vpack.c.b16 %v10473, %v10470
    %v10600 = vpack.c.b16 %v10474, %v10471
    %v10601 = vpack.c.b16 %v10475, %v10472
    %v10602 = vpack.c.b16 %v10479, %v10476
    %v10603 = vpack.c.b16 %v10480, %v10477
    %v10604 = vpack.c.b16 %v10481, %v10478
    %v10605 = vpack.c.b16 %v10485, %v10482
    %v10606 = vpack.c.b16 %v10486, %v10483
    %v10607 = vpack.c.b16 %v10487, %v10484
    %v10608 = vpack.c.b16 %v10491, %v10488
    %v10609 = vpack.c.b16 %v10492, %v10489
    %v10610 = vpack.c.b16 %v10493, %v10490
    %v10611 = vpack.c.b16 %v10497, %v10494
    %v10612 = vpack.c.b16 %v10498, %v10495
    %v10613 = vpack.c.b16 %v10499, %v10496
    %v10614 = vpack.c.b16 %v10503, %v10500
    %v10615 = vpack.c.b16 %v10504, %v10501
    %v10616 = vpack.c.b16 %v10505, %v10502
    %v10617 = vpack.c.b16 %v10509, %v10506
    %v10618 = vpack.c.b16 %v10510, %v10507
    %v10619 = vpack.c.b16 %v10511, %v10508
    %v10620 = vpack.c.b16 %v10515, %v10512
    %v10621 = vpack.c.b16 %v10516, %v10513
    %v10622 = vpack.c.b16 %v10517, %v10514
    %v10623 = vpack.c.b16 %v10521, %v10518
    %v10624 = vpack.c.b16 %v10522, %v10519
    %v10625 = vpack.c.b16 %v10523, %v10520
    %v10626 = vpack.c.b16 %v10527, %v10524
    %v10627 = vpack.c.b16 %v10528, %v10525
    %v10628 = vpack.c.b16 %v10529, %v10526
    %v10629 = vpack.c.b16 %v10533, %v10530
    %v10630 = vpack.c.b16 %v10534, %v10531
    %v10631 = vpack.c.b16 %v10535, %v10532
    %10728 = vmatprep.subr.bf16.mxu0 %v10558
    %10729 = vmatpush1.bf16.msra.mxu0 %v10557
    %10730 = vmatprep.subr.bf16.mxu0 %v10555
    %10731 = vmatpush1.bf16.msra.mxu0 %v10554
    %10732 = vmatprep.subr.bf16.mxu0 %v10552
    %10733 = vmatpush1.bf16.msra.mxu0 %v10551
    %10734 = vmatprep.subr.bf16.mxu0 %v10549
    %10735 = vmatpush1.bf16.msra.mxu0 %v10548
    %10736 = vmatprep.subr.bf16.mxu0 %v10546
    %10737 = vmatpush1.bf16.msra.mxu0 %v10545
    %10738 = vmatprep.subr.bf16.mxu0 %v10543
    %10739 = vmatpush1.bf16.msra.mxu0 %v10542
    %10740 = vmatprep.subr.bf16.mxu0 %v10540
    %10741 = vmatpush1.bf16.msra.mxu0 %v10539
    %10742 = vmatprep.subr.bf16.mxu0 %v10537
    %10743 = vmatpush1.bf16.msra.mxu0 %v10536
    %10744 = vmatprep.subr.bf16.mxu0 %v10582
    %10745 = vmatpush2.bf16.msra.mxu0 %v10581
    %10746 = vmatprep.subr.bf16.mxu0 %v10579
    %10747 = vmatpush2.bf16.msra.mxu0 %v10578
    %10748 = vmatprep.subr.bf16.mxu0 %v10576
    %10749 = vmatpush2.bf16.msra.mxu0 %v10575
    %10750 = vmatprep.subr.bf16.mxu0 %v10573
    %10751 = vmatpush2.bf16.msra.mxu0 %v10572
    %10752 = vmatprep.subr.bf16.mxu0 %v10570
    %10753 = vmatpush2.bf16.msra.mxu0 %v10569
    %10754 = vmatprep.subr.bf16.mxu0 %v10567
    %10755 = vmatpush2.bf16.msra.mxu0 %v10566
    %10756 = vmatprep.subr.bf16.mxu0 %v10564
    %10757 = vmatpush2.bf16.msra.mxu0 %v10563
    %10758 = vmatprep.subr.bf16.mxu0 %v10561
    %10759 = vmatpush2.bf16.msra.mxu0 %v10560
    %10760 = vmatprep.mubr.bf16.mxu0 %v10044
    %10761 = vmatmul.mubr.bf16.gmra.mxu0 %v10043
    %v10762 = vpop.f32.mrf.mxu0
    %v10763 = vadd.f32 %v10204, %v10762
    %v10764 = vpop.f32.mrf.mxu0
    %v10765 = vadd.f32 %v10208, %v10764
    %v10766 = vpop.f32.mrf.mxu0
    %v10767 = vadd.f32 %v10204, %v10766
    %v10768 = vpop.f32.mrf.mxu0
    %v10769 = vadd.f32 %v10208, %v10768
    %10770 = vmatprep.mubr.bf16.mxu0 %v10048
    %10771 = vmatmul.mubr.bf16.gmra.mxu0 %v10047
    %v10772 = vpop.f32.mrf.mxu0
    %v10773 = vadd.f32 %v10204, %v10772
    %v10774 = vpop.f32.mrf.mxu0
    %v10775 = vadd.f32 %v10208, %v10774
    %v10776 = vpop.f32.mrf.mxu0
    %v10777 = vadd.f32 %v10204, %v10776
    %v10778 = vpop.f32.mrf.mxu0
    %v10779 = vadd.f32 %v10208, %v10778
    %10780 = vmatprep.mubr.bf16.mxu0 %v10052
    %10781 = vmatmul.mubr.bf16.gmra.mxu0 %v10051
    %v10782 = vpop.f32.mrf.mxu0
    %v10783 = vadd.f32 %v10204, %v10782
    %v10784 = vpop.f32.mrf.mxu0
    %v10785 = vadd.f32 %v10208, %v10784
    %v10786 = vpop.f32.mrf.mxu0
    %v10787 = vadd.f32 %v10204, %v10786
    %v10788 = vpop.f32.mrf.mxu0
    %v10789 = vadd.f32 %v10208, %v10788
    %10790 = vmatprep.mubr.bf16.mxu0 %v10056
    %10791 = vmatmul.mubr.bf16.gmra.mxu0 %v10055
    %v10792 = vpop.f32.mrf.mxu0
    %v10793 = vadd.f32 %v10204, %v10792
    %v10794 = vpop.f32.mrf.mxu0
    %v10795 = vadd.f32 %v10208, %v10794
    %v10796 = vpop.f32.mrf.mxu0
    %v10797 = vadd.f32 %v10204, %v10796
    %v10798 = vpop.f32.mrf.mxu0
    %v10799 = vadd.f32 %v10208, %v10798
    %10800 = vmatprep.mubr.bf16.mxu0 %v10060
    %10801 = vmatmul.mubr.bf16.gmra.mxu0 %v10059
    %v10802 = vpop.f32.mrf.mxu0
    %v10803 = vadd.f32 %v10204, %v10802
    %v10804 = vpop.f32.mrf.mxu0
    %v10805 = vadd.f32 %v10208, %v10804
    %v10806 = vpop.f32.mrf.mxu0
    %v10807 = vadd.f32 %v10204, %v10806
    %v10808 = vpop.f32.mrf.mxu0
    %v10809 = vadd.f32 %v10208, %v10808
    %10810 = vmatprep.mubr.bf16.mxu0 %v10064
    %10811 = vmatmul.mubr.bf16.gmra.mxu0 %v10063
    %v10812 = vpop.f32.mrf.mxu0
    %v10813 = vadd.f32 %v10204, %v10812
    %v10814 = vpop.f32.mrf.mxu0
    %v10815 = vadd.f32 %v10208, %v10814
    %v10816 = vpop.f32.mrf.mxu0
    %v10817 = vadd.f32 %v10204, %v10816
    %v10818 = vpop.f32.mrf.mxu0
    %v10819 = vadd.f32 %v10208, %v10818
    %10820 = vmatprep.mubr.bf16.mxu0 %v10068
    %10821 = vmatmul.mubr.bf16.gmra.mxu0 %v10067
    %v10822 = vpop.f32.mrf.mxu0
    %v10823 = vadd.f32 %v10204, %v10822
    %v10824 = vpop.f32.mrf.mxu0
    %v10825 = vadd.f32 %v10208, %v10824
    %v10826 = vpop.f32.mrf.mxu0
    %v10827 = vpop.f32.mrf.mxu0
    %10828 = vdwg.mxu0
    %10829 = vmatprep.subr.bf16.mxu0 %v10606
    %10830 = vmatpush1.bf16.msra.mxu0 %v10605
    %10831 = vmatprep.subr.bf16.mxu0 %v10603
    %10832 = vmatpush1.bf16.msra.mxu0 %v10602
    %10833 = vmatprep.subr.bf16.mxu0 %v10600
    %10834 = vmatpush1.bf16.msra.mxu0 %v10599
    %10835 = vmatprep.subr.bf16.mxu0 %v10597
    %10836 = vmatpush1.bf16.msra.mxu0 %v10596
    %10837 = vmatprep.subr.bf16.mxu0 %v10594
    %10838 = vmatpush1.bf16.msra.mxu0 %v10593
    %10839 = vmatprep.subr.bf16.mxu0 %v10591
    %10840 = vmatpush1.bf16.msra.mxu0 %v10590
    %10841 = vmatprep.subr.bf16.mxu0 %v10588
    %10842 = vmatpush1.bf16.msra.mxu0 %v10587
    %10843 = vmatprep.subr.bf16.mxu0 %v10585
    %10844 = vmatpush1.bf16.msra.mxu0 %v10584
    %10845 = vmatprep.subr.bf16.mxu0 %v10630
    %10846 = vmatpush2.bf16.msra.mxu0 %v10629
    %10847 = vmatprep.subr.bf16.mxu0 %v10627
    %10848 = vmatpush2.bf16.msra.mxu0 %v10626
    %10849 = vmatprep.subr.bf16.mxu0 %v10624
    %10850 = vmatpush2.bf16.msra.mxu0 %v10623
    %10851 = vmatprep.subr.bf16.mxu0 %v10621
    %10852 = vmatpush2.bf16.msra.mxu0 %v10620
    %10853 = vmatprep.subr.bf16.mxu0 %v10618
    %10854 = vmatpush2.bf16.msra.mxu0 %v10617
    %10855 = vmatprep.subr.bf16.mxu0 %v10615
    %10856 = vmatpush2.bf16.msra.mxu0 %v10614
    %10857 = vmatprep.subr.bf16.mxu0 %v10612
    %10858 = vmatpush2.bf16.msra.mxu0 %v10611
    %10859 = vmatprep.subr.bf16.mxu0 %v10609
    %10860 = vmatpush2.bf16.msra.mxu0 %v10608
    %10861 = vmatprep.mubr.bf16.mxu0 %v10046
    %10862 = vmatmul.mubr.bf16.gmra.mxu0 %v10045
    %v10863 = vpop.f32.mrf.mxu0
    %v10864 = vadd.f32 %v10763, %v10863
    %v10865 = vpop.f32.mrf.mxu0
    %v10866 = vadd.f32 %v10765, %v10865
    %v10867 = vpop.f32.mrf.mxu0
    %v10868 = vadd.f32 %v10767, %v10867
    %v10869 = vpop.f32.mrf.mxu0
    %v10870 = vadd.f32 %v10769, %v10869
    %10871 = vmatprep.mubr.bf16.mxu0 %v10050
    %10872 = vmatmul.mubr.bf16.gmra.mxu0 %v10049
    %v10873 = vpop.f32.mrf.mxu0
    %v10874 = vadd.f32 %v10773, %v10873
    %v10875 = vpop.f32.mrf.mxu0
    %v10876 = vadd.f32 %v10775, %v10875
    %v10877 = vpop.f32.mrf.mxu0
    %v10878 = vadd.f32 %v10777, %v10877
    %v10879 = vpop.f32.mrf.mxu0
    %v10880 = vadd.f32 %v10779, %v10879
    %10881 = vmatprep.mubr.bf16.mxu0 %v10054
    %10882 = vmatmul.mubr.bf16.gmra.mxu0 %v10053
    %v10883 = vpop.f32.mrf.mxu0
    %v10884 = vadd.f32 %v10783, %v10883
    %v10885 = vpop.f32.mrf.mxu0
    %v10886 = vadd.f32 %v10785, %v10885
    %v10887 = vpop.f32.mrf.mxu0
    %v10888 = vadd.f32 %v10787, %v10887
    %v10889 = vpop.f32.mrf.mxu0
    %v10890 = vadd.f32 %v10789, %v10889
    %10891 = vmatprep.mubr.bf16.mxu0 %v10058
    %10892 = vmatmul.mubr.bf16.gmra.mxu0 %v10057
    %v10893 = vpop.f32.mrf.mxu0
    %v10894 = vadd.f32 %v10793, %v10893
    %v10895 = vpop.f32.mrf.mxu0
    %v10896 = vadd.f32 %v10795, %v10895
    %v10897 = vpop.f32.mrf.mxu0
    %v10898 = vadd.f32 %v10797, %v10897
    %v10899 = vpop.f32.mrf.mxu0
    %v10900 = vadd.f32 %v10799, %v10899
    %10901 = vmatprep.mubr.bf16.mxu0 %v10062
    %10902 = vmatmul.mubr.bf16.gmra.mxu0 %v10061
    %v10903 = vpop.f32.mrf.mxu0
    %v10904 = vadd.f32 %v10803, %v10903
    %v10905 = vpop.f32.mrf.mxu0
    %v10906 = vadd.f32 %v10805, %v10905
    %v10907 = vpop.f32.mrf.mxu0
    %v10908 = vadd.f32 %v10807, %v10907
    %v10909 = vpop.f32.mrf.mxu0
    %v10910 = vadd.f32 %v10809, %v10909
    %10911 = vmatprep.mubr.bf16.mxu0 %v10066
    %10912 = vmatmul.mubr.bf16.gmra.mxu0 %v10065
    %v10913 = vpop.f32.mrf.mxu0
    %v10914 = vadd.f32 %v10813, %v10913
    %v10915 = vpop.f32.mrf.mxu0
    %v10916 = vadd.f32 %v10815, %v10915
    %v10917 = vpop.f32.mrf.mxu0
    %v10918 = vadd.f32 %v10817, %v10917
    %v10919 = vpop.f32.mrf.mxu0
    %v10920 = vadd.f32 %v10819, %v10919
    %10921 = vmatprep.mubr.bf16.mxu0 %v10070
    %10922 = vmatmul.mubr.bf16.gmra.mxu0 %v10069
    %v10923 = vpop.f32.mrf.mxu0
    %v10924 = vadd.f32 %v10823, %v10923
    %v10925 = vpop.f32.mrf.mxu0
    %v10926 = vadd.f32 %v10825, %v10925
    %v10927 = vpop.f32.mrf.mxu0
    %v10928 = vpop.f32.mrf.mxu0
    %10929 = vdwg.mxu0
    %10930 = vmatprep.subr.bf16.mxu0 0
    %10931 = vmatpush1.bf16.msra.mxu0 %v10559
    %10932 = vmatprep.subr.bf16.mxu0 0
    %10933 = vmatpush1.bf16.msra.mxu0 %v10556
    %10934 = vmatprep.subr.bf16.mxu0 0
    %10935 = vmatpush1.bf16.msra.mxu0 %v10553
    %10936 = vmatprep.subr.bf16.mxu0 0
    %10937 = vmatpush1.bf16.msra.mxu0 %v10550
    %10938 = vmatprep.subr.bf16.mxu0 0
    %10939 = vmatpush1.bf16.msra.mxu0 %v10547
    %10940 = vmatprep.subr.bf16.mxu0 0
    %10941 = vmatpush1.bf16.msra.mxu0 %v10544
    %10942 = vmatprep.subr.bf16.mxu0 0
    %10943 = vmatpush1.bf16.msra.mxu0 %v10541
    %10944 = vmatprep.subr.bf16.mxu0 0
    %10945 = vmatpush1.bf16.msra.mxu0 %v10538
    %10946 = vmatprep.subr.bf16.mxu0 0
    %10947 = vmatpush2.bf16.msra.mxu0 %v10583
    %10948 = vmatprep.subr.bf16.mxu0 0
    %10949 = vmatpush2.bf16.msra.mxu0 %v10580
    %10950 = vmatprep.subr.bf16.mxu0 0
    %10951 = vmatpush2.bf16.msra.mxu0 %v10577
    %10952 = vmatprep.subr.bf16.mxu0 0
    %10953 = vmatpush2.bf16.msra.mxu0 %v10574
    %10954 = vmatprep.subr.bf16.mxu0 0
    %10955 = vmatpush2.bf16.msra.mxu0 %v10571
    %10956 = vmatprep.subr.bf16.mxu0 0
    %10957 = vmatpush2.bf16.msra.mxu0 %v10568
    %10958 = vmatprep.subr.bf16.mxu0 0
    %10959 = vmatpush2.bf16.msra.mxu0 %v10565
    %10960 = vmatprep.subr.bf16.mxu0 0
    %10961 = vmatpush2.bf16.msra.mxu0 %v10562
    %10962 = vmatprep.mubr.bf16.mxu0 %v10044
    %10963 = vmatmul.mubr.bf16.gmra.mxu0 %v10043
    %v10964 = vpop.f32.mrf.mxu0
    %v10965 = vadd.f32 %v10212, %v10964
    %v10966 = vpop.f32.mrf.mxu0
    %v10967 = vpop.f32.mrf.mxu0
    %v10968 = vadd.f32 %v10212, %v10967
    %v10969 = vpop.f32.mrf.mxu0
    %10970 = vmatprep.mubr.bf16.mxu0 %v10048
    %10971 = vmatmul.mubr.bf16.gmra.mxu0 %v10047
    %v10972 = vpop.f32.mrf.mxu0
    %v10973 = vadd.f32 %v10212, %v10972
    %v10974 = vpop.f32.mrf.mxu0
    %v10975 = vpop.f32.mrf.mxu0
    %v10976 = vadd.f32 %v10212, %v10975
    %v10977 = vpop.f32.mrf.mxu0
    %10978 = vmatprep.mubr.bf16.mxu0 %v10052
    %10979 = vmatmul.mubr.bf16.gmra.mxu0 %v10051
    %v10980 = vpop.f32.mrf.mxu0
    %v10981 = vadd.f32 %v10212, %v10980
    %v10982 = vpop.f32.mrf.mxu0
    %v10983 = vpop.f32.mrf.mxu0
    %v10984 = vadd.f32 %v10212, %v10983
    %v10985 = vpop.f32.mrf.mxu0
    %10986 = vmatprep.mubr.bf16.mxu0 %v10056
    %10987 = vmatmul.mubr.bf16.gmra.mxu0 %v10055
    %v10988 = vpop.f32.mrf.mxu0
    %v10989 = vadd.f32 %v10212, %v10988
    %v10990 = vpop.f32.mrf.mxu0
    %v10991 = vpop.f32.mrf.mxu0
    %v10992 = vadd.f32 %v10212, %v10991
    %v10993 = vpop.f32.mrf.mxu0
    %10994 = vmatprep.mubr.bf16.mxu0 %v10060
    %10995 = vmatmul.mubr.bf16.gmra.mxu0 %v10059
    %v10996 = vpop.f32.mrf.mxu0
    %v10997 = vadd.f32 %v10212, %v10996
    %v10998 = vpop.f32.mrf.mxu0
    %v10999 = vpop.f32.mrf.mxu0
    %v11000 = vadd.f32 %v10212, %v10999
    %v11001 = vpop.f32.mrf.mxu0
    %11002 = vmatprep.mubr.bf16.mxu0 %v10064
    %11003 = vmatmul.mubr.bf16.gmra.mxu0 %v10063
    %v11004 = vpop.f32.mrf.mxu0
    %v11005 = vadd.f32 %v10212, %v11004
    %v11006 = vpop.f32.mrf.mxu0
    %v11007 = vpop.f32.mrf.mxu0
    %v11008 = vadd.f32 %v10212, %v11007
    %v11009 = vpop.f32.mrf.mxu0
    %11010 = vmatprep.mubr.bf16.mxu0 %v10068
    %11011 = vmatmul.mubr.bf16.gmra.mxu0 %v10067
    %v11012 = vpop.f32.mrf.mxu0
    %v11013 = vadd.f32 %v10212, %v11012
    %v11014 = vpop.f32.mrf.mxu0
    %v11015 = vpop.f32.mrf.mxu0
    %v11016 = vpop.f32.mrf.mxu0
    %11017 = vdwg.mxu0
    %11018 = vmatprep.subr.bf16.mxu0 0
    %11019 = vmatpush1.bf16.msra.mxu0 %v10607
    %11020 = vmatprep.subr.bf16.mxu0 0
    %11021 = vmatpush1.bf16.msra.mxu0 %v10604
    %11022 = vmatprep.subr.bf16.mxu0 0
    %11023 = vmatpush1.bf16.msra.mxu0 %v10601
    %11024 = vmatprep.subr.bf16.mxu0 0
    %11025 = vmatpush1.bf16.msra.mxu0 %v10598
    %11026 = vmatprep.subr.bf16.mxu0 0
    %11027 = vmatpush1.bf16.msra.mxu0 %v10595
    %11028 = vmatprep.subr.bf16.mxu0 0
    %11029 = vmatpush1.bf16.msra.mxu0 %v10592
    %11030 = vmatprep.subr.bf16.mxu0 0
    %11031 = vmatpush1.bf16.msra.mxu0 %v10589
    %11032 = vmatprep.subr.bf16.mxu0 0
    %11033 = vmatpush1.bf16.msra.mxu0 %v10586
    %11034 = vmatprep.subr.bf16.mxu0 0
    %11035 = vmatpush2.bf16.msra.mxu0 %v10631
    %11036 = vmatprep.subr.bf16.mxu0 0
    %11037 = vmatpush2.bf16.msra.mxu0 %v10628
    %11038 = vmatprep.subr.bf16.mxu0 0
    %11039 = vmatpush2.bf16.msra.mxu0 %v10625
    %11040 = vmatprep.subr.bf16.mxu0 0
    %11041 = vmatpush2.bf16.msra.mxu0 %v10622
    %11042 = vmatprep.subr.bf16.mxu0 0
    %11043 = vmatpush2.bf16.msra.mxu0 %v10619
    %11044 = vmatprep.subr.bf16.mxu0 0
    %11045 = vmatpush2.bf16.msra.mxu0 %v10616
    %11046 = vmatprep.subr.bf16.mxu0 0
    %11047 = vmatpush2.bf16.msra.mxu0 %v10613
    %11048 = vmatprep.subr.bf16.mxu0 0
    %11049 = vmatpush2.bf16.msra.mxu0 %v10610
    %11050 = vmatprep.mubr.bf16.mxu0 %v10046
    %11051 = vmatmul.mubr.bf16.gmra.mxu0 %v10045
    %v11052 = vpop.f32.mrf.mxu0
    %v11053 = vadd.f32 %v10965, %v11052
    %v11054 = vpop.f32.mrf.mxu0
    %v11055 = vpop.f32.mrf.mxu0
    %v11056 = vadd.f32 %v10968, %v11055
    %v11057 = vpop.f32.mrf.mxu0
    %11058 = vmatprep.mubr.bf16.mxu0 %v10050
    %11059 = vmatmul.mubr.bf16.gmra.mxu0 %v10049
    %v11060 = vpop.f32.mrf.mxu0
    %v11061 = vadd.f32 %v10973, %v11060
    %v11062 = vpop.f32.mrf.mxu0
    %v11063 = vpop.f32.mrf.mxu0
    %v11064 = vadd.f32 %v10976, %v11063
    %v11065 = vpop.f32.mrf.mxu0
    %11066 = vmatprep.mubr.bf16.mxu0 %v10054
    %11067 = vmatmul.mubr.bf16.gmra.mxu0 %v10053
    %v11068 = vpop.f32.mrf.mxu0
    %v11069 = vadd.f32 %v10981, %v11068
    %v11070 = vpop.f32.mrf.mxu0
    %v11071 = vpop.f32.mrf.mxu0
    %v11072 = vadd.f32 %v10984, %v11071
    %v11073 = vpop.f32.mrf.mxu0
    %11074 = vmatprep.mubr.bf16.mxu0 %v10058
    %11075 = vmatmul.mubr.bf16.gmra.mxu0 %v10057
    %v11076 = vpop.f32.mrf.mxu0
    %v11077 = vadd.f32 %v10989, %v11076
    %v11078 = vpop.f32.mrf.mxu0
    %v11079 = vpop.f32.mrf.mxu0
    %v11080 = vadd.f32 %v10992, %v11079
    %v11081 = vpop.f32.mrf.mxu0
    %11082 = vmatprep.mubr.bf16.mxu0 %v10062
    %11083 = vmatmul.mubr.bf16.gmra.mxu0 %v10061
    %v11084 = vpop.f32.mrf.mxu0
    %v11085 = vadd.f32 %v10997, %v11084
    %v11086 = vpop.f32.mrf.mxu0
    %v11087 = vpop.f32.mrf.mxu0
    %v11088 = vadd.f32 %v11000, %v11087
    %v11089 = vpop.f32.mrf.mxu0
    %11090 = vmatprep.mubr.bf16.mxu0 %v10066
    %11091 = vmatmul.mubr.bf16.gmra.mxu0 %v10065
    %v11092 = vpop.f32.mrf.mxu0
    %v11093 = vadd.f32 %v11005, %v11092
    %v11094 = vpop.f32.mrf.mxu0
    %v11095 = vpop.f32.mrf.mxu0
    %v11096 = vadd.f32 %v11008, %v11095
    %v11097 = vpop.f32.mrf.mxu0
    %11098 = vmatprep.mubr.bf16.mxu0 %v10070
    %11099 = vmatmul.mubr.bf16.gmra.mxu0 %v10069
    %v11100 = vpop.f32.mrf.mxu0
    %v11101 = vadd.f32 %v11013, %v11100
    %v11102 = vpop.f32.mrf.mxu0
    %v11103 = vpop.f32.mrf.mxu0
    %v11104 = vpop.f32.mrf.mxu0
    %11105 = vdwg.mxu0
    %11106 = vst [vmem:[#allocation2] sm:$0xff] %v10864
    %11107 = vst [vmem:[#allocation2 + $0x8] sm:$0xff] %v10866
    %11108 = vst [vmem:[#allocation2 + $0x10] sm:$0xff] %v11053
    %11109 = vst [vmem:[#allocation2 + $0x18] sm:$0xff] %v10868
    %11110 = vst [vmem:[#allocation2 + $0x20] sm:$0xff] %v10870
    %11111 = vst [vmem:[#allocation2 + $0x28] sm:$0xff] %v11056
    %11112 = vst [vmem:[#allocation2 + $0x30] sm:$0xff] %v10874
    %11113 = vst [vmem:[#allocation2 + $0x38] sm:$0xff] %v10876
    %11114 = vst [vmem:[#allocation2 + $0x40] sm:$0xff] %v11061
    %11115 = vst [vmem:[#allocation2 + $0x48] sm:$0xff] %v10878
    %11116 = vst [vmem:[#allocation2 + $0x50] sm:$0xff] %v10880
    %11117 = vst [vmem:[#allocation2 + $0x58] sm:$0xff] %v11064
    %11118 = vst [vmem:[#allocation2 + $0x60] sm:$0xff] %v10884
    %11119 = vst [vmem:[#allocation2 + $0x68] sm:$0xff] %v10886
    %11120 = vst [vmem:[#allocation2 + $0x70] sm:$0xff] %v11069
    %11121 = vst [vmem:[#allocation2 + $0x78] sm:$0xff] %v10888
    %11122 = vst [vmem:[#allocation2 + $0x80] sm:$0xff] %v10890
    %11123 = vst [vmem:[#allocation2 + $0x88] sm:$0xff] %v11072
    %11124 = vst [vmem:[#allocation2 + $0x90] sm:$0xff] %v10894
    %11125 = vst [vmem:[#allocation2 + $0x98] sm:$0xff] %v10896
    %11126 = vst [vmem:[#allocation2 + $0xa0] sm:$0xff] %v11077
    %11127 = vst [vmem:[#allocation2 + $0xa8] sm:$0xff] %v10898
    %11128 = vst [vmem:[#allocation2 + $0xb0] sm:$0xff] %v10900
    %11129 = vst [vmem:[#allocation2 + $0xb8] sm:$0xff] %v11080
    %11130 = vst [vmem:[#allocation2 + $0xc0] sm:$0xff] %v10904
    %11131 = vst [vmem:[#allocation2 + $0xc8] sm:$0xff] %v10906
    %11132 = vst [vmem:[#allocation2 + $0xd0] sm:$0xff] %v11085
    %11133 = vst [vmem:[#allocation2 + $0xd8] sm:$0xff] %v10908
    %11134 = vst [vmem:[#allocation2 + $0xe0] sm:$0xff] %v10910
    %11135 = vst [vmem:[#allocation2 + $0xe8] sm:$0xff] %v11088
    %11136 = vst [vmem:[#allocation2 + $0xf0] sm:$0xff] %v10914
    %11137 = vst [vmem:[#allocation2 + $0xf8] sm:$0xff] %v10916
    %11138 = vst [vmem:[#allocation2 + $0x100] sm:$0xff] %v11093
    %11139 = vst [vmem:[#allocation2 + $0x108] sm:$0xff] %v10918
    %11140 = vst [vmem:[#allocation2 + $0x110] sm:$0xff] %v10920
    %11141 = vst [vmem:[#allocation2 + $0x118] sm:$0xff] %v11096
    %11142 = vst [vmem:[#allocation2 + $0x120] sm:$0xf] %v10924
    %11143 = vst [vmem:[#allocation2 + $0x128] sm:$0xf] %v10926
    %11144 = vst [vmem:[#allocation2 + $0x130] sm:$0xf] %v11101
    %v11145 = vld [vmem:[#allocation8] sm:$0xff]
    %v11146 = vld [vmem:[#allocation8 + $0x8] sm:$0xf]
    %v11147 = vld [vmem:[#allocation8 + $0xc] sm:$0xff]
    %v11148 = vld [vmem:[#allocation8 + $0x14] sm:$0xf]
    %v11149 = vld [vmem:[#allocation8 + $0x18] sm:$0xff]
    %v11150 = vld [vmem:[#allocation8 + $0x20] sm:$0xf]
    %v11151 = vld [vmem:[#allocation8 + $0x24] sm:$0xff]
    %v11152 = vld [vmem:[#allocation8 + $0x2c] sm:$0xf]
    %v11153 = vld [vmem:[#allocation8 + $0x30] sm:$0xff]
    %v11154 = vld [vmem:[#allocation8 + $0x38] sm:$0xf]
    %v11155 = vld [vmem:[#allocation8 + $0x3c] sm:$0xff]
    %v11156 = vld [vmem:[#allocation8 + $0x44] sm:$0xf]
    %v11157 = vld [vmem:[#allocation8 + $0x48] sm:$0xff]
    %v11158 = vld [vmem:[#allocation8 + $0x50] sm:$0xf]
    %v11159 = vld [vmem:[#allocation8 + $0x54] sm:$0xff]
    %v11160 = vld [vmem:[#allocation8 + $0x5c] sm:$0xf]
    %v11161 = vld [vmem:[#allocation8 + $0x60] sm:$0xff]
    %v11162 = vld [vmem:[#allocation8 + $0x68] sm:$0xf]
    %v11163 = vld [vmem:[#allocation8 + $0x6c] sm:$0xff]
    %v11164 = vld [vmem:[#allocation8 + $0x74] sm:$0xf]
    %v11165 = vld [vmem:[#allocation8 + $0x78] sm:$0xff]
    %v11166 = vld [vmem:[#allocation8 + $0x80] sm:$0xf]
    %v11167 = vld [vmem:[#allocation8 + $0x84] sm:$0xff]
    %v11168 = vld [vmem:[#allocation8 + $0x8c] sm:$0xf]
    %v11169 = vld [vmem:[#allocation8 + $0x90] sm:$0xff]
    %v11170 = vld [vmem:[#allocation8 + $0x98] sm:$0xf]
    %v11171 = vld [vmem:[#allocation8 + $0x9c] sm:$0xff]
    %v11172 = vld [vmem:[#allocation8 + $0xa4] sm:$0xf]
    %v11173 = vld [vmem:[#allocation8 + $0xa8] sm:$0xff]
    %v11174 = vld [vmem:[#allocation8 + $0xb0] sm:$0xf]
    %v11175 = vld [vmem:[#allocation8 + $0xb4] sm:$0xff]
    %v11176 = vld [vmem:[#allocation8 + $0xbc] sm:$0xf]
    %v11177 = vld [vmem:[%s10] sm:$0x7]
    loop: start=0, step=1, limit=10
    $region82: #{cgdnn_forward.1} parent=1 // loop_pre_header
      _
    $region83: #{cgdnn_forward.1} parent=1 // loop_header
      %s11179 = sphi 0, %s11183
      %p11180 = scmp.ge.s32.totalorder %s11179, 10
      %v11184 = vphi 0.0, %v12119
    $region84: #{cgdnn_forward.1} parent=1 // loop_header_branch
      %11182 = sbr.rel (%p11180) target = $region88
    $region85: #{cgdnn_forward.1} parent=1 // loop_body
      %s11185 = smul.u32 %s11179, 5
      %s11186 = sshra.s32 %s11185, 3
      %s11187 = sand.u32 %s11185, 7
      %s11188 = sshra.s32 %s11185, 3
      %s11189 = sand.u32 %s11185, 7
      %s11190 = smul.u32 %s11186, 3
      %s11191 = smul.u32 %s11190, 8
      %s11192 = sadd.s32 %s11191, %s11189
      %s11193 = scalar_lea.vmem [#allocation2], %s11192
      %v11194 = vld [vmem:[%s11193] ss:$8 sm:$0x7]
      %s11195 = sadd.s32 %s11185, 50
      %s11196 = sshra.s32 %s11195, 3
      %s11197 = sand.u32 %s11195, 7
      %s11198 = sshra.s32 %s11195, 3
      %s11199 = sand.u32 %s11195, 7
      %s11200 = smul.u32 %s11196, 3
      %s11201 = smul.u32 %s11200, 8
      %s11202 = sadd.s32 %s11201, %s11199
      %s11203 = scalar_lea.vmem [#allocation2], %s11202
      %v11204 = vld [vmem:[%s11203] ss:$8 sm:$0x7]
      %v11206 = vlaneseq
      %v11207 = vshrl.u32 %v11206, 7
      %v11208 = vsub.s32 0, %v11207
      %v11209 = vrot.slane %v11194, %v11208
      %v11210 = vlaneseq
      %v11211 = vshrl.u32 %v11210, 7
      %v11212 = vsub.s32 1, %v11211
      %v11213 = vrot.slane %v11194, %v11212
      %v11214 = vlaneseq
      %v11215 = vshrl.u32 %v11214, 7
      %v11216 = vsub.s32 2, %v11215
      %v11217 = vrot.slane %v11194, %v11216
      %v11222 = vlaneseq
      %v11223 = vshrl.u32 %v11222, 7
      %v11224 = vsub.s32 0, %v11223
      %v11225 = vrot.slane %v11204, %v11224
      %v11226 = vlaneseq
      %v11227 = vshrl.u32 %v11226, 7
      %v11228 = vsub.s32 1, %v11227
      %v11229 = vrot.slane %v11204, %v11228
      %v11230 = vlaneseq
      %v11231 = vshrl.u32 %v11230, 7
      %v11232 = vsub.s32 2, %v11231
      %v11233 = vrot.slane %v11204, %v11232
      %vm11237 = vcmask 1040384
      %v11238 = vsel %vm11237, %v11209, %v11225
      %v11239 = vsel %vm11237, %v11213, %v11229
      %v11240 = vsel %vm11237, %v11217, %v11233
      %v11241 = vpack.c.bf16 %v11184, %v11184
      %v11243 = vlaneseq
      %v11244 = vshrl.u32 %v11243, 7
      %v11245 = vsub.s32 0, %v11244
      %v11246 = vrot.slane %v11177, %v11245
      %v11247 = vlaneseq
      %v11248 = vshrl.u32 %v11247, 7
      %v11249 = vsub.s32 1, %v11248
      %v11250 = vrot.slane %v11177, %v11249
      %v11251 = vlaneseq
      %v11252 = vshrl.u32 %v11251, 7
      %v11253 = vsub.s32 2, %v11252
      %v11254 = vrot.slane %v11177, %v11253
      %v11290 = vunpack.c.l.b16 %v11145
      %v11291 = vunpack.c.h.b16 %v11145
      %v11292 = vunpack.c.l.b16 %v11146
      %v11293 = vunpack.c.l.b16 %v11147
      %v11294 = vunpack.c.h.b16 %v11147
      %v11295 = vunpack.c.l.b16 %v11148
      %v11296 = vunpack.c.l.b16 %v11149
      %v11297 = vunpack.c.h.b16 %v11149
      %v11298 = vunpack.c.l.b16 %v11150
      %v11299 = vunpack.c.l.b16 %v11151
      %v11300 = vunpack.c.h.b16 %v11151
      %v11301 = vunpack.c.l.b16 %v11152
      %v11302 = vunpack.c.l.b16 %v11153
      %v11303 = vunpack.c.h.b16 %v11153
      %v11304 = vunpack.c.l.b16 %v11154
      %v11305 = vunpack.c.l.b16 %v11155
      %v11306 = vunpack.c.h.b16 %v11155
      %v11307 = vunpack.c.l.b16 %v11156
      %v11308 = vunpack.c.l.b16 %v11157
      %v11309 = vunpack.c.h.b16 %v11157
      %v11310 = vunpack.c.l.b16 %v11158
      %v11311 = vunpack.c.l.b16 %v11159
      %v11312 = vunpack.c.h.b16 %v11159
      %v11313 = vunpack.c.l.b16 %v11160
      %v11314 = vunpack.c.l.b16 %v11161
      %v11315 = vunpack.c.h.b16 %v11161
      %v11316 = vunpack.c.l.b16 %v11162
      %v11317 = vunpack.c.l.b16 %v11163
      %v11318 = vunpack.c.h.b16 %v11163
      %v11319 = vunpack.c.l.b16 %v11164
      %v11320 = vunpack.c.l.b16 %v11165
      %v11321 = vunpack.c.h.b16 %v11165
      %v11322 = vunpack.c.l.b16 %v11166
      %v11323 = vunpack.c.l.b16 %v11167
      %v11324 = vunpack.c.h.b16 %v11167
      %v11325 = vunpack.c.l.b16 %v11168
      %v11326 = vunpack.c.l.b16 %v11169
      %v11327 = vunpack.c.h.b16 %v11169
      %v11328 = vunpack.c.l.b16 %v11170
      %v11329 = vunpack.c.l.b16 %v11171
      %v11330 = vunpack.c.h.b16 %v11171
      %v11331 = vunpack.c.l.b16 %v11172
      %v11332 = vunpack.c.l.b16 %v11173
      %v11333 = vunpack.c.h.b16 %v11173
      %v11334 = vunpack.c.l.b16 %v11174
      %v11335 = vunpack.c.l.b16 %v11175
      %v11336 = vunpack.c.h.b16 %v11175
      %v11337 = vunpack.c.l.b16 %v11176
      %v11338 = vpack.c.b16 %v11293, %v11290
      %v11339 = vpack.c.b16 %v11294, %v11291
      %v11340 = vpack.c.b16 %v11295, %v11292
      %v11341 = vpack.c.b16 %v11299, %v11296
      %v11342 = vpack.c.b16 %v11300, %v11297
      %v11343 = vpack.c.b16 %v11301, %v11298
      %v11344 = vpack.c.b16 %v11305, %v11302
      %v11345 = vpack.c.b16 %v11306, %v11303
      %v11346 = vpack.c.b16 %v11307, %v11304
      %v11347 = vpack.c.b16 %v11311, %v11308
      %v11348 = vpack.c.b16 %v11312, %v11309
      %v11349 = vpack.c.b16 %v11313, %v11310
      %v11350 = vpack.c.b16 %v11317, %v11314
      %v11351 = vpack.c.b16 %v11318, %v11315
      %v11352 = vpack.c.b16 %v11319, %v11316
      %v11353 = vpack.c.b16 %v11323, %v11320
      %v11354 = vpack.c.b16 %v11324, %v11321
      %v11355 = vpack.c.b16 %v11325, %v11322
      %v11356 = vpack.c.b16 %v11329, %v11326
      %v11357 = vpack.c.b16 %v11330, %v11327
      %v11358 = vpack.c.b16 %v11331, %v11328
      %v11359 = vpack.c.b16 %v11335, %v11332
      %v11360 = vpack.c.b16 %v11336, %v11333
      %v11361 = vpack.c.b16 %v11337, %v11334
      %11386 = vmatprep.subr.bf16.mxu0 %v11360
      %11387 = vmatpush1.bf16.msra.mxu0 %v11359
      %11388 = vmatprep.subr.bf16.mxu0 %v11357
      %11389 = vmatpush1.bf16.msra.mxu0 %v11356
      %11390 = vmatprep.subr.bf16.mxu0 %v11354
      %11391 = vmatpush1.bf16.msra.mxu0 %v11353
      %11392 = vmatprep.subr.bf16.mxu0 %v11351
      %11393 = vmatpush1.bf16.msra.mxu0 %v11350
      %11394 = vmatprep.subr.bf16.mxu0 %v11348
      %11395 = vmatpush1.bf16.msra.mxu0 %v11347
      %11396 = vmatprep.subr.bf16.mxu0 %v11345
      %11397 = vmatpush1.bf16.msra.mxu0 %v11344
      %11398 = vmatprep.subr.bf16.mxu0 %v11342
      %11399 = vmatpush1.bf16.msra.mxu0 %v11341
      %11400 = vmatprep.subr.bf16.mxu0 %v11339
      %11401 = vmatpush1.bf16.msra.mxu0 %v11338
      %11402 = vmatprep.subr.bf16.mxu0 0
      %11403 = vmatpush2.bf16.msra.mxu0 0
      %11404 = vmatprep.subr.bf16.mxu0 0
      %11405 = vmatpush2.bf16.msra.mxu0 0
      %11406 = vmatprep.subr.bf16.mxu0 0
      %11407 = vmatpush2.bf16.msra.mxu0 0
      %11408 = vmatprep.subr.bf16.mxu0 0
      %11409 = vmatpush2.bf16.msra.mxu0 0
      %11410 = vmatprep.subr.bf16.mxu0 0
      %11411 = vmatpush2.bf16.msra.mxu0 0
      %11412 = vmatprep.subr.bf16.mxu0 0
      %11413 = vmatpush2.bf16.msra.mxu0 0
      %11414 = vmatprep.subr.bf16.mxu0 0
      %11415 = vmatpush2.bf16.msra.mxu0 0
      %11416 = vmatprep.subr.bf16.mxu0 0
      %11417 = vmatpush2.bf16.msra.mxu0 0
      %11418 = vmatprep.mubr.bf16.mxu0 0
      %11419 = vmatmul.mubr.bf16.gmra.mxu0 %v11241
      %v11420 = vpop.f32.mrf.mxu0
      %v11421 = vadd.f32 %v11246, %v11420
      %v11422 = vpop.f32.mrf.mxu0
      %v11423 = vadd.f32 %v11250, %v11422
      %v11424 = vpop.f32.mrf.mxu0
      %v11425 = vpop.f32.mrf.mxu0
      %11426 = vdwg.mxu0
      %11427 = vmatprep.subr.bf16.mxu0 0
      %11428 = vmatpush1.bf16.msra.mxu0 %v11361
      %11429 = vmatprep.subr.bf16.mxu0 0
      %11430 = vmatpush1.bf16.msra.mxu0 %v11358
      %11431 = vmatprep.subr.bf16.mxu0 0
      %11432 = vmatpush1.bf16.msra.mxu0 %v11355
      %11433 = vmatprep.subr.bf16.mxu0 0
      %11434 = vmatpush1.bf16.msra.mxu0 %v11352
      %11435 = vmatprep.subr.bf16.mxu0 0
      %11436 = vmatpush1.bf16.msra.mxu0 %v11349
      %11437 = vmatprep.subr.bf16.mxu0 0
      %11438 = vmatpush1.bf16.msra.mxu0 %v11346
      %11439 = vmatprep.subr.bf16.mxu0 0
      %11440 = vmatpush1.bf16.msra.mxu0 %v11343
      %11441 = vmatprep.subr.bf16.mxu0 0
      %11442 = vmatpush1.bf16.msra.mxu0 %v11340
      %11443 = vmatprep.subr.bf16.mxu0 0
      %11444 = vmatpush2.bf16.msra.mxu0 0
      %11445 = vmatprep.subr.bf16.mxu0 0
      %11446 = vmatpush2.bf16.msra.mxu0 0
      %11447 = vmatprep.subr.bf16.mxu0 0
      %11448 = vmatpush2.bf16.msra.mxu0 0
      %11449 = vmatprep.subr.bf16.mxu0 0
      %11450 = vmatpush2.bf16.msra.mxu0 0
      %11451 = vmatprep.subr.bf16.mxu0 0
      %11452 = vmatpush2.bf16.msra.mxu0 0
      %11453 = vmatprep.subr.bf16.mxu0 0
      %11454 = vmatpush2.bf16.msra.mxu0 0
      %11455 = vmatprep.subr.bf16.mxu0 0
      %11456 = vmatpush2.bf16.msra.mxu0 0
      %11457 = vmatprep.subr.bf16.mxu0 0
      %11458 = vmatpush2.bf16.msra.mxu0 0
      %11459 = vmatprep.mubr.bf16.mxu0 0
      %11460 = vmatmul.mubr.bf16.gmra.mxu0 %v11241
      %v11461 = vpop.f32.mrf.mxu0
      %v11462 = vadd.f32 %v11254, %v11461
      %v11463 = vpop.f32.mrf.mxu0
      %v11464 = vpop.f32.mrf.mxu0
      %v11465 = vpop.f32.mrf.mxu0
      %11466 = vdwg.mxu0
      %v11467 = vadd.f32 %v11238, %v11421
      %v11468 = vadd.f32 %v11239, %v11423
      %v11469 = vxor.u32 %v11467, 2147483648
      %v11470 = vxor.u32 %v11468, 2147483648
      %v11471 = vmul.f32 %v11469, 1.442695
      %v11472 = vpow.pop %v11471
      %v11473 = vmul.f32 %v11470, 1.442695
      %v11474 = vpow.pop %v11473
      %v11475 = vadd.f32 %v11472, 1.0
      %v11476 = vadd.f32 %v11474, 1.0
      %v11477 = vrcp.pop %v11475
      %v11478 = vmul.f32 1.0, %v11477
      %v11479 = vrcp.pop %v11476
      %v11480 = vmul.f32 1.0, %v11479
      %v11481 = vmul.f32 %v11478, %v11462
      %v11482 = vadd.f32 %v11240, %v11481
      %v11483 = vtanh.pop %v11482
      %v11484 = vsub.f32 1.0, %v11480
      %v11485 = vmul.f32 %v11484, %v11483
      %v11486 = vmul.f32 %v11480, %v11184
      %v11487 = vadd.f32 %v11485, %v11486
      %s11488 = sadd.s32 %s11185, 1
      %s11489 = sshra.s32 %s11488, 3
      %s11490 = sand.u32 %s11488, 7
      %s11491 = sshra.s32 %s11488, 3
      %s11492 = sand.u32 %s11488, 7
      %s11493 = smul.u32 %s11489, 3
      %s11494 = smul.u32 %s11493, 8
      %s11495 = sadd.s32 %s11494, %s11492
      %s11496 = scalar_lea.vmem [#allocation2], %s11495
      %v11497 = vld [vmem:[%s11496] ss:$8 sm:$0x7]
      %s11498 = sadd.s32 %s11185, 51
      %s11499 = sshra.s32 %s11498, 3
      %s11500 = sand.u32 %s11498, 7
      %s11501 = sshra.s32 %s11498, 3
      %s11502 = sand.u32 %s11498, 7
      %s11503 = smul.u32 %s11499, 3
      %s11504 = smul.u32 %s11503, 8
      %s11505 = sadd.s32 %s11504, %s11502
      %s11506 = scalar_lea.vmem [#allocation2], %s11505
      %v11507 = vld [vmem:[%s11506] ss:$8 sm:$0x7]
      %v11509 = vlaneseq
      %v11510 = vshrl.u32 %v11509, 7
      %v11511 = vsub.s32 0, %v11510
      %v11512 = vrot.slane %v11497, %v11511
      %v11513 = vlaneseq
      %v11514 = vshrl.u32 %v11513, 7
      %v11515 = vsub.s32 1, %v11514
      %v11516 = vrot.slane %v11497, %v11515
      %v11517 = vlaneseq
      %v11518 = vshrl.u32 %v11517, 7
      %v11519 = vsub.s32 2, %v11518
      %v11520 = vrot.slane %v11497, %v11519
      %v11525 = vlaneseq
      %v11526 = vshrl.u32 %v11525, 7
      %v11527 = vsub.s32 0, %v11526
      %v11528 = vrot.slane %v11507, %v11527
      %v11529 = vlaneseq
      %v11530 = vshrl.u32 %v11529, 7
      %v11531 = vsub.s32 1, %v11530
      %v11532 = vrot.slane %v11507, %v11531
      %v11533 = vlaneseq
      %v11534 = vshrl.u32 %v11533, 7
      %v11535 = vsub.s32 2, %v11534
      %v11536 = vrot.slane %v11507, %v11535
      %v11540 = vsel %vm11237, %v11512, %v11528
      %v11541 = vsel %vm11237, %v11516, %v11532
      %v11542 = vsel %vm11237, %v11520, %v11536
      %v11543 = vpack.c.bf16 %v11487, %v11487
      %11544 = vmatprep.subr.bf16.mxu0 %v11360
      %11545 = vmatpush1.bf16.msra.mxu0 %v11359
      %11546 = vmatprep.subr.bf16.mxu0 %v11357
      %11547 = vmatpush1.bf16.msra.mxu0 %v11356
      %11548 = vmatprep.subr.bf16.mxu0 %v11354
      %11549 = vmatpush1.bf16.msra.mxu0 %v11353
      %11550 = vmatprep.subr.bf16.mxu0 %v11351
      %11551 = vmatpush1.bf16.msra.mxu0 %v11350
      %11552 = vmatprep.subr.bf16.mxu0 %v11348
      %11553 = vmatpush1.bf16.msra.mxu0 %v11347
      %11554 = vmatprep.subr.bf16.mxu0 %v11345
      %11555 = vmatpush1.bf16.msra.mxu0 %v11344
      %11556 = vmatprep.subr.bf16.mxu0 %v11342
      %11557 = vmatpush1.bf16.msra.mxu0 %v11341
      %11558 = vmatprep.subr.bf16.mxu0 %v11339
      %11559 = vmatpush1.bf16.msra.mxu0 %v11338
      %11560 = vmatprep.subr.bf16.mxu0 0
      %11561 = vmatpush2.bf16.msra.mxu0 0
      %11562 = vmatprep.subr.bf16.mxu0 0
      %11563 = vmatpush2.bf16.msra.mxu0 0
      %11564 = vmatprep.subr.bf16.mxu0 0
      %11565 = vmatpush2.bf16.msra.mxu0 0
      %11566 = vmatprep.subr.bf16.mxu0 0
      %11567 = vmatpush2.bf16.msra.mxu0 0
      %11568 = vmatprep.subr.bf16.mxu0 0
      %11569 = vmatpush2.bf16.msra.mxu0 0
      %11570 = vmatprep.subr.bf16.mxu0 0
      %11571 = vmatpush2.bf16.msra.mxu0 0
      %11572 = vmatprep.subr.bf16.mxu0 0
      %11573 = vmatpush2.bf16.msra.mxu0 0
      %11574 = vmatprep.subr.bf16.mxu0 0
      %11575 = vmatpush2.bf16.msra.mxu0 0
      %11576 = vmatprep.mubr.bf16.mxu0 0
      %11577 = vmatmul.mubr.bf16.gmra.mxu0 %v11543
      %v11578 = vpop.f32.mrf.mxu0
      %v11579 = vadd.f32 %v11246, %v11578
      %v11580 = vpop.f32.mrf.mxu0
      %v11581 = vadd.f32 %v11250, %v11580
      %v11582 = vpop.f32.mrf.mxu0
      %v11583 = vpop.f32.mrf.mxu0
      %11584 = vdwg.mxu0
      %11585 = vmatprep.subr.bf16.mxu0 0
      %11586 = vmatpush1.bf16.msra.mxu0 %v11361
      %11587 = vmatprep.subr.bf16.mxu0 0
      %11588 = vmatpush1.bf16.msra.mxu0 %v11358
      %11589 = vmatprep.subr.bf16.mxu0 0
      %11590 = vmatpush1.bf16.msra.mxu0 %v11355
      %11591 = vmatprep.subr.bf16.mxu0 0
      %11592 = vmatpush1.bf16.msra.mxu0 %v11352
      %11593 = vmatprep.subr.bf16.mxu0 0
      %11594 = vmatpush1.bf16.msra.mxu0 %v11349
      %11595 = vmatprep.subr.bf16.mxu0 0
      %11596 = vmatpush1.bf16.msra.mxu0 %v11346
      %11597 = vmatprep.subr.bf16.mxu0 0
      %11598 = vmatpush1.bf16.msra.mxu0 %v11343
      %11599 = vmatprep.subr.bf16.mxu0 0
      %11600 = vmatpush1.bf16.msra.mxu0 %v11340
      %11601 = vmatprep.subr.bf16.mxu0 0
      %11602 = vmatpush2.bf16.msra.mxu0 0
      %11603 = vmatprep.subr.bf16.mxu0 0
      %11604 = vmatpush2.bf16.msra.mxu0 0
      %11605 = vmatprep.subr.bf16.mxu0 0
      %11606 = vmatpush2.bf16.msra.mxu0 0
      %11607 = vmatprep.subr.bf16.mxu0 0
      %11608 = vmatpush2.bf16.msra.mxu0 0
      %11609 = vmatprep.subr.bf16.mxu0 0
      %11610 = vmatpush2.bf16.msra.mxu0 0
      %11611 = vmatprep.subr.bf16.mxu0 0
      %11612 = vmatpush2.bf16.msra.mxu0 0
      %11613 = vmatprep.subr.bf16.mxu0 0
      %11614 = vmatpush2.bf16.msra.mxu0 0
      %11615 = vmatprep.subr.bf16.mxu0 0
      %11616 = vmatpush2.bf16.msra.mxu0 0
      %11617 = vmatprep.mubr.bf16.mxu0 0
      %11618 = vmatmul.mubr.bf16.gmra.mxu0 %v11543
      %v11619 = vpop.f32.mrf.mxu0
      %v11620 = vadd.f32 %v11254, %v11619
      %v11621 = vpop.f32.mrf.mxu0
      %v11622 = vpop.f32.mrf.mxu0
      %v11623 = vpop.f32.mrf.mxu0
      %11624 = vdwg.mxu0
      %v11625 = vadd.f32 %v11540, %v11579
      %v11626 = vadd.f32 %v11541, %v11581
      %v11627 = vxor.u32 %v11625, 2147483648
      %v11628 = vxor.u32 %v11626, 2147483648
      %v11629 = vmul.f32 %v11627, 1.442695
      %v11630 = vpow.pop %v11629
      %v11631 = vmul.f32 %v11628, 1.442695
      %v11632 = vpow.pop %v11631
      %v11633 = vadd.f32 %v11630, 1.0
      %v11634 = vadd.f32 %v11632, 1.0
      %v11635 = vrcp.pop %v11633
      %v11636 = vmul.f32 1.0, %v11635
      %v11637 = vrcp.pop %v11634
      %v11638 = vmul.f32 1.0, %v11637
      %v11639 = vmul.f32 %v11636, %v11620
      %v11640 = vadd.f32 %v11542, %v11639
      %v11641 = vtanh.pop %v11640
      %v11642 = vsub.f32 1.0, %v11638
      %v11643 = vmul.f32 %v11642, %v11641
      %v11644 = vmul.f32 %v11638, %v11487
      %v11645 = vadd.f32 %v11643, %v11644
      %s11646 = sadd.s32 %s11185, 2
      %s11647 = sshra.s32 %s11646, 3
      %s11648 = sand.u32 %s11646, 7
      %s11649 = sshra.s32 %s11646, 3
      %s11650 = sand.u32 %s11646, 7
      %s11651 = smul.u32 %s11647, 3
      %s11652 = smul.u32 %s11651, 8
      %s11653 = sadd.s32 %s11652, %s11650
      %s11654 = scalar_lea.vmem [#allocation2], %s11653
      %v11655 = vld [vmem:[%s11654] ss:$8 sm:$0x7]
      %s11656 = sadd.s32 %s11185, 52
      %s11657 = sshra.s32 %s11656, 3
      %s11658 = sand.u32 %s11656, 7
      %s11659 = sshra.s32 %s11656, 3
      %s11660 = sand.u32 %s11656, 7
      %s11661 = smul.u32 %s11657, 3
      %s11662 = smul.u32 %s11661, 8
      %s11663 = sadd.s32 %s11662, %s11660
      %s11664 = scalar_lea.vmem [#allocation2], %s11663
      %v11665 = vld [vmem:[%s11664] ss:$8 sm:$0x7]
      %v11667 = vlaneseq
      %v11668 = vshrl.u32 %v11667, 7
      %v11669 = vsub.s32 0, %v11668
      %v11670 = vrot.slane %v11655, %v11669
      %v11671 = vlaneseq
      %v11672 = vshrl.u32 %v11671, 7
      %v11673 = vsub.s32 1, %v11672
      %v11674 = vrot.slane %v11655, %v11673
      %v11675 = vlaneseq
      %v11676 = vshrl.u32 %v11675, 7
      %v11677 = vsub.s32 2, %v11676
      %v11678 = vrot.slane %v11655, %v11677
      %v11683 = vlaneseq
      %v11684 = vshrl.u32 %v11683, 7
      %v11685 = vsub.s32 0, %v11684
      %v11686 = vrot.slane %v11665, %v11685
      %v11687 = vlaneseq
      %v11688 = vshrl.u32 %v11687, 7
      %v11689 = vsub.s32 1, %v11688
      %v11690 = vrot.slane %v11665, %v11689
      %v11691 = vlaneseq
      %v11692 = vshrl.u32 %v11691, 7
      %v11693 = vsub.s32 2, %v11692
      %v11694 = vrot.slane %v11665, %v11693
      %v11698 = vsel %vm11237, %v11670, %v11686
      %v11699 = vsel %vm11237, %v11674, %v11690
      %v11700 = vsel %vm11237, %v11678, %v11694
      %v11701 = vpack.c.bf16 %v11645, %v11645
      %11702 = vmatprep.subr.bf16.mxu0 %v11360
      %11703 = vmatpush1.bf16.msra.mxu0 %v11359
      %11704 = vmatprep.subr.bf16.mxu0 %v11357
      %11705 = vmatpush1.bf16.msra.mxu0 %v11356
      %11706 = vmatprep.subr.bf16.mxu0 %v11354
      %11707 = vmatpush1.bf16.msra.mxu0 %v11353
      %11708 = vmatprep.subr.bf16.mxu0 %v11351
      %11709 = vmatpush1.bf16.msra.mxu0 %v11350
      %11710 = vmatprep.subr.bf16.mxu0 %v11348
      %11711 = vmatpush1.bf16.msra.mxu0 %v11347
      %11712 = vmatprep.subr.bf16.mxu0 %v11345
      %11713 = vmatpush1.bf16.msra.mxu0 %v11344
      %11714 = vmatprep.subr.bf16.mxu0 %v11342
      %11715 = vmatpush1.bf16.msra.mxu0 %v11341
      %11716 = vmatprep.subr.bf16.mxu0 %v11339
      %11717 = vmatpush1.bf16.msra.mxu0 %v11338
      %11718 = vmatprep.subr.bf16.mxu0 0
      %11719 = vmatpush2.bf16.msra.mxu0 0
      %11720 = vmatprep.subr.bf16.mxu0 0
      %11721 = vmatpush2.bf16.msra.mxu0 0
      %11722 = vmatprep.subr.bf16.mxu0 0
      %11723 = vmatpush2.bf16.msra.mxu0 0
      %11724 = vmatprep.subr.bf16.mxu0 0
      %11725 = vmatpush2.bf16.msra.mxu0 0
      %11726 = vmatprep.subr.bf16.mxu0 0
      %11727 = vmatpush2.bf16.msra.mxu0 0
      %11728 = vmatprep.subr.bf16.mxu0 0
      %11729 = vmatpush2.bf16.msra.mxu0 0
      %11730 = vmatprep.subr.bf16.mxu0 0
      %11731 = vmatpush2.bf16.msra.mxu0 0
      %11732 = vmatprep.subr.bf16.mxu0 0
      %11733 = vmatpush2.bf16.msra.mxu0 0
      %11734 = vmatprep.mubr.bf16.mxu0 0
      %11735 = vmatmul.mubr.bf16.gmra.mxu0 %v11701
      %v11736 = vpop.f32.mrf.mxu0
      %v11737 = vadd.f32 %v11246, %v11736
      %v11738 = vpop.f32.mrf.mxu0
      %v11739 = vadd.f32 %v11250, %v11738
      %v11740 = vpop.f32.mrf.mxu0
      %v11741 = vpop.f32.mrf.mxu0
      %11742 = vdwg.mxu0
      %11743 = vmatprep.subr.bf16.mxu0 0
      %11744 = vmatpush1.bf16.msra.mxu0 %v11361
      %11745 = vmatprep.subr.bf16.mxu0 0
      %11746 = vmatpush1.bf16.msra.mxu0 %v11358
      %11747 = vmatprep.subr.bf16.mxu0 0
      %11748 = vmatpush1.bf16.msra.mxu0 %v11355
      %11749 = vmatprep.subr.bf16.mxu0 0
      %11750 = vmatpush1.bf16.msra.mxu0 %v11352
      %11751 = vmatprep.subr.bf16.mxu0 0
      %11752 = vmatpush1.bf16.msra.mxu0 %v11349
      %11753 = vmatprep.subr.bf16.mxu0 0
      %11754 = vmatpush1.bf16.msra.mxu0 %v11346
      %11755 = vmatprep.subr.bf16.mxu0 0
      %11756 = vmatpush1.bf16.msra.mxu0 %v11343
      %11757 = vmatprep.subr.bf16.mxu0 0
      %11758 = vmatpush1.bf16.msra.mxu0 %v11340
      %11759 = vmatprep.subr.bf16.mxu0 0
      %11760 = vmatpush2.bf16.msra.mxu0 0
      %11761 = vmatprep.subr.bf16.mxu0 0
      %11762 = vmatpush2.bf16.msra.mxu0 0
      %11763 = vmatprep.subr.bf16.mxu0 0
      %11764 = vmatpush2.bf16.msra.mxu0 0
      %11765 = vmatprep.subr.bf16.mxu0 0
      %11766 = vmatpush2.bf16.msra.mxu0 0
      %11767 = vmatprep.subr.bf16.mxu0 0
      %11768 = vmatpush2.bf16.msra.mxu0 0
      %11769 = vmatprep.subr.bf16.mxu0 0
      %11770 = vmatpush2.bf16.msra.mxu0 0
      %11771 = vmatprep.subr.bf16.mxu0 0
      %11772 = vmatpush2.bf16.msra.mxu0 0
      %11773 = vmatprep.subr.bf16.mxu0 0
      %11774 = vmatpush2.bf16.msra.mxu0 0
      %11775 = vmatprep.mubr.bf16.mxu0 0
      %11776 = vmatmul.mubr.bf16.gmra.mxu0 %v11701
      %v11777 = vpop.f32.mrf.mxu0
      %v11778 = vadd.f32 %v11254, %v11777
      %v11779 = vpop.f32.mrf.mxu0
      %v11780 = vpop.f32.mrf.mxu0
      %v11781 = vpop.f32.mrf.mxu0
      %11782 = vdwg.mxu0
      %v11783 = vadd.f32 %v11698, %v11737
      %v11784 = vadd.f32 %v11699, %v11739
      %v11785 = vxor.u32 %v11783, 2147483648
      %v11786 = vxor.u32 %v11784, 2147483648
      %v11787 = vmul.f32 %v11785, 1.442695
      %v11788 = vpow.pop %v11787
      %v11789 = vmul.f32 %v11786, 1.442695
      %v11790 = vpow.pop %v11789
      %v11791 = vadd.f32 %v11788, 1.0
      %v11792 = vadd.f32 %v11790, 1.0
      %v11793 = vrcp.pop %v11791
      %v11794 = vmul.f32 1.0, %v11793
      %v11795 = vrcp.pop %v11792
      %v11796 = vmul.f32 1.0, %v11795
      %v11797 = vmul.f32 %v11794, %v11778
      %v11798 = vadd.f32 %v11700, %v11797
      %v11799 = vtanh.pop %v11798
      %v11800 = vsub.f32 1.0, %v11796
      %v11801 = vmul.f32 %v11800, %v11799
      %v11802 = vmul.f32 %v11796, %v11645
      %v11803 = vadd.f32 %v11801, %v11802
      %s11804 = sadd.s32 %s11185, 3
      %s11805 = sshra.s32 %s11804, 3
      %s11806 = sand.u32 %s11804, 7
      %s11807 = sshra.s32 %s11804, 3
      %s11808 = sand.u32 %s11804, 7
      %s11809 = smul.u32 %s11805, 3
      %s11810 = smul.u32 %s11809, 8
      %s11811 = sadd.s32 %s11810, %s11808
      %s11812 = scalar_lea.vmem [#allocation2], %s11811
      %v11813 = vld [vmem:[%s11812] ss:$8 sm:$0x7]
      %s11814 = sadd.s32 %s11185, 53
      %s11815 = sshra.s32 %s11814, 3
      %s11816 = sand.u32 %s11814, 7
      %s11817 = sshra.s32 %s11814, 3
      %s11818 = sand.u32 %s11814, 7
      %s11819 = smul.u32 %s11815, 3
      %s11820 = smul.u32 %s11819, 8
      %s11821 = sadd.s32 %s11820, %s11818
      %s11822 = scalar_lea.vmem [#allocation2], %s11821
      %v11823 = vld [vmem:[%s11822] ss:$8 sm:$0x7]
      %v11825 = vlaneseq
      %v11826 = vshrl.u32 %v11825, 7
      %v11827 = vsub.s32 0, %v11826
      %v11828 = vrot.slane %v11813, %v11827
      %v11829 = vlaneseq
      %v11830 = vshrl.u32 %v11829, 7
      %v11831 = vsub.s32 1, %v11830
      %v11832 = vrot.slane %v11813, %v11831
      %v11833 = vlaneseq
      %v11834 = vshrl.u32 %v11833, 7
      %v11835 = vsub.s32 2, %v11834
      %v11836 = vrot.slane %v11813, %v11835
      %v11841 = vlaneseq
      %v11842 = vshrl.u32 %v11841, 7
      %v11843 = vsub.s32 0, %v11842
      %v11844 = vrot.slane %v11823, %v11843
      %v11845 = vlaneseq
      %v11846 = vshrl.u32 %v11845, 7
      %v11847 = vsub.s32 1, %v11846
      %v11848 = vrot.slane %v11823, %v11847
      %v11849 = vlaneseq
      %v11850 = vshrl.u32 %v11849, 7
      %v11851 = vsub.s32 2, %v11850
      %v11852 = vrot.slane %v11823, %v11851
      %v11856 = vsel %vm11237, %v11828, %v11844
      %v11857 = vsel %vm11237, %v11832, %v11848
      %v11858 = vsel %vm11237, %v11836, %v11852
      %v11859 = vpack.c.bf16 %v11803, %v11803
      %11860 = vmatprep.subr.bf16.mxu0 %v11360
      %11861 = vmatpush1.bf16.msra.mxu0 %v11359
      %11862 = vmatprep.subr.bf16.mxu0 %v11357
      %11863 = vmatpush1.bf16.msra.mxu0 %v11356
      %11864 = vmatprep.subr.bf16.mxu0 %v11354
      %11865 = vmatpush1.bf16.msra.mxu0 %v11353
      %11866 = vmatprep.subr.bf16.mxu0 %v11351
      %11867 = vmatpush1.bf16.msra.mxu0 %v11350
      %11868 = vmatprep.subr.bf16.mxu0 %v11348
      %11869 = vmatpush1.bf16.msra.mxu0 %v11347
      %11870 = vmatprep.subr.bf16.mxu0 %v11345
      %11871 = vmatpush1.bf16.msra.mxu0 %v11344
      %11872 = vmatprep.subr.bf16.mxu0 %v11342
      %11873 = vmatpush1.bf16.msra.mxu0 %v11341
      %11874 = vmatprep.subr.bf16.mxu0 %v11339
      %11875 = vmatpush1.bf16.msra.mxu0 %v11338
      %11876 = vmatprep.subr.bf16.mxu0 0
      %11877 = vmatpush2.bf16.msra.mxu0 0
      %11878 = vmatprep.subr.bf16.mxu0 0
      %11879 = vmatpush2.bf16.msra.mxu0 0
      %11880 = vmatprep.subr.bf16.mxu0 0
      %11881 = vmatpush2.bf16.msra.mxu0 0
      %11882 = vmatprep.subr.bf16.mxu0 0
      %11883 = vmatpush2.bf16.msra.mxu0 0
      %11884 = vmatprep.subr.bf16.mxu0 0
      %11885 = vmatpush2.bf16.msra.mxu0 0
      %11886 = vmatprep.subr.bf16.mxu0 0
      %11887 = vmatpush2.bf16.msra.mxu0 0
      %11888 = vmatprep.subr.bf16.mxu0 0
      %11889 = vmatpush2.bf16.msra.mxu0 0
      %11890 = vmatprep.subr.bf16.mxu0 0
      %11891 = vmatpush2.bf16.msra.mxu0 0
      %11892 = vmatprep.mubr.bf16.mxu0 0
      %11893 = vmatmul.mubr.bf16.gmra.mxu0 %v11859
      %v11894 = vpop.f32.mrf.mxu0
      %v11895 = vadd.f32 %v11246, %v11894
      %v11896 = vpop.f32.mrf.mxu0
      %v11897 = vadd.f32 %v11250, %v11896
      %v11898 = vpop.f32.mrf.mxu0
      %v11899 = vpop.f32.mrf.mxu0
      %11900 = vdwg.mxu0
      %11901 = vmatprep.subr.bf16.mxu0 0
      %11902 = vmatpush1.bf16.msra.mxu0 %v11361
      %11903 = vmatprep.subr.bf16.mxu0 0
      %11904 = vmatpush1.bf16.msra.mxu0 %v11358
      %11905 = vmatprep.subr.bf16.mxu0 0
      %11906 = vmatpush1.bf16.msra.mxu0 %v11355
      %11907 = vmatprep.subr.bf16.mxu0 0
      %11908 = vmatpush1.bf16.msra.mxu0 %v11352
      %11909 = vmatprep.subr.bf16.mxu0 0
      %11910 = vmatpush1.bf16.msra.mxu0 %v11349
      %11911 = vmatprep.subr.bf16.mxu0 0
      %11912 = vmatpush1.bf16.msra.mxu0 %v11346
      %11913 = vmatprep.subr.bf16.mxu0 0
      %11914 = vmatpush1.bf16.msra.mxu0 %v11343
      %11915 = vmatprep.subr.bf16.mxu0 0
      %11916 = vmatpush1.bf16.msra.mxu0 %v11340
      %11917 = vmatprep.subr.bf16.mxu0 0
      %11918 = vmatpush2.bf16.msra.mxu0 0
      %11919 = vmatprep.subr.bf16.mxu0 0
      %11920 = vmatpush2.bf16.msra.mxu0 0
      %11921 = vmatprep.subr.bf16.mxu0 0
      %11922 = vmatpush2.bf16.msra.mxu0 0
      %11923 = vmatprep.subr.bf16.mxu0 0
      %11924 = vmatpush2.bf16.msra.mxu0 0
      %11925 = vmatprep.subr.bf16.mxu0 0
      %11926 = vmatpush2.bf16.msra.mxu0 0
      %11927 = vmatprep.subr.bf16.mxu0 0
      %11928 = vmatpush2.bf16.msra.mxu0 0
      %11929 = vmatprep.subr.bf16.mxu0 0
      %11930 = vmatpush2.bf16.msra.mxu0 0
      %11931 = vmatprep.subr.bf16.mxu0 0
      %11932 = vmatpush2.bf16.msra.mxu0 0
      %11933 = vmatprep.mubr.bf16.mxu0 0
      %11934 = vmatmul.mubr.bf16.gmra.mxu0 %v11859
      %v11935 = vpop.f32.mrf.mxu0
      %v11936 = vadd.f32 %v11254, %v11935
      %v11937 = vpop.f32.mrf.mxu0
      %v11938 = vpop.f32.mrf.mxu0
      %v11939 = vpop.f32.mrf.mxu0
      %11940 = vdwg.mxu0
      %v11941 = vadd.f32 %v11856, %v11895
      %v11942 = vadd.f32 %v11857, %v11897
      %v11943 = vxor.u32 %v11941, 2147483648
      %v11944 = vxor.u32 %v11942, 2147483648
      %v11945 = vmul.f32 %v11943, 1.442695
      %v11946 = vpow.pop %v11945
      %v11947 = vmul.f32 %v11944, 1.442695
      %v11948 = vpow.pop %v11947
      %v11949 = vadd.f32 %v11946, 1.0
      %v11950 = vadd.f32 %v11948, 1.0
      %v11951 = vrcp.pop %v11949
      %v11952 = vmul.f32 1.0, %v11951
      %v11953 = vrcp.pop %v11950
      %v11954 = vmul.f32 1.0, %v11953
      %v11955 = vmul.f32 %v11952, %v11936
      %v11956 = vadd.f32 %v11858, %v11955
      %v11957 = vtanh.pop %v11956
      %v11958 = vsub.f32 1.0, %v11954
      %v11959 = vmul.f32 %v11958, %v11957
      %v11960 = vmul.f32 %v11954, %v11803
      %v11961 = vadd.f32 %v11959, %v11960
      %s11962 = sadd.s32 %s11185, 4
      %s11963 = sshra.s32 %s11962, 3
      %s11964 = sand.u32 %s11962, 7
      %s11965 = sshra.s32 %s11962, 3
      %s11966 = sand.u32 %s11962, 7
      %s11967 = smul.u32 %s11963, 3
      %s11968 = smul.u32 %s11967, 8
      %s11969 = sadd.s32 %s11968, %s11966
      %s11970 = scalar_lea.vmem [#allocation2], %s11969
      %v11971 = vld [vmem:[%s11970] ss:$8 sm:$0x7]
      %s11972 = sadd.s32 %s11185, 54
      %s11973 = sshra.s32 %s11972, 3
      %s11974 = sand.u32 %s11972, 7
      %s11975 = sshra.s32 %s11972, 3
      %s11976 = sand.u32 %s11972, 7
      %s11977 = smul.u32 %s11973, 3
      %s11978 = smul.u32 %s11977, 8
      %s11979 = sadd.s32 %s11978, %s11976
      %s11980 = scalar_lea.vmem [#allocation2], %s11979
      %v11981 = vld [vmem:[%s11980] ss:$8 sm:$0x7]
      %v11983 = vlaneseq
      %v11984 = vshrl.u32 %v11983, 7
      %v11985 = vsub.s32 0, %v11984
      %v11986 = vrot.slane %v11971, %v11985
      %v11987 = vlaneseq
      %v11988 = vshrl.u32 %v11987, 7
      %v11989 = vsub.s32 1, %v11988
      %v11990 = vrot.slane %v11971, %v11989
      %v11991 = vlaneseq
      %v11992 = vshrl.u32 %v11991, 7
      %v11993 = vsub.s32 2, %v11992
      %v11994 = vrot.slane %v11971, %v11993
      %v11999 = vlaneseq
      %v12000 = vshrl.u32 %v11999, 7
      %v12001 = vsub.s32 0, %v12000
      %v12002 = vrot.slane %v11981, %v12001
      %v12003 = vlaneseq
      %v12004 = vshrl.u32 %v12003, 7
      %v12005 = vsub.s32 1, %v12004
      %v12006 = vrot.slane %v11981, %v12005
      %v12007 = vlaneseq
      %v12008 = vshrl.u32 %v12007, 7
      %v12009 = vsub.s32 2, %v12008
      %v12010 = vrot.slane %v11981, %v12009
      %v12014 = vsel %vm11237, %v11986, %v12002
      %v12015 = vsel %vm11237, %v11990, %v12006
      %v12016 = vsel %vm11237, %v11994, %v12010
      %v12017 = vpack.c.bf16 %v11961, %v11961
      %12018 = vmatprep.subr.bf16.mxu0 %v11360
      %12019 = vmatpush1.bf16.msra.mxu0 %v11359
      %12020 = vmatprep.subr.bf16.mxu0 %v11357
      %12021 = vmatpush1.bf16.msra.mxu0 %v11356
      %12022 = vmatprep.subr.bf16.mxu0 %v11354
      %12023 = vmatpush1.bf16.msra.mxu0 %v11353
      %12024 = vmatprep.subr.bf16.mxu0 %v11351
      %12025 = vmatpush1.bf16.msra.mxu0 %v11350
      %12026 = vmatprep.subr.bf16.mxu0 %v11348
      %12027 = vmatpush1.bf16.msra.mxu0 %v11347
      %12028 = vmatprep.subr.bf16.mxu0 %v11345
      %12029 = vmatpush1.bf16.msra.mxu0 %v11344
      %12030 = vmatprep.subr.bf16.mxu0 %v11342
      %12031 = vmatpush1.bf16.msra.mxu0 %v11341
      %12032 = vmatprep.subr.bf16.mxu0 %v11339
      %12033 = vmatpush1.bf16.msra.mxu0 %v11338
      %12034 = vmatprep.subr.bf16.mxu0 0
      %12035 = vmatpush2.bf16.msra.mxu0 0
      %12036 = vmatprep.subr.bf16.mxu0 0
      %12037 = vmatpush2.bf16.msra.mxu0 0
      %12038 = vmatprep.subr.bf16.mxu0 0
      %12039 = vmatpush2.bf16.msra.mxu0 0
      %12040 = vmatprep.subr.bf16.mxu0 0
      %12041 = vmatpush2.bf16.msra.mxu0 0
      %12042 = vmatprep.subr.bf16.mxu0 0
      %12043 = vmatpush2.bf16.msra.mxu0 0
      %12044 = vmatprep.subr.bf16.mxu0 0
      %12045 = vmatpush2.bf16.msra.mxu0 0
      %12046 = vmatprep.subr.bf16.mxu0 0
      %12047 = vmatpush2.bf16.msra.mxu0 0
      %12048 = vmatprep.subr.bf16.mxu0 0
      %12049 = vmatpush2.bf16.msra.mxu0 0
      %12050 = vmatprep.mubr.bf16.mxu0 0
      %12051 = vmatmul.mubr.bf16.gmra.mxu0 %v12017
      %v12052 = vpop.f32.mrf.mxu0
      %v12053 = vadd.f32 %v11246, %v12052
      %v12054 = vpop.f32.mrf.mxu0
      %v12055 = vadd.f32 %v11250, %v12054
      %v12056 = vpop.f32.mrf.mxu0
      %v12057 = vpop.f32.mrf.mxu0
      %12058 = vdwg.mxu0
      %12059 = vmatprep.subr.bf16.mxu0 0
      %12060 = vmatpush1.bf16.msra.mxu0 %v11361
      %12061 = vmatprep.subr.bf16.mxu0 0
      %12062 = vmatpush1.bf16.msra.mxu0 %v11358
      %12063 = vmatprep.subr.bf16.mxu0 0
      %12064 = vmatpush1.bf16.msra.mxu0 %v11355
      %12065 = vmatprep.subr.bf16.mxu0 0
      %12066 = vmatpush1.bf16.msra.mxu0 %v11352
      %12067 = vmatprep.subr.bf16.mxu0 0
      %12068 = vmatpush1.bf16.msra.mxu0 %v11349
      %12069 = vmatprep.subr.bf16.mxu0 0
      %12070 = vmatpush1.bf16.msra.mxu0 %v11346
      %12071 = vmatprep.subr.bf16.mxu0 0
      %12072 = vmatpush1.bf16.msra.mxu0 %v11343
      %12073 = vmatprep.subr.bf16.mxu0 0
      %12074 = vmatpush1.bf16.msra.mxu0 %v11340
      %12075 = vmatprep.subr.bf16.mxu0 0
      %12076 = vmatpush2.bf16.msra.mxu0 0
      %12077 = vmatprep.subr.bf16.mxu0 0
      %12078 = vmatpush2.bf16.msra.mxu0 0
      %12079 = vmatprep.subr.bf16.mxu0 0
      %12080 = vmatpush2.bf16.msra.mxu0 0
      %12081 = vmatprep.subr.bf16.mxu0 0
      %12082 = vmatpush2.bf16.msra.mxu0 0
      %12083 = vmatprep.subr.bf16.mxu0 0
      %12084 = vmatpush2.bf16.msra.mxu0 0
      %12085 = vmatprep.subr.bf16.mxu0 0
      %12086 = vmatpush2.bf16.msra.mxu0 0
      %12087 = vmatprep.subr.bf16.mxu0 0
      %12088 = vmatpush2.bf16.msra.mxu0 0
      %12089 = vmatprep.subr.bf16.mxu0 0
      %12090 = vmatpush2.bf16.msra.mxu0 0
      %12091 = vmatprep.mubr.bf16.mxu0 0
      %12092 = vmatmul.mubr.bf16.gmra.mxu0 %v12017
      %v12093 = vpop.f32.mrf.mxu0
      %v12094 = vadd.f32 %v11254, %v12093
      %v12095 = vpop.f32.mrf.mxu0
      %v12096 = vpop.f32.mrf.mxu0
      %v12097 = vpop.f32.mrf.mxu0
      %12098 = vdwg.mxu0
      %v12099 = vadd.f32 %v12014, %v12053
      %v12100 = vadd.f32 %v12015, %v12055
      %v12101 = vxor.u32 %v12099, 2147483648
      %v12102 = vxor.u32 %v12100, 2147483648
      %v12103 = vmul.f32 %v12101, 1.442695
      %v12104 = vpow.pop %v12103
      %v12105 = vmul.f32 %v12102, 1.442695
      %v12106 = vpow.pop %v12105
      %v12107 = vadd.f32 %v12104, 1.0
      %v12108 = vadd.f32 %v12106, 1.0
      %v12109 = vrcp.pop %v12107
      %v12110 = vmul.f32 1.0, %v12109
      %v12111 = vrcp.pop %v12108
      %v12112 = vmul.f32 1.0, %v12111
      %v12113 = vmul.f32 %v12110, %v12094
      %v12114 = vadd.f32 %v12016, %v12113
      %v12115 = vtanh.pop %v12114
      %v12116 = vsub.f32 1.0, %v12112
      %v12117 = vmul.f32 %v12116, %v12115
      %v12118 = vmul.f32 %v12112, %v11961
      %v12119 = vadd.f32 %v12117, %v12118
    $region86: #{cgdnn_forward.1} parent=1 // loop_footer
      %s11183 = sadd.s32 1, %s11179
    $region87: #{cgdnn_forward.1} parent=1 // loop_footer_branch
      %11178 = sbr.rel target = $region83
    $region88: #{cgdnn_forward.1} parent=1 // loop_exit
      _
    %v12120 = vld [vmem:[#allocation9] sm:$0xff]
    %v12121 = vld [vmem:[#allocation9 + $0x8] sm:$0xff]
    %v12122 = vld [vmem:[#allocation9 + $0x10] sm:$0xff]
    %v12123 = vld [vmem:[#allocation9 + $0x18] sm:$0xff]
    %v12124 = vld [vmem:[#allocation9 + $0x20] sm:$0xff]
    %v12125 = vld [vmem:[#allocation9 + $0x28] sm:$0xff]
    %v12126 = vld [vmem:[#allocation9 + $0x30] sm:$0xff]
    %v12127 = vld [vmem:[#allocation9 + $0x38] sm:$0xff]
    %v12128 = vld [vmem:[#allocation9 + $0x40] sm:$0xff]
    %v12129 = vld [vmem:[#allocation9 + $0x48] sm:$0xff]
    %v12130 = vld [vmem:[#allocation9 + $0x50] sm:$0xff]
    %v12131 = vld [vmem:[#allocation9 + $0x58] sm:$0xff]
    %v12132 = vld [vmem:[#allocation9 + $0x60] sm:$0xff]
    %v12133 = vld [vmem:[#allocation9 + $0x68] sm:$0xff]
    %v12134 = vld [vmem:[#allocation9 + $0x70] sm:$0xff]
    %v12135 = vld [vmem:[#allocation9 + $0x78] sm:$0xff]
    %v12136 = vld [vmem:[#allocation9 + $0x80] sm:$0xff]
    %v12137 = vld [vmem:[#allocation9 + $0x88] sm:$0xff]
    %v12138 = vld [vmem:[#allocation9 + $0x90] sm:$0xff]
    %v12139 = vld [vmem:[#allocation9 + $0x98] sm:$0xff]
    %v12140 = vld [vmem:[#allocation9 + $0xa0] sm:$0xff]
    %v12141 = vld [vmem:[#allocation9 + $0xa8] sm:$0xff]
    %v12142 = vld [vmem:[#allocation9 + $0xb0] sm:$0xff]
    %v12143 = vld [vmem:[#allocation9 + $0xb8] sm:$0xff]
    %v12144 = vld [vmem:[#allocation9 + $0xc0] sm:$0xff]
    %v12145 = vld [vmem:[#allocation9 + $0xc8] sm:$0xff]
    %v12146 = vld [vmem:[#allocation9 + $0xd0] sm:$0xff]
    %v12147 = vld [vmem:[#allocation9 + $0xd8] sm:$0xff]
    %v12148 = vld [vmem:[#allocation9 + $0xe0] sm:$0xff]
    %v12149 = vld [vmem:[#allocation9 + $0xe8] sm:$0xff]
    %v12150 = vld [vmem:[#allocation9 + $0xf0] sm:$0xff]
    %v12151 = vld [vmem:[#allocation9 + $0xf8] sm:$0xff]
    %v12152 = vld [vmem:[%s12] sm:$0x3]
    %v12154 = vlaneseq
    %v12155 = vshrl.u32 %v12154, 7
    %v12156 = vsub.s32 0, %v12155
    %v12157 = vrot.slane %v12152, %v12156
    %v12158 = vlaneseq
    %v12159 = vshrl.u32 %v12158, 7
    %v12160 = vsub.s32 1, %v12159
    %v12161 = vrot.slane %v12152, %v12160
    %12164 = vmatprep.subr.mxu0 %v12151
    %12165 = vmatpush1.msra.mxu0 %v12150
    %12166 = vmatprep.subr.mxu0 %v12149
    %12167 = vmatpush1.msra.mxu0 %v12148
    %12168 = vmatprep.subr.mxu0 %v12147
    %12169 = vmatpush1.msra.mxu0 %v12146
    %12170 = vmatprep.subr.mxu0 %v12145
    %12171 = vmatpush1.msra.mxu0 %v12144
    %12172 = vmatprep.subr.mxu0 %v12143
    %12173 = vmatpush1.msra.mxu0 %v12142
    %12174 = vmatprep.subr.mxu0 %v12141
    %12175 = vmatpush1.msra.mxu0 %v12140
    %12176 = vmatprep.subr.mxu0 %v12139
    %12177 = vmatpush1.msra.mxu0 %v12138
    %12178 = vmatprep.subr.mxu0 %v12137
    %12179 = vmatpush1.msra.mxu0 %v12136
    %12180 = vmatprep.subr.mxu0 %v12135
    %12181 = vmatpush1.msra.mxu0 %v12134
    %12182 = vmatprep.subr.mxu0 %v12133
    %12183 = vmatpush1.msra.mxu0 %v12132
    %12184 = vmatprep.subr.mxu0 %v12131
    %12185 = vmatpush1.msra.mxu0 %v12130
    %12186 = vmatprep.subr.mxu0 %v12129
    %12187 = vmatpush1.msra.mxu0 %v12128
    %12188 = vmatprep.subr.mxu0 %v12127
    %12189 = vmatpush1.msra.mxu0 %v12126
    %12190 = vmatprep.subr.mxu0 %v12125
    %12191 = vmatpush1.msra.mxu0 %v12124
    %12192 = vmatprep.subr.mxu0 %v12123
    %12193 = vmatpush1.msra.mxu0 %v12122
    %12194 = vmatprep.subr.mxu0 %v12121
    %12195 = vmatpush1.msra.mxu0 %v12120
    %12196 = vmatprep.subr.mxu0 0.0
    %12197 = vmatpush2.msra.mxu0 0.0
    %12198 = vmatprep.subr.mxu0 0.0
    %12199 = vmatpush2.msra.mxu0 0.0
    %12200 = vmatprep.subr.mxu0 0.0
    %12201 = vmatpush2.msra.mxu0 0.0
    %12202 = vmatprep.subr.mxu0 0.0
    %12203 = vmatpush2.msra.mxu0 0.0
    %12204 = vmatprep.subr.mxu0 0.0
    %12205 = vmatpush2.msra.mxu0 0.0
    %12206 = vmatprep.subr.mxu0 0.0
    %12207 = vmatpush2.msra.mxu0 0.0
    %12208 = vmatprep.subr.mxu0 0.0
    %12209 = vmatpush2.msra.mxu0 0.0
    %12210 = vmatprep.subr.mxu0 0.0
    %12211 = vmatpush2.msra.mxu0 0.0
    %12212 = vmatprep.subr.mxu0 0.0
    %12213 = vmatpush2.msra.mxu0 0.0
    %12214 = vmatprep.subr.mxu0 0.0
    %12215 = vmatpush2.msra.mxu0 0.0
    %12216 = vmatprep.subr.mxu0 0.0
    %12217 = vmatpush2.msra.mxu0 0.0
    %12218 = vmatprep.subr.mxu0 0.0
    %12219 = vmatpush2.msra.mxu0 0.0
    %12220 = vmatprep.subr.mxu0 0.0
    %12221 = vmatpush2.msra.mxu0 0.0
    %12222 = vmatprep.subr.mxu0 0.0
    %12223 = vmatpush2.msra.mxu0 0.0
    %12224 = vmatprep.subr.mxu0 0.0
    %12225 = vmatpush2.msra.mxu0 0.0
    %12226 = vmatprep.subr.mxu0 0.0
    %12227 = vmatpush2.msra.mxu0 0.0
    %12228 = vmatprep.mubr.f32.mxu0 0.0
    %12229 = vmatmul.mubr.f32.gmra.mxu0 %v11184
    %v12230 = vpop.f32.mrf.mxu0
    %v12231 = vadd.f32 %v12157, %v12230
    %v12232 = vpop.f32.mrf.mxu0
    %v12233 = vadd.f32 %v12161, %v12232
    %12234 = vdwg.mxu0
    %v12235 = vmax.f32 %v12231, 0.0
    %v12236 = vmax.f32 %v12233, 0.0
    %v12237 = vld [vmem:[%s13] sm:$0xff]
    %v12238 = vld [vmem:[%s13 + $0x8] sm:$0xff]
    %v12239 = vld [vmem:[%s13 + $0x10] sm:$0xff]
    %v12240 = vld [vmem:[%s13 + $0x18] sm:$0xff]
    %v12241 = vld [vmem:[%s13 + $0x20] sm:$0xff]
    %v12242 = vld [vmem:[%s13 + $0x28] sm:$0xff]
    %v12243 = vld [vmem:[%s13 + $0x30] sm:$0xff]
    %v12244 = vld [vmem:[%s13 + $0x38] sm:$0xff]
    %v12245 = vld [vmem:[%s13 + $0x40] sm:$0xff]
    %v12246 = vld [vmem:[%s13 + $0x48] sm:$0xff]
    %v12247 = vld [vmem:[%s13 + $0x50] sm:$0xff]
    %v12248 = vld [vmem:[%s13 + $0x58] sm:$0xff]
    %v12249 = vld [vmem:[%s13 + $0x60] sm:$0xff]
    %v12250 = vld [vmem:[%s13 + $0x68] sm:$0xff]
    %v12251 = vld [vmem:[%s13 + $0x70] sm:$0xff]
    %v12252 = vld [vmem:[%s13 + $0x78] sm:$0xff]
    %v12253 = vld [vmem:[%s13 + $0x80] sm:$0xff]
    %v12254 = vld [vmem:[%s13 + $0x88] sm:$0xff]
    %v12255 = vld [vmem:[%s13 + $0x90] sm:$0xff]
    %v12256 = vld [vmem:[%s13 + $0x98] sm:$0xff]
    %v12257 = vld [vmem:[%s13 + $0xa0] sm:$0xff]
    %v12258 = vld [vmem:[%s13 + $0xa8] sm:$0xff]
    %v12259 = vld [vmem:[%s13 + $0xb0] sm:$0xff]
    %v12260 = vld [vmem:[%s13 + $0xb8] sm:$0xff]
    %v12261 = vld [vmem:[%s13 + $0xc0] sm:$0xff]
    %v12262 = vld [vmem:[%s13 + $0xc8] sm:$0xff]
    %v12263 = vld [vmem:[%s13 + $0xd0] sm:$0xff]
    %v12264 = vld [vmem:[%s13 + $0xd8] sm:$0xff]
    %v12265 = vld [vmem:[%s13 + $0xe0] sm:$0xff]
    %v12266 = vld [vmem:[%s13 + $0xe8] sm:$0xff]
    %v12267 = vld [vmem:[%s13 + $0xf0] sm:$0xff]
    %v12268 = vld [vmem:[%s13 + $0xf8] sm:$0xff]
    %v12269 = vld [vmem:[#allocation11] sm:$0x1]
    %v12271 = vlaneseq
    %v12272 = vshrl.u32 %v12271, 7
    %v12273 = vsub.s32 0, %v12272
    %v12274 = vrot.slane %v12269, %v12273
    %12276 = vmatprep.subr.mxu0 0.0
    %12277 = vmatpush1.msra.mxu0 %v12252
    %12278 = vmatprep.subr.mxu0 0.0
    %12279 = vmatpush1.msra.mxu0 %v12251
    %12280 = vmatprep.subr.mxu0 0.0
    %12281 = vmatpush1.msra.mxu0 %v12250
    %12282 = vmatprep.subr.mxu0 0.0
    %12283 = vmatpush1.msra.mxu0 %v12249
    %12284 = vmatprep.subr.mxu0 0.0
    %12285 = vmatpush1.msra.mxu0 %v12248
    %12286 = vmatprep.subr.mxu0 0.0
    %12287 = vmatpush1.msra.mxu0 %v12247
    %12288 = vmatprep.subr.mxu0 0.0
    %12289 = vmatpush1.msra.mxu0 %v12246
    %12290 = vmatprep.subr.mxu0 0.0
    %12291 = vmatpush1.msra.mxu0 %v12245
    %12292 = vmatprep.subr.mxu0 0.0
    %12293 = vmatpush1.msra.mxu0 %v12244
    %12294 = vmatprep.subr.mxu0 0.0
    %12295 = vmatpush1.msra.mxu0 %v12243
    %12296 = vmatprep.subr.mxu0 0.0
    %12297 = vmatpush1.msra.mxu0 %v12242
    %12298 = vmatprep.subr.mxu0 0.0
    %12299 = vmatpush1.msra.mxu0 %v12241
    %12300 = vmatprep.subr.mxu0 0.0
    %12301 = vmatpush1.msra.mxu0 %v12240
    %12302 = vmatprep.subr.mxu0 0.0
    %12303 = vmatpush1.msra.mxu0 %v12239
    %12304 = vmatprep.subr.mxu0 0.0
    %12305 = vmatpush1.msra.mxu0 %v12238
    %12306 = vmatprep.subr.mxu0 0.0
    %12307 = vmatpush1.msra.mxu0 %v12237
    %12308 = vmatprep.subr.mxu0 0.0
    %12309 = vmatpush2.msra.mxu0 %v12268
    %12310 = vmatprep.subr.mxu0 0.0
    %12311 = vmatpush2.msra.mxu0 %v12267
    %12312 = vmatprep.subr.mxu0 0.0
    %12313 = vmatpush2.msra.mxu0 %v12266
    %12314 = vmatprep.subr.mxu0 0.0
    %12315 = vmatpush2.msra.mxu0 %v12265
    %12316 = vmatprep.subr.mxu0 0.0
    %12317 = vmatpush2.msra.mxu0 %v12264
    %12318 = vmatprep.subr.mxu0 0.0
    %12319 = vmatpush2.msra.mxu0 %v12263
    %12320 = vmatprep.subr.mxu0 0.0
    %12321 = vmatpush2.msra.mxu0 %v12262
    %12322 = vmatprep.subr.mxu0 0.0
    %12323 = vmatpush2.msra.mxu0 %v12261
    %12324 = vmatprep.subr.mxu0 0.0
    %12325 = vmatpush2.msra.mxu0 %v12260
    %12326 = vmatprep.subr.mxu0 0.0
    %12327 = vmatpush2.msra.mxu0 %v12259
    %12328 = vmatprep.subr.mxu0 0.0
    %12329 = vmatpush2.msra.mxu0 %v12258
    %12330 = vmatprep.subr.mxu0 0.0
    %12331 = vmatpush2.msra.mxu0 %v12257
    %12332 = vmatprep.subr.mxu0 0.0
    %12333 = vmatpush2.msra.mxu0 %v12256
    %12334 = vmatprep.subr.mxu0 0.0
    %12335 = vmatpush2.msra.mxu0 %v12255
    %12336 = vmatprep.subr.mxu0 0.0
    %12337 = vmatpush2.msra.mxu0 %v12254
    %12338 = vmatprep.subr.mxu0 0.0
    %12339 = vmatpush2.msra.mxu0 %v12253
    %12340 = vmatprep.mubr.f32.mxu0 %v12236
    %12341 = vmatmul.mubr.f32.gmra.mxu0 %v12235
    %v12342 = vpop.f32.mrf.mxu0
    %v12343 = vadd.f32 %v12274, %v12342
    %v12344 = vpop.f32.mrf.mxu0
    %12345 = vdwg.mxu0
    %vm12346 = vcmask 82944
    %12347 = vst.msk [vmem:[#allocation12] sm:$0x3] %vm12346, %v12343
    // Predicated region
    $region89: #{cgdnn_forward.1} parent=1 // pred_check
      _
    $region90: #{cgdnn_forward.1} parent=1 // pred_check_branch
      %12349 = sbr.rel (0) target = $region92
    $region91: #{cgdnn_forward.1} parent=1 // pred_region
      %s12351 = ssub.s32 32, 32
      %12352 = vsyncadd [#allocation5], %s12351
      %s12354 = sshll.u32 [#allocation12], 4
      %s12355 = int_to_ptr.vmem [resolvable:$true] %s12354
      %12357 = dma.vmem_to_hbm [thread:$0]  %s12355, 32, %s15, [#allocation5]
    $region92: #{cgdnn_forward.1} parent=1 // pred_fallthru
      _
    // Predicated region
    $region93: #{cgdnn_forward.1} parent=1 // pred_check
      _
    $region94: #{cgdnn_forward.1} parent=1 // pred_check_branch
      %12359 = sbr.rel (0) target = $region96
    $region95: #{cgdnn_forward.1} parent=1 // pred_region
      %12360 = dma.done [#allocation5], 32
    $region96: #{cgdnn_forward.1} parent=1 // pred_fallthru
      _
    %12361 = vsyncpa [#allocation4], 1
    %12362 = vsyncpa [#allocation7], 1
    %12363 = vsyncpa [#allocation10], 1
    %12364 = vsyncpa [#allocation5], 1

</llo_original>
